<compile_context>
chip_gen: v6e
topology: v6e:2x2x1
jax: 0.10.0
libtpu: 0.0.40
codegen_flags: <defaults>
</compile_context>

<pallas_src>
import functools

import jax
import jax.numpy as jnp
from jax import lax
from jax.experimental import pallas as pl
from jax.experimental.pallas import tpu as pltpu

_EPS = 1e-06
_TC = 8   # timesteps fused per grid step; lower for very large N, raise for long T


def _alloc_seq_kernel(flag_ref,                         # [1] int32 (SMEM scalar prefetch)
                      w_ref, r_ref, g_ref, pu_ref,      # inputs
                      alloc_ref, phi_ref, usages_ref,   # outputs
                      *, tc, n_read_heads):
    t = pl.program_id(0)
    R = n_read_heads

    # Bring the carried usage state into the VMEM-resident output block once.
    @pl.when(t == 0)
    def _():
        usages_ref[...] = pu_ref[...]

    u_state = usages_ref[...]                           # [B, N] resident state
    B, N = u_state.shape

    # Batch/time-invariant strict-lower-triangular tie-break mask, hoisted out of
    # the per-timestep loop (built once per Tc steps instead of once per step).
    j_idx = lax.broadcasted_iota(jnp.int32, (1, N, N), 1)
    k_idx = lax.broadcasted_iota(jnp.int32, (1, N, N), 2)
    tie_lt = j_idx < k_idx                              # [1, N, N]

    # "First step of a brand-new sequence" only applies at global step 0.
    seq_start = jnp.logical_and(t == 0, flag_ref[0] != 0)
    seq_keep = 1.0 - seq_start.astype(jnp.float32)

    # Fully-unrolled inner time loop (tc is small and static).
    for tt in range(tc):
        w = w_ref[tt].astype(jnp.float32)               # [B, N]
        g = g_ref[tt].astype(jnp.float32)               # [B, R]
        r_flat = r_ref[tt].astype(jnp.float32)          # [B, R*N] lane-dense reads slab

        # phi = prod_r (1 - g[:, r] * reads[:, r, :]) : unrolled over the tiny
        # static R with static lane-dim slices (no sublane-padded [B, R, N] tile).
        phi = 1.0 - g[:, 0:1] * r_flat[:, 0:N]
        for rr in range(1, R):
            phi = phi * (1.0 - g[:, rr:rr + 1] * r_flat[:, rr * N:(rr + 1) * N])

        # torch: usages = addcmul(usages, write, 1 - usages) * phi ; skipped (:=0)
        # on the first step of a fresh sequence.
        updated = (u_state + w * (1.0 - u_state)) * phi
        if tt == 0:
            u_state = updated * seq_keep
        else:
            u_state = updated

        # ---- allocation scores (== sort / cumprod / scatter of the reference) ----
        u = u_state * (1.0 - _EPS) + _EPS               # [B, N]
        uj = u[:, :, None]                              # [B, N, 1]
        uk = u[:, None, :]                              # [B, 1, N]
        # j precedes k in a stable ascending sort of u (ties broken by index).
        precedes = (uj < uk) | ((uj == uk) & tie_lt)    # [B, N, N]
        # Exclusive prefix product in sorted order via a masked log-sum:
        #   alloc[k] = (1 - u[k]) * exp( sum_{j precedes k} log u[j] )
        logu = jnp.log(u)                               # [B, N]  (EUP)
        masked = jnp.where(precedes, logu[:, :, None], 0.0)   # [B, N, N]
        cum = jnp.exp(jnp.sum(masked, axis=1))          # [B, N]
        alloc = (1.0 - u) * cum

        alloc_ref[tt] = alloc
        phi_ref[tt] = phi

    usages_ref[...] = u_state                           # carry state to the next block


def _pick_vmem_limit(tc, b, r, n):
    """Explicit scoped-VMEM budget: ~2x the double-buffered block footprint plus
    headroom for the compiler's [B, N, N] mask temporaries.  Clamped to a range
    that is safe on all generations (v5e/v6e 128 MiB phys, v7x 64 MiB phys) and
    never below the v6e/v7x default scoped limit."""
    f32 = 4
    b_sub = ((b + 7) // 8) * 8                          # sublane-padded batch rows
    blocks = f32 * tc * b_sub * (3 * n + r * n + 128)   # writes+alloc+phi+reads+gates
    state = 2 * f32 * b_sub * n
    temps = 10 * f32 * b * n * n                        # live [B, N, N] intermediates
    est = 2 * blocks + state + temps + (8 << 20)
    return int(min(max(est, 32 << 20), 48 << 20))


@jax.jit
def allocation_forward_sequence(flag, prev_writes, prev_reads, free_gates, prev_usages):
    """Runs T DNC allocation steps in a single pallas_call (time-blocked grid)."""
    T, B, R, N = prev_reads.shape
    tc = min(_TC, T)
    n_blocks = pl.cdiv(T, tc)
    t_pad = n_blocks * tc

    if t_pad != T:
        # Zero-padded trailing steps are an identity for the usage recurrence
        # (phi = 1, write = 0), so padding keeps the carried state exact.
        dt = t_pad - T
        prev_writes = jnp.pad(prev_writes, ((0, dt), (0, 0), (0, 0)))
        prev_reads = jnp.pad(prev_reads, ((0, dt), (0, 0), (0, 0), (0, 0)))
        free_gates = jnp.pad(free_gates, ((0, dt), (0, 0), (0, 0)))

    # Lane-dense reads layout [T, B, R*N] (free contiguous reshape): avoids the
    # R(=4) < 8 sublane padding a (tc, B, R, N) tile would pay on the largest input.
    reads2d = prev_reads.reshape(t_pad, B, R * N)

    kernel = functools.partial(_alloc_seq_kernel, tc=tc, n_read_heads=R)

    grid_spec = pltpu.PrefetchScalarGridSpec(
        num_scalar_prefetch=1,                  # `flag` lands in SMEM
        grid=(n_blocks,),
        in_specs=[
            pl.BlockSpec((tc, B, N), lambda t, flag: (t, 0, 0)),        # writes
            pl.BlockSpec((tc, B, R * N), lambda t, flag: (t, 0, 0)),    # reads (lane-dense)
            pl.BlockSpec((tc, B, R), lambda t, flag: (t, 0, 0)),        # gates
            pl.BlockSpec((B, N), lambda t, flag: (0, 0)),               # prev usages (resident)
        ],
        out_specs=(
            pl.BlockSpec((tc, B, N), lambda t, flag: (t, 0, 0)),        # alloc
            pl.BlockSpec((tc, B, N), lambda t, flag: (t, 0, 0)),        # phi
            pl.BlockSpec((B, N), lambda t, flag: (0, 0)),               # final usages (resident)
        ),
    )

    alloc, phi, usages = pl.pallas_call(
        kernel,
        out_shape=(
            jax.ShapeDtypeStruct((t_pad, B, N), jnp.float32),   # allocation scores per step
            jax.ShapeDtypeStruct((t_pad, B, N), jnp.float32),   # phi per step
            jax.ShapeDtypeStruct((B, N), jnp.float32),          # final usages (carried state)
        ),
        grid_spec=grid_spec,
        # prev_usages (flat input index 4, counting the scalar-prefetch flag as 0)
        # aliases the final-usages output (output 2): state carries in place.
        input_output_aliases={4: 2},
        compiler_params=pltpu.CompilerParams(
            dimension_semantics=("arbitrary",),        # T carries the recurrence -> sequential
            vmem_limit_bytes=_pick_vmem_limit(tc, B, R, N),
        ),
    )(flag, prev_writes, reads2d, free_gates, prev_usages)

    return alloc[:T], phi[:T], usages


class AllocationManager:
    """Stateful wrapper mirroring the torch module (usages carried across calls)."""

    def __init__(self):
        self.usages = None

    def new_sequence(self):
        self.usages = None

    def forward_sequence(self, prev_writes, prev_reads, free_gates):
        """Fused multi-timestep forward: inputs are [T, B, ...]."""
        prev_writes = jnp.asarray(prev_writes, jnp.float32)
        prev_reads = jnp.asarray(prev_reads, jnp.float32)
        free_gates = jnp.asarray(free_gates, jnp.float32)
        T, B, R, N = prev_reads.shape
        if self.usages is None:
            flag = jnp.ones((1,), jnp.int32)
            prev_u = jnp.zeros((B, N), jnp.float32)
        else:
            flag = jnp.zeros((1,), jnp.int32)
            prev_u = self.usages
        alloc, phi, usages = allocation_forward_sequence(
            flag, prev_writes, prev_reads, free_gates, prev_u)
        self.usages = usages
        return alloc, phi

    def __call__(self, prev_write, prev_reads, free_gates):
        """Single step (mirrors the torch forward); same fused kernel with T=1."""
        alloc, phi = self.forward_sequence(
            prev_write[None], prev_reads[None], free_gates[None])
        return alloc[0], phi[0]


# ----------------------------- pure-JAX reference -----------------------------
def _reference_step(prev_write, prev_reads, free_gates, prev_usages, first_step):
    """Sort/cumprod/scatter reference mirroring the torch code for one step."""
    phi = jnp.prod(1.0 - free_gates[:, :, None] * prev_reads, axis=1)
    if first_step:
        usages = jnp.zeros_like(prev_write)
    else:
        usages = (prev_usages + prev_write * (1.0 - prev_usages)) * phi
    u = usages * (1.0 - _EPS) + _EPS
    order = jnp.argsort(u, axis=-1)                      # stable
    sorted_u = jnp.take_along_axis(u, order, axis=-1)
    uprod = jnp.cumprod(sorted_u, axis=-1)
    omu = 1.0 - sorted_u
    scores = jnp.concatenate([omu[..., :1], omu[..., 1:] * uprod[..., :-1]], axis=-1)
    inv = jnp.argsort(order, axis=-1)                    # scatter back
    alloc = jnp.take_along_axis(scores, inv, axis=-1)
    return alloc, phi, usages


def _reference_sequence(prev_writes, prev_reads, free_gates):
    T = prev_writes.shape[0]
    usages = None
    allocs, phis = [], []
    for t in range(T):
        alloc, phi, usages = _reference_step(
            prev_writes[t], prev_reads[t], free_gates[t], usages, usages is None)
        allocs.append(alloc)
        phis.append(phi)
    return jnp.stack(allocs), jnp.stack(phis), usages


if __name__ == "__main__":
    key = jax.random.PRNGKey(0)
    T1, T2, B, R, N = 12, 5, 4, 4, 128     # T1=12 exercises T padding + a 2-block grid
    keys = jax.random.split(key, 9)

    w_seq = jax.nn.softmax(jax.random.normal(keys[0], (T1, B, N)), axis=-1).astype(jnp.float32)
    r_seq = jax.nn.softmax(jax.random.normal(keys[1], (T1, B, R, N)), axis=-1).astype(jnp.float32)
    g_seq = jax.nn.sigmoid(jax.random.normal(keys[2], (T1, B, R))).astype(jnp.float32)

    w2 = jax.nn.softmax(jax.random.normal(keys[3], (T2, B, N)), axis=-1).astype(jnp.float32)
    r2 = jax.nn.softmax(jax.random.normal(keys[4], (T2, B, R, N)), axis=-1).astype(jnp.float32)
    g2 = jax.nn.sigmoid(jax.random.normal(keys[5], (T2, B, R))).astype(jnp.float32)

    w1 = jax.nn.softmax(jax.random.normal(keys[6], (B, N)), axis=-1).astype(jnp.float32)
    r1 = jax.nn.softmax(jax.random.normal(keys[7], (B, R, N)), axis=-1).astype(jnp.float32)
    g1 = jax.nn.sigmoid(jax.random.normal(keys[8], (B, R))).astype(jnp.float32)

    mgr = AllocationManager()
    alloc_a, phi_a = mgr.forward_sequence(w_seq, r_seq, g_seq)   # new sequence, T=12 (padded to 16)
    alloc_b, phi_b = mgr.forward_sequence(w2, r2, g2)            # continuation, T=5
    alloc_c, phi_c = mgr(w1, r1, g1)                             # single-step continuation
    jax.block_until_ready((alloc_a, phi_a, alloc_b, phi_b, alloc_c, phi_c, mgr.usages))

    # Pure-JAX reference over the whole concatenated sequence.
    w_all = jnp.concatenate([w_seq, w2, w1[None]], axis=0)
    r_all = jnp.concatenate([r_seq, r2, r1[None]], axis=0)
    g_all = jnp.concatenate([g_seq, g2, g1[None]], axis=0)
    ref_alloc, ref_phi, ref_usages = _reference_sequence(w_all, r_all, g_all)

    got_alloc = jnp.concatenate([alloc_a, alloc_b, alloc_c[None]], axis=0)
    got_phi = jnp.concatenate([phi_a, phi_b, phi_c[None]], axis=0)

    assert got_alloc.shape == (T1 + T2 + 1, B, N) and got_phi.shape == (T1 + T2 + 1, B, N)
    assert jnp.allclose(got_phi, ref_phi, rtol=1e-4, atol=1e-5)
    # alloc compares exp(sum(log u)) against the reference cumprod -> slightly looser.
    assert jnp.allclose(got_alloc, ref_alloc, rtol=2e-4, atol=2e-5)
    assert jnp.allclose(mgr.usages, ref_usages, rtol=1e-4, atol=1e-5)

    # new_sequence() resets the carried state: the next step must ignore it.
    mgr.new_sequence()
    alloc_d, phi_d = mgr(w1, r1, g1)
    jax.block_until_ready((alloc_d, phi_d))
    rd_alloc, rd_phi, _ = _reference_step(w1, r1, g1, None, True)
    assert jnp.allclose(phi_d, rd_phi, rtol=1e-4, atol=1e-5)
    assert jnp.allclose(alloc_d, rd_alloc, rtol=2e-4, atol=2e-5)

    print("KERNEL_OK")
</pallas_src>

<mosaic_0001>
module attributes {stable_mosaic.version = 11 : i64} {
  func.func @_alloc_seq_kernel(%arg0: i32, %arg1: memref<1xi32, #tpu.memory_space<smem>>, %arg2: memref<8x4x128xf32, #tpu.memory_space<vmem>>, %arg3: memref<8x4x512xf32, #tpu.memory_space<vmem>>, %arg4: memref<8x4x4xf32, #tpu.memory_space<vmem>>, %arg5: memref<4x128xf32, #tpu.memory_space<vmem>>, %arg6: memref<8x4x128xf32, #tpu.memory_space<vmem>>, %arg7: memref<8x4x128xf32, #tpu.memory_space<vmem>>, %arg8: memref<4x128xf32, #tpu.memory_space<vmem>>) attributes {dimension_semantics = [#tpu.dimension_semantics<arbitrary>], iteration_bounds = array<i64: 2>, scalar_prefetch = 1 : i64, scratch_operands = 0 : i64, tpu.core_type = #tpu.core_type<tc>, window_params = [{transform_indices = @transform_0, window_bounds = array<i64: 8, 4, 128>}, {transform_indices = @transform_1, window_bounds = array<i64: 8, 4, 512>}, {transform_indices = @transform_2, window_bounds = array<i64: 8, 4, 4>}, {pipeline_mode = #tpu.pipeline_mode<synchronous>, transform_indices = @transform_3, window_bounds = array<i64: 4, 128>}, {transform_indices = @transform_4, window_bounds = array<i64: 8, 4, 128>}, {transform_indices = @transform_5, window_bounds = array<i64: 8, 4, 128>}, {pipeline_mode = #tpu.pipeline_mode<synchronous>, transform_indices = @transform_6, window_bounds = array<i64: 4, 128>}]} {
    %c0_i32 = arith.constant 0 : i32
    %0 = arith.cmpi eq, %arg0, %c0_i32 : i32
    %1 = arith.extui %0 : i1 to i32
    %c0_i32_0 = arith.constant 0 : i32
    %2 = arith.cmpi ne, %1, %c0_i32_0 : i32
    scf.if %2 {
      %c0_200 = arith.constant 0 : index
      %c0_201 = arith.constant 0 : index
      %577 = vector.load %arg5[%c0_200, %c0_201] : memref<4x128xf32, #tpu.memory_space<vmem>>, vector<4x128xf32>
      %c0_202 = arith.constant 0 : index
      %c0_203 = arith.constant 0 : index
      %578 = vector.load %arg8[%c0_202, %c0_203] : memref<4x128xf32, #tpu.memory_space<vmem>>, vector<4x128xf32>
      tpu.vector_store %arg8[%c0_202, %c0_203], %577 {strides = array<i32>} : memref<4x128xf32, #tpu.memory_space<vmem>>, vector<4x128xf32>,
    } else {
    }
    %c0 = arith.constant 0 : index
    %c0_1 = arith.constant 0 : index
    %3 = vector.load %arg8[%c0, %c0_1] : memref<4x128xf32, #tpu.memory_space<vmem>>, vector<4x128xf32>
    %4 = tpu.iota {dimensions = array<i32: 1>} : vector<1x128x128xi32>
    %5 = tpu.iota {dimensions = array<i32: 2>} : vector<1x128x128xi32>
    %6 = arith.cmpi slt, %4, %5 : vector<1x128x128xi32>
    %c0_i32_2 = arith.constant 0 : i32
    %7 = arith.cmpi eq, %arg0, %c0_i32_2 : i32
    %c0_3 = arith.constant 0 : index
    %8 = memref.load %arg1[%c0_3] : memref<1xi32, #tpu.memory_space<smem>>
    %c0_i32_4 = arith.constant 0 : i32
    %9 = arith.cmpi ne, %8, %c0_i32_4 : i32
    %10 = arith.andi %7, %9 : i1
    %11 = arith.extui %10 : i1 to i32
    %12 = arith.sitofp %11 : i32 to f32
    %cst = arith.constant 1.000000e+00 : f32
    %13 = arith.subf %cst, %12 : f32
    %c0_5 = arith.constant 0 : index
    %c0_6 = arith.constant 0 : index
    %c0_7 = arith.constant 0 : index
    %14 = vector.load %arg2[%c0_5, %c0_6, %c0_7] : memref<8x4x128xf32, #tpu.memory_space<vmem>>, vector<1x4x128xf32>
    %15 = vector.shape_cast %14 : vector<1x4x128xf32> to vector<4x128xf32>
    %c0_8 = arith.constant 0 : index
    %c0_9 = arith.constant 0 : index
    %c0_10 = arith.constant 0 : index
    %16 = vector.load %arg4[%c0_8, %c0_9, %c0_10] : memref<8x4x4xf32, #tpu.memory_space<vmem>>, vector<1x4x4xf32>
    %17 = vector.shape_cast %16 : vector<1x4x4xf32> to vector<4x4xf32>
    %c0_11 = arith.constant 0 : index
    %c0_12 = arith.constant 0 : index
    %c0_13 = arith.constant 0 : index
    %18 = vector.load %arg3[%c0_11, %c0_12, %c0_13] : memref<8x4x512xf32, #tpu.memory_space<vmem>>, vector<1x4x512xf32>
    %19 = vector.shape_cast %18 : vector<1x4x512xf32> to vector<4x512xf32>
    %20 = vector.extract_strided_slice %17 {offsets = [0, 0], sizes = [4, 1], strides = [1, 1]} : vector<4x4xf32> to vector<4x1xf32>
    %21 = vector.extract_strided_slice %19 {offsets = [0, 0], sizes = [4, 128], strides = [1, 1]} : vector<4x512xf32> to vector<4x128xf32>
    %22 = vector.broadcast %20 : vector<4x1xf32> to vector<4x128xf32>
    %23 = arith.mulf %22, %21 : vector<4x128xf32>
    %cst_14 = arith.constant 1.000000e+00 : f32
    %24 = vector.broadcast %cst_14 : f32 to vector<4x128xf32>
    %25 = arith.subf %24, %23 : vector<4x128xf32>
    %26 = vector.extract_strided_slice %17 {offsets = [0, 1], sizes = [4, 1], strides = [1, 1]} : vector<4x4xf32> to vector<4x1xf32>
    %27 = vector.extract_strided_slice %19 {offsets = [0, 128], sizes = [4, 128], strides = [1, 1]} : vector<4x512xf32> to vector<4x128xf32>
    %28 = vector.broadcast %26 : vector<4x1xf32> to vector<4x128xf32>
    %29 = arith.mulf %28, %27 : vector<4x128xf32>
    %cst_15 = arith.constant 1.000000e+00 : f32
    %30 = vector.broadcast %cst_15 : f32 to vector<4x128xf32>
    %31 = arith.subf %30, %29 : vector<4x128xf32>
    %32 = arith.mulf %25, %31 : vector<4x128xf32>
    %33 = vector.extract_strided_slice %17 {offsets = [0, 2], sizes = [4, 1], strides = [1, 1]} : vector<4x4xf32> to vector<4x1xf32>
    %34 = vector.extract_strided_slice %19 {offsets = [0, 256], sizes = [4, 128], strides = [1, 1]} : vector<4x512xf32> to vector<4x128xf32>
    %35 = vector.broadcast %33 : vector<4x1xf32> to vector<4x128xf32>
    %36 = arith.mulf %35, %34 : vector<4x128xf32>
    %cst_16 = arith.constant 1.000000e+00 : f32
    %37 = vector.broadcast %cst_16 : f32 to vector<4x128xf32>
    %38 = arith.subf %37, %36 : vector<4x128xf32>
    %39 = arith.mulf %32, %38 : vector<4x128xf32>
    %40 = vector.extract_strided_slice %17 {offsets = [0, 3], sizes = [4, 1], strides = [1, 1]} : vector<4x4xf32> to vector<4x1xf32>
    %41 = vector.extract_strided_slice %19 {offsets = [0, 384], sizes = [4, 128], strides = [1, 1]} : vector<4x512xf32> to vector<4x128xf32>
    %42 = vector.broadcast %40 : vector<4x1xf32> to vector<4x128xf32>
    %43 = arith.mulf %42, %41 : vector<4x128xf32>
    %cst_17 = arith.constant 1.000000e+00 : f32
    %44 = vector.broadcast %cst_17 : f32 to vector<4x128xf32>
    %45 = arith.subf %44, %43 : vector<4x128xf32>
    %46 = arith.mulf %39, %45 : vector<4x128xf32>
    %cst_18 = arith.constant 1.000000e+00 : f32
    %47 = vector.broadcast %cst_18 : f32 to vector<4x128xf32>
    %48 = arith.subf %47, %3 : vector<4x128xf32>
    %49 = arith.mulf %15, %48 : vector<4x128xf32>
    %50 = arith.addf %3, %49 : vector<4x128xf32>
    %51 = arith.mulf %50, %46 : vector<4x128xf32>
    %52 = vector.broadcast %13 : f32 to vector<4x128xf32>
    %53 = arith.mulf %51, %52 : vector<4x128xf32>
    %cst_19 = arith.constant 0.999998986 : f32
    %54 = vector.broadcast %cst_19 : f32 to vector<4x128xf32>
    %55 = arith.mulf %53, %54 : vector<4x128xf32>
    %cst_20 = arith.constant 9.99999997E-7 : f32
    %56 = vector.broadcast %cst_20 : f32 to vector<4x128xf32>
    %57 = arith.addf %55, %56 : vector<4x128xf32>
    %58 = vector.shape_cast %57 : vector<4x128xf32> to vector<4x128x1xf32>
    %59 = vector.shape_cast %57 : vector<4x128xf32> to vector<4x1x128xf32>
    %60 = vector.broadcast %58 : vector<4x128x1xf32> to vector<4x128x128xf32>
    %61 = vector.broadcast %59 : vector<4x1x128xf32> to vector<4x128x128xf32>
    %62 = arith.cmpf olt, %60, %61 : vector<4x128x128xf32>
    %63 = vector.broadcast %58 : vector<4x128x1xf32> to vector<4x128x128xf32>
    %64 = vector.broadcast %59 : vector<4x1x128xf32> to vector<4x128x128xf32>
    %65 = arith.cmpf oeq, %63, %64 : vector<4x128x128xf32>
    %66 = vector.broadcast %6 : vector<1x128x128xi1> to vector<4x128x128xi1>
    %67 = arith.andi %65, %66 : vector<4x128x128xi1>
    %68 = arith.ori %62, %67 : vector<4x128x128xi1>
    %69 = math.log %57 : vector<4x128xf32>
    %70 = vector.shape_cast %69 : vector<4x128xf32> to vector<4x128x1xf32>
    %cst_21 = arith.constant 0.000000e+00 : f32
    %71 = vector.shape_cast %70 : vector<4x128x1xf32> to vector<4x128x1xf32>
    %72 = vector.broadcast %71 : vector<4x128x1xf32> to vector<4x128x128xf32>
    %73 = vector.broadcast %cst_21 : f32 to vector<4x128x128xf32>
    %74 = arith.select %68, %72, %73 : vector<4x128x128xi1>, vector<4x128x128xf32>
    %cst_22 = arith.constant dense<0.000000e+00> : vector<4x128xf32>
    %75 = vector.multi_reduction <add>, %74, %cst_22 [1] : vector<4x128x128xf32> to vector<4x128xf32>
    %76 = math.exp %75 : vector<4x128xf32>
    %cst_23 = arith.constant 1.000000e+00 : f32
    %77 = vector.broadcast %cst_23 : f32 to vector<4x128xf32>
    %78 = arith.subf %77, %57 : vector<4x128xf32>
    %79 = arith.mulf %78, %76 : vector<4x128xf32>
    %c0_24 = arith.constant 0 : index
    %c0_25 = arith.constant 0 : index
    %c0_26 = arith.constant 0 : index
    %80 = vector.load %arg6[%c0_24, %c0_25, %c0_26] : memref<8x4x128xf32, #tpu.memory_space<vmem>>, vector<1x4x128xf32>
    %81 = vector.shape_cast %80 : vector<1x4x128xf32> to vector<4x128xf32>
    %82 = vector.shape_cast %79 : vector<4x128xf32> to vector<1x4x128xf32>
    tpu.vector_store %arg6[%c0_24, %c0_25, %c0_26], %82 {strides = array<i32>} : memref<8x4x128xf32, #tpu.memory_space<vmem>>, vector<1x4x128xf32>,
    %c0_27 = arith.constant 0 : index
    %c0_28 = arith.constant 0 : index
    %c0_29 = arith.constant 0 : index
    %83 = vector.load %arg7[%c0_27, %c0_28, %c0_29] : memref<8x4x128xf32, #tpu.memory_space<vmem>>, vector<1x4x128xf32>
    %84 = vector.shape_cast %83 : vector<1x4x128xf32> to vector<4x128xf32>
    %85 = vector.shape_cast %46 : vector<4x128xf32> to vector<1x4x128xf32>
    tpu.vector_store %arg7[%c0_27, %c0_28, %c0_29], %85 {strides = array<i32>} : memref<8x4x128xf32, #tpu.memory_space<vmem>>, vector<1x4x128xf32>,
    %c1 = arith.constant 1 : index
    %c0_30 = arith.constant 0 : index
    %c0_31 = arith.constant 0 : index
    %86 = vector.load %arg2[%c1, %c0_30, %c0_31] : memref<8x4x128xf32, #tpu.memory_space<vmem>>, vector<1x4x128xf32>
    %87 = vector.shape_cast %86 : vector<1x4x128xf32> to vector<4x128xf32>
    %c1_32 = arith.constant 1 : index
    %c0_33 = arith.constant 0 : index
    %c0_34 = arith.constant 0 : index
    %88 = vector.load %arg4[%c1_32, %c0_33, %c0_34] : memref<8x4x4xf32, #tpu.memory_space<vmem>>, vector<1x4x4xf32>
    %89 = vector.shape_cast %88 : vector<1x4x4xf32> to vector<4x4xf32>
    %c1_35 = arith.constant 1 : index
    %c0_36 = arith.constant 0 : index
    %c0_37 = arith.constant 0 : index
    %90 = vector.load %arg3[%c1_35, %c0_36, %c0_37] : memref<8x4x512xf32, #tpu.memory_space<vmem>>, vector<1x4x512xf32>
    %91 = vector.shape_cast %90 : vector<1x4x512xf32> to vector<4x512xf32>
    %92 = vector.extract_strided_slice %89 {offsets = [0, 0], sizes = [4, 1], strides = [1, 1]} : vector<4x4xf32> to vector<4x1xf32>
    %93 = vector.extract_strided_slice %91 {offsets = [0, 0], sizes = [4, 128], strides = [1, 1]} : vector<4x512xf32> to vector<4x128xf32>
    %94 = vector.broadcast %92 : vector<4x1xf32> to vector<4x128xf32>
    %95 = arith.mulf %94, %93 : vector<4x128xf32>
    %cst_38 = arith.constant 1.000000e+00 : f32
    %96 = vector.broadcast %cst_38 : f32 to vector<4x128xf32>
    %97 = arith.subf %96, %95 : vector<4x128xf32>
    %98 = vector.extract_strided_slice %89 {offsets = [0, 1], sizes = [4, 1], strides = [1, 1]} : vector<4x4xf32> to vector<4x1xf32>
    %99 = vector.extract_strided_slice %91 {offsets = [0, 128], sizes = [4, 128], strides = [1, 1]} : vector<4x512xf32> to vector<4x128xf32>
    %100 = vector.broadcast %98 : vector<4x1xf32> to vector<4x128xf32>
    %101 = arith.mulf %100, %99 : vector<4x128xf32>
    %cst_39 = arith.constant 1.000000e+00 : f32
    %102 = vector.broadcast %cst_39 : f32 to vector<4x128xf32>
    %103 = arith.subf %102, %101 : vector<4x128xf32>
    %104 = arith.mulf %97, %103 : vector<4x128xf32>
    %105 = vector.extract_strided_slice %89 {offsets = [0, 2], sizes = [4, 1], strides = [1, 1]} : vector<4x4xf32> to vector<4x1xf32>
    %106 = vector.extract_strided_slice %91 {offsets = [0, 256], sizes = [4, 128], strides = [1, 1]} : vector<4x512xf32> to vector<4x128xf32>
    %107 = vector.broadcast %105 : vector<4x1xf32> to vector<4x128xf32>
    %108 = arith.mulf %107, %106 : vector<4x128xf32>
    %cst_40 = arith.constant 1.000000e+00 : f32
    %109 = vector.broadcast %cst_40 : f32 to vector<4x128xf32>
    %110 = arith.subf %109, %108 : vector<4x128xf32>
    %111 = arith.mulf %104, %110 : vector<4x128xf32>
    %112 = vector.extract_strided_slice %89 {offsets = [0, 3], sizes = [4, 1], strides = [1, 1]} : vector<4x4xf32> to vector<4x1xf32>
    %113 = vector.extract_strided_slice %91 {offsets = [0, 384], sizes = [4, 128], strides = [1, 1]} : vector<4x512xf32> to vector<4x128xf32>
    %114 = vector.broadcast %112 : vector<4x1xf32> to vector<4x128xf32>
    %115 = arith.mulf %114, %113 : vector<4x128xf32>
    %cst_41 = arith.constant 1.000000e+00 : f32
    %116 = vector.broadcast %cst_41 : f32 to vector<4x128xf32>
    %117 = arith.subf %116, %115 : vector<4x128xf32>
    %118 = arith.mulf %111, %117 : vector<4x128xf32>
    %cst_42 = arith.constant 1.000000e+00 : f32
    %119 = vector.broadcast %cst_42 : f32 to vector<4x128xf32>
    %120 = arith.subf %119, %53 : vector<4x128xf32>
    %121 = arith.mulf %87, %120 : vector<4x128xf32>
    %122 = arith.addf %53, %121 : vector<4x128xf32>
    %123 = arith.mulf %122, %118 : vector<4x128xf32>
    %cst_43 = arith.constant 0.999998986 : f32
    %124 = vector.broadcast %cst_43 : f32 to vector<4x128xf32>
    %125 = arith.mulf %123, %124 : vector<4x128xf32>
    %cst_44 = arith.constant 9.99999997E-7 : f32
    %126 = vector.broadcast %cst_44 : f32 to vector<4x128xf32>
    %127 = arith.addf %125, %126 : vector<4x128xf32>
    %128 = vector.shape_cast %127 : vector<4x128xf32> to vector<4x128x1xf32>
    %129 = vector.shape_cast %127 : vector<4x128xf32> to vector<4x1x128xf32>
    %130 = vector.broadcast %128 : vector<4x128x1xf32> to vector<4x128x128xf32>
    %131 = vector.broadcast %129 : vector<4x1x128xf32> to vector<4x128x128xf32>
    %132 = arith.cmpf olt, %130, %131 : vector<4x128x128xf32>
    %133 = vector.broadcast %128 : vector<4x128x1xf32> to vector<4x128x128xf32>
    %134 = vector.broadcast %129 : vector<4x1x128xf32> to vector<4x128x128xf32>
    %135 = arith.cmpf oeq, %133, %134 : vector<4x128x128xf32>
    %136 = vector.broadcast %6 : vector<1x128x128xi1> to vector<4x128x128xi1>
    %137 = arith.andi %135, %136 : vector<4x128x128xi1>
    %138 = arith.ori %132, %137 : vector<4x128x128xi1>
    %139 = math.log %127 : vector<4x128xf32>
    %140 = vector.shape_cast %139 : vector<4x128xf32> to vector<4x128x1xf32>
    %cst_45 = arith.constant 0.000000e+00 : f32
    %141 = vector.shape_cast %140 : vector<4x128x1xf32> to vector<4x128x1xf32>
    %142 = vector.broadcast %141 : vector<4x128x1xf32> to vector<4x128x128xf32>
    %143 = vector.broadcast %cst_45 : f32 to vector<4x128x128xf32>
    %144 = arith.select %138, %142, %143 : vector<4x128x128xi1>, vector<4x128x128xf32>
    %cst_46 = arith.constant dense<0.000000e+00> : vector<4x128xf32>
    %145 = vector.multi_reduction <add>, %144, %cst_46 [1] : vector<4x128x128xf32> to vector<4x128xf32>
    %146 = math.exp %145 : vector<4x128xf32>
    %cst_47 = arith.constant 1.000000e+00 : f32
    %147 = vector.broadcast %cst_47 : f32 to vector<4x128xf32>
    %148 = arith.subf %147, %127 : vector<4x128xf32>
    %149 = arith.mulf %148, %146 : vector<4x128xf32>
    %c1_48 = arith.constant 1 : index
    %c0_49 = arith.constant 0 : index
    %c0_50 = arith.constant 0 : index
    %150 = vector.load %arg6[%c1_48, %c0_49, %c0_50] : memref<8x4x128xf32, #tpu.memory_space<vmem>>, vector<1x4x128xf32>
    %151 = vector.shape_cast %150 : vector<1x4x128xf32> to vector<4x128xf32>
    %152 = vector.shape_cast %149 : vector<4x128xf32> to vector<1x4x128xf32>
    tpu.vector_store %arg6[%c1_48, %c0_49, %c0_50], %152 {strides = array<i32>} : memref<8x4x128xf32, #tpu.memory_space<vmem>>, vector<1x4x128xf32>,
    %c1_51 = arith.constant 1 : index
    %c0_52 = arith.constant 0 : index
    %c0_53 = arith.constant 0 : index
    %153 = vector.load %arg7[%c1_51, %c0_52, %c0_53] : memref<8x4x128xf32, #tpu.memory_space<vmem>>, vector<1x4x128xf32>
    %154 = vector.shape_cast %153 : vector<1x4x128xf32> to vector<4x128xf32>
    %155 = vector.shape_cast %118 : vector<4x128xf32> to vector<1x4x128xf32>
    tpu.vector_store %arg7[%c1_51, %c0_52, %c0_53], %155 {strides = array<i32>} : memref<8x4x128xf32, #tpu.memory_space<vmem>>, vector<1x4x128xf32>,
    %c2 = arith.constant 2 : index
    %c0_54 = arith.constant 0 : index
    %c0_55 = arith.constant 0 : index
    %156 = vector.load %arg2[%c2, %c0_54, %c0_55] : memref<8x4x128xf32, #tpu.memory_space<vmem>>, vector<1x4x128xf32>
    %157 = vector.shape_cast %156 : vector<1x4x128xf32> to vector<4x128xf32>
    %c2_56 = arith.constant 2 : index
    %c0_57 = arith.constant 0 : index
    %c0_58 = arith.constant 0 : index
    %158 = vector.load %arg4[%c2_56, %c0_57, %c0_58] : memref<8x4x4xf32, #tpu.memory_space<vmem>>, vector<1x4x4xf32>
    %159 = vector.shape_cast %158 : vector<1x4x4xf32> to vector<4x4xf32>
    %c2_59 = arith.constant 2 : index
    %c0_60 = arith.constant 0 : index
    %c0_61 = arith.constant 0 : index
    %160 = vector.load %arg3[%c2_59, %c0_60, %c0_61] : memref<8x4x512xf32, #tpu.memory_space<vmem>>, vector<1x4x512xf32>
    %161 = vector.shape_cast %160 : vector<1x4x512xf32> to vector<4x512xf32>
    %162 = vector.extract_strided_slice %159 {offsets = [0, 0], sizes = [4, 1], strides = [1, 1]} : vector<4x4xf32> to vector<4x1xf32>
    %163 = vector.extract_strided_slice %161 {offsets = [0, 0], sizes = [4, 128], strides = [1, 1]} : vector<4x512xf32> to vector<4x128xf32>
    %164 = vector.broadcast %162 : vector<4x1xf32> to vector<4x128xf32>
    %165 = arith.mulf %164, %163 : vector<4x128xf32>
    %cst_62 = arith.constant 1.000000e+00 : f32
    %166 = vector.broadcast %cst_62 : f32 to vector<4x128xf32>
    %167 = arith.subf %166, %165 : vector<4x128xf32>
    %168 = vector.extract_strided_slice %159 {offsets = [0, 1], sizes = [4, 1], strides = [1, 1]} : vector<4x4xf32> to vector<4x1xf32>
    %169 = vector.extract_strided_slice %161 {offsets = [0, 128], sizes = [4, 128], strides = [1, 1]} : vector<4x512xf32> to vector<4x128xf32>
    %170 = vector.broadcast %168 : vector<4x1xf32> to vector<4x128xf32>
    %171 = arith.mulf %170, %169 : vector<4x128xf32>
    %cst_63 = arith.constant 1.000000e+00 : f32
    %172 = vector.broadcast %cst_63 : f32 to vector<4x128xf32>
    %173 = arith.subf %172, %171 : vector<4x128xf32>
    %174 = arith.mulf %167, %173 : vector<4x128xf32>
    %175 = vector.extract_strided_slice %159 {offsets = [0, 2], sizes = [4, 1], strides = [1, 1]} : vector<4x4xf32> to vector<4x1xf32>
    %176 = vector.extract_strided_slice %161 {offsets = [0, 256], sizes = [4, 128], strides = [1, 1]} : vector<4x512xf32> to vector<4x128xf32>
    %177 = vector.broadcast %175 : vector<4x1xf32> to vector<4x128xf32>
    %178 = arith.mulf %177, %176 : vector<4x128xf32>
    %cst_64 = arith.constant 1.000000e+00 : f32
    %179 = vector.broadcast %cst_64 : f32 to vector<4x128xf32>
    %180 = arith.subf %179, %178 : vector<4x128xf32>
    %181 = arith.mulf %174, %180 : vector<4x128xf32>
    %182 = vector.extract_strided_slice %159 {offsets = [0, 3], sizes = [4, 1], strides = [1, 1]} : vector<4x4xf32> to vector<4x1xf32>
    %183 = vector.extract_strided_slice %161 {offsets = [0, 384], sizes = [4, 128], strides = [1, 1]} : vector<4x512xf32> to vector<4x128xf32>
    %184 = vector.broadcast %182 : vector<4x1xf32> to vector<4x128xf32>
    %185 = arith.mulf %184, %183 : vector<4x128xf32>
    %cst_65 = arith.constant 1.000000e+00 : f32
    %186 = vector.broadcast %cst_65 : f32 to vector<4x128xf32>
    %187 = arith.subf %186, %185 : vector<4x128xf32>
    %188 = arith.mulf %181, %187 : vector<4x128xf32>
    %cst_66 = arith.constant 1.000000e+00 : f32
    %189 = vector.broadcast %cst_66 : f32 to vector<4x128xf32>
    %190 = arith.subf %189, %123 : vector<4x128xf32>
    %191 = arith.mulf %157, %190 : vector<4x128xf32>
    %192 = arith.addf %123, %191 : vector<4x128xf32>
    %193 = arith.mulf %192, %188 : vector<4x128xf32>
    %cst_67 = arith.constant 0.999998986 : f32
    %194 = vector.broadcast %cst_67 : f32 to vector<4x128xf32>
    %195 = arith.mulf %193, %194 : vector<4x128xf32>
    %cst_68 = arith.constant 9.99999997E-7 : f32
    %196 = vector.broadcast %cst_68 : f32 to vector<4x128xf32>
    %197 = arith.addf %195, %196 : vector<4x128xf32>
    %198 = vector.shape_cast %197 : vector<4x128xf32> to vector<4x128x1xf32>
    %199 = vector.shape_cast %197 : vector<4x128xf32> to vector<4x1x128xf32>
    %200 = vector.broadcast %198 : vector<4x128x1xf32> to vector<4x128x128xf32>
    %201 = vector.broadcast %199 : vector<4x1x128xf32> to vector<4x128x128xf32>
    %202 = arith.cmpf olt, %200, %201 : vector<4x128x128xf32>
    %203 = vector.broadcast %198 : vector<4x128x1xf32> to vector<4x128x128xf32>
    %204 = vector.broadcast %199 : vector<4x1x128xf32> to vector<4x128x128xf32>
    %205 = arith.cmpf oeq, %203, %204 : vector<4x128x128xf32>
    %206 = vector.broadcast %6 : vector<1x128x128xi1> to vector<4x128x128xi1>
    %207 = arith.andi %205, %206 : vector<4x128x128xi1>
    %208 = arith.ori %202, %207 : vector<4x128x128xi1>
    %209 = math.log %197 : vector<4x128xf32>
    %210 = vector.shape_cast %209 : vector<4x128xf32> to vector<4x128x1xf32>
    %cst_69 = arith.constant 0.000000e+00 : f32
    %211 = vector.shape_cast %210 : vector<4x128x1xf32> to vector<4x128x1xf32>
    %212 = vector.broadcast %211 : vector<4x128x1xf32> to vector<4x128x128xf32>
    %213 = vector.broadcast %cst_69 : f32 to vector<4x128x128xf32>
    %214 = arith.select %208, %212, %213 : vector<4x128x128xi1>, vector<4x128x128xf32>
    %cst_70 = arith.constant dense<0.000000e+00> : vector<4x128xf32>
    %215 = vector.multi_reduction <add>, %214, %cst_70 [1] : vector<4x128x128xf32> to vector<4x128xf32>
    %216 = math.exp %215 : vector<4x128xf32>
    %cst_71 = arith.constant 1.000000e+00 : f32
    %217 = vector.broadcast %cst_71 : f32 to vector<4x128xf32>
    %218 = arith.subf %217, %197 : vector<4x128xf32>
    %219 = arith.mulf %218, %216 : vector<4x128xf32>
    %c2_72 = arith.constant 2 : index
    %c0_73 = arith.constant 0 : index
    %c0_74 = arith.constant 0 : index
    %220 = vector.load %arg6[%c2_72, %c0_73, %c0_74] : memref<8x4x128xf32, #tpu.memory_space<vmem>>, vector<1x4x128xf32>
    %221 = vector.shape_cast %220 : vector<1x4x128xf32> to vector<4x128xf32>
    %222 = vector.shape_cast %219 : vector<4x128xf32> to vector<1x4x128xf32>
    tpu.vector_store %arg6[%c2_72, %c0_73, %c0_74], %222 {strides = array<i32>} : memref<8x4x128xf32, #tpu.memory_space<vmem>>, vector<1x4x128xf32>,
    %c2_75 = arith.constant 2 : index
    %c0_76 = arith.constant 0 : index
    %c0_77 = arith.constant 0 : index
    %223 = vector.load %arg7[%c2_75, %c0_76, %c0_77] : memref<8x4x128xf32, #tpu.memory_space<vmem>>, vector<1x4x128xf32>
    %224 = vector.shape_cast %223 : vector<1x4x128xf32> to vector<4x128xf32>
    %225 = vector.shape_cast %188 : vector<4x128xf32> to vector<1x4x128xf32>
    tpu.vector_store %arg7[%c2_75, %c0_76, %c0_77], %225 {strides = array<i32>} : memref<8x4x128xf32, #tpu.memory_space<vmem>>, vector<1x4x128xf32>,
    %c3 = arith.constant 3 : index
    %c0_78 = arith.constant 0 : index
    %c0_79 = arith.constant 0 : index
    %226 = vector.load %arg2[%c3, %c0_78, %c0_79] : memref<8x4x128xf32, #tpu.memory_space<vmem>>, vector<1x4x128xf32>
    %227 = vector.shape_cast %226 : vector<1x4x128xf32> to vector<4x128xf32>
    %c3_80 = arith.constant 3 : index
    %c0_81 = arith.constant 0 : index
    %c0_82 = arith.constant 0 : index
    %228 = vector.load %arg4[%c3_80, %c0_81, %c0_82] : memref<8x4x4xf32, #tpu.memory_space<vmem>>, vector<1x4x4xf32>
    %229 = vector.shape_cast %228 : vector<1x4x4xf32> to vector<4x4xf32>
    %c3_83 = arith.constant 3 : index
    %c0_84 = arith.constant 0 : index
    %c0_85 = arith.constant 0 : index
    %230 = vector.load %arg3[%c3_83, %c0_84, %c0_85] : memref<8x4x512xf32, #tpu.memory_space<vmem>>, vector<1x4x512xf32>
    %231 = vector.shape_cast %230 : vector<1x4x512xf32> to vector<4x512xf32>
    %232 = vector.extract_strided_slice %229 {offsets = [0, 0], sizes = [4, 1], strides = [1, 1]} : vector<4x4xf32> to vector<4x1xf32>
    %233 = vector.extract_strided_slice %231 {offsets = [0, 0], sizes = [4, 128], strides = [1, 1]} : vector<4x512xf32> to vector<4x128xf32>
    %234 = vector.broadcast %232 : vector<4x1xf32> to vector<4x128xf32>
    %235 = arith.mulf %234, %233 : vector<4x128xf32>
    %cst_86 = arith.constant 1.000000e+00 : f32
    %236 = vector.broadcast %cst_86 : f32 to vector<4x128xf32>
    %237 = arith.subf %236, %235 : vector<4x128xf32>
    %238 = vector.extract_strided_slice %229 {offsets = [0, 1], sizes = [4, 1], strides = [1, 1]} : vector<4x4xf32> to vector<4x1xf32>
    %239 = vector.extract_strided_slice %231 {offsets = [0, 128], sizes = [4, 128], strides = [1, 1]} : vector<4x512xf32> to vector<4x128xf32>
    %240 = vector.broadcast %238 : vector<4x1xf32> to vector<4x128xf32>
    %241 = arith.mulf %240, %239 : vector<4x128xf32>
    %cst_87 = arith.constant 1.000000e+00 : f32
    %242 = vector.broadcast %cst_87 : f32 to vector<4x128xf32>
    %243 = arith.subf %242, %241 : vector<4x128xf32>
    %244 = arith.mulf %237, %243 : vector<4x128xf32>
    %245 = vector.extract_strided_slice %229 {offsets = [0, 2], sizes = [4, 1], strides = [1, 1]} : vector<4x4xf32> to vector<4x1xf32>
    %246 = vector.extract_strided_slice %231 {offsets = [0, 256], sizes = [4, 128], strides = [1, 1]} : vector<4x512xf32> to vector<4x128xf32>
    %247 = vector.broadcast %245 : vector<4x1xf32> to vector<4x128xf32>
    %248 = arith.mulf %247, %246 : vector<4x128xf32>
    %cst_88 = arith.constant 1.000000e+00 : f32
    %249 = vector.broadcast %cst_88 : f32 to vector<4x128xf32>
    %250 = arith.subf %249, %248 : vector<4x128xf32>
    %251 = arith.mulf %244, %250 : vector<4x128xf32>
    %252 = vector.extract_strided_slice %229 {offsets = [0, 3], sizes = [4, 1], strides = [1, 1]} : vector<4x4xf32> to vector<4x1xf32>
    %253 = vector.extract_strided_slice %231 {offsets = [0, 384], sizes = [4, 128], strides = [1, 1]} : vector<4x512xf32> to vector<4x128xf32>
    %254 = vector.broadcast %252 : vector<4x1xf32> to vector<4x128xf32>
    %255 = arith.mulf %254, %253 : vector<4x128xf32>
    %cst_89 = arith.constant 1.000000e+00 : f32
    %256 = vector.broadcast %cst_89 : f32 to vector<4x128xf32>
    %257 = arith.subf %256, %255 : vector<4x128xf32>
    %258 = arith.mulf %251, %257 : vector<4x128xf32>
    %cst_90 = arith.constant 1.000000e+00 : f32
    %259 = vector.broadcast %cst_90 : f32 to vector<4x128xf32>
    %260 = arith.subf %259, %193 : vector<4x128xf32>
    %261 = arith.mulf %227, %260 : vector<4x128xf32>
    %262 = arith.addf %193, %261 : vector<4x128xf32>
    %263 = arith.mulf %262, %258 : vector<4x128xf32>
    %cst_91 = arith.constant 0.999998986 : f32
    %264 = vector.broadcast %cst_91 : f32 to vector<4x128xf32>
    %265 = arith.mulf %263, %264 : vector<4x128xf32>
    %cst_92 = arith.constant 9.99999997E-7 : f32
    %266 = vector.broadcast %cst_92 : f32 to vector<4x128xf32>
    %267 = arith.addf %265, %266 : vector<4x128xf32>
    %268 = vector.shape_cast %267 : vector<4x128xf32> to vector<4x128x1xf32>
    %269 = vector.shape_cast %267 : vector<4x128xf32> to vector<4x1x128xf32>
    %270 = vector.broadcast %268 : vector<4x128x1xf32> to vector<4x128x128xf32>
    %271 = vector.broadcast %269 : vector<4x1x128xf32> to vector<4x128x128xf32>
    %272 = arith.cmpf olt, %270, %271 : vector<4x128x128xf32>
    %273 = vector.broadcast %268 : vector<4x128x1xf32> to vector<4x128x128xf32>
    %274 = vector.broadcast %269 : vector<4x1x128xf32> to vector<4x128x128xf32>
    %275 = arith.cmpf oeq, %273, %274 : vector<4x128x128xf32>
    %276 = vector.broadcast %6 : vector<1x128x128xi1> to vector<4x128x128xi1>
    %277 = arith.andi %275, %276 : vector<4x128x128xi1>
    %278 = arith.ori %272, %277 : vector<4x128x128xi1>
    %279 = math.log %267 : vector<4x128xf32>
    %280 = vector.shape_cast %279 : vector<4x128xf32> to vector<4x128x1xf32>
    %cst_93 = arith.constant 0.000000e+00 : f32
    %281 = vector.shape_cast %280 : vector<4x128x1xf32> to vector<4x128x1xf32>
    %282 = vector.broadcast %281 : vector<4x128x1xf32> to vector<4x128x128xf32>
    %283 = vector.broadcast %cst_93 : f32 to vector<4x128x128xf32>
    %284 = arith.select %278, %282, %283 : vector<4x128x128xi1>, vector<4x128x128xf32>
    %cst_94 = arith.constant dense<0.000000e+00> : vector<4x128xf32>
    %285 = vector.multi_reduction <add>, %284, %cst_94 [1] : vector<4x128x128xf32> to vector<4x128xf32>
    %286 = math.exp %285 : vector<4x128xf32>
    %cst_95 = arith.constant 1.000000e+00 : f32
    %287 = vector.broadcast %cst_95 : f32 to vector<4x128xf32>
    %288 = arith.subf %287, %267 : vector<4x128xf32>
    %289 = arith.mulf %288, %286 : vector<4x128xf32>
    %c3_96 = arith.constant 3 : index
    %c0_97 = arith.constant 0 : index
    %c0_98 = arith.constant 0 : index
    %290 = vector.load %arg6[%c3_96, %c0_97, %c0_98] : memref<8x4x128xf32, #tpu.memory_space<vmem>>, vector<1x4x128xf32>
    %291 = vector.shape_cast %290 : vector<1x4x128xf32> to vector<4x128xf32>
    %292 = vector.shape_cast %289 : vector<4x128xf32> to vector<1x4x128xf32>
    tpu.vector_store %arg6[%c3_96, %c0_97, %c0_98], %292 {strides = array<i32>} : memref<8x4x128xf32, #tpu.memory_space<vmem>>, vector<1x4x128xf32>,
    %c3_99 = arith.constant 3 : index
    %c0_100 = arith.constant 0 : index
    %c0_101 = arith.constant 0 : index
    %293 = vector.load %arg7[%c3_99, %c0_100, %c0_101] : memref<8x4x128xf32, #tpu.memory_space<vmem>>, vector<1x4x128xf32>
    %294 = vector.shape_cast %293 : vector<1x4x128xf32> to vector<4x128xf32>
    %295 = vector.shape_cast %258 : vector<4x128xf32> to vector<1x4x128xf32>
    tpu.vector_store %arg7[%c3_99, %c0_100, %c0_101], %295 {strides = array<i32>} : memref<8x4x128xf32, #tpu.memory_space<vmem>>, vector<1x4x128xf32>,
    %c4 = arith.constant 4 : index
    %c0_102 = arith.constant 0 : index
    %c0_103 = arith.constant 0 : index
    %296 = vector.load %arg2[%c4, %c0_102, %c0_103] : memref<8x4x128xf32, #tpu.memory_space<vmem>>, vector<1x4x128xf32>
    %297 = vector.shape_cast %296 : vector<1x4x128xf32> to vector<4x128xf32>
    %c4_104 = arith.constant 4 : index
    %c0_105 = arith.constant 0 : index
    %c0_106 = arith.constant 0 : index
    %298 = vector.load %arg4[%c4_104, %c0_105, %c0_106] : memref<8x4x4xf32, #tpu.memory_space<vmem>>, vector<1x4x4xf32>
    %299 = vector.shape_cast %298 : vector<1x4x4xf32> to vector<4x4xf32>
    %c4_107 = arith.constant 4 : index
    %c0_108 = arith.constant 0 : index
    %c0_109 = arith.constant 0 : index
    %300 = vector.load %arg3[%c4_107, %c0_108, %c0_109] : memref<8x4x512xf32, #tpu.memory_space<vmem>>, vector<1x4x512xf32>
    %301 = vector.shape_cast %300 : vector<1x4x512xf32> to vector<4x512xf32>
    %302 = vector.extract_strided_slice %299 {offsets = [0, 0], sizes = [4, 1], strides = [1, 1]} : vector<4x4xf32> to vector<4x1xf32>
    %303 = vector.extract_strided_slice %301 {offsets = [0, 0], sizes = [4, 128], strides = [1, 1]} : vector<4x512xf32> to vector<4x128xf32>
    %304 = vector.broadcast %302 : vector<4x1xf32> to vector<4x128xf32>
    %305 = arith.mulf %304, %303 : vector<4x128xf32>
    %cst_110 = arith.constant 1.000000e+00 : f32
    %306 = vector.broadcast %cst_110 : f32 to vector<4x128xf32>
    %307 = arith.subf %306, %305 : vector<4x128xf32>
    %308 = vector.extract_strided_slice %299 {offsets = [0, 1], sizes = [4, 1], strides = [1, 1]} : vector<4x4xf32> to vector<4x1xf32>
    %309 = vector.extract_strided_slice %301 {offsets = [0, 128], sizes = [4, 128], strides = [1, 1]} : vector<4x512xf32> to vector<4x128xf32>
    %310 = vector.broadcast %308 : vector<4x1xf32> to vector<4x128xf32>
    %311 = arith.mulf %310, %309 : vector<4x128xf32>
    %cst_111 = arith.constant 1.000000e+00 : f32
    %312 = vector.broadcast %cst_111 : f32 to vector<4x128xf32>
    %313 = arith.subf %312, %311 : vector<4x128xf32>
    %314 = arith.mulf %307, %313 : vector<4x128xf32>
    %315 = vector.extract_strided_slice %299 {offsets = [0, 2], sizes = [4, 1], strides = [1, 1]} : vector<4x4xf32> to vector<4x1xf32>
    %316 = vector.extract_strided_slice %301 {offsets = [0, 256], sizes = [4, 128], strides = [1, 1]} : vector<4x512xf32> to vector<4x128xf32>
    %317 = vector.broadcast %315 : vector<4x1xf32> to vector<4x128xf32>
    %318 = arith.mulf %317, %316 : vector<4x128xf32>
    %cst_112 = arith.constant 1.000000e+00 : f32
    %319 = vector.broadcast %cst_112 : f32 to vector<4x128xf32>
    %320 = arith.subf %319, %318 : vector<4x128xf32>
    %321 = arith.mulf %314, %320 : vector<4x128xf32>
    %322 = vector.extract_strided_slice %299 {offsets = [0, 3], sizes = [4, 1], strides = [1, 1]} : vector<4x4xf32> to vector<4x1xf32>
    %323 = vector.extract_strided_slice %301 {offsets = [0, 384], sizes = [4, 128], strides = [1, 1]} : vector<4x512xf32> to vector<4x128xf32>
    %324 = vector.broadcast %322 : vector<4x1xf32> to vector<4x128xf32>
    %325 = arith.mulf %324, %323 : vector<4x128xf32>
    %cst_113 = arith.constant 1.000000e+00 : f32
    %326 = vector.broadcast %cst_113 : f32 to vector<4x128xf32>
    %327 = arith.subf %326, %325 : vector<4x128xf32>
    %328 = arith.mulf %321, %327 : vector<4x128xf32>
    %cst_114 = arith.constant 1.000000e+00 : f32
    %329 = vector.broadcast %cst_114 : f32 to vector<4x128xf32>
    %330 = arith.subf %329, %263 : vector<4x128xf32>
    %331 = arith.mulf %297, %330 : vector<4x128xf32>
    %332 = arith.addf %263, %331 : vector<4x128xf32>
    %333 = arith.mulf %332, %328 : vector<4x128xf32>
    %cst_115 = arith.constant 0.999998986 : f32
    %334 = vector.broadcast %cst_115 : f32 to vector<4x128xf32>
    %335 = arith.mulf %333, %334 : vector<4x128xf32>
    %cst_116 = arith.constant 9.99999997E-7 : f32
    %336 = vector.broadcast %cst_116 : f32 to vector<4x128xf32>
    %337 = arith.addf %335, %336 : vector<4x128xf32>
    %338 = vector.shape_cast %337 : vector<4x128xf32> to vector<4x128x1xf32>
    %339 = vector.shape_cast %337 : vector<4x128xf32> to vector<4x1x128xf32>
    %340 = vector.broadcast %338 : vector<4x128x1xf32> to vector<4x128x128xf32>
    %341 = vector.broadcast %339 : vector<4x1x128xf32> to vector<4x128x128xf32>
    %342 = arith.cmpf olt, %340, %341 : vector<4x128x128xf32>
    %343 = vector.broadcast %338 : vector<4x128x1xf32> to vector<4x128x128xf32>
    %344 = vector.broadcast %339 : vector<4x1x128xf32> to vector<4x128x128xf32>
    %345 = arith.cmpf oeq, %343, %344 : vector<4x128x128xf32>
    %346 = vector.broadcast %6 : vector<1x128x128xi1> to vector<4x128x128xi1>
    %347 = arith.andi %345, %346 : vector<4x128x128xi1>
    %348 = arith.ori %342, %347 : vector<4x128x128xi1>
    %349 = math.log %337 : vector<4x128xf32>
    %350 = vector.shape_cast %349 : vector<4x128xf32> to vector<4x128x1xf32>
    %cst_117 = arith.constant 0.000000e+00 : f32
    %351 = vector.shape_cast %350 : vector<4x128x1xf32> to vector<4x128x1xf32>
    %352 = vector.broadcast %351 : vector<4x128x1xf32> to vector<4x128x128xf32>
    %353 = vector.broadcast %cst_117 : f32 to vector<4x128x128xf32>
    %354 = arith.select %348, %352, %353 : vector<4x128x128xi1>, vector<4x128x128xf32>
    %cst_118 = arith.constant dense<0.000000e+00> : vector<4x128xf32>
    %355 = vector.multi_reduction <add>, %354, %cst_118 [1] : vector<4x128x128xf32> to vector<4x128xf32>
    %356 = math.exp %355 : vector<4x128xf32>
    %cst_119 = arith.constant 1.000000e+00 : f32
    %357 = vector.broadcast %cst_119 : f32 to vector<4x128xf32>
    %358 = arith.subf %357, %337 : vector<4x128xf32>
    %359 = arith.mulf %358, %356 : vector<4x128xf32>
    %c4_120 = arith.constant 4 : index
    %c0_121 = arith.constant 0 : index
    %c0_122 = arith.constant 0 : index
    %360 = vector.load %arg6[%c4_120, %c0_121, %c0_122] : memref<8x4x128xf32, #tpu.memory_space<vmem>>, vector<1x4x128xf32>
    %361 = vector.shape_cast %360 : vector<1x4x128xf32> to vector<4x128xf32>
    %362 = vector.shape_cast %359 : vector<4x128xf32> to vector<1x4x128xf32>
    tpu.vector_store %arg6[%c4_120, %c0_121, %c0_122], %362 {strides = array<i32>} : memref<8x4x128xf32, #tpu.memory_space<vmem>>, vector<1x4x128xf32>,
    %c4_123 = arith.constant 4 : index
    %c0_124 = arith.constant 0 : index
    %c0_125 = arith.constant 0 : index
    %363 = vector.load %arg7[%c4_123, %c0_124, %c0_125] : memref<8x4x128xf32, #tpu.memory_space<vmem>>, vector<1x4x128xf32>
    %364 = vector.shape_cast %363 : vector<1x4x128xf32> to vector<4x128xf32>
    %365 = vector.shape_cast %328 : vector<4x128xf32> to vector<1x4x128xf32>
    tpu.vector_store %arg7[%c4_123, %c0_124, %c0_125], %365 {strides = array<i32>} : memref<8x4x128xf32, #tpu.memory_space<vmem>>, vector<1x4x128xf32>,
    %c5 = arith.constant 5 : index
    %c0_126 = arith.constant 0 : index
    %c0_127 = arith.constant 0 : index
    %366 = vector.load %arg2[%c5, %c0_126, %c0_127] : memref<8x4x128xf32, #tpu.memory_space<vmem>>, vector<1x4x128xf32>
    %367 = vector.shape_cast %366 : vector<1x4x128xf32> to vector<4x128xf32>
    %c5_128 = arith.constant 5 : index
    %c0_129 = arith.constant 0 : index
    %c0_130 = arith.constant 0 : index
    %368 = vector.load %arg4[%c5_128, %c0_129, %c0_130] : memref<8x4x4xf32, #tpu.memory_space<vmem>>, vector<1x4x4xf32>
    %369 = vector.shape_cast %368 : vector<1x4x4xf32> to vector<4x4xf32>
    %c5_131 = arith.constant 5 : index
    %c0_132 = arith.constant 0 : index
    %c0_133 = arith.constant 0 : index
    %370 = vector.load %arg3[%c5_131, %c0_132, %c0_133] : memref<8x4x512xf32, #tpu.memory_space<vmem>>, vector<1x4x512xf32>
    %371 = vector.shape_cast %370 : vector<1x4x512xf32> to vector<4x512xf32>
    %372 = vector.extract_strided_slice %369 {offsets = [0, 0], sizes = [4, 1], strides = [1, 1]} : vector<4x4xf32> to vector<4x1xf32>
    %373 = vector.extract_strided_slice %371 {offsets = [0, 0], sizes = [4, 128], strides = [1, 1]} : vector<4x512xf32> to vector<4x128xf32>
    %374 = vector.broadcast %372 : vector<4x1xf32> to vector<4x128xf32>
    %375 = arith.mulf %374, %373 : vector<4x128xf32>
    %cst_134 = arith.constant 1.000000e+00 : f32
    %376 = vector.broadcast %cst_134 : f32 to vector<4x128xf32>
    %377 = arith.subf %376, %375 : vector<4x128xf32>
    %378 = vector.extract_strided_slice %369 {offsets = [0, 1], sizes = [4, 1], strides = [1, 1]} : vector<4x4xf32> to vector<4x1xf32>
    %379 = vector.extract_strided_slice %371 {offsets = [0, 128], sizes = [4, 128], strides = [1, 1]} : vector<4x512xf32> to vector<4x128xf32>
    %380 = vector.broadcast %378 : vector<4x1xf32> to vector<4x128xf32>
    %381 = arith.mulf %380, %379 : vector<4x128xf32>
    %cst_135 = arith.constant 1.000000e+00 : f32
    %382 = vector.broadcast %cst_135 : f32 to vector<4x128xf32>
    %383 = arith.subf %382, %381 : vector<4x128xf32>
    %384 = arith.mulf %377, %383 : vector<4x128xf32>
    %385 = vector.extract_strided_slice %369 {offsets = [0, 2], sizes = [4, 1], strides = [1, 1]} : vector<4x4xf32> to vector<4x1xf32>
    %386 = vector.extract_strided_slice %371 {offsets = [0, 256], sizes = [4, 128], strides = [1, 1]} : vector<4x512xf32> to vector<4x128xf32>
    %387 = vector.broadcast %385 : vector<4x1xf32> to vector<4x128xf32>
    %388 = arith.mulf %387, %386 : vector<4x128xf32>
    %cst_136 = arith.constant 1.000000e+00 : f32
    %389 = vector.broadcast %cst_136 : f32 to vector<4x128xf32>
    %390 = arith.subf %389, %388 : vector<4x128xf32>
    %391 = arith.mulf %384, %390 : vector<4x128xf32>
    %392 = vector.extract_strided_slice %369 {offsets = [0, 3], sizes = [4, 1], strides = [1, 1]} : vector<4x4xf32> to vector<4x1xf32>
    %393 = vector.extract_strided_slice %371 {offsets = [0, 384], sizes = [4, 128], strides = [1, 1]} : vector<4x512xf32> to vector<4x128xf32>
    %394 = vector.broadcast %392 : vector<4x1xf32> to vector<4x128xf32>
    %395 = arith.mulf %394, %393 : vector<4x128xf32>
    %cst_137 = arith.constant 1.000000e+00 : f32
    %396 = vector.broadcast %cst_137 : f32 to vector<4x128xf32>
    %397 = arith.subf %396, %395 : vector<4x128xf32>
    %398 = arith.mulf %391, %397 : vector<4x128xf32>
    %cst_138 = arith.constant 1.000000e+00 : f32
    %399 = vector.broadcast %cst_138 : f32 to vector<4x128xf32>
    %400 = arith.subf %399, %333 : vector<4x128xf32>
    %401 = arith.mulf %367, %400 : vector<4x128xf32>
    %402 = arith.addf %333, %401 : vector<4x128xf32>
    %403 = arith.mulf %402, %398 : vector<4x128xf32>
    %cst_139 = arith.constant 0.999998986 : f32
    %404 = vector.broadcast %cst_139 : f32 to vector<4x128xf32>
    %405 = arith.mulf %403, %404 : vector<4x128xf32>
    %cst_140 = arith.constant 9.99999997E-7 : f32
    %406 = vector.broadcast %cst_140 : f32 to vector<4x128xf32>
    %407 = arith.addf %405, %406 : vector<4x128xf32>
    %408 = vector.shape_cast %407 : vector<4x128xf32> to vector<4x128x1xf32>
    %409 = vector.shape_cast %407 : vector<4x128xf32> to vector<4x1x128xf32>
    %410 = vector.broadcast %408 : vector<4x128x1xf32> to vector<4x128x128xf32>
    %411 = vector.broadcast %409 : vector<4x1x128xf32> to vector<4x128x128xf32>
    %412 = arith.cmpf olt, %410, %411 : vector<4x128x128xf32>
    %413 = vector.broadcast %408 : vector<4x128x1xf32> to vector<4x128x128xf32>
    %414 = vector.broadcast %409 : vector<4x1x128xf32> to vector<4x128x128xf32>
    %415 = arith.cmpf oeq, %413, %414 : vector<4x128x128xf32>
    %416 = vector.broadcast %6 : vector<1x128x128xi1> to vector<4x128x128xi1>
    %417 = arith.andi %415, %416 : vector<4x128x128xi1>
    %418 = arith.ori %412, %417 : vector<4x128x128xi1>
    %419 = math.log %407 : vector<4x128xf32>
    %420 = vector.shape_cast %419 : vector<4x128xf32> to vector<4x128x1xf32>
    %cst_141 = arith.constant 0.000000e+00 : f32
    %421 = vector.shape_cast %420 : vector<4x128x1xf32> to vector<4x128x1xf32>
    %422 = vector.broadcast %421 : vector<4x128x1xf32> to vector<4x128x128xf32>
    %423 = vector.broadcast %cst_141 : f32 to vector<4x128x128xf32>
    %424 = arith.select %418, %422, %423 : vector<4x128x128xi1>, vector<4x128x128xf32>
    %cst_142 = arith.constant dense<0.000000e+00> : vector<4x128xf32>
    %425 = vector.multi_reduction <add>, %424, %cst_142 [1] : vector<4x128x128xf32> to vector<4x128xf32>
    %426 = math.exp %425 : vector<4x128xf32>
    %cst_143 = arith.constant 1.000000e+00 : f32
    %427 = vector.broadcast %cst_143 : f32 to vector<4x128xf32>
    %428 = arith.subf %427, %407 : vector<4x128xf32>
    %429 = arith.mulf %428, %426 : vector<4x128xf32>
    %c5_144 = arith.constant 5 : index
    %c0_145 = arith.constant 0 : index
    %c0_146 = arith.constant 0 : index
    %430 = vector.load %arg6[%c5_144, %c0_145, %c0_146] : memref<8x4x128xf32, #tpu.memory_space<vmem>>, vector<1x4x128xf32>
    %431 = vector.shape_cast %430 : vector<1x4x128xf32> to vector<4x128xf32>
    %432 = vector.shape_cast %429 : vector<4x128xf32> to vector<1x4x128xf32>
    tpu.vector_store %arg6[%c5_144, %c0_145, %c0_146], %432 {strides = array<i32>} : memref<8x4x128xf32, #tpu.memory_space<vmem>>, vector<1x4x128xf32>,
    %c5_147 = arith.constant 5 : index
    %c0_148 = arith.constant 0 : index
    %c0_149 = arith.constant 0 : index
    %433 = vector.load %arg7[%c5_147, %c0_148, %c0_149] : memref<8x4x128xf32, #tpu.memory_space<vmem>>, vector<1x4x128xf32>
    %434 = vector.shape_cast %433 : vector<1x4x128xf32> to vector<4x128xf32>
    %435 = vector.shape_cast %398 : vector<4x128xf32> to vector<1x4x128xf32>
    tpu.vector_store %arg7[%c5_147, %c0_148, %c0_149], %435 {strides = array<i32>} : memref<8x4x128xf32, #tpu.memory_space<vmem>>, vector<1x4x128xf32>,
    %c6 = arith.constant 6 : index
    %c0_150 = arith.constant 0 : index
    %c0_151 = arith.constant 0 : index
    %436 = vector.load %arg2[%c6, %c0_150, %c0_151] : memref<8x4x128xf32, #tpu.memory_space<vmem>>, vector<1x4x128xf32>
    %437 = vector.shape_cast %436 : vector<1x4x128xf32> to vector<4x128xf32>
    %c6_152 = arith.constant 6 : index
    %c0_153 = arith.constant 0 : index
    %c0_154 = arith.constant 0 : index
    %438 = vector.load %arg4[%c6_152, %c0_153, %c0_154] : memref<8x4x4xf32, #tpu.memory_space<vmem>>, vector<1x4x4xf32>
    %439 = vector.shape_cast %438 : vector<1x4x4xf32> to vector<4x4xf32>
    %c6_155 = arith.constant 6 : index
    %c0_156 = arith.constant 0 : index
    %c0_157 = arith.constant 0 : index
    %440 = vector.load %arg3[%c6_155, %c0_156, %c0_157] : memref<8x4x512xf32, #tpu.memory_space<vmem>>, vector<1x4x512xf32>
    %441 = vector.shape_cast %440 : vector<1x4x512xf32> to vector<4x512xf32>
    %442 = vector.extract_strided_slice %439 {offsets = [0, 0], sizes = [4, 1], strides = [1, 1]} : vector<4x4xf32> to vector<4x1xf32>
    %443 = vector.extract_strided_slice %441 {offsets = [0, 0], sizes = [4, 128], strides = [1, 1]} : vector<4x512xf32> to vector<4x128xf32>
    %444 = vector.broadcast %442 : vector<4x1xf32> to vector<4x128xf32>
    %445 = arith.mulf %444, %443 : vector<4x128xf32>
    %cst_158 = arith.constant 1.000000e+00 : f32
    %446 = vector.broadcast %cst_158 : f32 to vector<4x128xf32>
    %447 = arith.subf %446, %445 : vector<4x128xf32>
    %448 = vector.extract_strided_slice %439 {offsets = [0, 1], sizes = [4, 1], strides = [1, 1]} : vector<4x4xf32> to vector<4x1xf32>
    %449 = vector.extract_strided_slice %441 {offsets = [0, 128], sizes = [4, 128], strides = [1, 1]} : vector<4x512xf32> to vector<4x128xf32>
    %450 = vector.broadcast %448 : vector<4x1xf32> to vector<4x128xf32>
    %451 = arith.mulf %450, %449 : vector<4x128xf32>
    %cst_159 = arith.constant 1.000000e+00 : f32
    %452 = vector.broadcast %cst_159 : f32 to vector<4x128xf32>
    %453 = arith.subf %452, %451 : vector<4x128xf32>
    %454 = arith.mulf %447, %453 : vector<4x128xf32>
    %455 = vector.extract_strided_slice %439 {offsets = [0, 2], sizes = [4, 1], strides = [1, 1]} : vector<4x4xf32> to vector<4x1xf32>
    %456 = vector.extract_strided_slice %441 {offsets = [0, 256], sizes = [4, 128], strides = [1, 1]} : vector<4x512xf32> to vector<4x128xf32>
    %457 = vector.broadcast %455 : vector<4x1xf32> to vector<4x128xf32>
    %458 = arith.mulf %457, %456 : vector<4x128xf32>
    %cst_160 = arith.constant 1.000000e+00 : f32
    %459 = vector.broadcast %cst_160 : f32 to vector<4x128xf32>
    %460 = arith.subf %459, %458 : vector<4x128xf32>
    %461 = arith.mulf %454, %460 : vector<4x128xf32>
    %462 = vector.extract_strided_slice %439 {offsets = [0, 3], sizes = [4, 1], strides = [1, 1]} : vector<4x4xf32> to vector<4x1xf32>
    %463 = vector.extract_strided_slice %441 {offsets = [0, 384], sizes = [4, 128], strides = [1, 1]} : vector<4x512xf32> to vector<4x128xf32>
    %464 = vector.broadcast %462 : vector<4x1xf32> to vector<4x128xf32>
    %465 = arith.mulf %464, %463 : vector<4x128xf32>
    %cst_161 = arith.constant 1.000000e+00 : f32
    %466 = vector.broadcast %cst_161 : f32 to vector<4x128xf32>
    %467 = arith.subf %466, %465 : vector<4x128xf32>
    %468 = arith.mulf %461, %467 : vector<4x128xf32>
    %cst_162 = arith.constant 1.000000e+00 : f32
    %469 = vector.broadcast %cst_162 : f32 to vector<4x128xf32>
    %470 = arith.subf %469, %403 : vector<4x128xf32>
    %471 = arith.mulf %437, %470 : vector<4x128xf32>
    %472 = arith.addf %403, %471 : vector<4x128xf32>
    %473 = arith.mulf %472, %468 : vector<4x128xf32>
    %cst_163 = arith.constant 0.999998986 : f32
    %474 = vector.broadcast %cst_163 : f32 to vector<4x128xf32>
    %475 = arith.mulf %473, %474 : vector<4x128xf32>
    %cst_164 = arith.constant 9.99999997E-7 : f32
    %476 = vector.broadcast %cst_164 : f32 to vector<4x128xf32>
    %477 = arith.addf %475, %476 : vector<4x128xf32>
    %478 = vector.shape_cast %477 : vector<4x128xf32> to vector<4x128x1xf32>
    %479 = vector.shape_cast %477 : vector<4x128xf32> to vector<4x1x128xf32>
    %480 = vector.broadcast %478 : vector<4x128x1xf32> to vector<4x128x128xf32>
    %481 = vector.broadcast %479 : vector<4x1x128xf32> to vector<4x128x128xf32>
    %482 = arith.cmpf olt, %480, %481 : vector<4x128x128xf32>
    %483 = vector.broadcast %478 : vector<4x128x1xf32> to vector<4x128x128xf32>
    %484 = vector.broadcast %479 : vector<4x1x128xf32> to vector<4x128x128xf32>
    %485 = arith.cmpf oeq, %483, %484 : vector<4x128x128xf32>
    %486 = vector.broadcast %6 : vector<1x128x128xi1> to vector<4x128x128xi1>
    %487 = arith.andi %485, %486 : vector<4x128x128xi1>
    %488 = arith.ori %482, %487 : vector<4x128x128xi1>
    %489 = math.log %477 : vector<4x128xf32>
    %490 = vector.shape_cast %489 : vector<4x128xf32> to vector<4x128x1xf32>
    %cst_165 = arith.constant 0.000000e+00 : f32
    %491 = vector.shape_cast %490 : vector<4x128x1xf32> to vector<4x128x1xf32>
    %492 = vector.broadcast %491 : vector<4x128x1xf32> to vector<4x128x128xf32>
    %493 = vector.broadcast %cst_165 : f32 to vector<4x128x128xf32>
    %494 = arith.select %488, %492, %493 : vector<4x128x128xi1>, vector<4x128x128xf32>
    %cst_166 = arith.constant dense<0.000000e+00> : vector<4x128xf32>
    %495 = vector.multi_reduction <add>, %494, %cst_166 [1] : vector<4x128x128xf32> to vector<4x128xf32>
    %496 = math.exp %495 : vector<4x128xf32>
    %cst_167 = arith.constant 1.000000e+00 : f32
    %497 = vector.broadcast %cst_167 : f32 to vector<4x128xf32>
    %498 = arith.subf %497, %477 : vector<4x128xf32>
    %499 = arith.mulf %498, %496 : vector<4x128xf32>
    %c6_168 = arith.constant 6 : index
    %c0_169 = arith.constant 0 : index
    %c0_170 = arith.constant 0 : index
    %500 = vector.load %arg6[%c6_168, %c0_169, %c0_170] : memref<8x4x128xf32, #tpu.memory_space<vmem>>, vector<1x4x128xf32>
    %501 = vector.shape_cast %500 : vector<1x4x128xf32> to vector<4x128xf32>
    %502 = vector.shape_cast %499 : vector<4x128xf32> to vector<1x4x128xf32>
    tpu.vector_store %arg6[%c6_168, %c0_169, %c0_170], %502 {strides = array<i32>} : memref<8x4x128xf32, #tpu.memory_space<vmem>>, vector<1x4x128xf32>,
    %c6_171 = arith.constant 6 : index
    %c0_172 = arith.constant 0 : index
    %c0_173 = arith.constant 0 : index
    %503 = vector.load %arg7[%c6_171, %c0_172, %c0_173] : memref<8x4x128xf32, #tpu.memory_space<vmem>>, vector<1x4x128xf32>
    %504 = vector.shape_cast %503 : vector<1x4x128xf32> to vector<4x128xf32>
    %505 = vector.shape_cast %468 : vector<4x128xf32> to vector<1x4x128xf32>
    tpu.vector_store %arg7[%c6_171, %c0_172, %c0_173], %505 {strides = array<i32>} : memref<8x4x128xf32, #tpu.memory_space<vmem>>, vector<1x4x128xf32>,
    %c7 = arith.constant 7 : index
    %c0_174 = arith.constant 0 : index
    %c0_175 = arith.constant 0 : index
    %506 = vector.load %arg2[%c7, %c0_174, %c0_175] : memref<8x4x128xf32, #tpu.memory_space<vmem>>, vector<1x4x128xf32>
    %507 = vector.shape_cast %506 : vector<1x4x128xf32> to vector<4x128xf32>
    %c7_176 = arith.constant 7 : index
    %c0_177 = arith.constant 0 : index
    %c0_178 = arith.constant 0 : index
    %508 = vector.load %arg4[%c7_176, %c0_177, %c0_178] : memref<8x4x4xf32, #tpu.memory_space<vmem>>, vector<1x4x4xf32>
    %509 = vector.shape_cast %508 : vector<1x4x4xf32> to vector<4x4xf32>
    %c7_179 = arith.constant 7 : index
    %c0_180 = arith.constant 0 : index
    %c0_181 = arith.constant 0 : index
    %510 = vector.load %arg3[%c7_179, %c0_180, %c0_181] : memref<8x4x512xf32, #tpu.memory_space<vmem>>, vector<1x4x512xf32>
    %511 = vector.shape_cast %510 : vector<1x4x512xf32> to vector<4x512xf32>
    %512 = vector.extract_strided_slice %509 {offsets = [0, 0], sizes = [4, 1], strides = [1, 1]} : vector<4x4xf32> to vector<4x1xf32>
    %513 = vector.extract_strided_slice %511 {offsets = [0, 0], sizes = [4, 128], strides = [1, 1]} : vector<4x512xf32> to vector<4x128xf32>
    %514 = vector.broadcast %512 : vector<4x1xf32> to vector<4x128xf32>
    %515 = arith.mulf %514, %513 : vector<4x128xf32>
    %cst_182 = arith.constant 1.000000e+00 : f32
    %516 = vector.broadcast %cst_182 : f32 to vector<4x128xf32>
    %517 = arith.subf %516, %515 : vector<4x128xf32>
    %518 = vector.extract_strided_slice %509 {offsets = [0, 1], sizes = [4, 1], strides = [1, 1]} : vector<4x4xf32> to vector<4x1xf32>
    %519 = vector.extract_strided_slice %511 {offsets = [0, 128], sizes = [4, 128], strides = [1, 1]} : vector<4x512xf32> to vector<4x128xf32>
    %520 = vector.broadcast %518 : vector<4x1xf32> to vector<4x128xf32>
    %521 = arith.mulf %520, %519 : vector<4x128xf32>
    %cst_183 = arith.constant 1.000000e+00 : f32
    %522 = vector.broadcast %cst_183 : f32 to vector<4x128xf32>
    %523 = arith.subf %522, %521 : vector<4x128xf32>
    %524 = arith.mulf %517, %523 : vector<4x128xf32>
    %525 = vector.extract_strided_slice %509 {offsets = [0, 2], sizes = [4, 1], strides = [1, 1]} : vector<4x4xf32> to vector<4x1xf32>
    %526 = vector.extract_strided_slice %511 {offsets = [0, 256], sizes = [4, 128], strides = [1, 1]} : vector<4x512xf32> to vector<4x128xf32>
    %527 = vector.broadcast %525 : vector<4x1xf32> to vector<4x128xf32>
    %528 = arith.mulf %527, %526 : vector<4x128xf32>
    %cst_184 = arith.constant 1.000000e+00 : f32
    %529 = vector.broadcast %cst_184 : f32 to vector<4x128xf32>
    %530 = arith.subf %529, %528 : vector<4x128xf32>
    %531 = arith.mulf %524, %530 : vector<4x128xf32>
    %532 = vector.extract_strided_slice %509 {offsets = [0, 3], sizes = [4, 1], strides = [1, 1]} : vector<4x4xf32> to vector<4x1xf32>
    %533 = vector.extract_strided_slice %511 {offsets = [0, 384], sizes = [4, 128], strides = [1, 1]} : vector<4x512xf32> to vector<4x128xf32>
    %534 = vector.broadcast %532 : vector<4x1xf32> to vector<4x128xf32>
    %535 = arith.mulf %534, %533 : vector<4x128xf32>
    %cst_185 = arith.constant 1.000000e+00 : f32
    %536 = vector.broadcast %cst_185 : f32 to vector<4x128xf32>
    %537 = arith.subf %536, %535 : vector<4x128xf32>
    %538 = arith.mulf %531, %537 : vector<4x128xf32>
    %cst_186 = arith.constant 1.000000e+00 : f32
    %539 = vector.broadcast %cst_186 : f32 to vector<4x128xf32>
    %540 = arith.subf %539, %473 : vector<4x128xf32>
    %541 = arith.mulf %507, %540 : vector<4x128xf32>
    %542 = arith.addf %473, %541 : vector<4x128xf32>
    %543 = arith.mulf %542, %538 : vector<4x128xf32>
    %cst_187 = arith.constant 0.999998986 : f32
    %544 = vector.broadcast %cst_187 : f32 to vector<4x128xf32>
    %545 = arith.mulf %543, %544 : vector<4x128xf32>
    %cst_188 = arith.constant 9.99999997E-7 : f32
    %546 = vector.broadcast %cst_188 : f32 to vector<4x128xf32>
    %547 = arith.addf %545, %546 : vector<4x128xf32>
    %548 = vector.shape_cast %547 : vector<4x128xf32> to vector<4x128x1xf32>
    %549 = vector.shape_cast %547 : vector<4x128xf32> to vector<4x1x128xf32>
    %550 = vector.broadcast %548 : vector<4x128x1xf32> to vector<4x128x128xf32>
    %551 = vector.broadcast %549 : vector<4x1x128xf32> to vector<4x128x128xf32>
    %552 = arith.cmpf olt, %550, %551 : vector<4x128x128xf32>
    %553 = vector.broadcast %548 : vector<4x128x1xf32> to vector<4x128x128xf32>
    %554 = vector.broadcast %549 : vector<4x1x128xf32> to vector<4x128x128xf32>
    %555 = arith.cmpf oeq, %553, %554 : vector<4x128x128xf32>
    %556 = vector.broadcast %6 : vector<1x128x128xi1> to vector<4x128x128xi1>
    %557 = arith.andi %555, %556 : vector<4x128x128xi1>
    %558 = arith.ori %552, %557 : vector<4x128x128xi1>
    %559 = math.log %547 : vector<4x128xf32>
    %560 = vector.shape_cast %559 : vector<4x128xf32> to vector<4x128x1xf32>
    %cst_189 = arith.constant 0.000000e+00 : f32
    %561 = vector.shape_cast %560 : vector<4x128x1xf32> to vector<4x128x1xf32>
    %562 = vector.broadcast %561 : vector<4x128x1xf32> to vector<4x128x128xf32>
    %563 = vector.broadcast %cst_189 : f32 to vector<4x128x128xf32>
    %564 = arith.select %558, %562, %563 : vector<4x128x128xi1>, vector<4x128x128xf32>
    %cst_190 = arith.constant dense<0.000000e+00> : vector<4x128xf32>
    %565 = vector.multi_reduction <add>, %564, %cst_190 [1] : vector<4x128x128xf32> to vector<4x128xf32>
    %566 = math.exp %565 : vector<4x128xf32>
    %cst_191 = arith.constant 1.000000e+00 : f32
    %567 = vector.broadcast %cst_191 : f32 to vector<4x128xf32>
    %568 = arith.subf %567, %547 : vector<4x128xf32>
    %569 = arith.mulf %568, %566 : vector<4x128xf32>
    %c7_192 = arith.constant 7 : index
    %c0_193 = arith.constant 0 : index
    %c0_194 = arith.constant 0 : index
    %570 = vector.load %arg6[%c7_192, %c0_193, %c0_194] : memref<8x4x128xf32, #tpu.memory_space<vmem>>, vector<1x4x128xf32>
    %571 = vector.shape_cast %570 : vector<1x4x128xf32> to vector<4x128xf32>
    %572 = vector.shape_cast %569 : vector<4x128xf32> to vector<1x4x128xf32>
    tpu.vector_store %arg6[%c7_192, %c0_193, %c0_194], %572 {strides = array<i32>} : memref<8x4x128xf32, #tpu.memory_space<vmem>>, vector<1x4x128xf32>,
    %c7_195 = arith.constant 7 : index
    %c0_196 = arith.constant 0 : index
    %c0_197 = arith.constant 0 : index
    %573 = vector.load %arg7[%c7_195, %c0_196, %c0_197] : memref<8x4x128xf32, #tpu.memory_space<vmem>>, vector<1x4x128xf32>
    %574 = vector.shape_cast %573 : vector<1x4x128xf32> to vector<4x128xf32>
    %575 = vector.shape_cast %538 : vector<4x128xf32> to vector<1x4x128xf32>
    tpu.vector_store %arg7[%c7_195, %c0_196, %c0_197], %575 {strides = array<i32>} : memref<8x4x128xf32, #tpu.memory_space<vmem>>, vector<1x4x128xf32>,
    %c0_198 = arith.constant 0 : index
    %c0_199 = arith.constant 0 : index
    %576 = vector.load %arg8[%c0_198, %c0_199] : memref<4x128xf32, #tpu.memory_space<vmem>>, vector<4x128xf32>
    tpu.vector_store %arg8[%c0_198, %c0_199], %543 {strides = array<i32>} : memref<4x128xf32, #tpu.memory_space<vmem>>, vector<4x128xf32>,
    return
  }
  func.func @transform_0(%arg0: i32, %arg1: memref<1xi32, #tpu.memory_space<smem>>) -> (i32, i32, i32) {
    %c0_i32 = arith.constant 0 : i32
    %c0_i32_0 = arith.constant 0 : i32
    %c0_i32_1 = arith.constant 0 : i32
    return %arg0, %c0_i32, %c0_i32_0 : i32, i32, i32
  }
  func.func @transform_1(%arg0: i32, %arg1: memref<1xi32, #tpu.memory_space<smem>>) -> (i32, i32, i32) {
    %c0_i32 = arith.constant 0 : i32
    %c0_i32_0 = arith.constant 0 : i32
    %c0_i32_1 = arith.constant 0 : i32
    return %arg0, %c0_i32, %c0_i32_0 : i32, i32, i32
  }
  func.func @transform_2(%arg0: i32, %arg1: memref<1xi32, #tpu.memory_space<smem>>) -> (i32, i32, i32) {
    %c0_i32 = arith.constant 0 : i32
    %c0_i32_0 = arith.constant 0 : i32
    %c0_i32_1 = arith.constant 0 : i32
    return %arg0, %c0_i32, %c0_i32_0 : i32, i32, i32
  }
  func.func @transform_3(%arg0: i32, %arg1: memref<1xi32, #tpu.memory_space<smem>>) -> (i32, i32) {
    %c0_i32 = arith.constant 0 : i32
    %c0_i32_0 = arith.constant 0 : i32
    %c0_i32_1 = arith.constant 0 : i32
    return %c0_i32, %c0_i32_0 : i32, i32
  }
  func.func @transform_4(%arg0: i32, %arg1: memref<1xi32, #tpu.memory_space<smem>>) -> (i32, i32, i32) {
    %c0_i32 = arith.constant 0 : i32
    %c0_i32_0 = arith.constant 0 : i32
    %c0_i32_1 = arith.constant 0 : i32
    return %arg0, %c0_i32, %c0_i32_0 : i32, i32, i32
  }
  func.func @transform_5(%arg0: i32, %arg1: memref<1xi32, #tpu.memory_space<smem>>) -> (i32, i32, i32) {
    %c0_i32 = arith.constant 0 : i32
    %c0_i32_0 = arith.constant 0 : i32
    %c0_i32_1 = arith.constant 0 : i32
    return %arg0, %c0_i32, %c0_i32_0 : i32, i32, i32
  }
  func.func @transform_6(%arg0: i32, %arg1: memref<1xi32, #tpu.memory_space<smem>>) -> (i32, i32) {
    %c0_i32 = arith.constant 0 : i32
    %c0_i32_0 = arith.constant 0 : i32
    %c0_i32_1 = arith.constant 0 : i32
    return %c0_i32, %c0_i32_0 : i32, i32
  }
}

</mosaic_0001>

<llo_original>
// kernel: allocation_forward_sequence.1
$region0: #{allocation_forward_sequence.1}
  #allocation0 [shape = 'u32[]', space=smem, size = 0x4, offset = 0x4, fixed_abs, tag = 'smem constant byte address 0x4 - core index']
  #allocation1 [shape = 'u32[144,128]{1,0:T(1,128)}', space=vmem, size = 0x12000, scoped, tag = 'internal scratch']
  #allocation2 [shape = 's32[1]{0}', space=sflag, size = 0x4, scoped, tag = 'scoped memory for allocation_forward_sequence.1']
  #allocation3 [shape = 's32[1]{0:T(128)S(6)}', space=smem, size = 0x200, scoped, tag = 'prefetched SMEM operand 0']
  %s0 = inlined_call_operand.<no memory space> [shape: s32[1], index: 0, kind: input, shape index: {}]
  %s1 = inlined_call_operand.vmem [shape: f32[16,4,128], index: 1, kind: input, shape index: {}]
  %s2 = inlined_call_operand.vmem [shape: f32[16,4,512], index: 2, kind: input, shape index: {}]
  %s3 = inlined_call_operand.vmem [shape: f32[16,4,4], index: 3, kind: input, shape index: {}]
  %s4 = inlined_call_operand.vmem [shape: f32[4,128], index: 4, kind: input, shape index: {}, may-alias: {4,7}]
  %s5 = inlined_call_operand.vmem [shape: f32[16,4,128], index: 5, kind: output, shape index: {0}]
  %s6 = inlined_call_operand.vmem [shape: f32[16,4,128], index: 6, kind: output, shape index: {1}]
  %s7 = inlined_call_operand.vmem [shape: f32[4,128], index: 7, kind: output, shape index: {2}, may-alias: {4,7}]
  %8 = xla_tuple %s5, %s6, %s7
  %s9 = sld [smem:[#allocation0]]
  $region69: #{allocation_forward_sequence.1} parent=0
    _
  %s11 = ssub.s32 1, %s9
  %s12 = scalar_select 0, %s11, %s9
  %13 = sst [smem:[#allocation3]] %s0
  loop: start=0, step=1, limit=4
  $region2: #{allocation_forward_sequence.1} parent=0 // loop_pre_header
    _
  $region3: #{allocation_forward_sequence.1} parent=0 // loop_header
    %s15 = sphi 0, %s19
    %p16 = scmp.ge.s32.totalorder %s15, 4
    %s25 = sphi 0, %s27
    %s28 = sphi 0, %s25
    %s29 = sphi 0, %s28
    %s45 = sphi 0, %s29
    %s51 = sphi 0, %s53
    %s54 = sphi 0, %s51
    %s55 = sphi 0, %s54
    %s71 = sphi 0, %s55
    %s77 = sphi 0, %s79
    %s80 = sphi 0, %s77
    %s81 = sphi 0, %s80
    %s97 = sphi 0, %s81
    %s101 = sphi 0, %s101
    %s103 = sphi 0, %s101
    %s104 = sphi 0, %s103
    %s118 = sphi 0, %s104
    %s124 = sphi 0, %s126
    %s127 = sphi 0, %s124
    %s128 = sphi 0, %s127
    %s144 = sphi 0, %s128
    %s150 = sphi 0, %s152
    %s153 = sphi 0, %s150
    %s154 = sphi 0, %s153
    %s170 = sphi 0, %s154
    %s174 = sphi 0, %s174
    %s176 = sphi 0, %s174
    %s177 = sphi 0, %s176
    %s191 = sphi 0, %s177
  $region4: #{allocation_forward_sequence.1} parent=0 // loop_header_branch
    %18 = sbr.rel (%p16) target = $region8
  $region5: #{allocation_forward_sequence.1} parent=0 // loop_body
    %s20 = ssub.s32 %s15, 1
    %s21 = ssub.s32 %s15, 2
    %s22 = sadd.s32 %s15, 1
    %s23 = ssub.s32 %s15, %s22
    %p24 = scmp.eq.s32.totalorder %s23, 0
    %s26 = sadd.s32 %s25, 1
    %s27 = scalar_select %p24, %s25, %s26
    %p30 = pneg %p24
    %p31 = scmp.eq.s32.totalorder %s15, 1
    %p32 = por %p30, %p31
    %p33 = scmp.ne.s32.totalorder %s25, %s28
    %p34 = scmp.eq.s32.totalorder %s15, 0
    %p35 = por %p33, %p34
    %p36 = scmp.ne.s32.totalorder %s25, %s28
    %p37 = scmp.eq.s32.totalorder %s20, 1
    %p38 = por %p36, %p37
    %p39 = scmp.ne.s32.totalorder %s28, %s29
    %p40 = scmp.eq.s32.totalorder %s20, 0
    %p41 = por %p39, %p40
    %p42 = scmp.ne.s32.totalorder %s28, %s29
    %p43 = scmp.eq.s32.totalorder %s21, 1
    %p44 = por %p42, %p43
    %p46 = scmp.ne.s32.totalorder %s29, %s45
    %p47 = scmp.eq.s32.totalorder %s21, 0
    %p48 = por %p46, %p47
    %s49 = ssub.s32 %s15, %s22
    %p50 = scmp.eq.s32.totalorder %s49, 0
    %s52 = sadd.s32 %s51, 1
    %s53 = scalar_select %p50, %s51, %s52
    %p56 = pneg %p50
    %p57 = scmp.eq.s32.totalorder %s15, 1
    %p58 = por %p56, %p57
    %p59 = scmp.ne.s32.totalorder %s51, %s54
    %p60 = scmp.eq.s32.totalorder %s15, 0
    %p61 = por %p59, %p60
    %p62 = scmp.ne.s32.totalorder %s51, %s54
    %p63 = scmp.eq.s32.totalorder %s20, 1
    %p64 = por %p62, %p63
    %p65 = scmp.ne.s32.totalorder %s54, %s55
    %p66 = scmp.eq.s32.totalorder %s20, 0
    %p67 = por %p65, %p66
    %p68 = scmp.ne.s32.totalorder %s54, %s55
    %p69 = scmp.eq.s32.totalorder %s21, 1
    %p70 = por %p68, %p69
    %p72 = scmp.ne.s32.totalorder %s55, %s71
    %p73 = scmp.eq.s32.totalorder %s21, 0
    %p74 = por %p72, %p73
    %s75 = ssub.s32 %s15, %s22
    %p76 = scmp.eq.s32.totalorder %s75, 0
    %s78 = sadd.s32 %s77, 1
    %s79 = scalar_select %p76, %s77, %s78
    %p82 = pneg %p76
    %p83 = scmp.eq.s32.totalorder %s15, 1
    %p84 = por %p82, %p83
    %p85 = scmp.ne.s32.totalorder %s77, %s80
    %p86 = scmp.eq.s32.totalorder %s15, 0
    %p87 = por %p85, %p86
    %p88 = scmp.ne.s32.totalorder %s77, %s80
    %p89 = scmp.eq.s32.totalorder %s20, 1
    %p90 = por %p88, %p89
    %p91 = scmp.ne.s32.totalorder %s80, %s81
    %p92 = scmp.eq.s32.totalorder %s20, 0
    %p93 = por %p91, %p92
    %p94 = scmp.ne.s32.totalorder %s80, %s81
    %p95 = scmp.eq.s32.totalorder %s21, 1
    %p96 = por %p94, %p95
    %p98 = scmp.ne.s32.totalorder %s81, %s97
    %p99 = scmp.eq.s32.totalorder %s21, 0
    %p100 = por %p98, %p99
    %s102 = sadd.s32 %s101, 1
    %p105 = scmp.eq.s32.totalorder %s15, 1
    %p106 = scmp.ne.s32.totalorder %s101, %s103
    %p107 = scmp.eq.s32.totalorder %s15, 0
    %p108 = por %p106, %p107
    %p109 = scmp.ne.s32.totalorder %s101, %s103
    %p110 = scmp.eq.s32.totalorder %s20, 1
    %p111 = por %p109, %p110
    %p112 = scmp.ne.s32.totalorder %s103, %s104
    %p113 = scmp.eq.s32.totalorder %s20, 0
    %p114 = por %p112, %p113
    %p115 = scmp.ne.s32.totalorder %s103, %s104
    %p116 = scmp.eq.s32.totalorder %s21, 1
    %p117 = por %p115, %p116
    %p119 = scmp.ne.s32.totalorder %s104, %s118
    %p120 = scmp.eq.s32.totalorder %s21, 0
    %p121 = por %p119, %p120
    %s122 = ssub.s32 %s15, %s22
    %p123 = scmp.eq.s32.totalorder %s122, 0
    %s125 = sadd.s32 %s124, 1
    %s126 = scalar_select %p123, %s124, %s125
    %p129 = pneg %p123
    %p130 = scmp.eq.s32.totalorder %s15, 1
    %p131 = por %p129, %p130
    %p132 = scmp.ne.s32.totalorder %s124, %s127
    %p133 = scmp.eq.s32.totalorder %s15, 0
    %p134 = por %p132, %p133
    %p135 = scmp.ne.s32.totalorder %s124, %s127
    %p136 = scmp.eq.s32.totalorder %s20, 1
    %p137 = por %p135, %p136
    %p138 = scmp.ne.s32.totalorder %s127, %s128
    %p139 = scmp.eq.s32.totalorder %s20, 0
    %p140 = por %p138, %p139
    %p141 = scmp.ne.s32.totalorder %s127, %s128
    %p142 = scmp.eq.s32.totalorder %s21, 1
    %p143 = por %p141, %p142
    %p145 = scmp.ne.s32.totalorder %s128, %s144
    %p146 = scmp.eq.s32.totalorder %s21, 0
    %p147 = por %p145, %p146
    %s148 = ssub.s32 %s15, %s22
    %p149 = scmp.eq.s32.totalorder %s148, 0
    %s151 = sadd.s32 %s150, 1
    %s152 = scalar_select %p149, %s150, %s151
    %p155 = pneg %p149
    %p156 = scmp.eq.s32.totalorder %s15, 1
    %p157 = por %p155, %p156
    %p158 = scmp.ne.s32.totalorder %s150, %s153
    %p159 = scmp.eq.s32.totalorder %s15, 0
    %p160 = por %p158, %p159
    %p161 = scmp.ne.s32.totalorder %s150, %s153
    %p162 = scmp.eq.s32.totalorder %s20, 1
    %p163 = por %p161, %p162
    %p164 = scmp.ne.s32.totalorder %s153, %s154
    %p165 = scmp.eq.s32.totalorder %s20, 0
    %p166 = por %p164, %p165
    %p167 = scmp.ne.s32.totalorder %s153, %s154
    %p168 = scmp.eq.s32.totalorder %s21, 1
    %p169 = por %p167, %p168
    %p171 = scmp.ne.s32.totalorder %s154, %s170
    %p172 = scmp.eq.s32.totalorder %s21, 0
    %p173 = por %p171, %p172
    %s175 = sadd.s32 %s174, 1
    %p178 = scmp.eq.s32.totalorder %s15, 1
    %p179 = scmp.ne.s32.totalorder %s174, %s176
    %p180 = scmp.eq.s32.totalorder %s15, 0
    %p181 = por %p179, %p180
    %p182 = scmp.ne.s32.totalorder %s174, %s176
    %p183 = scmp.eq.s32.totalorder %s20, 1
    %p184 = por %p182, %p183
    %p185 = scmp.ne.s32.totalorder %s176, %s177
    %p186 = scmp.eq.s32.totalorder %s20, 0
    %p187 = por %p185, %p186
    %p188 = scmp.ne.s32.totalorder %s176, %s177
    %p189 = scmp.eq.s32.totalorder %s21, 1
    %p190 = por %p188, %p189
    %p192 = scmp.ne.s32.totalorder %s177, %s191
    %p193 = scmp.eq.s32.totalorder %s21, 0
    %p194 = por %p192, %p193
    %p195 = scmp.le.s32.totalorder 1, %s15
    %p196 = scmp.lt.s32.totalorder %s15, 3
    %p197 = pnand %p195, %p196
    %p198 = pneg %p197
    // Predicated region
    $region9: #{allocation_forward_sequence.1} parent=5 // pred_check
      _
    $region10: #{allocation_forward_sequence.1} parent=5 // pred_check_branch
      %200 = sbr.rel (%p197) target = $region12
    $region11: #{allocation_forward_sequence.1} parent=5 // pred_region
      %s201 = ssub.s32 %s15, 1
      // Predicated region
      $region13: #{allocation_forward_sequence.1} parent=11 // pred_check
        %p202 = pneg %p114
      $region14: #{allocation_forward_sequence.1} parent=11 // pred_check_branch
        %204 = sbr.rel (%p202) target = $region16
      $region15: #{allocation_forward_sequence.1} parent=11 // pred_region
        _
      $region16: #{allocation_forward_sequence.1} parent=11 // pred_fallthru
        _
    $region12: #{allocation_forward_sequence.1} parent=5 // pred_fallthru
      _
    %p205 = scmp.lt.s32.totalorder %s15, 2
    // Predicated region
    $region17: #{allocation_forward_sequence.1} parent=5 // pred_check
      %p206 = pneg %p205
    $region18: #{allocation_forward_sequence.1} parent=5 // pred_check_branch
      %208 = sbr.rel (%p206) target = $region20
    $region19: #{allocation_forward_sequence.1} parent=5 // pred_region
      // Predicated region
      $region21: #{allocation_forward_sequence.1} parent=19 // pred_check
        %p209 = pneg %p35
      $region22: #{allocation_forward_sequence.1} parent=19 // pred_check_branch
        %211 = sbr.rel (%p209) target = $region24
      $region23: #{allocation_forward_sequence.1} parent=19 // pred_region
        %s212 = smul.u32 8, %s15
        %p213 = scmp.lt.s32.totalorder %s212, 15
        %s214 = scalar_select %p213, %s212, 15
        %s215 = smul.addr %s214, 4
        %s216 = scalar_lea.vmem %s1, %s215
        %s217 = smul.u32 8, %s15
      $region24: #{allocation_forward_sequence.1} parent=19 // pred_fallthru
        _
      // Predicated region
      $region25: #{allocation_forward_sequence.1} parent=19 // pred_check
        %p218 = pneg %p61
      $region26: #{allocation_forward_sequence.1} parent=19 // pred_check_branch
        %220 = sbr.rel (%p218) target = $region28
      $region27: #{allocation_forward_sequence.1} parent=19 // pred_region
        %s221 = smul.u32 8, %s15
        %p222 = scmp.lt.s32.totalorder %s221, 15
        %s223 = scalar_select %p222, %s221, 15
        %s224 = smul.addr %s223, 4
        %s225 = smul.addr %s224, 4
        %s226 = scalar_lea.vmem %s2, %s225
        %s227 = smul.u32 8, %s15
      $region28: #{allocation_forward_sequence.1} parent=19 // pred_fallthru
        _
      // Predicated region
      $region29: #{allocation_forward_sequence.1} parent=19 // pred_check
        %p228 = pneg %p87
      $region30: #{allocation_forward_sequence.1} parent=19 // pred_check_branch
        %230 = sbr.rel (%p228) target = $region32
      $region31: #{allocation_forward_sequence.1} parent=19 // pred_region
        %s231 = smul.u32 8, %s15
        %p232 = scmp.lt.s32.totalorder %s231, 15
        %s233 = scalar_select %p232, %s231, 15
        %s234 = smul.addr %s233, 4
        %s235 = scalar_lea.vmem %s3, %s234
        %s236 = smul.u32 8, %s15
      $region32: #{allocation_forward_sequence.1} parent=19 // pred_fallthru
        _
    $region20: #{allocation_forward_sequence.1} parent=5 // pred_fallthru
      _
    %p237 = scmp.le.s32.totalorder 1, %s15
    %p238 = scmp.lt.s32.totalorder %s15, 3
    %p239 = pnand %p237, %p238
    %p240 = pneg %p239
    // Predicated region
    $region33: #{allocation_forward_sequence.1} parent=5 // pred_check
      _
    $region34: #{allocation_forward_sequence.1} parent=5 // pred_check_branch
      %242 = sbr.rel (%p239) target = $region36
    $region35: #{allocation_forward_sequence.1} parent=5 // pred_region
      %s243 = ssub.s32 %s15, 1
      %s244 = smul.u32 8, %s20
      %p245 = scmp.lt.s32.totalorder %s244, 15
      %s246 = scalar_select %p245, %s244, 15
      %s247 = smul.addr %s246, 4
      %s248 = scalar_lea.vmem %s1, %s247
      %p249 = pneg %p41
      %p250 = pneg %p38
      %s251 = smul.u32 8, %s20
      %p252 = scmp.lt.s32.totalorder %s251, 15
      %s253 = scalar_select %p252, %s251, 15
      %s254 = smul.addr %s253, 4
      %s255 = smul.addr %s254, 4
      %s256 = scalar_lea.vmem %s2, %s255
      %p257 = pneg %p67
      %p258 = pneg %p64
      %s259 = smul.u32 8, %s20
      %p260 = scmp.lt.s32.totalorder %s259, 15
      %s261 = scalar_select %p260, %s259, 15
      %s262 = smul.addr %s261, 4
      %s263 = scalar_lea.vmem %s3, %s262
      %p264 = pneg %p93
      %p265 = pneg %p90
      %p266 = pneg %p114
      %p267 = pneg %p111
      %p268 = pneg %p140
      %p269 = pneg %p137
      %s270 = smul.u32 8, %s20
      %p271 = scmp.lt.s32.totalorder %s270, 15
      %s272 = scalar_select %p271, %s270, 15
      %s273 = smul.addr %s272, 4
      %s274 = scalar_lea.vmem %s5, %s273
      %p275 = pneg %p166
      %p276 = pneg %p163
      %s277 = smul.u32 8, %s20
      %p278 = scmp.lt.s32.totalorder %s277, 15
      %s279 = scalar_select %p278, %s277, 15
      %s280 = smul.addr %s279, 4
      %s281 = scalar_lea.vmem %s6, %s280
      %p282 = pneg %p187
      %p283 = pneg %p184
      %s284 = smul.u32 8, %s20
      %p285 = scmp.lt.s32.totalorder %s284, 15
      %s286 = scalar_select %p285, %s284, 15
      %s287 = smul.addr %s286, 4
      %s288 = scalar_lea.vmem %s1, %s287
      %s289 = smul.u32 8, %s20
      %s290 = smul.u32 8, %s20
      %p291 = scmp.lt.s32.totalorder %s290, 15
      %s292 = scalar_select %p291, %s290, 15
      %s293 = smul.addr %s292, 4
      %s294 = smul.addr %s293, 4
      %s295 = scalar_lea.vmem %s2, %s294
      %s296 = smul.u32 8, %s20
      %s297 = smul.u32 8, %s20
      %p298 = scmp.lt.s32.totalorder %s297, 15
      %s299 = scalar_select %p298, %s297, 15
      %s300 = smul.addr %s299, 4
      %s301 = scalar_lea.vmem %s3, %s300
      %s302 = smul.u32 8, %s20
      %s303 = smul.u32 8, %s20
      %p304 = scmp.lt.s32.totalorder %s303, 15
      %s305 = scalar_select %p304, %s303, 15
      %s306 = smul.addr %s305, 4
      %s307 = scalar_lea.vmem %s5, %s306
      %s308 = smul.u32 8, %s20
      %s309 = smul.u32 8, %s20
      %p310 = scmp.lt.s32.totalorder %s309, 15
      %s311 = scalar_select %p310, %s309, 15
      %s312 = smul.addr %s311, 4
      %s313 = scalar_lea.vmem %s6, %s312
      %s314 = smul.u32 8, %s20
      %p315 = scmp.eq.s32.totalorder %s20, 0
      // Predicated region
      $region37: #{allocation_forward_sequence.1} parent=35 // pred_check
        %p316 = pneg %p315
      $region38: #{allocation_forward_sequence.1} parent=35 // pred_check_branch
        %318 = sbr.rel (%p316) target = $region40
      $region39: #{allocation_forward_sequence.1} parent=35 // pred_region
        %v319 = vld [vmem:[%s4] sm:$0xf]
        %320 = vst [vmem:[%s7] sm:$0xf] %v319
      $region40: #{allocation_forward_sequence.1} parent=35 // pred_fallthru
        _
      %v321 = vld [vmem:[%s7] sm:$0xf]
      %v322 = vlaneseq
      %v323 = vshrl.u32 %v322, 7
      %v324 = vadd.s32 %v323, 8
      %v325 = vadd.s32 %v323, 16
      %v326 = vadd.s32 %v323, 24
      %v327 = vadd.s32 %v323, 32
      %v328 = vadd.s32 %v323, 40
      %v329 = vadd.s32 %v323, 48
      %v330 = vadd.s32 %v323, 56
      %v331 = vadd.s32 %v323, 64
      %v332 = vadd.s32 %v323, 72
      %v333 = vadd.s32 %v323, 80
      %v334 = vadd.s32 %v323, 88
      %v335 = vadd.s32 %v323, 96
      %v336 = vadd.s32 %v323, 104
      %v337 = vadd.s32 %v323, 112
      %v338 = vadd.s32 %v323, 120
      %v339 = vlaneseq
      %v340 = vand.u32 %v339, 127
      %vm341 = vcmp.lt.s32.totalorder %v323, %v340
      %vm342 = vcmp.lt.s32.totalorder %v324, %v340
      %vm343 = vcmp.lt.s32.totalorder %v325, %v340
      %vm344 = vcmp.lt.s32.totalorder %v326, %v340
      %vm345 = vcmp.lt.s32.totalorder %v327, %v340
      %vm346 = vcmp.lt.s32.totalorder %v328, %v340
      %vm347 = vcmp.lt.s32.totalorder %v329, %v340
      %vm348 = vcmp.lt.s32.totalorder %v330, %v340
      %vm349 = vcmp.lt.s32.totalorder %v331, %v340
      %vm350 = vcmp.lt.s32.totalorder %v332, %v340
      %vm351 = vcmp.lt.s32.totalorder %v333, %v340
      %vm352 = vcmp.lt.s32.totalorder %v334, %v340
      %vm353 = vcmp.lt.s32.totalorder %v335, %v340
      %vm354 = vcmp.lt.s32.totalorder %v336, %v340
      %vm355 = vcmp.lt.s32.totalorder %v337, %v340
      %vm356 = vcmp.lt.s32.totalorder %v338, %v340
      %s357 = sld [smem:[#allocation3]]
      %p358 = scmp.ne.s32.totalorder %s357, 0
      %p359 = pnand %p315, %p358
      %p360 = pneg %p359
      %s361 = scalar_select %p360, 1, 0
      %s362 = scvt.s32.f32 %s361
      %s363 = ssub.f32 1.0, %s362
      %v364 = vld [vmem:[%s288] sm:$0xf]
      %v365 = vld [vmem:[%s301] sm:$0xf]
      %v366 = vld [vmem:[%s295] sm:$0xff]
      %v367 = vld [vmem:[%s295 + $0x8] sm:$0xff]
      %369 = vset.pattern.permute.xlu0 0
      %370 = vperm.xlu0 %369, %v365
      %v371 = vpop.permute.xlu0 %370
      %v373 = vmul.f32 %v371, %v366
      %v374 = vsub.f32 1.0, %v373
      %375 = vset.pattern.permute.xlu0 1
      %376 = vperm.xlu0 %375, %v365
      %v377 = vpop.permute.xlu0 %376
      %v380 = vcombine.high %v366, %v366
      %v382 = vmul.f32 %v377, %v380
      %v383 = vsub.f32 1.0, %v382
      %v384 = vmul.f32 %v374, %v383
      %385 = vset.pattern.permute.xlu0 2
      %386 = vperm.xlu0 %385, %v365
      %v387 = vpop.permute.xlu0 %386
      %v389 = vmul.f32 %v387, %v367
      %v390 = vsub.f32 1.0, %v389
      %v391 = vmul.f32 %v384, %v390
      %392 = vset.pattern.permute.xlu0 3
      %393 = vperm.xlu0 %392, %v365
      %v394 = vpop.permute.xlu0 %393
      %v397 = vcombine.high %v367, %v367
      %v399 = vmul.f32 %v394, %v397
      %v400 = vsub.f32 1.0, %v399
      %v401 = vmul.f32 %v391, %v400
      %v402 = vsub.f32 1.0, %v321
      %v403 = vmul.f32 %v364, %v402
      %v404 = vadd.f32 %v321, %v403
      %v405 = vmul.f32 %v404, %v401
      %v406 = vstv %s363
      %v407 = vmul.f32 %v405, %v406
      %v408 = vmul.f32 %v407, 0.999999
      %v409 = vadd.f32 %v408, 1e-06
      %v410 = vlaneseq
      %v411 = vshrl.u32 %v410, 7
      %v412 = vsub.s32 0, %v411
      %v413 = vrot.slane %v409, %v412
      %415 = vbcast.lane.b32.xlu0 %v413, 256
      %v416 = vpop.permute.xlu0 %415
      %s418 = sor.u32 256, 8
      %419 = vbcast.lane.b32.xlu0 %v413, %s418
      %v420 = vpop.permute.xlu0 %419
      %s422 = sor.u32 256, 16
      %423 = vbcast.lane.b32.xlu0 %v413, %s422
      %v424 = vpop.permute.xlu0 %423
      %s426 = sor.u32 256, 24
      %427 = vbcast.lane.b32.xlu0 %v413, %s426
      %v428 = vpop.permute.xlu0 %427
      %s430 = sor.u32 256, 32
      %431 = vbcast.lane.b32.xlu0 %v413, %s430
      %v432 = vpop.permute.xlu0 %431
      %s434 = sor.u32 256, 40
      %435 = vbcast.lane.b32.xlu0 %v413, %s434
      %v436 = vpop.permute.xlu0 %435
      %s438 = sor.u32 256, 48
      %439 = vbcast.lane.b32.xlu0 %v413, %s438
      %v440 = vpop.permute.xlu0 %439
      %s442 = sor.u32 256, 56
      %443 = vbcast.lane.b32.xlu0 %v413, %s442
      %v444 = vpop.permute.xlu0 %443
      %s446 = sor.u32 256, 64
      %447 = vbcast.lane.b32.xlu0 %v413, %s446
      %v448 = vpop.permute.xlu0 %447
      %s450 = sor.u32 256, 72
      %451 = vbcast.lane.b32.xlu0 %v413, %s450
      %v452 = vpop.permute.xlu0 %451
      %s454 = sor.u32 256, 80
      %455 = vbcast.lane.b32.xlu0 %v413, %s454
      %v456 = vpop.permute.xlu0 %455
      %s458 = sor.u32 256, 88
      %459 = vbcast.lane.b32.xlu0 %v413, %s458
      %v460 = vpop.permute.xlu0 %459
      %s462 = sor.u32 256, 96
      %463 = vbcast.lane.b32.xlu0 %v413, %s462
      %v464 = vpop.permute.xlu0 %463
      %s466 = sor.u32 256, 104
      %467 = vbcast.lane.b32.xlu0 %v413, %s466
      %v468 = vpop.permute.xlu0 %467
      %s470 = sor.u32 256, 112
      %471 = vbcast.lane.b32.xlu0 %v413, %s470
      %v472 = vpop.permute.xlu0 %471
      %s474 = sor.u32 256, 120
      %475 = vbcast.lane.b32.xlu0 %v413, %s474
      %v476 = vpop.permute.xlu0 %475
      %v477 = vlaneseq
      %v478 = vshrl.u32 %v477, 7
      %v479 = vsub.s32 1, %v478
      %v480 = vrot.slane %v409, %v479
      %482 = vbcast.lane.b32.xlu0 %v480, 256
      %v483 = vpop.permute.xlu0 %482
      %s485 = sor.u32 256, 8
      %486 = vbcast.lane.b32.xlu0 %v480, %s485
      %v487 = vpop.permute.xlu0 %486
      %s489 = sor.u32 256, 16
      %490 = vbcast.lane.b32.xlu0 %v480, %s489
      %v491 = vpop.permute.xlu0 %490
      %s493 = sor.u32 256, 24
      %494 = vbcast.lane.b32.xlu0 %v480, %s493
      %v495 = vpop.permute.xlu0 %494
      %s497 = sor.u32 256, 32
      %498 = vbcast.lane.b32.xlu0 %v480, %s497
      %v499 = vpop.permute.xlu0 %498
      %s501 = sor.u32 256, 40
      %502 = vbcast.lane.b32.xlu0 %v480, %s501
      %v503 = vpop.permute.xlu0 %502
      %s505 = sor.u32 256, 48
      %506 = vbcast.lane.b32.xlu0 %v480, %s505
      %v507 = vpop.permute.xlu0 %506
      %s509 = sor.u32 256, 56
      %510 = vbcast.lane.b32.xlu0 %v480, %s509
      %v511 = vpop.permute.xlu0 %510
      %s513 = sor.u32 256, 64
      %514 = vbcast.lane.b32.xlu0 %v480, %s513
      %v515 = vpop.permute.xlu0 %514
      %s517 = sor.u32 256, 72
      %518 = vbcast.lane.b32.xlu0 %v480, %s517
      %v519 = vpop.permute.xlu0 %518
      %s521 = sor.u32 256, 80
      %522 = vbcast.lane.b32.xlu0 %v480, %s521
      %v523 = vpop.permute.xlu0 %522
      %s525 = sor.u32 256, 88
      %526 = vbcast.lane.b32.xlu0 %v480, %s525
      %v527 = vpop.permute.xlu0 %526
      %s529 = sor.u32 256, 96
      %530 = vbcast.lane.b32.xlu0 %v480, %s529
      %v531 = vpop.permute.xlu0 %530
      %s533 = sor.u32 256, 104
      %534 = vbcast.lane.b32.xlu0 %v480, %s533
      %v535 = vpop.permute.xlu0 %534
      %s537 = sor.u32 256, 112
      %538 = vbcast.lane.b32.xlu0 %v480, %s537
      %v539 = vpop.permute.xlu0 %538
      %s541 = sor.u32 256, 120
      %542 = vbcast.lane.b32.xlu0 %v480, %s541
      %v543 = vpop.permute.xlu0 %542
      %v544 = vlaneseq
      %v545 = vshrl.u32 %v544, 7
      %v546 = vsub.s32 2, %v545
      %v547 = vrot.slane %v409, %v546
      %549 = vbcast.lane.b32.xlu0 %v547, 256
      %v550 = vpop.permute.xlu0 %549
      %s552 = sor.u32 256, 8
      %553 = vbcast.lane.b32.xlu0 %v547, %s552
      %v554 = vpop.permute.xlu0 %553
      %s556 = sor.u32 256, 16
      %557 = vbcast.lane.b32.xlu0 %v547, %s556
      %v558 = vpop.permute.xlu0 %557
      %s560 = sor.u32 256, 24
      %561 = vbcast.lane.b32.xlu0 %v547, %s560
      %v562 = vpop.permute.xlu0 %561
      %s564 = sor.u32 256, 32
      %565 = vbcast.lane.b32.xlu0 %v547, %s564
      %v566 = vpop.permute.xlu0 %565
      %s568 = sor.u32 256, 40
      %569 = vbcast.lane.b32.xlu0 %v547, %s568
      %v570 = vpop.permute.xlu0 %569
      %s572 = sor.u32 256, 48
      %573 = vbcast.lane.b32.xlu0 %v547, %s572
      %v574 = vpop.permute.xlu0 %573
      %s576 = sor.u32 256, 56
      %577 = vbcast.lane.b32.xlu0 %v547, %s576
      %v578 = vpop.permute.xlu0 %577
      %s580 = sor.u32 256, 64
      %581 = vbcast.lane.b32.xlu0 %v547, %s580
      %v582 = vpop.permute.xlu0 %581
      %s584 = sor.u32 256, 72
      %585 = vbcast.lane.b32.xlu0 %v547, %s584
      %v586 = vpop.permute.xlu0 %585
      %s588 = sor.u32 256, 80
      %589 = vbcast.lane.b32.xlu0 %v547, %s588
      %v590 = vpop.permute.xlu0 %589
      %s592 = sor.u32 256, 88
      %593 = vbcast.lane.b32.xlu0 %v547, %s592
      %v594 = vpop.permute.xlu0 %593
      %s596 = sor.u32 256, 96
      %597 = vbcast.lane.b32.xlu0 %v547, %s596
      %v598 = vpop.permute.xlu0 %597
      %s600 = sor.u32 256, 104
      %601 = vbcast.lane.b32.xlu0 %v547, %s600
      %v602 = vpop.permute.xlu0 %601
      %s604 = sor.u32 256, 112
      %605 = vbcast.lane.b32.xlu0 %v547, %s604
      %v606 = vpop.permute.xlu0 %605
      %s608 = sor.u32 256, 120
      %609 = vbcast.lane.b32.xlu0 %v547, %s608
      %v610 = vpop.permute.xlu0 %609
      %v611 = vlaneseq
      %v612 = vshrl.u32 %v611, 7
      %v613 = vsub.s32 3, %v612
      %v614 = vrot.slane %v409, %v613
      %616 = vbcast.lane.b32.xlu0 %v614, 256
      %v617 = vpop.permute.xlu0 %616
      %s619 = sor.u32 256, 8
      %620 = vbcast.lane.b32.xlu0 %v614, %s619
      %v621 = vpop.permute.xlu0 %620
      %s623 = sor.u32 256, 16
      %624 = vbcast.lane.b32.xlu0 %v614, %s623
      %v625 = vpop.permute.xlu0 %624
      %s627 = sor.u32 256, 24
      %628 = vbcast.lane.b32.xlu0 %v614, %s627
      %v629 = vpop.permute.xlu0 %628
      %s631 = sor.u32 256, 32
      %632 = vbcast.lane.b32.xlu0 %v614, %s631
      %v633 = vpop.permute.xlu0 %632
      %s635 = sor.u32 256, 40
      %636 = vbcast.lane.b32.xlu0 %v614, %s635
      %v637 = vpop.permute.xlu0 %636
      %s639 = sor.u32 256, 48
      %640 = vbcast.lane.b32.xlu0 %v614, %s639
      %v641 = vpop.permute.xlu0 %640
      %s643 = sor.u32 256, 56
      %644 = vbcast.lane.b32.xlu0 %v614, %s643
      %v645 = vpop.permute.xlu0 %644
      %s647 = sor.u32 256, 64
      %648 = vbcast.lane.b32.xlu0 %v614, %s647
      %v649 = vpop.permute.xlu0 %648
      %s651 = sor.u32 256, 72
      %652 = vbcast.lane.b32.xlu0 %v614, %s651
      %v653 = vpop.permute.xlu0 %652
      %s655 = sor.u32 256, 80
      %656 = vbcast.lane.b32.xlu0 %v614, %s655
      %v657 = vpop.permute.xlu0 %656
      %s659 = sor.u32 256, 88
      %660 = vbcast.lane.b32.xlu0 %v614, %s659
      %v661 = vpop.permute.xlu0 %660
      %s663 = sor.u32 256, 96
      %664 = vbcast.lane.b32.xlu0 %v614, %s663
      %v665 = vpop.permute.xlu0 %664
      %s667 = sor.u32 256, 104
      %668 = vbcast.lane.b32.xlu0 %v614, %s667
      %v669 = vpop.permute.xlu0 %668
      %s671 = sor.u32 256, 112
      %672 = vbcast.lane.b32.xlu0 %v614, %s671
      %v673 = vpop.permute.xlu0 %672
      %s675 = sor.u32 256, 120
      %676 = vbcast.lane.b32.xlu0 %v614, %s675
      %v677 = vpop.permute.xlu0 %676
      %v680 = vunpack.c.l.s4 1966171168
      %v681 = vunpack.c.0.s8 %v680
      %v682 = vlaneseq
      %v683 = vshrl.u32 %v682, 7
      %v684 = vsub.s32 %v681, %v683
      %v685 = vrot.slane %v409, %v684
      %v686 = vcombine.high %v685, %v685
      %v688 = vunpack.c.l.s4 1966171168
      %v689 = vunpack.c.0.s8 %v688
      %v690 = vlaneseq
      %v691 = vshrl.u32 %v690, 7
      %v692 = vsub.s32 %v689, %v691
      %v693 = vrot.slane %v685, %v692
      %v695 = vunpack.c.l.s4 1966171168
      %v696 = vunpack.c.0.s8 %v695
      %v697 = vlaneseq
      %v698 = vshrl.u32 %v697, 7
      %v699 = vsub.s32 %v696, %v698
      %v700 = vrot.slane %v686, %v699
      %v701 = vcombine.high %v693, %v693
      %v702 = vcombine.high %v700, %v700
      %v703 = vlaneseq
      %v704 = vshrl.u32 %v703, 7
      %v705 = vsub.s32 0, %v704
      %v706 = vrot.slane %v693, %v705
      %v707 = vlaneseq
      %v708 = vshrl.u32 %v707, 7
      %v709 = vsub.s32 0, %v708
      %v710 = vrot.slane %v700, %v709
      %v711 = vlaneseq
      %v712 = vshrl.u32 %v711, 7
      %v713 = vsub.s32 0, %v712
      %v714 = vrot.slane %v701, %v713
      %v715 = vlaneseq
      %v716 = vshrl.u32 %v715, 7
      %v717 = vsub.s32 0, %v716
      %v718 = vrot.slane %v702, %v717
      %vm723 = vcmp.lt.f32.partialorder %v416, %v706
      %vm724 = vcmp.lt.f32.partialorder %v420, %v706
      %vm725 = vcmp.lt.f32.partialorder %v424, %v706
      %vm726 = vcmp.lt.f32.partialorder %v428, %v706
      %vm727 = vcmp.lt.f32.partialorder %v432, %v706
      %vm728 = vcmp.lt.f32.partialorder %v436, %v706
      %vm729 = vcmp.lt.f32.partialorder %v440, %v706
      %vm730 = vcmp.lt.f32.partialorder %v444, %v706
      %vm731 = vcmp.lt.f32.partialorder %v448, %v706
      %vm732 = vcmp.lt.f32.partialorder %v452, %v706
      %vm733 = vcmp.lt.f32.partialorder %v456, %v706
      %vm734 = vcmp.lt.f32.partialorder %v460, %v706
      %vm735 = vcmp.lt.f32.partialorder %v464, %v706
      %vm736 = vcmp.lt.f32.partialorder %v468, %v706
      %vm737 = vcmp.lt.f32.partialorder %v472, %v706
      %vm738 = vcmp.lt.f32.partialorder %v476, %v706
      %vm739 = vcmp.lt.f32.partialorder %v483, %v710
      %vm740 = vcmp.lt.f32.partialorder %v487, %v710
      %vm741 = vcmp.lt.f32.partialorder %v491, %v710
      %vm742 = vcmp.lt.f32.partialorder %v495, %v710
      %vm743 = vcmp.lt.f32.partialorder %v499, %v710
      %vm744 = vcmp.lt.f32.partialorder %v503, %v710
      %vm745 = vcmp.lt.f32.partialorder %v507, %v710
      %vm746 = vcmp.lt.f32.partialorder %v511, %v710
      %vm747 = vcmp.lt.f32.partialorder %v515, %v710
      %vm748 = vcmp.lt.f32.partialorder %v519, %v710
      %vm749 = vcmp.lt.f32.partialorder %v523, %v710
      %vm750 = vcmp.lt.f32.partialorder %v527, %v710
      %vm751 = vcmp.lt.f32.partialorder %v531, %v710
      %vm752 = vcmp.lt.f32.partialorder %v535, %v710
      %vm753 = vcmp.lt.f32.partialorder %v539, %v710
      %vm754 = vcmp.lt.f32.partialorder %v543, %v710
      %vm755 = vcmp.lt.f32.partialorder %v550, %v714
      %vm756 = vcmp.lt.f32.partialorder %v554, %v714
      %vm757 = vcmp.lt.f32.partialorder %v558, %v714
      %vm758 = vcmp.lt.f32.partialorder %v562, %v714
      %vm759 = vcmp.lt.f32.partialorder %v566, %v714
      %vm760 = vcmp.lt.f32.partialorder %v570, %v714
      %vm761 = vcmp.lt.f32.partialorder %v574, %v714
      %vm762 = vcmp.lt.f32.partialorder %v578, %v714
      %vm763 = vcmp.lt.f32.partialorder %v582, %v714
      %vm764 = vcmp.lt.f32.partialorder %v586, %v714
      %vm765 = vcmp.lt.f32.partialorder %v590, %v714
      %vm766 = vcmp.lt.f32.partialorder %v594, %v714
      %vm767 = vcmp.lt.f32.partialorder %v598, %v714
      %vm768 = vcmp.lt.f32.partialorder %v602, %v714
      %vm769 = vcmp.lt.f32.partialorder %v606, %v714
      %vm770 = vcmp.lt.f32.partialorder %v610, %v714
      %vm771 = vcmp.lt.f32.partialorder %v617, %v718
      %vm772 = vcmp.lt.f32.partialorder %v621, %v718
      %vm773 = vcmp.lt.f32.partialorder %v625, %v718
      %vm774 = vcmp.lt.f32.partialorder %v629, %v718
      %vm775 = vcmp.lt.f32.partialorder %v633, %v718
      %vm776 = vcmp.lt.f32.partialorder %v637, %v718
      %vm777 = vcmp.lt.f32.partialorder %v641, %v718
      %vm778 = vcmp.lt.f32.partialorder %v645, %v718
      %vm779 = vcmp.lt.f32.partialorder %v649, %v718
      %vm780 = vcmp.lt.f32.partialorder %v653, %v718
      %vm781 = vcmp.lt.f32.partialorder %v657, %v718
      %vm782 = vcmp.lt.f32.partialorder %v661, %v718
      %vm783 = vcmp.lt.f32.partialorder %v665, %v718
      %vm784 = vcmp.lt.f32.partialorder %v669, %v718
      %vm785 = vcmp.lt.f32.partialorder %v673, %v718
      %vm786 = vcmp.lt.f32.partialorder %v677, %v718
      %vm787 = vcmp.eq.f32.partialorder %v416, %v706
      %vm788 = vcmp.eq.f32.partialorder %v420, %v706
      %vm789 = vcmp.eq.f32.partialorder %v424, %v706
      %vm790 = vcmp.eq.f32.partialorder %v428, %v706
      %vm791 = vcmp.eq.f32.partialorder %v432, %v706
      %vm792 = vcmp.eq.f32.partialorder %v436, %v706
      %vm793 = vcmp.eq.f32.partialorder %v440, %v706
      %vm794 = vcmp.eq.f32.partialorder %v444, %v706
      %vm795 = vcmp.eq.f32.partialorder %v448, %v706
      %vm796 = vcmp.eq.f32.partialorder %v452, %v706
      %vm797 = vcmp.eq.f32.partialorder %v456, %v706
      %vm798 = vcmp.eq.f32.partialorder %v460, %v706
      %vm799 = vcmp.eq.f32.partialorder %v464, %v706
      %vm800 = vcmp.eq.f32.partialorder %v468, %v706
      %vm801 = vcmp.eq.f32.partialorder %v472, %v706
      %vm802 = vcmp.eq.f32.partialorder %v476, %v706
      %vm803 = vcmp.eq.f32.partialorder %v483, %v710
      %vm804 = vcmp.eq.f32.partialorder %v487, %v710
      %vm805 = vcmp.eq.f32.partialorder %v491, %v710
      %vm806 = vcmp.eq.f32.partialorder %v495, %v710
      %vm807 = vcmp.eq.f32.partialorder %v499, %v710
      %vm808 = vcmp.eq.f32.partialorder %v503, %v710
      %vm809 = vcmp.eq.f32.partialorder %v507, %v710
      %vm810 = vcmp.eq.f32.partialorder %v511, %v710
      %vm811 = vcmp.eq.f32.partialorder %v515, %v710
      %vm812 = vcmp.eq.f32.partialorder %v519, %v710
      %vm813 = vcmp.eq.f32.partialorder %v523, %v710
      %vm814 = vcmp.eq.f32.partialorder %v527, %v710
      %vm815 = vcmp.eq.f32.partialorder %v531, %v710
      %vm816 = vcmp.eq.f32.partialorder %v535, %v710
      %vm817 = vcmp.eq.f32.partialorder %v539, %v710
      %vm818 = vcmp.eq.f32.partialorder %v543, %v710
      %vm819 = vcmp.eq.f32.partialorder %v550, %v714
      %vm820 = vcmp.eq.f32.partialorder %v554, %v714
      %vm821 = vcmp.eq.f32.partialorder %v558, %v714
      %vm822 = vcmp.eq.f32.partialorder %v562, %v714
      %vm823 = vcmp.eq.f32.partialorder %v566, %v714
      %vm824 = vcmp.eq.f32.partialorder %v570, %v714
      %vm825 = vcmp.eq.f32.partialorder %v574, %v714
      %vm826 = vcmp.eq.f32.partialorder %v578, %v714
      %vm827 = vcmp.eq.f32.partialorder %v582, %v714
      %vm828 = vcmp.eq.f32.partialorder %v586, %v714
      %vm829 = vcmp.eq.f32.partialorder %v590, %v714
      %vm830 = vcmp.eq.f32.partialorder %v594, %v714
      %vm831 = vcmp.eq.f32.partialorder %v598, %v714
      %vm832 = vcmp.eq.f32.partialorder %v602, %v714
      %vm833 = vcmp.eq.f32.partialorder %v606, %v714
      %vm834 = vcmp.eq.f32.partialorder %v610, %v714
      %vm835 = vcmp.eq.f32.partialorder %v617, %v718
      %vm836 = vcmp.eq.f32.partialorder %v621, %v718
      %vm837 = vcmp.eq.f32.partialorder %v625, %v718
      %vm838 = vcmp.eq.f32.partialorder %v629, %v718
      %vm839 = vcmp.eq.f32.partialorder %v633, %v718
      %vm840 = vcmp.eq.f32.partialorder %v637, %v718
      %vm841 = vcmp.eq.f32.partialorder %v641, %v718
      %vm842 = vcmp.eq.f32.partialorder %v645, %v718
      %vm843 = vcmp.eq.f32.partialorder %v649, %v718
      %vm844 = vcmp.eq.f32.partialorder %v653, %v718
      %vm845 = vcmp.eq.f32.partialorder %v657, %v718
      %vm846 = vcmp.eq.f32.partialorder %v661, %v718
      %vm847 = vcmp.eq.f32.partialorder %v665, %v718
      %vm848 = vcmp.eq.f32.partialorder %v669, %v718
      %vm849 = vcmp.eq.f32.partialorder %v673, %v718
      %vm850 = vcmp.eq.f32.partialorder %v677, %v718
      %v851 = vsel %vm341, 1, 0
      %v852 = vsel %vm342, 1, 0
      %v853 = vsel %vm343, 1, 0
      %v854 = vsel %vm344, 1, 0
      %v855 = vsel %vm345, 1, 0
      %v856 = vsel %vm346, 1, 0
      %v857 = vsel %vm347, 1, 0
      %v858 = vsel %vm348, 1, 0
      %v859 = vsel %vm349, 1, 0
      %v860 = vsel %vm350, 1, 0
      %v861 = vsel %vm351, 1, 0
      %v862 = vsel %vm352, 1, 0
      %v863 = vsel %vm353, 1, 0
      %v864 = vsel %vm354, 1, 0
      %v865 = vsel %vm355, 1, 0
      %v866 = vsel %vm356, 1, 0
      %vm867 = vcmp.eq.s32.totalorder %v851, 1
      %vm868 = vcmp.eq.s32.totalorder %v852, 1
      %vm869 = vcmp.eq.s32.totalorder %v853, 1
      %vm870 = vcmp.eq.s32.totalorder %v854, 1
      %vm871 = vcmp.eq.s32.totalorder %v855, 1
      %vm872 = vcmp.eq.s32.totalorder %v856, 1
      %vm873 = vcmp.eq.s32.totalorder %v857, 1
      %vm874 = vcmp.eq.s32.totalorder %v858, 1
      %vm875 = vcmp.eq.s32.totalorder %v859, 1
      %vm876 = vcmp.eq.s32.totalorder %v860, 1
      %vm877 = vcmp.eq.s32.totalorder %v861, 1
      %vm878 = vcmp.eq.s32.totalorder %v862, 1
      %vm879 = vcmp.eq.s32.totalorder %v863, 1
      %vm880 = vcmp.eq.s32.totalorder %v864, 1
      %vm881 = vcmp.eq.s32.totalorder %v865, 1
      %vm882 = vcmp.eq.s32.totalorder %v866, 1
      %vm883 = vmand %vm787, %vm867
      %vm884 = vmand %vm788, %vm868
      %vm885 = vmand %vm789, %vm869
      %vm886 = vmand %vm790, %vm870
      %vm887 = vmand %vm791, %vm871
      %vm888 = vmand %vm792, %vm872
      %vm889 = vmand %vm793, %vm873
      %vm890 = vmand %vm794, %vm874
      %vm891 = vmand %vm795, %vm875
      %vm892 = vmand %vm796, %vm876
      %vm893 = vmand %vm797, %vm877
      %vm894 = vmand %vm798, %vm878
      %vm895 = vmand %vm799, %vm879
      %vm896 = vmand %vm800, %vm880
      %vm897 = vmand %vm801, %vm881
      %vm898 = vmand %vm802, %vm882
      %vm899 = vmand %vm803, %vm867
      %vm900 = vmand %vm804, %vm868
      %vm901 = vmand %vm805, %vm869
      %vm902 = vmand %vm806, %vm870
      %vm903 = vmand %vm807, %vm871
      %vm904 = vmand %vm808, %vm872
      %vm905 = vmand %vm809, %vm873
      %vm906 = vmand %vm810, %vm874
      %vm907 = vmand %vm811, %vm875
      %vm908 = vmand %vm812, %vm876
      %vm909 = vmand %vm813, %vm877
      %vm910 = vmand %vm814, %vm878
      %vm911 = vmand %vm815, %vm879
      %vm912 = vmand %vm816, %vm880
      %vm913 = vmand %vm817, %vm881
      %vm914 = vmand %vm818, %vm882
      %vm915 = vmand %vm819, %vm867
      %vm916 = vmand %vm820, %vm868
      %vm917 = vmand %vm821, %vm869
      %vm918 = vmand %vm822, %vm870
      %vm919 = vmand %vm823, %vm871
      %vm920 = vmand %vm824, %vm872
      %vm921 = vmand %vm825, %vm873
      %vm922 = vmand %vm826, %vm874
      %vm923 = vmand %vm827, %vm875
      %vm924 = vmand %vm828, %vm876
      %vm925 = vmand %vm829, %vm877
      %vm926 = vmand %vm830, %vm878
      %vm927 = vmand %vm831, %vm879
      %vm928 = vmand %vm832, %vm880
      %vm929 = vmand %vm833, %vm881
      %vm930 = vmand %vm834, %vm882
      %vm931 = vmand %vm835, %vm867
      %vm932 = vmand %vm836, %vm868
      %vm933 = vmand %vm837, %vm869
      %vm934 = vmand %vm838, %vm870
      %vm935 = vmand %vm839, %vm871
      %vm936 = vmand %vm840, %vm872
      %vm937 = vmand %vm841, %vm873
      %vm938 = vmand %vm842, %vm874
      %vm939 = vmand %vm843, %vm875
      %vm940 = vmand %vm844, %vm876
      %vm941 = vmand %vm845, %vm877
      %vm942 = vmand %vm846, %vm878
      %vm943 = vmand %vm847, %vm879
      %vm944 = vmand %vm848, %vm880
      %vm945 = vmand %vm849, %vm881
      %vm946 = vmand %vm850, %vm882
      %vm947 = vmor %vm723, %vm883
      %vm948 = vmor %vm724, %vm884
      %vm949 = vmor %vm725, %vm885
      %vm950 = vmor %vm726, %vm886
      %vm951 = vmor %vm727, %vm887
      %vm952 = vmor %vm728, %vm888
      %vm953 = vmor %vm729, %vm889
      %vm954 = vmor %vm730, %vm890
      %vm955 = vmor %vm731, %vm891
      %vm956 = vmor %vm732, %vm892
      %vm957 = vmor %vm733, %vm893
      %vm958 = vmor %vm734, %vm894
      %vm959 = vmor %vm735, %vm895
      %vm960 = vmor %vm736, %vm896
      %vm961 = vmor %vm737, %vm897
      %vm962 = vmor %vm738, %vm898
      %vm963 = vmor %vm739, %vm899
      %vm964 = vmor %vm740, %vm900
      %vm965 = vmor %vm741, %vm901
      %vm966 = vmor %vm742, %vm902
      %vm967 = vmor %vm743, %vm903
      %vm968 = vmor %vm744, %vm904
      %vm969 = vmor %vm745, %vm905
      %vm970 = vmor %vm746, %vm906
      %vm971 = vmor %vm747, %vm907
      %vm972 = vmor %vm748, %vm908
      %vm973 = vmor %vm749, %vm909
      %vm974 = vmor %vm750, %vm910
      %vm975 = vmor %vm751, %vm911
      %vm976 = vmor %vm752, %vm912
      %vm977 = vmor %vm753, %vm913
      %vm978 = vmor %vm754, %vm914
      %vm979 = vmor %vm755, %vm915
      %vm980 = vmor %vm756, %vm916
      %vm981 = vmor %vm757, %vm917
      %vm982 = vmor %vm758, %vm918
      %vm983 = vmor %vm759, %vm919
      %vm984 = vmor %vm760, %vm920
      %vm985 = vmor %vm761, %vm921
      %vm986 = vmor %vm762, %vm922
      %vm987 = vmor %vm763, %vm923
      %vm988 = vmor %vm764, %vm924
      %vm989 = vmor %vm765, %vm925
      %vm990 = vmor %vm766, %vm926
      %vm991 = vmor %vm767, %vm927
      %vm992 = vmor %vm768, %vm928
      %vm993 = vmor %vm769, %vm929
      %vm994 = vmor %vm770, %vm930
      %vm995 = vmor %vm771, %vm931
      %vm996 = vmor %vm772, %vm932
      %vm997 = vmor %vm773, %vm933
      %vm998 = vmor %vm774, %vm934
      %vm999 = vmor %vm775, %vm935
      %vm1000 = vmor %vm776, %vm936
      %vm1001 = vmor %vm777, %vm937
      %vm1002 = vmor %vm778, %vm938
      %vm1003 = vmor %vm779, %vm939
      %vm1004 = vmor %vm780, %vm940
      %vm1005 = vmor %vm781, %vm941
      %vm1006 = vmor %vm782, %vm942
      %vm1007 = vmor %vm783, %vm943
      %vm1008 = vmor %vm784, %vm944
      %vm1009 = vmor %vm785, %vm945
      %vm1010 = vmor %vm786, %vm946
      %v1011 = vlog2.pop %v409
      %v1012 = vmul.f32 %v1011, 0.6931472
      %v1013 = vlaneseq
      %v1014 = vshrl.u32 %v1013, 7
      %v1015 = vsub.s32 0, %v1014
      %v1016 = vrot.slane %v1012, %v1015
      %1018 = vbcast.lane.b32.xlu0 %v1016, 256
      %v1019 = vpop.permute.xlu0 %1018
      %s1021 = sor.u32 256, 8
      %1022 = vbcast.lane.b32.xlu0 %v1016, %s1021
      %v1023 = vpop.permute.xlu0 %1022
      %s1025 = sor.u32 256, 16
      %1026 = vbcast.lane.b32.xlu0 %v1016, %s1025
      %v1027 = vpop.permute.xlu0 %1026
      %s1029 = sor.u32 256, 24
      %1030 = vbcast.lane.b32.xlu0 %v1016, %s1029
      %v1031 = vpop.permute.xlu0 %1030
      %s1033 = sor.u32 256, 32
      %1034 = vbcast.lane.b32.xlu0 %v1016, %s1033
      %v1035 = vpop.permute.xlu0 %1034
      %s1037 = sor.u32 256, 40
      %1038 = vbcast.lane.b32.xlu0 %v1016, %s1037
      %v1039 = vpop.permute.xlu0 %1038
      %s1041 = sor.u32 256, 48
      %1042 = vbcast.lane.b32.xlu0 %v1016, %s1041
      %v1043 = vpop.permute.xlu0 %1042
      %s1045 = sor.u32 256, 56
      %1046 = vbcast.lane.b32.xlu0 %v1016, %s1045
      %v1047 = vpop.permute.xlu0 %1046
      %s1049 = sor.u32 256, 64
      %1050 = vbcast.lane.b32.xlu0 %v1016, %s1049
      %v1051 = vpop.permute.xlu0 %1050
      %s1053 = sor.u32 256, 72
      %1054 = vbcast.lane.b32.xlu0 %v1016, %s1053
      %v1055 = vpop.permute.xlu0 %1054
      %s1057 = sor.u32 256, 80
      %1058 = vbcast.lane.b32.xlu0 %v1016, %s1057
      %v1059 = vpop.permute.xlu0 %1058
      %s1061 = sor.u32 256, 88
      %1062 = vbcast.lane.b32.xlu0 %v1016, %s1061
      %v1063 = vpop.permute.xlu0 %1062
      %s1065 = sor.u32 256, 96
      %1066 = vbcast.lane.b32.xlu0 %v1016, %s1065
      %v1067 = vpop.permute.xlu0 %1066
      %s1069 = sor.u32 256, 104
      %1070 = vbcast.lane.b32.xlu0 %v1016, %s1069
      %v1071 = vpop.permute.xlu0 %1070
      %s1073 = sor.u32 256, 112
      %1074 = vbcast.lane.b32.xlu0 %v1016, %s1073
      %v1075 = vpop.permute.xlu0 %1074
      %s1077 = sor.u32 256, 120
      %1078 = vbcast.lane.b32.xlu0 %v1016, %s1077
      %v1079 = vpop.permute.xlu0 %1078
      %v1080 = vlaneseq
      %v1081 = vshrl.u32 %v1080, 7
      %v1082 = vsub.s32 1, %v1081
      %v1083 = vrot.slane %v1012, %v1082
      %1085 = vbcast.lane.b32.xlu0 %v1083, 256
      %v1086 = vpop.permute.xlu0 %1085
      %s1088 = sor.u32 256, 8
      %1089 = vbcast.lane.b32.xlu0 %v1083, %s1088
      %v1090 = vpop.permute.xlu0 %1089
      %s1092 = sor.u32 256, 16
      %1093 = vbcast.lane.b32.xlu0 %v1083, %s1092
      %v1094 = vpop.permute.xlu0 %1093
      %s1096 = sor.u32 256, 24
      %1097 = vbcast.lane.b32.xlu0 %v1083, %s1096
      %v1098 = vpop.permute.xlu0 %1097
      %s1100 = sor.u32 256, 32
      %1101 = vbcast.lane.b32.xlu0 %v1083, %s1100
      %v1102 = vpop.permute.xlu0 %1101
      %s1104 = sor.u32 256, 40
      %1105 = vbcast.lane.b32.xlu0 %v1083, %s1104
      %v1106 = vpop.permute.xlu0 %1105
      %s1108 = sor.u32 256, 48
      %1109 = vbcast.lane.b32.xlu0 %v1083, %s1108
      %v1110 = vpop.permute.xlu0 %1109
      %s1112 = sor.u32 256, 56
      %1113 = vbcast.lane.b32.xlu0 %v1083, %s1112
      %v1114 = vpop.permute.xlu0 %1113
      %s1116 = sor.u32 256, 64
      %1117 = vbcast.lane.b32.xlu0 %v1083, %s1116
      %v1118 = vpop.permute.xlu0 %1117
      %s1120 = sor.u32 256, 72
      %1121 = vbcast.lane.b32.xlu0 %v1083, %s1120
      %v1122 = vpop.permute.xlu0 %1121
      %s1124 = sor.u32 256, 80
      %1125 = vbcast.lane.b32.xlu0 %v1083, %s1124
      %v1126 = vpop.permute.xlu0 %1125
      %s1128 = sor.u32 256, 88
      %1129 = vbcast.lane.b32.xlu0 %v1083, %s1128
      %v1130 = vpop.permute.xlu0 %1129
      %s1132 = sor.u32 256, 96
      %1133 = vbcast.lane.b32.xlu0 %v1083, %s1132
      %v1134 = vpop.permute.xlu0 %1133
      %s1136 = sor.u32 256, 104
      %1137 = vbcast.lane.b32.xlu0 %v1083, %s1136
      %v1138 = vpop.permute.xlu0 %1137
      %s1140 = sor.u32 256, 112
      %1141 = vbcast.lane.b32.xlu0 %v1083, %s1140
      %v1142 = vpop.permute.xlu0 %1141
      %s1144 = sor.u32 256, 120
      %1145 = vbcast.lane.b32.xlu0 %v1083, %s1144
      %v1146 = vpop.permute.xlu0 %1145
      %v1147 = vlaneseq
      %v1148 = vshrl.u32 %v1147, 7
      %v1149 = vsub.s32 2, %v1148
      %v1150 = vrot.slane %v1012, %v1149
      %1152 = vbcast.lane.b32.xlu0 %v1150, 256
      %v1153 = vpop.permute.xlu0 %1152
      %s1155 = sor.u32 256, 8
      %1156 = vbcast.lane.b32.xlu0 %v1150, %s1155
      %v1157 = vpop.permute.xlu0 %1156
      %s1159 = sor.u32 256, 16
      %1160 = vbcast.lane.b32.xlu0 %v1150, %s1159
      %v1161 = vpop.permute.xlu0 %1160
      %s1163 = sor.u32 256, 24
      %1164 = vbcast.lane.b32.xlu0 %v1150, %s1163
      %v1165 = vpop.permute.xlu0 %1164
      %s1167 = sor.u32 256, 32
      %1168 = vbcast.lane.b32.xlu0 %v1150, %s1167
      %v1169 = vpop.permute.xlu0 %1168
      %s1171 = sor.u32 256, 40
      %1172 = vbcast.lane.b32.xlu0 %v1150, %s1171
      %v1173 = vpop.permute.xlu0 %1172
      %s1175 = sor.u32 256, 48
      %1176 = vbcast.lane.b32.xlu0 %v1150, %s1175
      %v1177 = vpop.permute.xlu0 %1176
      %s1179 = sor.u32 256, 56
      %1180 = vbcast.lane.b32.xlu0 %v1150, %s1179
      %v1181 = vpop.permute.xlu0 %1180
      %s1183 = sor.u32 256, 64
      %1184 = vbcast.lane.b32.xlu0 %v1150, %s1183
      %v1185 = vpop.permute.xlu0 %1184
      %s1187 = sor.u32 256, 72
      %1188 = vbcast.lane.b32.xlu0 %v1150, %s1187
      %v1189 = vpop.permute.xlu0 %1188
      %s1191 = sor.u32 256, 80
      %1192 = vbcast.lane.b32.xlu0 %v1150, %s1191
      %v1193 = vpop.permute.xlu0 %1192
      %s1195 = sor.u32 256, 88
      %1196 = vbcast.lane.b32.xlu0 %v1150, %s1195
      %v1197 = vpop.permute.xlu0 %1196
      %s1199 = sor.u32 256, 96
      %1200 = vbcast.lane.b32.xlu0 %v1150, %s1199
      %v1201 = vpop.permute.xlu0 %1200
      %s1203 = sor.u32 256, 104
      %1204 = vbcast.lane.b32.xlu0 %v1150, %s1203
      %v1205 = vpop.permute.xlu0 %1204
      %s1207 = sor.u32 256, 112
      %1208 = vbcast.lane.b32.xlu0 %v1150, %s1207
      %v1209 = vpop.permute.xlu0 %1208
      %s1211 = sor.u32 256, 120
      %1212 = vbcast.lane.b32.xlu0 %v1150, %s1211
      %v1213 = vpop.permute.xlu0 %1212
      %v1214 = vlaneseq
      %v1215 = vshrl.u32 %v1214, 7
      %v1216 = vsub.s32 3, %v1215
      %v1217 = vrot.slane %v1012, %v1216
      %1219 = vbcast.lane.b32.xlu0 %v1217, 256
      %v1220 = vpop.permute.xlu0 %1219
      %s1222 = sor.u32 256, 8
      %1223 = vbcast.lane.b32.xlu0 %v1217, %s1222
      %v1224 = vpop.permute.xlu0 %1223
      %s1226 = sor.u32 256, 16
      %1227 = vbcast.lane.b32.xlu0 %v1217, %s1226
      %v1228 = vpop.permute.xlu0 %1227
      %s1230 = sor.u32 256, 24
      %1231 = vbcast.lane.b32.xlu0 %v1217, %s1230
      %v1232 = vpop.permute.xlu0 %1231
      %s1234 = sor.u32 256, 32
      %1235 = vbcast.lane.b32.xlu0 %v1217, %s1234
      %v1236 = vpop.permute.xlu0 %1235
      %s1238 = sor.u32 256, 40
      %1239 = vbcast.lane.b32.xlu0 %v1217, %s1238
      %v1240 = vpop.permute.xlu0 %1239
      %s1242 = sor.u32 256, 48
      %1243 = vbcast.lane.b32.xlu0 %v1217, %s1242
      %v1244 = vpop.permute.xlu0 %1243
      %s1246 = sor.u32 256, 56
      %1247 = vbcast.lane.b32.xlu0 %v1217, %s1246
      %v1248 = vpop.permute.xlu0 %1247
      %s1250 = sor.u32 256, 64
      %1251 = vbcast.lane.b32.xlu0 %v1217, %s1250
      %v1252 = vpop.permute.xlu0 %1251
      %s1254 = sor.u32 256, 72
      %1255 = vbcast.lane.b32.xlu0 %v1217, %s1254
      %v1256 = vpop.permute.xlu0 %1255
      %s1258 = sor.u32 256, 80
      %1259 = vbcast.lane.b32.xlu0 %v1217, %s1258
      %v1260 = vpop.permute.xlu0 %1259
      %s1262 = sor.u32 256, 88
      %1263 = vbcast.lane.b32.xlu0 %v1217, %s1262
      %v1264 = vpop.permute.xlu0 %1263
      %s1266 = sor.u32 256, 96
      %1267 = vbcast.lane.b32.xlu0 %v1217, %s1266
      %v1268 = vpop.permute.xlu0 %1267
      %s1270 = sor.u32 256, 104
      %1271 = vbcast.lane.b32.xlu0 %v1217, %s1270
      %v1272 = vpop.permute.xlu0 %1271
      %s1274 = sor.u32 256, 112
      %1275 = vbcast.lane.b32.xlu0 %v1217, %s1274
      %v1276 = vpop.permute.xlu0 %1275
      %s1278 = sor.u32 256, 120
      %1279 = vbcast.lane.b32.xlu0 %v1217, %s1278
      %v1280 = vpop.permute.xlu0 %1279
      %v1281 = vsel %vm947, %v1019, 0.0
      %v1282 = vsel %vm948, %v1023, 0.0
      %v1283 = vsel %vm949, %v1027, 0.0
      %v1284 = vsel %vm950, %v1031, 0.0
      %v1285 = vsel %vm951, %v1035, 0.0
      %v1286 = vsel %vm952, %v1039, 0.0
      %v1287 = vsel %vm953, %v1043, 0.0
      %v1288 = vsel %vm954, %v1047, 0.0
      %v1289 = vsel %vm955, %v1051, 0.0
      %v1290 = vsel %vm956, %v1055, 0.0
      %v1291 = vsel %vm957, %v1059, 0.0
      %v1292 = vsel %vm958, %v1063, 0.0
      %v1293 = vsel %vm959, %v1067, 0.0
      %v1294 = vsel %vm960, %v1071, 0.0
      %v1295 = vsel %vm961, %v1075, 0.0
      %v1296 = vsel %vm962, %v1079, 0.0
      %v1297 = vsel %vm963, %v1086, 0.0
      %v1298 = vsel %vm964, %v1090, 0.0
      %v1299 = vsel %vm965, %v1094, 0.0
      %v1300 = vsel %vm966, %v1098, 0.0
      %v1301 = vsel %vm967, %v1102, 0.0
      %v1302 = vsel %vm968, %v1106, 0.0
      %v1303 = vsel %vm969, %v1110, 0.0
      %v1304 = vsel %vm970, %v1114, 0.0
      %v1305 = vsel %vm971, %v1118, 0.0
      %v1306 = vsel %vm972, %v1122, 0.0
      %v1307 = vsel %vm973, %v1126, 0.0
      %v1308 = vsel %vm974, %v1130, 0.0
      %v1309 = vsel %vm975, %v1134, 0.0
      %v1310 = vsel %vm976, %v1138, 0.0
      %v1311 = vsel %vm977, %v1142, 0.0
      %v1312 = vsel %vm978, %v1146, 0.0
      %v1313 = vsel %vm979, %v1153, 0.0
      %v1314 = vsel %vm980, %v1157, 0.0
      %v1315 = vsel %vm981, %v1161, 0.0
      %v1316 = vsel %vm982, %v1165, 0.0
      %v1317 = vsel %vm983, %v1169, 0.0
      %v1318 = vsel %vm984, %v1173, 0.0
      %v1319 = vsel %vm985, %v1177, 0.0
      %v1320 = vsel %vm986, %v1181, 0.0
      %v1321 = vsel %vm987, %v1185, 0.0
      %v1322 = vsel %vm988, %v1189, 0.0
      %v1323 = vsel %vm989, %v1193, 0.0
      %v1324 = vsel %vm990, %v1197, 0.0
      %v1325 = vsel %vm991, %v1201, 0.0
      %v1326 = vsel %vm992, %v1205, 0.0
      %v1327 = vsel %vm993, %v1209, 0.0
      %v1328 = vsel %vm994, %v1213, 0.0
      %v1329 = vsel %vm995, %v1220, 0.0
      %v1330 = vsel %vm996, %v1224, 0.0
      %v1331 = vsel %vm997, %v1228, 0.0
      %v1332 = vsel %vm998, %v1232, 0.0
      %v1333 = vsel %vm999, %v1236, 0.0
      %v1334 = vsel %vm1000, %v1240, 0.0
      %v1335 = vsel %vm1001, %v1244, 0.0
      %v1336 = vsel %vm1002, %v1248, 0.0
      %v1337 = vsel %vm1003, %v1252, 0.0
      %v1338 = vsel %vm1004, %v1256, 0.0
      %v1339 = vsel %vm1005, %v1260, 0.0
      %v1340 = vsel %vm1006, %v1264, 0.0
      %v1341 = vsel %vm1007, %v1268, 0.0
      %v1342 = vsel %vm1008, %v1272, 0.0
      %v1343 = vsel %vm1009, %v1276, 0.0
      %v1344 = vsel %vm1010, %v1280, 0.0
      %v1345 = vadd.f32 %v1281, %v1282
      %v1346 = vadd.f32 %v1345, %v1283
      %v1347 = vadd.f32 %v1346, %v1284
      %v1348 = vadd.f32 %v1347, %v1285
      %v1349 = vadd.f32 %v1348, %v1286
      %v1350 = vadd.f32 %v1349, %v1287
      %v1351 = vadd.f32 %v1350, %v1288
      %v1352 = vadd.f32 %v1351, %v1289
      %v1353 = vadd.f32 %v1352, %v1290
      %v1354 = vadd.f32 %v1353, %v1291
      %v1355 = vadd.f32 %v1354, %v1292
      %v1356 = vadd.f32 %v1355, %v1293
      %v1357 = vadd.f32 %v1356, %v1294
      %v1358 = vadd.f32 %v1357, %v1295
      %v1359 = vadd.f32 %v1358, %v1296
      %v1360 = vrot.slane %v1359, 4
      %v1361 = vadd.f32 %v1359, %v1360
      %v1362 = vrot.slane %v1361, 2
      %v1363 = vadd.f32 %v1361, %v1362
      %v1364 = vrot.slane %v1363, 1
      %v1365 = vadd.f32 %v1363, %v1364
      %v1366 = vadd.f32 %v1297, %v1298
      %v1367 = vadd.f32 %v1366, %v1299
      %v1368 = vadd.f32 %v1367, %v1300
      %v1369 = vadd.f32 %v1368, %v1301
      %v1370 = vadd.f32 %v1369, %v1302
      %v1371 = vadd.f32 %v1370, %v1303
      %v1372 = vadd.f32 %v1371, %v1304
      %v1373 = vadd.f32 %v1372, %v1305
      %v1374 = vadd.f32 %v1373, %v1306
      %v1375 = vadd.f32 %v1374, %v1307
      %v1376 = vadd.f32 %v1375, %v1308
      %v1377 = vadd.f32 %v1376, %v1309
      %v1378 = vadd.f32 %v1377, %v1310
      %v1379 = vadd.f32 %v1378, %v1311
      %v1380 = vadd.f32 %v1379, %v1312
      %v1381 = vrot.slane %v1380, 4
      %v1382 = vadd.f32 %v1380, %v1381
      %v1383 = vrot.slane %v1382, 2
      %v1384 = vadd.f32 %v1382, %v1383
      %v1385 = vrot.slane %v1384, 1
      %v1386 = vadd.f32 %v1384, %v1385
      %v1387 = vadd.f32 %v1313, %v1314
      %v1388 = vadd.f32 %v1387, %v1315
      %v1389 = vadd.f32 %v1388, %v1316
      %v1390 = vadd.f32 %v1389, %v1317
      %v1391 = vadd.f32 %v1390, %v1318
      %v1392 = vadd.f32 %v1391, %v1319
      %v1393 = vadd.f32 %v1392, %v1320
      %v1394 = vadd.f32 %v1393, %v1321
      %v1395 = vadd.f32 %v1394, %v1322
      %v1396 = vadd.f32 %v1395, %v1323
      %v1397 = vadd.f32 %v1396, %v1324
      %v1398 = vadd.f32 %v1397, %v1325
      %v1399 = vadd.f32 %v1398, %v1326
      %v1400 = vadd.f32 %v1399, %v1327
      %v1401 = vadd.f32 %v1400, %v1328
      %v1402 = vrot.slane %v1401, 4
      %v1403 = vadd.f32 %v1401, %v1402
      %v1404 = vrot.slane %v1403, 2
      %v1405 = vadd.f32 %v1403, %v1404
      %v1406 = vrot.slane %v1405, 1
      %v1407 = vadd.f32 %v1405, %v1406
      %v1408 = vadd.f32 %v1329, %v1330
      %v1409 = vadd.f32 %v1408, %v1331
      %v1410 = vadd.f32 %v1409, %v1332
      %v1411 = vadd.f32 %v1410, %v1333
      %v1412 = vadd.f32 %v1411, %v1334
      %v1413 = vadd.f32 %v1412, %v1335
      %v1414 = vadd.f32 %v1413, %v1336
      %v1415 = vadd.f32 %v1414, %v1337
      %v1416 = vadd.f32 %v1415, %v1338
      %v1417 = vadd.f32 %v1416, %v1339
      %v1418 = vadd.f32 %v1417, %v1340
      %v1419 = vadd.f32 %v1418, %v1341
      %v1420 = vadd.f32 %v1419, %v1342
      %v1421 = vadd.f32 %v1420, %v1343
      %v1422 = vadd.f32 %v1421, %v1344
      %v1423 = vrot.slane %v1422, 4
      %v1424 = vadd.f32 %v1422, %v1423
      %v1425 = vrot.slane %v1424, 2
      %v1426 = vadd.f32 %v1424, %v1425
      %v1427 = vrot.slane %v1426, 1
      %v1428 = vadd.f32 %v1426, %v1427
      %v1429 = vmul.f32 %v1365, 1.442695
      %v1430 = vpow.pop %v1429
      %v1431 = vmul.f32 %v1386, 1.442695
      %v1432 = vpow.pop %v1431
      %v1433 = vmul.f32 %v1407, 1.442695
      %v1434 = vpow.pop %v1433
      %v1435 = vmul.f32 %v1428, 1.442695
      %v1436 = vpow.pop %v1435
      %v1437 = vsub.f32 1.0, %v409
      %vm1442 = vcmask 1041409
      %v1443 = vsel %vm1442, %v1432, %v1430
      %vm1444 = vcmask 1042434
      %v1445 = vsel %vm1444, %v1434, %v1443
      %vm1446 = vcmask 1043459
      %v1447 = vsel %vm1446, %v1436, %v1445
      %v1449 = vmul.f32 %v1437, %v1447
      %1450 = vst [vmem:[%s307] sm:$0xf] %v1449
      %1451 = vst [vmem:[%s313] sm:$0xf] %v401
      %s1452 = scalar_lea.vmem %s288, 4
      %v1453 = vld [vmem:[%s1452] sm:$0xf]
      %s1454 = scalar_lea.vmem %s301, 4
      %v1455 = vld [vmem:[%s1454] sm:$0xf]
      %s1456 = scalar_lea.vmem %s295, 16
      %v1457 = vld [vmem:[%s1456] sm:$0xff]
      %v1458 = vld [vmem:[%s1456 + $0x8] sm:$0xff]
      %1460 = vset.pattern.permute.xlu0 0
      %1461 = vperm.xlu0 %1460, %v1455
      %v1462 = vpop.permute.xlu0 %1461
      %v1464 = vmul.f32 %v1462, %v1457
      %v1465 = vsub.f32 1.0, %v1464
      %1466 = vset.pattern.permute.xlu0 1
      %1467 = vperm.xlu0 %1466, %v1455
      %v1468 = vpop.permute.xlu0 %1467
      %v1471 = vcombine.high %v1457, %v1457
      %v1473 = vmul.f32 %v1468, %v1471
      %v1474 = vsub.f32 1.0, %v1473
      %v1475 = vmul.f32 %v1465, %v1474
      %1476 = vset.pattern.permute.xlu0 2
      %1477 = vperm.xlu0 %1476, %v1455
      %v1478 = vpop.permute.xlu0 %1477
      %v1480 = vmul.f32 %v1478, %v1458
      %v1481 = vsub.f32 1.0, %v1480
      %v1482 = vmul.f32 %v1475, %v1481
      %1483 = vset.pattern.permute.xlu0 3
      %1484 = vperm.xlu0 %1483, %v1455
      %v1485 = vpop.permute.xlu0 %1484
      %v1488 = vcombine.high %v1458, %v1458
      %v1490 = vmul.f32 %v1485, %v1488
      %v1491 = vsub.f32 1.0, %v1490
      %v1492 = vmul.f32 %v1482, %v1491
      %v1493 = vsub.f32 1.0, %v407
      %v1494 = vmul.f32 %v1453, %v1493
      %v1495 = vadd.f32 %v407, %v1494
      %v1496 = vmul.f32 %v1495, %v1492
      %v1497 = vmul.f32 %v1496, 0.999999
      %v1498 = vadd.f32 %v1497, 1e-06
      %v1499 = vlaneseq
      %v1500 = vshrl.u32 %v1499, 7
      %v1501 = vsub.s32 0, %v1500
      %v1502 = vrot.slane %v1498, %v1501
      %1504 = vbcast.lane.b32.xlu0 %v1502, 256
      %v1505 = vpop.permute.xlu0 %1504
      %s1507 = sor.u32 256, 8
      %1508 = vbcast.lane.b32.xlu0 %v1502, %s1507
      %v1509 = vpop.permute.xlu0 %1508
      %s1511 = sor.u32 256, 16
      %1512 = vbcast.lane.b32.xlu0 %v1502, %s1511
      %v1513 = vpop.permute.xlu0 %1512
      %s1515 = sor.u32 256, 24
      %1516 = vbcast.lane.b32.xlu0 %v1502, %s1515
      %v1517 = vpop.permute.xlu0 %1516
      %s1519 = sor.u32 256, 32
      %1520 = vbcast.lane.b32.xlu0 %v1502, %s1519
      %v1521 = vpop.permute.xlu0 %1520
      %s1523 = sor.u32 256, 40
      %1524 = vbcast.lane.b32.xlu0 %v1502, %s1523
      %v1525 = vpop.permute.xlu0 %1524
      %s1527 = sor.u32 256, 48
      %1528 = vbcast.lane.b32.xlu0 %v1502, %s1527
      %v1529 = vpop.permute.xlu0 %1528
      %s1531 = sor.u32 256, 56
      %1532 = vbcast.lane.b32.xlu0 %v1502, %s1531
      %v1533 = vpop.permute.xlu0 %1532
      %s1535 = sor.u32 256, 64
      %1536 = vbcast.lane.b32.xlu0 %v1502, %s1535
      %v1537 = vpop.permute.xlu0 %1536
      %s1539 = sor.u32 256, 72
      %1540 = vbcast.lane.b32.xlu0 %v1502, %s1539
      %v1541 = vpop.permute.xlu0 %1540
      %s1543 = sor.u32 256, 80
      %1544 = vbcast.lane.b32.xlu0 %v1502, %s1543
      %v1545 = vpop.permute.xlu0 %1544
      %s1547 = sor.u32 256, 88
      %1548 = vbcast.lane.b32.xlu0 %v1502, %s1547
      %v1549 = vpop.permute.xlu0 %1548
      %s1551 = sor.u32 256, 96
      %1552 = vbcast.lane.b32.xlu0 %v1502, %s1551
      %v1553 = vpop.permute.xlu0 %1552
      %s1555 = sor.u32 256, 104
      %1556 = vbcast.lane.b32.xlu0 %v1502, %s1555
      %v1557 = vpop.permute.xlu0 %1556
      %s1559 = sor.u32 256, 112
      %1560 = vbcast.lane.b32.xlu0 %v1502, %s1559
      %v1561 = vpop.permute.xlu0 %1560
      %s1563 = sor.u32 256, 120
      %1564 = vbcast.lane.b32.xlu0 %v1502, %s1563
      %v1565 = vpop.permute.xlu0 %1564
      %v1566 = vlaneseq
      %v1567 = vshrl.u32 %v1566, 7
      %v1568 = vsub.s32 1, %v1567
      %v1569 = vrot.slane %v1498, %v1568
      %1571 = vbcast.lane.b32.xlu0 %v1569, 256
      %v1572 = vpop.permute.xlu0 %1571
      %s1574 = sor.u32 256, 8
      %1575 = vbcast.lane.b32.xlu0 %v1569, %s1574
      %v1576 = vpop.permute.xlu0 %1575
      %s1578 = sor.u32 256, 16
      %1579 = vbcast.lane.b32.xlu0 %v1569, %s1578
      %v1580 = vpop.permute.xlu0 %1579
      %s1582 = sor.u32 256, 24
      %1583 = vbcast.lane.b32.xlu0 %v1569, %s1582
      %v1584 = vpop.permute.xlu0 %1583
      %s1586 = sor.u32 256, 32
      %1587 = vbcast.lane.b32.xlu0 %v1569, %s1586
      %v1588 = vpop.permute.xlu0 %1587
      %s1590 = sor.u32 256, 40
      %1591 = vbcast.lane.b32.xlu0 %v1569, %s1590
      %v1592 = vpop.permute.xlu0 %1591
      %s1594 = sor.u32 256, 48
      %1595 = vbcast.lane.b32.xlu0 %v1569, %s1594
      %v1596 = vpop.permute.xlu0 %1595
      %s1598 = sor.u32 256, 56
      %1599 = vbcast.lane.b32.xlu0 %v1569, %s1598
      %v1600 = vpop.permute.xlu0 %1599
      %s1602 = sor.u32 256, 64
      %1603 = vbcast.lane.b32.xlu0 %v1569, %s1602
      %v1604 = vpop.permute.xlu0 %1603
      %s1606 = sor.u32 256, 72
      %1607 = vbcast.lane.b32.xlu0 %v1569, %s1606
      %v1608 = vpop.permute.xlu0 %1607
      %s1610 = sor.u32 256, 80
      %1611 = vbcast.lane.b32.xlu0 %v1569, %s1610
      %v1612 = vpop.permute.xlu0 %1611
      %s1614 = sor.u32 256, 88
      %1615 = vbcast.lane.b32.xlu0 %v1569, %s1614
      %v1616 = vpop.permute.xlu0 %1615
      %s1618 = sor.u32 256, 96
      %1619 = vbcast.lane.b32.xlu0 %v1569, %s1618
      %v1620 = vpop.permute.xlu0 %1619
      %s1622 = sor.u32 256, 104
      %1623 = vbcast.lane.b32.xlu0 %v1569, %s1622
      %v1624 = vpop.permute.xlu0 %1623
      %s1626 = sor.u32 256, 112
      %1627 = vbcast.lane.b32.xlu0 %v1569, %s1626
      %v1628 = vpop.permute.xlu0 %1627
      %s1630 = sor.u32 256, 120
      %1631 = vbcast.lane.b32.xlu0 %v1569, %s1630
      %v1632 = vpop.permute.xlu0 %1631
      %v1633 = vlaneseq
      %v1634 = vshrl.u32 %v1633, 7
      %v1635 = vsub.s32 2, %v1634
      %v1636 = vrot.slane %v1498, %v1635
      %1638 = vbcast.lane.b32.xlu0 %v1636, 256
      %v1639 = vpop.permute.xlu0 %1638
      %s1641 = sor.u32 256, 8
      %1642 = vbcast.lane.b32.xlu0 %v1636, %s1641
      %v1643 = vpop.permute.xlu0 %1642
      %s1645 = sor.u32 256, 16
      %1646 = vbcast.lane.b32.xlu0 %v1636, %s1645
      %v1647 = vpop.permute.xlu0 %1646
      %s1649 = sor.u32 256, 24
      %1650 = vbcast.lane.b32.xlu0 %v1636, %s1649
      %v1651 = vpop.permute.xlu0 %1650
      %s1653 = sor.u32 256, 32
      %1654 = vbcast.lane.b32.xlu0 %v1636, %s1653
      %v1655 = vpop.permute.xlu0 %1654
      %s1657 = sor.u32 256, 40
      %1658 = vbcast.lane.b32.xlu0 %v1636, %s1657
      %v1659 = vpop.permute.xlu0 %1658
      %s1661 = sor.u32 256, 48
      %1662 = vbcast.lane.b32.xlu0 %v1636, %s1661
      %v1663 = vpop.permute.xlu0 %1662
      %s1665 = sor.u32 256, 56
      %1666 = vbcast.lane.b32.xlu0 %v1636, %s1665
      %v1667 = vpop.permute.xlu0 %1666
      %s1669 = sor.u32 256, 64
      %1670 = vbcast.lane.b32.xlu0 %v1636, %s1669
      %v1671 = vpop.permute.xlu0 %1670
      %s1673 = sor.u32 256, 72
      %1674 = vbcast.lane.b32.xlu0 %v1636, %s1673
      %v1675 = vpop.permute.xlu0 %1674
      %s1677 = sor.u32 256, 80
      %1678 = vbcast.lane.b32.xlu0 %v1636, %s1677
      %v1679 = vpop.permute.xlu0 %1678
      %s1681 = sor.u32 256, 88
      %1682 = vbcast.lane.b32.xlu0 %v1636, %s1681
      %v1683 = vpop.permute.xlu0 %1682
      %s1685 = sor.u32 256, 96
      %1686 = vbcast.lane.b32.xlu0 %v1636, %s1685
      %v1687 = vpop.permute.xlu0 %1686
      %s1689 = sor.u32 256, 104
      %1690 = vbcast.lane.b32.xlu0 %v1636, %s1689
      %v1691 = vpop.permute.xlu0 %1690
      %s1693 = sor.u32 256, 112
      %1694 = vbcast.lane.b32.xlu0 %v1636, %s1693
      %v1695 = vpop.permute.xlu0 %1694
      %s1697 = sor.u32 256, 120
      %1698 = vbcast.lane.b32.xlu0 %v1636, %s1697
      %v1699 = vpop.permute.xlu0 %1698
      %v1700 = vlaneseq
      %v1701 = vshrl.u32 %v1700, 7
      %v1702 = vsub.s32 3, %v1701
      %v1703 = vrot.slane %v1498, %v1702
      %1705 = vbcast.lane.b32.xlu0 %v1703, 256
      %v1706 = vpop.permute.xlu0 %1705
      %s1708 = sor.u32 256, 8
      %1709 = vbcast.lane.b32.xlu0 %v1703, %s1708
      %v1710 = vpop.permute.xlu0 %1709
      %s1712 = sor.u32 256, 16
      %1713 = vbcast.lane.b32.xlu0 %v1703, %s1712
      %v1714 = vpop.permute.xlu0 %1713
      %s1716 = sor.u32 256, 24
      %1717 = vbcast.lane.b32.xlu0 %v1703, %s1716
      %v1718 = vpop.permute.xlu0 %1717
      %s1720 = sor.u32 256, 32
      %1721 = vbcast.lane.b32.xlu0 %v1703, %s1720
      %v1722 = vpop.permute.xlu0 %1721
      %s1724 = sor.u32 256, 40
      %1725 = vbcast.lane.b32.xlu0 %v1703, %s1724
      %v1726 = vpop.permute.xlu0 %1725
      %s1728 = sor.u32 256, 48
      %1729 = vbcast.lane.b32.xlu0 %v1703, %s1728
      %v1730 = vpop.permute.xlu0 %1729
      %s1732 = sor.u32 256, 56
      %1733 = vbcast.lane.b32.xlu0 %v1703, %s1732
      %v1734 = vpop.permute.xlu0 %1733
      %s1736 = sor.u32 256, 64
      %1737 = vbcast.lane.b32.xlu0 %v1703, %s1736
      %v1738 = vpop.permute.xlu0 %1737
      %s1740 = sor.u32 256, 72
      %1741 = vbcast.lane.b32.xlu0 %v1703, %s1740
      %v1742 = vpop.permute.xlu0 %1741
      %s1744 = sor.u32 256, 80
      %1745 = vbcast.lane.b32.xlu0 %v1703, %s1744
      %v1746 = vpop.permute.xlu0 %1745
      %s1748 = sor.u32 256, 88
      %1749 = vbcast.lane.b32.xlu0 %v1703, %s1748
      %v1750 = vpop.permute.xlu0 %1749
      %s1752 = sor.u32 256, 96
      %1753 = vbcast.lane.b32.xlu0 %v1703, %s1752
      %v1754 = vpop.permute.xlu0 %1753
      %s1756 = sor.u32 256, 104
      %1757 = vbcast.lane.b32.xlu0 %v1703, %s1756
      %v1758 = vpop.permute.xlu0 %1757
      %s1760 = sor.u32 256, 112
      %1761 = vbcast.lane.b32.xlu0 %v1703, %s1760
      %v1762 = vpop.permute.xlu0 %1761
      %s1764 = sor.u32 256, 120
      %1765 = vbcast.lane.b32.xlu0 %v1703, %s1764
      %v1766 = vpop.permute.xlu0 %1765
      %v1769 = vunpack.c.l.s4 1966171168
      %v1770 = vunpack.c.0.s8 %v1769
      %v1771 = vlaneseq
      %v1772 = vshrl.u32 %v1771, 7
      %v1773 = vsub.s32 %v1770, %v1772
      %v1774 = vrot.slane %v1498, %v1773
      %v1775 = vcombine.high %v1774, %v1774
      %v1777 = vunpack.c.l.s4 1966171168
      %v1778 = vunpack.c.0.s8 %v1777
      %v1779 = vlaneseq
      %v1780 = vshrl.u32 %v1779, 7
      %v1781 = vsub.s32 %v1778, %v1780
      %v1782 = vrot.slane %v1774, %v1781
      %v1784 = vunpack.c.l.s4 1966171168
      %v1785 = vunpack.c.0.s8 %v1784
      %v1786 = vlaneseq
      %v1787 = vshrl.u32 %v1786, 7
      %v1788 = vsub.s32 %v1785, %v1787
      %v1789 = vrot.slane %v1775, %v1788
      %v1790 = vcombine.high %v1782, %v1782
      %v1791 = vcombine.high %v1789, %v1789
      %v1792 = vlaneseq
      %v1793 = vshrl.u32 %v1792, 7
      %v1794 = vsub.s32 0, %v1793
      %v1795 = vrot.slane %v1782, %v1794
      %v1796 = vlaneseq
      %v1797 = vshrl.u32 %v1796, 7
      %v1798 = vsub.s32 0, %v1797
      %v1799 = vrot.slane %v1789, %v1798
      %v1800 = vlaneseq
      %v1801 = vshrl.u32 %v1800, 7
      %v1802 = vsub.s32 0, %v1801
      %v1803 = vrot.slane %v1790, %v1802
      %v1804 = vlaneseq
      %v1805 = vshrl.u32 %v1804, 7
      %v1806 = vsub.s32 0, %v1805
      %v1807 = vrot.slane %v1791, %v1806
      %vm1812 = vcmp.lt.f32.partialorder %v1505, %v1795
      %vm1813 = vcmp.lt.f32.partialorder %v1509, %v1795
      %vm1814 = vcmp.lt.f32.partialorder %v1513, %v1795
      %vm1815 = vcmp.lt.f32.partialorder %v1517, %v1795
      %vm1816 = vcmp.lt.f32.partialorder %v1521, %v1795
      %vm1817 = vcmp.lt.f32.partialorder %v1525, %v1795
      %vm1818 = vcmp.lt.f32.partialorder %v1529, %v1795
      %vm1819 = vcmp.lt.f32.partialorder %v1533, %v1795
      %vm1820 = vcmp.lt.f32.partialorder %v1537, %v1795
      %vm1821 = vcmp.lt.f32.partialorder %v1541, %v1795
      %vm1822 = vcmp.lt.f32.partialorder %v1545, %v1795
      %vm1823 = vcmp.lt.f32.partialorder %v1549, %v1795
      %vm1824 = vcmp.lt.f32.partialorder %v1553, %v1795
      %vm1825 = vcmp.lt.f32.partialorder %v1557, %v1795
      %vm1826 = vcmp.lt.f32.partialorder %v1561, %v1795
      %vm1827 = vcmp.lt.f32.partialorder %v1565, %v1795
      %vm1828 = vcmp.lt.f32.partialorder %v1572, %v1799
      %vm1829 = vcmp.lt.f32.partialorder %v1576, %v1799
      %vm1830 = vcmp.lt.f32.partialorder %v1580, %v1799
      %vm1831 = vcmp.lt.f32.partialorder %v1584, %v1799
      %vm1832 = vcmp.lt.f32.partialorder %v1588, %v1799
      %vm1833 = vcmp.lt.f32.partialorder %v1592, %v1799
      %vm1834 = vcmp.lt.f32.partialorder %v1596, %v1799
      %vm1835 = vcmp.lt.f32.partialorder %v1600, %v1799
      %vm1836 = vcmp.lt.f32.partialorder %v1604, %v1799
      %vm1837 = vcmp.lt.f32.partialorder %v1608, %v1799
      %vm1838 = vcmp.lt.f32.partialorder %v1612, %v1799
      %vm1839 = vcmp.lt.f32.partialorder %v1616, %v1799
      %vm1840 = vcmp.lt.f32.partialorder %v1620, %v1799
      %vm1841 = vcmp.lt.f32.partialorder %v1624, %v1799
      %vm1842 = vcmp.lt.f32.partialorder %v1628, %v1799
      %vm1843 = vcmp.lt.f32.partialorder %v1632, %v1799
      %vm1844 = vcmp.lt.f32.partialorder %v1639, %v1803
      %vm1845 = vcmp.lt.f32.partialorder %v1643, %v1803
      %vm1846 = vcmp.lt.f32.partialorder %v1647, %v1803
      %vm1847 = vcmp.lt.f32.partialorder %v1651, %v1803
      %vm1848 = vcmp.lt.f32.partialorder %v1655, %v1803
      %vm1849 = vcmp.lt.f32.partialorder %v1659, %v1803
      %vm1850 = vcmp.lt.f32.partialorder %v1663, %v1803
      %vm1851 = vcmp.lt.f32.partialorder %v1667, %v1803
      %vm1852 = vcmp.lt.f32.partialorder %v1671, %v1803
      %vm1853 = vcmp.lt.f32.partialorder %v1675, %v1803
      %vm1854 = vcmp.lt.f32.partialorder %v1679, %v1803
      %vm1855 = vcmp.lt.f32.partialorder %v1683, %v1803
      %vm1856 = vcmp.lt.f32.partialorder %v1687, %v1803
      %vm1857 = vcmp.lt.f32.partialorder %v1691, %v1803
      %vm1858 = vcmp.lt.f32.partialorder %v1695, %v1803
      %vm1859 = vcmp.lt.f32.partialorder %v1699, %v1803
      %vm1860 = vcmp.lt.f32.partialorder %v1706, %v1807
      %vm1861 = vcmp.lt.f32.partialorder %v1710, %v1807
      %vm1862 = vcmp.lt.f32.partialorder %v1714, %v1807
      %vm1863 = vcmp.lt.f32.partialorder %v1718, %v1807
      %vm1864 = vcmp.lt.f32.partialorder %v1722, %v1807
      %vm1865 = vcmp.lt.f32.partialorder %v1726, %v1807
      %vm1866 = vcmp.lt.f32.partialorder %v1730, %v1807
      %vm1867 = vcmp.lt.f32.partialorder %v1734, %v1807
      %vm1868 = vcmp.lt.f32.partialorder %v1738, %v1807
      %vm1869 = vcmp.lt.f32.partialorder %v1742, %v1807
      %vm1870 = vcmp.lt.f32.partialorder %v1746, %v1807
      %vm1871 = vcmp.lt.f32.partialorder %v1750, %v1807
      %vm1872 = vcmp.lt.f32.partialorder %v1754, %v1807
      %vm1873 = vcmp.lt.f32.partialorder %v1758, %v1807
      %vm1874 = vcmp.lt.f32.partialorder %v1762, %v1807
      %vm1875 = vcmp.lt.f32.partialorder %v1766, %v1807
      %vm1876 = vcmp.eq.f32.partialorder %v1505, %v1795
      %vm1877 = vcmp.eq.f32.partialorder %v1509, %v1795
      %vm1878 = vcmp.eq.f32.partialorder %v1513, %v1795
      %vm1879 = vcmp.eq.f32.partialorder %v1517, %v1795
      %vm1880 = vcmp.eq.f32.partialorder %v1521, %v1795
      %vm1881 = vcmp.eq.f32.partialorder %v1525, %v1795
      %vm1882 = vcmp.eq.f32.partialorder %v1529, %v1795
      %vm1883 = vcmp.eq.f32.partialorder %v1533, %v1795
      %vm1884 = vcmp.eq.f32.partialorder %v1537, %v1795
      %vm1885 = vcmp.eq.f32.partialorder %v1541, %v1795
      %vm1886 = vcmp.eq.f32.partialorder %v1545, %v1795
      %vm1887 = vcmp.eq.f32.partialorder %v1549, %v1795
      %vm1888 = vcmp.eq.f32.partialorder %v1553, %v1795
      %vm1889 = vcmp.eq.f32.partialorder %v1557, %v1795
      %vm1890 = vcmp.eq.f32.partialorder %v1561, %v1795
      %vm1891 = vcmp.eq.f32.partialorder %v1565, %v1795
      %vm1892 = vcmp.eq.f32.partialorder %v1572, %v1799
      %vm1893 = vcmp.eq.f32.partialorder %v1576, %v1799
      %vm1894 = vcmp.eq.f32.partialorder %v1580, %v1799
      %vm1895 = vcmp.eq.f32.partialorder %v1584, %v1799
      %vm1896 = vcmp.eq.f32.partialorder %v1588, %v1799
      %vm1897 = vcmp.eq.f32.partialorder %v1592, %v1799
      %vm1898 = vcmp.eq.f32.partialorder %v1596, %v1799
      %vm1899 = vcmp.eq.f32.partialorder %v1600, %v1799
      %vm1900 = vcmp.eq.f32.partialorder %v1604, %v1799
      %vm1901 = vcmp.eq.f32.partialorder %v1608, %v1799
      %vm1902 = vcmp.eq.f32.partialorder %v1612, %v1799
      %vm1903 = vcmp.eq.f32.partialorder %v1616, %v1799
      %vm1904 = vcmp.eq.f32.partialorder %v1620, %v1799
      %vm1905 = vcmp.eq.f32.partialorder %v1624, %v1799
      %vm1906 = vcmp.eq.f32.partialorder %v1628, %v1799
      %vm1907 = vcmp.eq.f32.partialorder %v1632, %v1799
      %vm1908 = vcmp.eq.f32.partialorder %v1639, %v1803
      %vm1909 = vcmp.eq.f32.partialorder %v1643, %v1803
      %vm1910 = vcmp.eq.f32.partialorder %v1647, %v1803
      %vm1911 = vcmp.eq.f32.partialorder %v1651, %v1803
      %vm1912 = vcmp.eq.f32.partialorder %v1655, %v1803
      %vm1913 = vcmp.eq.f32.partialorder %v1659, %v1803
      %vm1914 = vcmp.eq.f32.partialorder %v1663, %v1803
      %vm1915 = vcmp.eq.f32.partialorder %v1667, %v1803
      %vm1916 = vcmp.eq.f32.partialorder %v1671, %v1803
      %vm1917 = vcmp.eq.f32.partialorder %v1675, %v1803
      %vm1918 = vcmp.eq.f32.partialorder %v1679, %v1803
      %vm1919 = vcmp.eq.f32.partialorder %v1683, %v1803
      %vm1920 = vcmp.eq.f32.partialorder %v1687, %v1803
      %vm1921 = vcmp.eq.f32.partialorder %v1691, %v1803
      %vm1922 = vcmp.eq.f32.partialorder %v1695, %v1803
      %vm1923 = vcmp.eq.f32.partialorder %v1699, %v1803
      %vm1924 = vcmp.eq.f32.partialorder %v1706, %v1807
      %vm1925 = vcmp.eq.f32.partialorder %v1710, %v1807
      %vm1926 = vcmp.eq.f32.partialorder %v1714, %v1807
      %vm1927 = vcmp.eq.f32.partialorder %v1718, %v1807
      %vm1928 = vcmp.eq.f32.partialorder %v1722, %v1807
      %vm1929 = vcmp.eq.f32.partialorder %v1726, %v1807
      %vm1930 = vcmp.eq.f32.partialorder %v1730, %v1807
      %vm1931 = vcmp.eq.f32.partialorder %v1734, %v1807
      %vm1932 = vcmp.eq.f32.partialorder %v1738, %v1807
      %vm1933 = vcmp.eq.f32.partialorder %v1742, %v1807
      %vm1934 = vcmp.eq.f32.partialorder %v1746, %v1807
      %vm1935 = vcmp.eq.f32.partialorder %v1750, %v1807
      %vm1936 = vcmp.eq.f32.partialorder %v1754, %v1807
      %vm1937 = vcmp.eq.f32.partialorder %v1758, %v1807
      %vm1938 = vcmp.eq.f32.partialorder %v1762, %v1807
      %vm1939 = vcmp.eq.f32.partialorder %v1766, %v1807
      %vm1940 = vmand %vm1876, %vm867
      %vm1941 = vmand %vm1877, %vm868
      %vm1942 = vmand %vm1878, %vm869
      %vm1943 = vmand %vm1879, %vm870
      %vm1944 = vmand %vm1880, %vm871
      %vm1945 = vmand %vm1881, %vm872
      %vm1946 = vmand %vm1882, %vm873
      %vm1947 = vmand %vm1883, %vm874
      %vm1948 = vmand %vm1884, %vm875
      %vm1949 = vmand %vm1885, %vm876
      %vm1950 = vmand %vm1886, %vm877
      %vm1951 = vmand %vm1887, %vm878
      %vm1952 = vmand %vm1888, %vm879
      %vm1953 = vmand %vm1889, %vm880
      %vm1954 = vmand %vm1890, %vm881
      %vm1955 = vmand %vm1891, %vm882
      %vm1956 = vmand %vm1892, %vm867
      %vm1957 = vmand %vm1893, %vm868
      %vm1958 = vmand %vm1894, %vm869
      %vm1959 = vmand %vm1895, %vm870
      %vm1960 = vmand %vm1896, %vm871
      %vm1961 = vmand %vm1897, %vm872
      %vm1962 = vmand %vm1898, %vm873
      %vm1963 = vmand %vm1899, %vm874
      %vm1964 = vmand %vm1900, %vm875
      %vm1965 = vmand %vm1901, %vm876
      %vm1966 = vmand %vm1902, %vm877
      %vm1967 = vmand %vm1903, %vm878
      %vm1968 = vmand %vm1904, %vm879
      %vm1969 = vmand %vm1905, %vm880
      %vm1970 = vmand %vm1906, %vm881
      %vm1971 = vmand %vm1907, %vm882
      %vm1972 = vmand %vm1908, %vm867
      %vm1973 = vmand %vm1909, %vm868
      %vm1974 = vmand %vm1910, %vm869
      %vm1975 = vmand %vm1911, %vm870
      %vm1976 = vmand %vm1912, %vm871
      %vm1977 = vmand %vm1913, %vm872
      %vm1978 = vmand %vm1914, %vm873
      %vm1979 = vmand %vm1915, %vm874
      %vm1980 = vmand %vm1916, %vm875
      %vm1981 = vmand %vm1917, %vm876
      %vm1982 = vmand %vm1918, %vm877
      %vm1983 = vmand %vm1919, %vm878
      %vm1984 = vmand %vm1920, %vm879
      %vm1985 = vmand %vm1921, %vm880
      %vm1986 = vmand %vm1922, %vm881
      %vm1987 = vmand %vm1923, %vm882
      %vm1988 = vmand %vm1924, %vm867
      %vm1989 = vmand %vm1925, %vm868
      %vm1990 = vmand %vm1926, %vm869
      %vm1991 = vmand %vm1927, %vm870
      %vm1992 = vmand %vm1928, %vm871
      %vm1993 = vmand %vm1929, %vm872
      %vm1994 = vmand %vm1930, %vm873
      %vm1995 = vmand %vm1931, %vm874
      %vm1996 = vmand %vm1932, %vm875
      %vm1997 = vmand %vm1933, %vm876
      %vm1998 = vmand %vm1934, %vm877
      %vm1999 = vmand %vm1935, %vm878
      %vm2000 = vmand %vm1936, %vm879
      %vm2001 = vmand %vm1937, %vm880
      %vm2002 = vmand %vm1938, %vm881
      %vm2003 = vmand %vm1939, %vm882
      %vm2004 = vmor %vm1812, %vm1940
      %vm2005 = vmor %vm1813, %vm1941
      %vm2006 = vmor %vm1814, %vm1942
      %vm2007 = vmor %vm1815, %vm1943
      %vm2008 = vmor %vm1816, %vm1944
      %vm2009 = vmor %vm1817, %vm1945
      %vm2010 = vmor %vm1818, %vm1946
      %vm2011 = vmor %vm1819, %vm1947
      %vm2012 = vmor %vm1820, %vm1948
      %vm2013 = vmor %vm1821, %vm1949
      %vm2014 = vmor %vm1822, %vm1950
      %vm2015 = vmor %vm1823, %vm1951
      %vm2016 = vmor %vm1824, %vm1952
      %vm2017 = vmor %vm1825, %vm1953
      %vm2018 = vmor %vm1826, %vm1954
      %vm2019 = vmor %vm1827, %vm1955
      %vm2020 = vmor %vm1828, %vm1956
      %vm2021 = vmor %vm1829, %vm1957
      %vm2022 = vmor %vm1830, %vm1958
      %vm2023 = vmor %vm1831, %vm1959
      %vm2024 = vmor %vm1832, %vm1960
      %vm2025 = vmor %vm1833, %vm1961
      %vm2026 = vmor %vm1834, %vm1962
      %vm2027 = vmor %vm1835, %vm1963
      %vm2028 = vmor %vm1836, %vm1964
      %vm2029 = vmor %vm1837, %vm1965
      %vm2030 = vmor %vm1838, %vm1966
      %vm2031 = vmor %vm1839, %vm1967
      %vm2032 = vmor %vm1840, %vm1968
      %vm2033 = vmor %vm1841, %vm1969
      %vm2034 = vmor %vm1842, %vm1970
      %vm2035 = vmor %vm1843, %vm1971
      %vm2036 = vmor %vm1844, %vm1972
      %vm2037 = vmor %vm1845, %vm1973
      %vm2038 = vmor %vm1846, %vm1974
      %vm2039 = vmor %vm1847, %vm1975
      %vm2040 = vmor %vm1848, %vm1976
      %vm2041 = vmor %vm1849, %vm1977
      %vm2042 = vmor %vm1850, %vm1978
      %vm2043 = vmor %vm1851, %vm1979
      %vm2044 = vmor %vm1852, %vm1980
      %vm2045 = vmor %vm1853, %vm1981
      %vm2046 = vmor %vm1854, %vm1982
      %vm2047 = vmor %vm1855, %vm1983
      %vm2048 = vmor %vm1856, %vm1984
      %vm2049 = vmor %vm1857, %vm1985
      %vm2050 = vmor %vm1858, %vm1986
      %vm2051 = vmor %vm1859, %vm1987
      %vm2052 = vmor %vm1860, %vm1988
      %vm2053 = vmor %vm1861, %vm1989
      %vm2054 = vmor %vm1862, %vm1990
      %vm2055 = vmor %vm1863, %vm1991
      %vm2056 = vmor %vm1864, %vm1992
      %vm2057 = vmor %vm1865, %vm1993
      %vm2058 = vmor %vm1866, %vm1994
      %vm2059 = vmor %vm1867, %vm1995
      %vm2060 = vmor %vm1868, %vm1996
      %vm2061 = vmor %vm1869, %vm1997
      %vm2062 = vmor %vm1870, %vm1998
      %vm2063 = vmor %vm1871, %vm1999
      %vm2064 = vmor %vm1872, %vm2000
      %vm2065 = vmor %vm1873, %vm2001
      %vm2066 = vmor %vm1874, %vm2002
      %vm2067 = vmor %vm1875, %vm2003
      %v2068 = vlog2.pop %v1498
      %v2069 = vmul.f32 %v2068, 0.6931472
      %v2070 = vlaneseq
      %v2071 = vshrl.u32 %v2070, 7
      %v2072 = vsub.s32 0, %v2071
      %v2073 = vrot.slane %v2069, %v2072
      %2075 = vbcast.lane.b32.xlu0 %v2073, 256
      %v2076 = vpop.permute.xlu0 %2075
      %s2078 = sor.u32 256, 8
      %2079 = vbcast.lane.b32.xlu0 %v2073, %s2078
      %v2080 = vpop.permute.xlu0 %2079
      %s2082 = sor.u32 256, 16
      %2083 = vbcast.lane.b32.xlu0 %v2073, %s2082
      %v2084 = vpop.permute.xlu0 %2083
      %s2086 = sor.u32 256, 24
      %2087 = vbcast.lane.b32.xlu0 %v2073, %s2086
      %v2088 = vpop.permute.xlu0 %2087
      %s2090 = sor.u32 256, 32
      %2091 = vbcast.lane.b32.xlu0 %v2073, %s2090
      %v2092 = vpop.permute.xlu0 %2091
      %s2094 = sor.u32 256, 40
      %2095 = vbcast.lane.b32.xlu0 %v2073, %s2094
      %v2096 = vpop.permute.xlu0 %2095
      %s2098 = sor.u32 256, 48
      %2099 = vbcast.lane.b32.xlu0 %v2073, %s2098
      %v2100 = vpop.permute.xlu0 %2099
      %s2102 = sor.u32 256, 56
      %2103 = vbcast.lane.b32.xlu0 %v2073, %s2102
      %v2104 = vpop.permute.xlu0 %2103
      %s2106 = sor.u32 256, 64
      %2107 = vbcast.lane.b32.xlu0 %v2073, %s2106
      %v2108 = vpop.permute.xlu0 %2107
      %s2110 = sor.u32 256, 72
      %2111 = vbcast.lane.b32.xlu0 %v2073, %s2110
      %v2112 = vpop.permute.xlu0 %2111
      %s2114 = sor.u32 256, 80
      %2115 = vbcast.lane.b32.xlu0 %v2073, %s2114
      %v2116 = vpop.permute.xlu0 %2115
      %s2118 = sor.u32 256, 88
      %2119 = vbcast.lane.b32.xlu0 %v2073, %s2118
      %v2120 = vpop.permute.xlu0 %2119
      %s2122 = sor.u32 256, 96
      %2123 = vbcast.lane.b32.xlu0 %v2073, %s2122
      %v2124 = vpop.permute.xlu0 %2123
      %s2126 = sor.u32 256, 104
      %2127 = vbcast.lane.b32.xlu0 %v2073, %s2126
      %v2128 = vpop.permute.xlu0 %2127
      %s2130 = sor.u32 256, 112
      %2131 = vbcast.lane.b32.xlu0 %v2073, %s2130
      %v2132 = vpop.permute.xlu0 %2131
      %s2134 = sor.u32 256, 120
      %2135 = vbcast.lane.b32.xlu0 %v2073, %s2134
      %v2136 = vpop.permute.xlu0 %2135
      %v2137 = vlaneseq
      %v2138 = vshrl.u32 %v2137, 7
      %v2139 = vsub.s32 1, %v2138
      %v2140 = vrot.slane %v2069, %v2139
      %2142 = vbcast.lane.b32.xlu0 %v2140, 256
      %v2143 = vpop.permute.xlu0 %2142
      %s2145 = sor.u32 256, 8
      %2146 = vbcast.lane.b32.xlu0 %v2140, %s2145
      %v2147 = vpop.permute.xlu0 %2146
      %s2149 = sor.u32 256, 16
      %2150 = vbcast.lane.b32.xlu0 %v2140, %s2149
      %v2151 = vpop.permute.xlu0 %2150
      %s2153 = sor.u32 256, 24
      %2154 = vbcast.lane.b32.xlu0 %v2140, %s2153
      %v2155 = vpop.permute.xlu0 %2154
      %s2157 = sor.u32 256, 32
      %2158 = vbcast.lane.b32.xlu0 %v2140, %s2157
      %v2159 = vpop.permute.xlu0 %2158
      %s2161 = sor.u32 256, 40
      %2162 = vbcast.lane.b32.xlu0 %v2140, %s2161
      %v2163 = vpop.permute.xlu0 %2162
      %s2165 = sor.u32 256, 48
      %2166 = vbcast.lane.b32.xlu0 %v2140, %s2165
      %v2167 = vpop.permute.xlu0 %2166
      %s2169 = sor.u32 256, 56
      %2170 = vbcast.lane.b32.xlu0 %v2140, %s2169
      %v2171 = vpop.permute.xlu0 %2170
      %s2173 = sor.u32 256, 64
      %2174 = vbcast.lane.b32.xlu0 %v2140, %s2173
      %v2175 = vpop.permute.xlu0 %2174
      %s2177 = sor.u32 256, 72
      %2178 = vbcast.lane.b32.xlu0 %v2140, %s2177
      %v2179 = vpop.permute.xlu0 %2178
      %s2181 = sor.u32 256, 80
      %2182 = vbcast.lane.b32.xlu0 %v2140, %s2181
      %v2183 = vpop.permute.xlu0 %2182
      %s2185 = sor.u32 256, 88
      %2186 = vbcast.lane.b32.xlu0 %v2140, %s2185
      %v2187 = vpop.permute.xlu0 %2186
      %s2189 = sor.u32 256, 96
      %2190 = vbcast.lane.b32.xlu0 %v2140, %s2189
      %v2191 = vpop.permute.xlu0 %2190
      %s2193 = sor.u32 256, 104
      %2194 = vbcast.lane.b32.xlu0 %v2140, %s2193
      %v2195 = vpop.permute.xlu0 %2194
      %s2197 = sor.u32 256, 112
      %2198 = vbcast.lane.b32.xlu0 %v2140, %s2197
      %v2199 = vpop.permute.xlu0 %2198
      %s2201 = sor.u32 256, 120
      %2202 = vbcast.lane.b32.xlu0 %v2140, %s2201
      %v2203 = vpop.permute.xlu0 %2202
      %v2204 = vlaneseq
      %v2205 = vshrl.u32 %v2204, 7
      %v2206 = vsub.s32 2, %v2205
      %v2207 = vrot.slane %v2069, %v2206
      %2209 = vbcast.lane.b32.xlu0 %v2207, 256
      %v2210 = vpop.permute.xlu0 %2209
      %s2212 = sor.u32 256, 8
      %2213 = vbcast.lane.b32.xlu0 %v2207, %s2212
      %v2214 = vpop.permute.xlu0 %2213
      %s2216 = sor.u32 256, 16
      %2217 = vbcast.lane.b32.xlu0 %v2207, %s2216
      %v2218 = vpop.permute.xlu0 %2217
      %s2220 = sor.u32 256, 24
      %2221 = vbcast.lane.b32.xlu0 %v2207, %s2220
      %v2222 = vpop.permute.xlu0 %2221
      %s2224 = sor.u32 256, 32
      %2225 = vbcast.lane.b32.xlu0 %v2207, %s2224
      %v2226 = vpop.permute.xlu0 %2225
      %s2228 = sor.u32 256, 40
      %2229 = vbcast.lane.b32.xlu0 %v2207, %s2228
      %v2230 = vpop.permute.xlu0 %2229
      %s2232 = sor.u32 256, 48
      %2233 = vbcast.lane.b32.xlu0 %v2207, %s2232
      %v2234 = vpop.permute.xlu0 %2233
      %s2236 = sor.u32 256, 56
      %2237 = vbcast.lane.b32.xlu0 %v2207, %s2236
      %v2238 = vpop.permute.xlu0 %2237
      %s2240 = sor.u32 256, 64
      %2241 = vbcast.lane.b32.xlu0 %v2207, %s2240
      %v2242 = vpop.permute.xlu0 %2241
      %s2244 = sor.u32 256, 72
      %2245 = vbcast.lane.b32.xlu0 %v2207, %s2244
      %v2246 = vpop.permute.xlu0 %2245
      %s2248 = sor.u32 256, 80
      %2249 = vbcast.lane.b32.xlu0 %v2207, %s2248
      %v2250 = vpop.permute.xlu0 %2249
      %s2252 = sor.u32 256, 88
      %2253 = vbcast.lane.b32.xlu0 %v2207, %s2252
      %v2254 = vpop.permute.xlu0 %2253
      %s2256 = sor.u32 256, 96
      %2257 = vbcast.lane.b32.xlu0 %v2207, %s2256
      %v2258 = vpop.permute.xlu0 %2257
      %s2260 = sor.u32 256, 104
      %2261 = vbcast.lane.b32.xlu0 %v2207, %s2260
      %v2262 = vpop.permute.xlu0 %2261
      %s2264 = sor.u32 256, 112
      %2265 = vbcast.lane.b32.xlu0 %v2207, %s2264
      %v2266 = vpop.permute.xlu0 %2265
      %s2268 = sor.u32 256, 120
      %2269 = vbcast.lane.b32.xlu0 %v2207, %s2268
      %v2270 = vpop.permute.xlu0 %2269
      %v2271 = vlaneseq
      %v2272 = vshrl.u32 %v2271, 7
      %v2273 = vsub.s32 3, %v2272
      %v2274 = vrot.slane %v2069, %v2273
      %2276 = vbcast.lane.b32.xlu0 %v2274, 256
      %v2277 = vpop.permute.xlu0 %2276
      %s2279 = sor.u32 256, 8
      %2280 = vbcast.lane.b32.xlu0 %v2274, %s2279
      %v2281 = vpop.permute.xlu0 %2280
      %s2283 = sor.u32 256, 16
      %2284 = vbcast.lane.b32.xlu0 %v2274, %s2283
      %v2285 = vpop.permute.xlu0 %2284
      %s2287 = sor.u32 256, 24
      %2288 = vbcast.lane.b32.xlu0 %v2274, %s2287
      %v2289 = vpop.permute.xlu0 %2288
      %s2291 = sor.u32 256, 32
      %2292 = vbcast.lane.b32.xlu0 %v2274, %s2291
      %v2293 = vpop.permute.xlu0 %2292
      %s2295 = sor.u32 256, 40
      %2296 = vbcast.lane.b32.xlu0 %v2274, %s2295
      %v2297 = vpop.permute.xlu0 %2296
      %s2299 = sor.u32 256, 48
      %2300 = vbcast.lane.b32.xlu0 %v2274, %s2299
      %v2301 = vpop.permute.xlu0 %2300
      %s2303 = sor.u32 256, 56
      %2304 = vbcast.lane.b32.xlu0 %v2274, %s2303
      %v2305 = vpop.permute.xlu0 %2304
      %s2307 = sor.u32 256, 64
      %2308 = vbcast.lane.b32.xlu0 %v2274, %s2307
      %v2309 = vpop.permute.xlu0 %2308
      %s2311 = sor.u32 256, 72
      %2312 = vbcast.lane.b32.xlu0 %v2274, %s2311
      %v2313 = vpop.permute.xlu0 %2312
      %s2315 = sor.u32 256, 80
      %2316 = vbcast.lane.b32.xlu0 %v2274, %s2315
      %v2317 = vpop.permute.xlu0 %2316
      %s2319 = sor.u32 256, 88
      %2320 = vbcast.lane.b32.xlu0 %v2274, %s2319
      %v2321 = vpop.permute.xlu0 %2320
      %s2323 = sor.u32 256, 96
      %2324 = vbcast.lane.b32.xlu0 %v2274, %s2323
      %v2325 = vpop.permute.xlu0 %2324
      %s2327 = sor.u32 256, 104
      %2328 = vbcast.lane.b32.xlu0 %v2274, %s2327
      %v2329 = vpop.permute.xlu0 %2328
      %s2331 = sor.u32 256, 112
      %2332 = vbcast.lane.b32.xlu0 %v2274, %s2331
      %v2333 = vpop.permute.xlu0 %2332
      %s2335 = sor.u32 256, 120
      %2336 = vbcast.lane.b32.xlu0 %v2274, %s2335
      %v2337 = vpop.permute.xlu0 %2336
      %v2338 = vsel %vm2004, %v2076, 0.0
      %v2339 = vsel %vm2005, %v2080, 0.0
      %v2340 = vsel %vm2006, %v2084, 0.0
      %v2341 = vsel %vm2007, %v2088, 0.0
      %v2342 = vsel %vm2008, %v2092, 0.0
      %v2343 = vsel %vm2009, %v2096, 0.0
      %v2344 = vsel %vm2010, %v2100, 0.0
      %v2345 = vsel %vm2011, %v2104, 0.0
      %v2346 = vsel %vm2012, %v2108, 0.0
      %v2347 = vsel %vm2013, %v2112, 0.0
      %v2348 = vsel %vm2014, %v2116, 0.0
      %v2349 = vsel %vm2015, %v2120, 0.0
      %v2350 = vsel %vm2016, %v2124, 0.0
      %v2351 = vsel %vm2017, %v2128, 0.0
      %v2352 = vsel %vm2018, %v2132, 0.0
      %v2353 = vsel %vm2019, %v2136, 0.0
      %v2354 = vsel %vm2020, %v2143, 0.0
      %v2355 = vsel %vm2021, %v2147, 0.0
      %v2356 = vsel %vm2022, %v2151, 0.0
      %v2357 = vsel %vm2023, %v2155, 0.0
      %v2358 = vsel %vm2024, %v2159, 0.0
      %v2359 = vsel %vm2025, %v2163, 0.0
      %v2360 = vsel %vm2026, %v2167, 0.0
      %v2361 = vsel %vm2027, %v2171, 0.0
      %v2362 = vsel %vm2028, %v2175, 0.0
      %v2363 = vsel %vm2029, %v2179, 0.0
      %v2364 = vsel %vm2030, %v2183, 0.0
      %v2365 = vsel %vm2031, %v2187, 0.0
      %v2366 = vsel %vm2032, %v2191, 0.0
      %v2367 = vsel %vm2033, %v2195, 0.0
      %v2368 = vsel %vm2034, %v2199, 0.0
      %v2369 = vsel %vm2035, %v2203, 0.0
      %v2370 = vsel %vm2036, %v2210, 0.0
      %v2371 = vsel %vm2037, %v2214, 0.0
      %v2372 = vsel %vm2038, %v2218, 0.0
      %v2373 = vsel %vm2039, %v2222, 0.0
      %v2374 = vsel %vm2040, %v2226, 0.0
      %v2375 = vsel %vm2041, %v2230, 0.0
      %v2376 = vsel %vm2042, %v2234, 0.0
      %v2377 = vsel %vm2043, %v2238, 0.0
      %v2378 = vsel %vm2044, %v2242, 0.0
      %v2379 = vsel %vm2045, %v2246, 0.0
      %v2380 = vsel %vm2046, %v2250, 0.0
      %v2381 = vsel %vm2047, %v2254, 0.0
      %v2382 = vsel %vm2048, %v2258, 0.0
      %v2383 = vsel %vm2049, %v2262, 0.0
      %v2384 = vsel %vm2050, %v2266, 0.0
      %v2385 = vsel %vm2051, %v2270, 0.0
      %v2386 = vsel %vm2052, %v2277, 0.0
      %v2387 = vsel %vm2053, %v2281, 0.0
      %v2388 = vsel %vm2054, %v2285, 0.0
      %v2389 = vsel %vm2055, %v2289, 0.0
      %v2390 = vsel %vm2056, %v2293, 0.0
      %v2391 = vsel %vm2057, %v2297, 0.0
      %v2392 = vsel %vm2058, %v2301, 0.0
      %v2393 = vsel %vm2059, %v2305, 0.0
      %v2394 = vsel %vm2060, %v2309, 0.0
      %v2395 = vsel %vm2061, %v2313, 0.0
      %v2396 = vsel %vm2062, %v2317, 0.0
      %v2397 = vsel %vm2063, %v2321, 0.0
      %v2398 = vsel %vm2064, %v2325, 0.0
      %v2399 = vsel %vm2065, %v2329, 0.0
      %v2400 = vsel %vm2066, %v2333, 0.0
      %v2401 = vsel %vm2067, %v2337, 0.0
      %v2402 = vadd.f32 %v2338, %v2339
      %v2403 = vadd.f32 %v2402, %v2340
      %v2404 = vadd.f32 %v2403, %v2341
      %v2405 = vadd.f32 %v2404, %v2342
      %v2406 = vadd.f32 %v2405, %v2343
      %v2407 = vadd.f32 %v2406, %v2344
      %v2408 = vadd.f32 %v2407, %v2345
      %v2409 = vadd.f32 %v2408, %v2346
      %v2410 = vadd.f32 %v2409, %v2347
      %v2411 = vadd.f32 %v2410, %v2348
      %v2412 = vadd.f32 %v2411, %v2349
      %v2413 = vadd.f32 %v2412, %v2350
      %v2414 = vadd.f32 %v2413, %v2351
      %v2415 = vadd.f32 %v2414, %v2352
      %v2416 = vadd.f32 %v2415, %v2353
      %v2417 = vrot.slane %v2416, 4
      %v2418 = vadd.f32 %v2416, %v2417
      %v2419 = vrot.slane %v2418, 2
      %v2420 = vadd.f32 %v2418, %v2419
      %v2421 = vrot.slane %v2420, 1
      %v2422 = vadd.f32 %v2420, %v2421
      %v2423 = vadd.f32 %v2354, %v2355
      %v2424 = vadd.f32 %v2423, %v2356
      %v2425 = vadd.f32 %v2424, %v2357
      %v2426 = vadd.f32 %v2425, %v2358
      %v2427 = vadd.f32 %v2426, %v2359
      %v2428 = vadd.f32 %v2427, %v2360
      %v2429 = vadd.f32 %v2428, %v2361
      %v2430 = vadd.f32 %v2429, %v2362
      %v2431 = vadd.f32 %v2430, %v2363
      %v2432 = vadd.f32 %v2431, %v2364
      %v2433 = vadd.f32 %v2432, %v2365
      %v2434 = vadd.f32 %v2433, %v2366
      %v2435 = vadd.f32 %v2434, %v2367
      %v2436 = vadd.f32 %v2435, %v2368
      %v2437 = vadd.f32 %v2436, %v2369
      %v2438 = vrot.slane %v2437, 4
      %v2439 = vadd.f32 %v2437, %v2438
      %v2440 = vrot.slane %v2439, 2
      %v2441 = vadd.f32 %v2439, %v2440
      %v2442 = vrot.slane %v2441, 1
      %v2443 = vadd.f32 %v2441, %v2442
      %v2444 = vadd.f32 %v2370, %v2371
      %v2445 = vadd.f32 %v2444, %v2372
      %v2446 = vadd.f32 %v2445, %v2373
      %v2447 = vadd.f32 %v2446, %v2374
      %v2448 = vadd.f32 %v2447, %v2375
      %v2449 = vadd.f32 %v2448, %v2376
      %v2450 = vadd.f32 %v2449, %v2377
      %v2451 = vadd.f32 %v2450, %v2378
      %v2452 = vadd.f32 %v2451, %v2379
      %v2453 = vadd.f32 %v2452, %v2380
      %v2454 = vadd.f32 %v2453, %v2381
      %v2455 = vadd.f32 %v2454, %v2382
      %v2456 = vadd.f32 %v2455, %v2383
      %v2457 = vadd.f32 %v2456, %v2384
      %v2458 = vadd.f32 %v2457, %v2385
      %v2459 = vrot.slane %v2458, 4
      %v2460 = vadd.f32 %v2458, %v2459
      %v2461 = vrot.slane %v2460, 2
      %v2462 = vadd.f32 %v2460, %v2461
      %v2463 = vrot.slane %v2462, 1
      %v2464 = vadd.f32 %v2462, %v2463
      %v2465 = vadd.f32 %v2386, %v2387
      %v2466 = vadd.f32 %v2465, %v2388
      %v2467 = vadd.f32 %v2466, %v2389
      %v2468 = vadd.f32 %v2467, %v2390
      %v2469 = vadd.f32 %v2468, %v2391
      %v2470 = vadd.f32 %v2469, %v2392
      %v2471 = vadd.f32 %v2470, %v2393
      %v2472 = vadd.f32 %v2471, %v2394
      %v2473 = vadd.f32 %v2472, %v2395
      %v2474 = vadd.f32 %v2473, %v2396
      %v2475 = vadd.f32 %v2474, %v2397
      %v2476 = vadd.f32 %v2475, %v2398
      %v2477 = vadd.f32 %v2476, %v2399
      %v2478 = vadd.f32 %v2477, %v2400
      %v2479 = vadd.f32 %v2478, %v2401
      %v2480 = vrot.slane %v2479, 4
      %v2481 = vadd.f32 %v2479, %v2480
      %v2482 = vrot.slane %v2481, 2
      %v2483 = vadd.f32 %v2481, %v2482
      %v2484 = vrot.slane %v2483, 1
      %v2485 = vadd.f32 %v2483, %v2484
      %v2486 = vmul.f32 %v2422, 1.442695
      %v2487 = vpow.pop %v2486
      %v2488 = vmul.f32 %v2443, 1.442695
      %v2489 = vpow.pop %v2488
      %v2490 = vmul.f32 %v2464, 1.442695
      %v2491 = vpow.pop %v2490
      %v2492 = vmul.f32 %v2485, 1.442695
      %v2493 = vpow.pop %v2492
      %v2494 = vsub.f32 1.0, %v1498
      %v2499 = vsel %vm1442, %v2489, %v2487
      %v2500 = vsel %vm1444, %v2491, %v2499
      %v2501 = vsel %vm1446, %v2493, %v2500
      %v2503 = vmul.f32 %v2494, %v2501
      %s2504 = scalar_lea.vmem %s307, 4
      %2505 = vst [vmem:[%s2504] sm:$0xf] %v2503
      %s2506 = scalar_lea.vmem %s313, 4
      %2507 = vst [vmem:[%s2506] sm:$0xf] %v1492
      %s2508 = scalar_lea.vmem %s288, 8
      %v2509 = vld [vmem:[%s2508] sm:$0xf]
      %s2510 = scalar_lea.vmem %s301, 8
      %v2511 = vld [vmem:[%s2510] sm:$0xf]
      %s2512 = scalar_lea.vmem %s295, 32
      %v2513 = vld [vmem:[%s2512] sm:$0xff]
      %v2514 = vld [vmem:[%s2512 + $0x8] sm:$0xff]
      %2516 = vset.pattern.permute.xlu0 0
      %2517 = vperm.xlu0 %2516, %v2511
      %v2518 = vpop.permute.xlu0 %2517
      %v2520 = vmul.f32 %v2518, %v2513
      %v2521 = vsub.f32 1.0, %v2520
      %2522 = vset.pattern.permute.xlu0 1
      %2523 = vperm.xlu0 %2522, %v2511
      %v2524 = vpop.permute.xlu0 %2523
      %v2527 = vcombine.high %v2513, %v2513
      %v2529 = vmul.f32 %v2524, %v2527
      %v2530 = vsub.f32 1.0, %v2529
      %v2531 = vmul.f32 %v2521, %v2530
      %2532 = vset.pattern.permute.xlu0 2
      %2533 = vperm.xlu0 %2532, %v2511
      %v2534 = vpop.permute.xlu0 %2533
      %v2536 = vmul.f32 %v2534, %v2514
      %v2537 = vsub.f32 1.0, %v2536
      %v2538 = vmul.f32 %v2531, %v2537
      %2539 = vset.pattern.permute.xlu0 3
      %2540 = vperm.xlu0 %2539, %v2511
      %v2541 = vpop.permute.xlu0 %2540
      %v2544 = vcombine.high %v2514, %v2514
      %v2546 = vmul.f32 %v2541, %v2544
      %v2547 = vsub.f32 1.0, %v2546
      %v2548 = vmul.f32 %v2538, %v2547
      %v2549 = vsub.f32 1.0, %v1496
      %v2550 = vmul.f32 %v2509, %v2549
      %v2551 = vadd.f32 %v1496, %v2550
      %v2552 = vmul.f32 %v2551, %v2548
      %v2553 = vmul.f32 %v2552, 0.999999
      %v2554 = vadd.f32 %v2553, 1e-06
      %v2555 = vlaneseq
      %v2556 = vshrl.u32 %v2555, 7
      %v2557 = vsub.s32 0, %v2556
      %v2558 = vrot.slane %v2554, %v2557
      %2560 = vbcast.lane.b32.xlu0 %v2558, 256
      %v2561 = vpop.permute.xlu0 %2560
      %s2563 = sor.u32 256, 8
      %2564 = vbcast.lane.b32.xlu0 %v2558, %s2563
      %v2565 = vpop.permute.xlu0 %2564
      %s2567 = sor.u32 256, 16
      %2568 = vbcast.lane.b32.xlu0 %v2558, %s2567
      %v2569 = vpop.permute.xlu0 %2568
      %s2571 = sor.u32 256, 24
      %2572 = vbcast.lane.b32.xlu0 %v2558, %s2571
      %v2573 = vpop.permute.xlu0 %2572
      %s2575 = sor.u32 256, 32
      %2576 = vbcast.lane.b32.xlu0 %v2558, %s2575
      %v2577 = vpop.permute.xlu0 %2576
      %s2579 = sor.u32 256, 40
      %2580 = vbcast.lane.b32.xlu0 %v2558, %s2579
      %v2581 = vpop.permute.xlu0 %2580
      %s2583 = sor.u32 256, 48
      %2584 = vbcast.lane.b32.xlu0 %v2558, %s2583
      %v2585 = vpop.permute.xlu0 %2584
      %s2587 = sor.u32 256, 56
      %2588 = vbcast.lane.b32.xlu0 %v2558, %s2587
      %v2589 = vpop.permute.xlu0 %2588
      %s2591 = sor.u32 256, 64
      %2592 = vbcast.lane.b32.xlu0 %v2558, %s2591
      %v2593 = vpop.permute.xlu0 %2592
      %s2595 = sor.u32 256, 72
      %2596 = vbcast.lane.b32.xlu0 %v2558, %s2595
      %v2597 = vpop.permute.xlu0 %2596
      %s2599 = sor.u32 256, 80
      %2600 = vbcast.lane.b32.xlu0 %v2558, %s2599
      %v2601 = vpop.permute.xlu0 %2600
      %s2603 = sor.u32 256, 88
      %2604 = vbcast.lane.b32.xlu0 %v2558, %s2603
      %v2605 = vpop.permute.xlu0 %2604
      %s2607 = sor.u32 256, 96
      %2608 = vbcast.lane.b32.xlu0 %v2558, %s2607
      %v2609 = vpop.permute.xlu0 %2608
      %s2611 = sor.u32 256, 104
      %2612 = vbcast.lane.b32.xlu0 %v2558, %s2611
      %v2613 = vpop.permute.xlu0 %2612
      %s2615 = sor.u32 256, 112
      %2616 = vbcast.lane.b32.xlu0 %v2558, %s2615
      %v2617 = vpop.permute.xlu0 %2616
      %s2619 = sor.u32 256, 120
      %2620 = vbcast.lane.b32.xlu0 %v2558, %s2619
      %v2621 = vpop.permute.xlu0 %2620
      %v2622 = vlaneseq
      %v2623 = vshrl.u32 %v2622, 7
      %v2624 = vsub.s32 1, %v2623
      %v2625 = vrot.slane %v2554, %v2624
      %2627 = vbcast.lane.b32.xlu0 %v2625, 256
      %v2628 = vpop.permute.xlu0 %2627
      %s2630 = sor.u32 256, 8
      %2631 = vbcast.lane.b32.xlu0 %v2625, %s2630
      %v2632 = vpop.permute.xlu0 %2631
      %s2634 = sor.u32 256, 16
      %2635 = vbcast.lane.b32.xlu0 %v2625, %s2634
      %v2636 = vpop.permute.xlu0 %2635
      %s2638 = sor.u32 256, 24
      %2639 = vbcast.lane.b32.xlu0 %v2625, %s2638
      %v2640 = vpop.permute.xlu0 %2639
      %s2642 = sor.u32 256, 32
      %2643 = vbcast.lane.b32.xlu0 %v2625, %s2642
      %v2644 = vpop.permute.xlu0 %2643
      %s2646 = sor.u32 256, 40
      %2647 = vbcast.lane.b32.xlu0 %v2625, %s2646
      %v2648 = vpop.permute.xlu0 %2647
      %s2650 = sor.u32 256, 48
      %2651 = vbcast.lane.b32.xlu0 %v2625, %s2650
      %v2652 = vpop.permute.xlu0 %2651
      %s2654 = sor.u32 256, 56
      %2655 = vbcast.lane.b32.xlu0 %v2625, %s2654
      %v2656 = vpop.permute.xlu0 %2655
      %s2658 = sor.u32 256, 64
      %2659 = vbcast.lane.b32.xlu0 %v2625, %s2658
      %v2660 = vpop.permute.xlu0 %2659
      %s2662 = sor.u32 256, 72
      %2663 = vbcast.lane.b32.xlu0 %v2625, %s2662
      %v2664 = vpop.permute.xlu0 %2663
      %s2666 = sor.u32 256, 80
      %2667 = vbcast.lane.b32.xlu0 %v2625, %s2666
      %v2668 = vpop.permute.xlu0 %2667
      %s2670 = sor.u32 256, 88
      %2671 = vbcast.lane.b32.xlu0 %v2625, %s2670
      %v2672 = vpop.permute.xlu0 %2671
      %s2674 = sor.u32 256, 96
      %2675 = vbcast.lane.b32.xlu0 %v2625, %s2674
      %v2676 = vpop.permute.xlu0 %2675
      %s2678 = sor.u32 256, 104
      %2679 = vbcast.lane.b32.xlu0 %v2625, %s2678
      %v2680 = vpop.permute.xlu0 %2679
      %s2682 = sor.u32 256, 112
      %2683 = vbcast.lane.b32.xlu0 %v2625, %s2682
      %v2684 = vpop.permute.xlu0 %2683
      %s2686 = sor.u32 256, 120
      %2687 = vbcast.lane.b32.xlu0 %v2625, %s2686
      %v2688 = vpop.permute.xlu0 %2687
      %v2689 = vlaneseq
      %v2690 = vshrl.u32 %v2689, 7
      %v2691 = vsub.s32 2, %v2690
      %v2692 = vrot.slane %v2554, %v2691
      %2694 = vbcast.lane.b32.xlu0 %v2692, 256
      %v2695 = vpop.permute.xlu0 %2694
      %s2697 = sor.u32 256, 8
      %2698 = vbcast.lane.b32.xlu0 %v2692, %s2697
      %v2699 = vpop.permute.xlu0 %2698
      %s2701 = sor.u32 256, 16
      %2702 = vbcast.lane.b32.xlu0 %v2692, %s2701
      %v2703 = vpop.permute.xlu0 %2702
      %s2705 = sor.u32 256, 24
      %2706 = vbcast.lane.b32.xlu0 %v2692, %s2705
      %v2707 = vpop.permute.xlu0 %2706
      %s2709 = sor.u32 256, 32
      %2710 = vbcast.lane.b32.xlu0 %v2692, %s2709
      %v2711 = vpop.permute.xlu0 %2710
      %s2713 = sor.u32 256, 40
      %2714 = vbcast.lane.b32.xlu0 %v2692, %s2713
      %v2715 = vpop.permute.xlu0 %2714
      %s2717 = sor.u32 256, 48
      %2718 = vbcast.lane.b32.xlu0 %v2692, %s2717
      %v2719 = vpop.permute.xlu0 %2718
      %s2721 = sor.u32 256, 56
      %2722 = vbcast.lane.b32.xlu0 %v2692, %s2721
      %v2723 = vpop.permute.xlu0 %2722
      %s2725 = sor.u32 256, 64
      %2726 = vbcast.lane.b32.xlu0 %v2692, %s2725
      %v2727 = vpop.permute.xlu0 %2726
      %s2729 = sor.u32 256, 72
      %2730 = vbcast.lane.b32.xlu0 %v2692, %s2729
      %v2731 = vpop.permute.xlu0 %2730
      %s2733 = sor.u32 256, 80
      %2734 = vbcast.lane.b32.xlu0 %v2692, %s2733
      %v2735 = vpop.permute.xlu0 %2734
      %s2737 = sor.u32 256, 88
      %2738 = vbcast.lane.b32.xlu0 %v2692, %s2737
      %v2739 = vpop.permute.xlu0 %2738
      %s2741 = sor.u32 256, 96
      %2742 = vbcast.lane.b32.xlu0 %v2692, %s2741
      %v2743 = vpop.permute.xlu0 %2742
      %s2745 = sor.u32 256, 104
      %2746 = vbcast.lane.b32.xlu0 %v2692, %s2745
      %v2747 = vpop.permute.xlu0 %2746
      %s2749 = sor.u32 256, 112
      %2750 = vbcast.lane.b32.xlu0 %v2692, %s2749
      %v2751 = vpop.permute.xlu0 %2750
      %s2753 = sor.u32 256, 120
      %2754 = vbcast.lane.b32.xlu0 %v2692, %s2753
      %v2755 = vpop.permute.xlu0 %2754
      %v2756 = vlaneseq
      %v2757 = vshrl.u32 %v2756, 7
      %v2758 = vsub.s32 3, %v2757
      %v2759 = vrot.slane %v2554, %v2758
      %2761 = vbcast.lane.b32.xlu0 %v2759, 256
      %v2762 = vpop.permute.xlu0 %2761
      %s2764 = sor.u32 256, 8
      %2765 = vbcast.lane.b32.xlu0 %v2759, %s2764
      %v2766 = vpop.permute.xlu0 %2765
      %s2768 = sor.u32 256, 16
      %2769 = vbcast.lane.b32.xlu0 %v2759, %s2768
      %v2770 = vpop.permute.xlu0 %2769
      %s2772 = sor.u32 256, 24
      %2773 = vbcast.lane.b32.xlu0 %v2759, %s2772
      %v2774 = vpop.permute.xlu0 %2773
      %s2776 = sor.u32 256, 32
      %2777 = vbcast.lane.b32.xlu0 %v2759, %s2776
      %v2778 = vpop.permute.xlu0 %2777
      %s2780 = sor.u32 256, 40
      %2781 = vbcast.lane.b32.xlu0 %v2759, %s2780
      %v2782 = vpop.permute.xlu0 %2781
      %s2784 = sor.u32 256, 48
      %2785 = vbcast.lane.b32.xlu0 %v2759, %s2784
      %v2786 = vpop.permute.xlu0 %2785
      %s2788 = sor.u32 256, 56
      %2789 = vbcast.lane.b32.xlu0 %v2759, %s2788
      %v2790 = vpop.permute.xlu0 %2789
      %s2792 = sor.u32 256, 64
      %2793 = vbcast.lane.b32.xlu0 %v2759, %s2792
      %v2794 = vpop.permute.xlu0 %2793
      %s2796 = sor.u32 256, 72
      %2797 = vbcast.lane.b32.xlu0 %v2759, %s2796
      %v2798 = vpop.permute.xlu0 %2797
      %s2800 = sor.u32 256, 80
      %2801 = vbcast.lane.b32.xlu0 %v2759, %s2800
      %v2802 = vpop.permute.xlu0 %2801
      %s2804 = sor.u32 256, 88
      %2805 = vbcast.lane.b32.xlu0 %v2759, %s2804
      %v2806 = vpop.permute.xlu0 %2805
      %s2808 = sor.u32 256, 96
      %2809 = vbcast.lane.b32.xlu0 %v2759, %s2808
      %v2810 = vpop.permute.xlu0 %2809
      %s2812 = sor.u32 256, 104
      %2813 = vbcast.lane.b32.xlu0 %v2759, %s2812
      %v2814 = vpop.permute.xlu0 %2813
      %s2816 = sor.u32 256, 112
      %2817 = vbcast.lane.b32.xlu0 %v2759, %s2816
      %v2818 = vpop.permute.xlu0 %2817
      %s2820 = sor.u32 256, 120
      %2821 = vbcast.lane.b32.xlu0 %v2759, %s2820
      %v2822 = vpop.permute.xlu0 %2821
      %v2825 = vunpack.c.l.s4 1966171168
      %v2826 = vunpack.c.0.s8 %v2825
      %v2827 = vlaneseq
      %v2828 = vshrl.u32 %v2827, 7
      %v2829 = vsub.s32 %v2826, %v2828
      %v2830 = vrot.slane %v2554, %v2829
      %v2831 = vcombine.high %v2830, %v2830
      %v2833 = vunpack.c.l.s4 1966171168
      %v2834 = vunpack.c.0.s8 %v2833
      %v2835 = vlaneseq
      %v2836 = vshrl.u32 %v2835, 7
      %v2837 = vsub.s32 %v2834, %v2836
      %v2838 = vrot.slane %v2830, %v2837
      %v2840 = vunpack.c.l.s4 1966171168
      %v2841 = vunpack.c.0.s8 %v2840
      %v2842 = vlaneseq
      %v2843 = vshrl.u32 %v2842, 7
      %v2844 = vsub.s32 %v2841, %v2843
      %v2845 = vrot.slane %v2831, %v2844
      %v2846 = vcombine.high %v2838, %v2838
      %v2847 = vcombine.high %v2845, %v2845
      %v2848 = vlaneseq
      %v2849 = vshrl.u32 %v2848, 7
      %v2850 = vsub.s32 0, %v2849
      %v2851 = vrot.slane %v2838, %v2850
      %v2852 = vlaneseq
      %v2853 = vshrl.u32 %v2852, 7
      %v2854 = vsub.s32 0, %v2853
      %v2855 = vrot.slane %v2845, %v2854
      %v2856 = vlaneseq
      %v2857 = vshrl.u32 %v2856, 7
      %v2858 = vsub.s32 0, %v2857
      %v2859 = vrot.slane %v2846, %v2858
      %v2860 = vlaneseq
      %v2861 = vshrl.u32 %v2860, 7
      %v2862 = vsub.s32 0, %v2861
      %v2863 = vrot.slane %v2847, %v2862
      %vm2868 = vcmp.lt.f32.partialorder %v2561, %v2851
      %vm2869 = vcmp.lt.f32.partialorder %v2565, %v2851
      %vm2870 = vcmp.lt.f32.partialorder %v2569, %v2851
      %vm2871 = vcmp.lt.f32.partialorder %v2573, %v2851
      %vm2872 = vcmp.lt.f32.partialorder %v2577, %v2851
      %vm2873 = vcmp.lt.f32.partialorder %v2581, %v2851
      %vm2874 = vcmp.lt.f32.partialorder %v2585, %v2851
      %vm2875 = vcmp.lt.f32.partialorder %v2589, %v2851
      %vm2876 = vcmp.lt.f32.partialorder %v2593, %v2851
      %vm2877 = vcmp.lt.f32.partialorder %v2597, %v2851
      %vm2878 = vcmp.lt.f32.partialorder %v2601, %v2851
      %vm2879 = vcmp.lt.f32.partialorder %v2605, %v2851
      %vm2880 = vcmp.lt.f32.partialorder %v2609, %v2851
      %vm2881 = vcmp.lt.f32.partialorder %v2613, %v2851
      %vm2882 = vcmp.lt.f32.partialorder %v2617, %v2851
      %vm2883 = vcmp.lt.f32.partialorder %v2621, %v2851
      %vm2884 = vcmp.lt.f32.partialorder %v2628, %v2855
      %vm2885 = vcmp.lt.f32.partialorder %v2632, %v2855
      %vm2886 = vcmp.lt.f32.partialorder %v2636, %v2855
      %vm2887 = vcmp.lt.f32.partialorder %v2640, %v2855
      %vm2888 = vcmp.lt.f32.partialorder %v2644, %v2855
      %vm2889 = vcmp.lt.f32.partialorder %v2648, %v2855
      %vm2890 = vcmp.lt.f32.partialorder %v2652, %v2855
      %vm2891 = vcmp.lt.f32.partialorder %v2656, %v2855
      %vm2892 = vcmp.lt.f32.partialorder %v2660, %v2855
      %vm2893 = vcmp.lt.f32.partialorder %v2664, %v2855
      %vm2894 = vcmp.lt.f32.partialorder %v2668, %v2855
      %vm2895 = vcmp.lt.f32.partialorder %v2672, %v2855
      %vm2896 = vcmp.lt.f32.partialorder %v2676, %v2855
      %vm2897 = vcmp.lt.f32.partialorder %v2680, %v2855
      %vm2898 = vcmp.lt.f32.partialorder %v2684, %v2855
      %vm2899 = vcmp.lt.f32.partialorder %v2688, %v2855
      %vm2900 = vcmp.lt.f32.partialorder %v2695, %v2859
      %vm2901 = vcmp.lt.f32.partialorder %v2699, %v2859
      %vm2902 = vcmp.lt.f32.partialorder %v2703, %v2859
      %vm2903 = vcmp.lt.f32.partialorder %v2707, %v2859
      %vm2904 = vcmp.lt.f32.partialorder %v2711, %v2859
      %vm2905 = vcmp.lt.f32.partialorder %v2715, %v2859
      %vm2906 = vcmp.lt.f32.partialorder %v2719, %v2859
      %vm2907 = vcmp.lt.f32.partialorder %v2723, %v2859
      %vm2908 = vcmp.lt.f32.partialorder %v2727, %v2859
      %vm2909 = vcmp.lt.f32.partialorder %v2731, %v2859
      %vm2910 = vcmp.lt.f32.partialorder %v2735, %v2859
      %vm2911 = vcmp.lt.f32.partialorder %v2739, %v2859
      %vm2912 = vcmp.lt.f32.partialorder %v2743, %v2859
      %vm2913 = vcmp.lt.f32.partialorder %v2747, %v2859
      %vm2914 = vcmp.lt.f32.partialorder %v2751, %v2859
      %vm2915 = vcmp.lt.f32.partialorder %v2755, %v2859
      %vm2916 = vcmp.lt.f32.partialorder %v2762, %v2863
      %vm2917 = vcmp.lt.f32.partialorder %v2766, %v2863
      %vm2918 = vcmp.lt.f32.partialorder %v2770, %v2863
      %vm2919 = vcmp.lt.f32.partialorder %v2774, %v2863
      %vm2920 = vcmp.lt.f32.partialorder %v2778, %v2863
      %vm2921 = vcmp.lt.f32.partialorder %v2782, %v2863
      %vm2922 = vcmp.lt.f32.partialorder %v2786, %v2863
      %vm2923 = vcmp.lt.f32.partialorder %v2790, %v2863
      %vm2924 = vcmp.lt.f32.partialorder %v2794, %v2863
      %vm2925 = vcmp.lt.f32.partialorder %v2798, %v2863
      %vm2926 = vcmp.lt.f32.partialorder %v2802, %v2863
      %vm2927 = vcmp.lt.f32.partialorder %v2806, %v2863
      %vm2928 = vcmp.lt.f32.partialorder %v2810, %v2863
      %vm2929 = vcmp.lt.f32.partialorder %v2814, %v2863
      %vm2930 = vcmp.lt.f32.partialorder %v2818, %v2863
      %vm2931 = vcmp.lt.f32.partialorder %v2822, %v2863
      %vm2932 = vcmp.eq.f32.partialorder %v2561, %v2851
      %vm2933 = vcmp.eq.f32.partialorder %v2565, %v2851
      %vm2934 = vcmp.eq.f32.partialorder %v2569, %v2851
      %vm2935 = vcmp.eq.f32.partialorder %v2573, %v2851
      %vm2936 = vcmp.eq.f32.partialorder %v2577, %v2851
      %vm2937 = vcmp.eq.f32.partialorder %v2581, %v2851
      %vm2938 = vcmp.eq.f32.partialorder %v2585, %v2851
      %vm2939 = vcmp.eq.f32.partialorder %v2589, %v2851
      %vm2940 = vcmp.eq.f32.partialorder %v2593, %v2851
      %vm2941 = vcmp.eq.f32.partialorder %v2597, %v2851
      %vm2942 = vcmp.eq.f32.partialorder %v2601, %v2851
      %vm2943 = vcmp.eq.f32.partialorder %v2605, %v2851
      %vm2944 = vcmp.eq.f32.partialorder %v2609, %v2851
      %vm2945 = vcmp.eq.f32.partialorder %v2613, %v2851
      %vm2946 = vcmp.eq.f32.partialorder %v2617, %v2851
      %vm2947 = vcmp.eq.f32.partialorder %v2621, %v2851
      %vm2948 = vcmp.eq.f32.partialorder %v2628, %v2855
      %vm2949 = vcmp.eq.f32.partialorder %v2632, %v2855
      %vm2950 = vcmp.eq.f32.partialorder %v2636, %v2855
      %vm2951 = vcmp.eq.f32.partialorder %v2640, %v2855
      %vm2952 = vcmp.eq.f32.partialorder %v2644, %v2855
      %vm2953 = vcmp.eq.f32.partialorder %v2648, %v2855
      %vm2954 = vcmp.eq.f32.partialorder %v2652, %v2855
      %vm2955 = vcmp.eq.f32.partialorder %v2656, %v2855
      %vm2956 = vcmp.eq.f32.partialorder %v2660, %v2855
      %vm2957 = vcmp.eq.f32.partialorder %v2664, %v2855
      %vm2958 = vcmp.eq.f32.partialorder %v2668, %v2855
      %vm2959 = vcmp.eq.f32.partialorder %v2672, %v2855
      %vm2960 = vcmp.eq.f32.partialorder %v2676, %v2855
      %vm2961 = vcmp.eq.f32.partialorder %v2680, %v2855
      %vm2962 = vcmp.eq.f32.partialorder %v2684, %v2855
      %vm2963 = vcmp.eq.f32.partialorder %v2688, %v2855
      %vm2964 = vcmp.eq.f32.partialorder %v2695, %v2859
      %vm2965 = vcmp.eq.f32.partialorder %v2699, %v2859
      %vm2966 = vcmp.eq.f32.partialorder %v2703, %v2859
      %vm2967 = vcmp.eq.f32.partialorder %v2707, %v2859
      %vm2968 = vcmp.eq.f32.partialorder %v2711, %v2859
      %vm2969 = vcmp.eq.f32.partialorder %v2715, %v2859
      %vm2970 = vcmp.eq.f32.partialorder %v2719, %v2859
      %vm2971 = vcmp.eq.f32.partialorder %v2723, %v2859
      %vm2972 = vcmp.eq.f32.partialorder %v2727, %v2859
      %vm2973 = vcmp.eq.f32.partialorder %v2731, %v2859
      %vm2974 = vcmp.eq.f32.partialorder %v2735, %v2859
      %vm2975 = vcmp.eq.f32.partialorder %v2739, %v2859
      %vm2976 = vcmp.eq.f32.partialorder %v2743, %v2859
      %vm2977 = vcmp.eq.f32.partialorder %v2747, %v2859
      %vm2978 = vcmp.eq.f32.partialorder %v2751, %v2859
      %vm2979 = vcmp.eq.f32.partialorder %v2755, %v2859
      %vm2980 = vcmp.eq.f32.partialorder %v2762, %v2863
      %vm2981 = vcmp.eq.f32.partialorder %v2766, %v2863
      %vm2982 = vcmp.eq.f32.partialorder %v2770, %v2863
      %vm2983 = vcmp.eq.f32.partialorder %v2774, %v2863
      %vm2984 = vcmp.eq.f32.partialorder %v2778, %v2863
      %vm2985 = vcmp.eq.f32.partialorder %v2782, %v2863
      %vm2986 = vcmp.eq.f32.partialorder %v2786, %v2863
      %vm2987 = vcmp.eq.f32.partialorder %v2790, %v2863
      %vm2988 = vcmp.eq.f32.partialorder %v2794, %v2863
      %vm2989 = vcmp.eq.f32.partialorder %v2798, %v2863
      %vm2990 = vcmp.eq.f32.partialorder %v2802, %v2863
      %vm2991 = vcmp.eq.f32.partialorder %v2806, %v2863
      %vm2992 = vcmp.eq.f32.partialorder %v2810, %v2863
      %vm2993 = vcmp.eq.f32.partialorder %v2814, %v2863
      %vm2994 = vcmp.eq.f32.partialorder %v2818, %v2863
      %vm2995 = vcmp.eq.f32.partialorder %v2822, %v2863
      %vm2996 = vmand %vm2932, %vm867
      %vm2997 = vmand %vm2933, %vm868
      %vm2998 = vmand %vm2934, %vm869
      %vm2999 = vmand %vm2935, %vm870
      %vm3000 = vmand %vm2936, %vm871
      %vm3001 = vmand %vm2937, %vm872
      %vm3002 = vmand %vm2938, %vm873
      %vm3003 = vmand %vm2939, %vm874
      %vm3004 = vmand %vm2940, %vm875
      %vm3005 = vmand %vm2941, %vm876
      %vm3006 = vmand %vm2942, %vm877
      %vm3007 = vmand %vm2943, %vm878
      %vm3008 = vmand %vm2944, %vm879
      %vm3009 = vmand %vm2945, %vm880
      %vm3010 = vmand %vm2946, %vm881
      %vm3011 = vmand %vm2947, %vm882
      %vm3012 = vmand %vm2948, %vm867
      %vm3013 = vmand %vm2949, %vm868
      %vm3014 = vmand %vm2950, %vm869
      %vm3015 = vmand %vm2951, %vm870
      %vm3016 = vmand %vm2952, %vm871
      %vm3017 = vmand %vm2953, %vm872
      %vm3018 = vmand %vm2954, %vm873
      %vm3019 = vmand %vm2955, %vm874
      %vm3020 = vmand %vm2956, %vm875
      %vm3021 = vmand %vm2957, %vm876
      %vm3022 = vmand %vm2958, %vm877
      %vm3023 = vmand %vm2959, %vm878
      %vm3024 = vmand %vm2960, %vm879
      %vm3025 = vmand %vm2961, %vm880
      %vm3026 = vmand %vm2962, %vm881
      %vm3027 = vmand %vm2963, %vm882
      %vm3028 = vmand %vm2964, %vm867
      %vm3029 = vmand %vm2965, %vm868
      %vm3030 = vmand %vm2966, %vm869
      %vm3031 = vmand %vm2967, %vm870
      %vm3032 = vmand %vm2968, %vm871
      %vm3033 = vmand %vm2969, %vm872
      %vm3034 = vmand %vm2970, %vm873
      %vm3035 = vmand %vm2971, %vm874
      %vm3036 = vmand %vm2972, %vm875
      %vm3037 = vmand %vm2973, %vm876
      %vm3038 = vmand %vm2974, %vm877
      %vm3039 = vmand %vm2975, %vm878
      %vm3040 = vmand %vm2976, %vm879
      %vm3041 = vmand %vm2977, %vm880
      %vm3042 = vmand %vm2978, %vm881
      %vm3043 = vmand %vm2979, %vm882
      %vm3044 = vmand %vm2980, %vm867
      %vm3045 = vmand %vm2981, %vm868
      %vm3046 = vmand %vm2982, %vm869
      %vm3047 = vmand %vm2983, %vm870
      %vm3048 = vmand %vm2984, %vm871
      %vm3049 = vmand %vm2985, %vm872
      %vm3050 = vmand %vm2986, %vm873
      %vm3051 = vmand %vm2987, %vm874
      %vm3052 = vmand %vm2988, %vm875
      %vm3053 = vmand %vm2989, %vm876
      %vm3054 = vmand %vm2990, %vm877
      %vm3055 = vmand %vm2991, %vm878
      %vm3056 = vmand %vm2992, %vm879
      %vm3057 = vmand %vm2993, %vm880
      %vm3058 = vmand %vm2994, %vm881
      %vm3059 = vmand %vm2995, %vm882
      %vm3060 = vmor %vm2868, %vm2996
      %vm3061 = vmor %vm2869, %vm2997
      %vm3062 = vmor %vm2870, %vm2998
      %vm3063 = vmor %vm2871, %vm2999
      %vm3064 = vmor %vm2872, %vm3000
      %vm3065 = vmor %vm2873, %vm3001
      %vm3066 = vmor %vm2874, %vm3002
      %vm3067 = vmor %vm2875, %vm3003
      %vm3068 = vmor %vm2876, %vm3004
      %vm3069 = vmor %vm2877, %vm3005
      %vm3070 = vmor %vm2878, %vm3006
      %vm3071 = vmor %vm2879, %vm3007
      %vm3072 = vmor %vm2880, %vm3008
      %vm3073 = vmor %vm2881, %vm3009
      %vm3074 = vmor %vm2882, %vm3010
      %vm3075 = vmor %vm2883, %vm3011
      %vm3076 = vmor %vm2884, %vm3012
      %vm3077 = vmor %vm2885, %vm3013
      %vm3078 = vmor %vm2886, %vm3014
      %vm3079 = vmor %vm2887, %vm3015
      %vm3080 = vmor %vm2888, %vm3016
      %vm3081 = vmor %vm2889, %vm3017
      %vm3082 = vmor %vm2890, %vm3018
      %vm3083 = vmor %vm2891, %vm3019
      %vm3084 = vmor %vm2892, %vm3020
      %vm3085 = vmor %vm2893, %vm3021
      %vm3086 = vmor %vm2894, %vm3022
      %vm3087 = vmor %vm2895, %vm3023
      %vm3088 = vmor %vm2896, %vm3024
      %vm3089 = vmor %vm2897, %vm3025
      %vm3090 = vmor %vm2898, %vm3026
      %vm3091 = vmor %vm2899, %vm3027
      %vm3092 = vmor %vm2900, %vm3028
      %vm3093 = vmor %vm2901, %vm3029
      %vm3094 = vmor %vm2902, %vm3030
      %vm3095 = vmor %vm2903, %vm3031
      %vm3096 = vmor %vm2904, %vm3032
      %vm3097 = vmor %vm2905, %vm3033
      %vm3098 = vmor %vm2906, %vm3034
      %vm3099 = vmor %vm2907, %vm3035
      %vm3100 = vmor %vm2908, %vm3036
      %vm3101 = vmor %vm2909, %vm3037
      %vm3102 = vmor %vm2910, %vm3038
      %vm3103 = vmor %vm2911, %vm3039
      %vm3104 = vmor %vm2912, %vm3040
      %vm3105 = vmor %vm2913, %vm3041
      %vm3106 = vmor %vm2914, %vm3042
      %vm3107 = vmor %vm2915, %vm3043
      %vm3108 = vmor %vm2916, %vm3044
      %vm3109 = vmor %vm2917, %vm3045
      %vm3110 = vmor %vm2918, %vm3046
      %vm3111 = vmor %vm2919, %vm3047
      %vm3112 = vmor %vm2920, %vm3048
      %vm3113 = vmor %vm2921, %vm3049
      %vm3114 = vmor %vm2922, %vm3050
      %vm3115 = vmor %vm2923, %vm3051
      %vm3116 = vmor %vm2924, %vm3052
      %vm3117 = vmor %vm2925, %vm3053
      %vm3118 = vmor %vm2926, %vm3054
      %vm3119 = vmor %vm2927, %vm3055
      %vm3120 = vmor %vm2928, %vm3056
      %vm3121 = vmor %vm2929, %vm3057
      %vm3122 = vmor %vm2930, %vm3058
      %vm3123 = vmor %vm2931, %vm3059
      %v3124 = vlog2.pop %v2554
      %v3125 = vmul.f32 %v3124, 0.6931472
      %v3126 = vlaneseq
      %v3127 = vshrl.u32 %v3126, 7
      %v3128 = vsub.s32 0, %v3127
      %v3129 = vrot.slane %v3125, %v3128
      %3131 = vbcast.lane.b32.xlu0 %v3129, 256
      %v3132 = vpop.permute.xlu0 %3131
      %s3134 = sor.u32 256, 8
      %3135 = vbcast.lane.b32.xlu0 %v3129, %s3134
      %v3136 = vpop.permute.xlu0 %3135
      %s3138 = sor.u32 256, 16
      %3139 = vbcast.lane.b32.xlu0 %v3129, %s3138
      %v3140 = vpop.permute.xlu0 %3139
      %s3142 = sor.u32 256, 24
      %3143 = vbcast.lane.b32.xlu0 %v3129, %s3142
      %v3144 = vpop.permute.xlu0 %3143
      %s3146 = sor.u32 256, 32
      %3147 = vbcast.lane.b32.xlu0 %v3129, %s3146
      %v3148 = vpop.permute.xlu0 %3147
      %s3150 = sor.u32 256, 40
      %3151 = vbcast.lane.b32.xlu0 %v3129, %s3150
      %v3152 = vpop.permute.xlu0 %3151
      %s3154 = sor.u32 256, 48
      %3155 = vbcast.lane.b32.xlu0 %v3129, %s3154
      %v3156 = vpop.permute.xlu0 %3155
      %s3158 = sor.u32 256, 56
      %3159 = vbcast.lane.b32.xlu0 %v3129, %s3158
      %v3160 = vpop.permute.xlu0 %3159
      %s3162 = sor.u32 256, 64
      %3163 = vbcast.lane.b32.xlu0 %v3129, %s3162
      %v3164 = vpop.permute.xlu0 %3163
      %s3166 = sor.u32 256, 72
      %3167 = vbcast.lane.b32.xlu0 %v3129, %s3166
      %v3168 = vpop.permute.xlu0 %3167
      %s3170 = sor.u32 256, 80
      %3171 = vbcast.lane.b32.xlu0 %v3129, %s3170
      %v3172 = vpop.permute.xlu0 %3171
      %s3174 = sor.u32 256, 88
      %3175 = vbcast.lane.b32.xlu0 %v3129, %s3174
      %v3176 = vpop.permute.xlu0 %3175
      %s3178 = sor.u32 256, 96
      %3179 = vbcast.lane.b32.xlu0 %v3129, %s3178
      %v3180 = vpop.permute.xlu0 %3179
      %s3182 = sor.u32 256, 104
      %3183 = vbcast.lane.b32.xlu0 %v3129, %s3182
      %v3184 = vpop.permute.xlu0 %3183
      %s3186 = sor.u32 256, 112
      %3187 = vbcast.lane.b32.xlu0 %v3129, %s3186
      %v3188 = vpop.permute.xlu0 %3187
      %s3190 = sor.u32 256, 120
      %3191 = vbcast.lane.b32.xlu0 %v3129, %s3190
      %v3192 = vpop.permute.xlu0 %3191
      %v3193 = vlaneseq
      %v3194 = vshrl.u32 %v3193, 7
      %v3195 = vsub.s32 1, %v3194
      %v3196 = vrot.slane %v3125, %v3195
      %3198 = vbcast.lane.b32.xlu0 %v3196, 256
      %v3199 = vpop.permute.xlu0 %3198
      %s3201 = sor.u32 256, 8
      %3202 = vbcast.lane.b32.xlu0 %v3196, %s3201
      %v3203 = vpop.permute.xlu0 %3202
      %s3205 = sor.u32 256, 16
      %3206 = vbcast.lane.b32.xlu0 %v3196, %s3205
      %v3207 = vpop.permute.xlu0 %3206
      %s3209 = sor.u32 256, 24
      %3210 = vbcast.lane.b32.xlu0 %v3196, %s3209
      %v3211 = vpop.permute.xlu0 %3210
      %s3213 = sor.u32 256, 32
      %3214 = vbcast.lane.b32.xlu0 %v3196, %s3213
      %v3215 = vpop.permute.xlu0 %3214
      %s3217 = sor.u32 256, 40
      %3218 = vbcast.lane.b32.xlu0 %v3196, %s3217
      %v3219 = vpop.permute.xlu0 %3218
      %s3221 = sor.u32 256, 48
      %3222 = vbcast.lane.b32.xlu0 %v3196, %s3221
      %v3223 = vpop.permute.xlu0 %3222
      %s3225 = sor.u32 256, 56
      %3226 = vbcast.lane.b32.xlu0 %v3196, %s3225
      %v3227 = vpop.permute.xlu0 %3226
      %s3229 = sor.u32 256, 64
      %3230 = vbcast.lane.b32.xlu0 %v3196, %s3229
      %v3231 = vpop.permute.xlu0 %3230
      %s3233 = sor.u32 256, 72
      %3234 = vbcast.lane.b32.xlu0 %v3196, %s3233
      %v3235 = vpop.permute.xlu0 %3234
      %s3237 = sor.u32 256, 80
      %3238 = vbcast.lane.b32.xlu0 %v3196, %s3237
      %v3239 = vpop.permute.xlu0 %3238
      %s3241 = sor.u32 256, 88
      %3242 = vbcast.lane.b32.xlu0 %v3196, %s3241
      %v3243 = vpop.permute.xlu0 %3242
      %s3245 = sor.u32 256, 96
      %3246 = vbcast.lane.b32.xlu0 %v3196, %s3245
      %v3247 = vpop.permute.xlu0 %3246
      %s3249 = sor.u32 256, 104
      %3250 = vbcast.lane.b32.xlu0 %v3196, %s3249
      %v3251 = vpop.permute.xlu0 %3250
      %s3253 = sor.u32 256, 112
      %3254 = vbcast.lane.b32.xlu0 %v3196, %s3253
      %v3255 = vpop.permute.xlu0 %3254
      %s3257 = sor.u32 256, 120
      %3258 = vbcast.lane.b32.xlu0 %v3196, %s3257
      %v3259 = vpop.permute.xlu0 %3258
      %v3260 = vlaneseq
      %v3261 = vshrl.u32 %v3260, 7
      %v3262 = vsub.s32 2, %v3261
      %v3263 = vrot.slane %v3125, %v3262
      %3265 = vbcast.lane.b32.xlu0 %v3263, 256
      %v3266 = vpop.permute.xlu0 %3265
      %s3268 = sor.u32 256, 8
      %3269 = vbcast.lane.b32.xlu0 %v3263, %s3268
      %v3270 = vpop.permute.xlu0 %3269
      %s3272 = sor.u32 256, 16
      %3273 = vbcast.lane.b32.xlu0 %v3263, %s3272
      %v3274 = vpop.permute.xlu0 %3273
      %s3276 = sor.u32 256, 24
      %3277 = vbcast.lane.b32.xlu0 %v3263, %s3276
      %v3278 = vpop.permute.xlu0 %3277
      %s3280 = sor.u32 256, 32
      %3281 = vbcast.lane.b32.xlu0 %v3263, %s3280
      %v3282 = vpop.permute.xlu0 %3281
      %s3284 = sor.u32 256, 40
      %3285 = vbcast.lane.b32.xlu0 %v3263, %s3284
      %v3286 = vpop.permute.xlu0 %3285
      %s3288 = sor.u32 256, 48
      %3289 = vbcast.lane.b32.xlu0 %v3263, %s3288
      %v3290 = vpop.permute.xlu0 %3289
      %s3292 = sor.u32 256, 56
      %3293 = vbcast.lane.b32.xlu0 %v3263, %s3292
      %v3294 = vpop.permute.xlu0 %3293
      %s3296 = sor.u32 256, 64
      %3297 = vbcast.lane.b32.xlu0 %v3263, %s3296
      %v3298 = vpop.permute.xlu0 %3297
      %s3300 = sor.u32 256, 72
      %3301 = vbcast.lane.b32.xlu0 %v3263, %s3300
      %v3302 = vpop.permute.xlu0 %3301
      %s3304 = sor.u32 256, 80
      %3305 = vbcast.lane.b32.xlu0 %v3263, %s3304
      %v3306 = vpop.permute.xlu0 %3305
      %s3308 = sor.u32 256, 88
      %3309 = vbcast.lane.b32.xlu0 %v3263, %s3308
      %v3310 = vpop.permute.xlu0 %3309
      %s3312 = sor.u32 256, 96
      %3313 = vbcast.lane.b32.xlu0 %v3263, %s3312
      %v3314 = vpop.permute.xlu0 %3313
      %s3316 = sor.u32 256, 104
      %3317 = vbcast.lane.b32.xlu0 %v3263, %s3316
      %v3318 = vpop.permute.xlu0 %3317
      %s3320 = sor.u32 256, 112
      %3321 = vbcast.lane.b32.xlu0 %v3263, %s3320
      %v3322 = vpop.permute.xlu0 %3321
      %s3324 = sor.u32 256, 120
      %3325 = vbcast.lane.b32.xlu0 %v3263, %s3324
      %v3326 = vpop.permute.xlu0 %3325
      %v3327 = vlaneseq
      %v3328 = vshrl.u32 %v3327, 7
      %v3329 = vsub.s32 3, %v3328
      %v3330 = vrot.slane %v3125, %v3329
      %3332 = vbcast.lane.b32.xlu0 %v3330, 256
      %v3333 = vpop.permute.xlu0 %3332
      %s3335 = sor.u32 256, 8
      %3336 = vbcast.lane.b32.xlu0 %v3330, %s3335
      %v3337 = vpop.permute.xlu0 %3336
      %s3339 = sor.u32 256, 16
      %3340 = vbcast.lane.b32.xlu0 %v3330, %s3339
      %v3341 = vpop.permute.xlu0 %3340
      %s3343 = sor.u32 256, 24
      %3344 = vbcast.lane.b32.xlu0 %v3330, %s3343
      %v3345 = vpop.permute.xlu0 %3344
      %s3347 = sor.u32 256, 32
      %3348 = vbcast.lane.b32.xlu0 %v3330, %s3347
      %v3349 = vpop.permute.xlu0 %3348
      %s3351 = sor.u32 256, 40
      %3352 = vbcast.lane.b32.xlu0 %v3330, %s3351
      %v3353 = vpop.permute.xlu0 %3352
      %s3355 = sor.u32 256, 48
      %3356 = vbcast.lane.b32.xlu0 %v3330, %s3355
      %v3357 = vpop.permute.xlu0 %3356
      %s3359 = sor.u32 256, 56
      %3360 = vbcast.lane.b32.xlu0 %v3330, %s3359
      %v3361 = vpop.permute.xlu0 %3360
      %s3363 = sor.u32 256, 64
      %3364 = vbcast.lane.b32.xlu0 %v3330, %s3363
      %v3365 = vpop.permute.xlu0 %3364
      %s3367 = sor.u32 256, 72
      %3368 = vbcast.lane.b32.xlu0 %v3330, %s3367
      %v3369 = vpop.permute.xlu0 %3368
      %s3371 = sor.u32 256, 80
      %3372 = vbcast.lane.b32.xlu0 %v3330, %s3371
      %v3373 = vpop.permute.xlu0 %3372
      %s3375 = sor.u32 256, 88
      %3376 = vbcast.lane.b32.xlu0 %v3330, %s3375
      %v3377 = vpop.permute.xlu0 %3376
      %s3379 = sor.u32 256, 96
      %3380 = vbcast.lane.b32.xlu0 %v3330, %s3379
      %v3381 = vpop.permute.xlu0 %3380
      %s3383 = sor.u32 256, 104
      %3384 = vbcast.lane.b32.xlu0 %v3330, %s3383
      %v3385 = vpop.permute.xlu0 %3384
      %s3387 = sor.u32 256, 112
      %3388 = vbcast.lane.b32.xlu0 %v3330, %s3387
      %v3389 = vpop.permute.xlu0 %3388
      %s3391 = sor.u32 256, 120
      %3392 = vbcast.lane.b32.xlu0 %v3330, %s3391
      %v3393 = vpop.permute.xlu0 %3392
      %v3394 = vsel %vm3060, %v3132, 0.0
      %v3395 = vsel %vm3061, %v3136, 0.0
      %v3396 = vsel %vm3062, %v3140, 0.0
      %v3397 = vsel %vm3063, %v3144, 0.0
      %v3398 = vsel %vm3064, %v3148, 0.0
      %v3399 = vsel %vm3065, %v3152, 0.0
      %v3400 = vsel %vm3066, %v3156, 0.0
      %v3401 = vsel %vm3067, %v3160, 0.0
      %v3402 = vsel %vm3068, %v3164, 0.0
      %v3403 = vsel %vm3069, %v3168, 0.0
      %v3404 = vsel %vm3070, %v3172, 0.0
      %v3405 = vsel %vm3071, %v3176, 0.0
      %v3406 = vsel %vm3072, %v3180, 0.0
      %v3407 = vsel %vm3073, %v3184, 0.0
      %v3408 = vsel %vm3074, %v3188, 0.0
      %v3409 = vsel %vm3075, %v3192, 0.0
      %v3410 = vsel %vm3076, %v3199, 0.0
      %v3411 = vsel %vm3077, %v3203, 0.0
      %v3412 = vsel %vm3078, %v3207, 0.0
      %v3413 = vsel %vm3079, %v3211, 0.0
      %v3414 = vsel %vm3080, %v3215, 0.0
      %v3415 = vsel %vm3081, %v3219, 0.0
      %v3416 = vsel %vm3082, %v3223, 0.0
      %v3417 = vsel %vm3083, %v3227, 0.0
      %v3418 = vsel %vm3084, %v3231, 0.0
      %v3419 = vsel %vm3085, %v3235, 0.0
      %v3420 = vsel %vm3086, %v3239, 0.0
      %v3421 = vsel %vm3087, %v3243, 0.0
      %v3422 = vsel %vm3088, %v3247, 0.0
      %v3423 = vsel %vm3089, %v3251, 0.0
      %v3424 = vsel %vm3090, %v3255, 0.0
      %v3425 = vsel %vm3091, %v3259, 0.0
      %v3426 = vsel %vm3092, %v3266, 0.0
      %v3427 = vsel %vm3093, %v3270, 0.0
      %v3428 = vsel %vm3094, %v3274, 0.0
      %v3429 = vsel %vm3095, %v3278, 0.0
      %v3430 = vsel %vm3096, %v3282, 0.0
      %v3431 = vsel %vm3097, %v3286, 0.0
      %v3432 = vsel %vm3098, %v3290, 0.0
      %v3433 = vsel %vm3099, %v3294, 0.0
      %v3434 = vsel %vm3100, %v3298, 0.0
      %v3435 = vsel %vm3101, %v3302, 0.0
      %v3436 = vsel %vm3102, %v3306, 0.0
      %v3437 = vsel %vm3103, %v3310, 0.0
      %v3438 = vsel %vm3104, %v3314, 0.0
      %v3439 = vsel %vm3105, %v3318, 0.0
      %v3440 = vsel %vm3106, %v3322, 0.0
      %v3441 = vsel %vm3107, %v3326, 0.0
      %v3442 = vsel %vm3108, %v3333, 0.0
      %v3443 = vsel %vm3109, %v3337, 0.0
      %v3444 = vsel %vm3110, %v3341, 0.0
      %v3445 = vsel %vm3111, %v3345, 0.0
      %v3446 = vsel %vm3112, %v3349, 0.0
      %v3447 = vsel %vm3113, %v3353, 0.0
      %v3448 = vsel %vm3114, %v3357, 0.0
      %v3449 = vsel %vm3115, %v3361, 0.0
      %v3450 = vsel %vm3116, %v3365, 0.0
      %v3451 = vsel %vm3117, %v3369, 0.0
      %v3452 = vsel %vm3118, %v3373, 0.0
      %v3453 = vsel %vm3119, %v3377, 0.0
      %v3454 = vsel %vm3120, %v3381, 0.0
      %v3455 = vsel %vm3121, %v3385, 0.0
      %v3456 = vsel %vm3122, %v3389, 0.0
      %v3457 = vsel %vm3123, %v3393, 0.0
      %v3458 = vadd.f32 %v3394, %v3395
      %v3459 = vadd.f32 %v3458, %v3396
      %v3460 = vadd.f32 %v3459, %v3397
      %v3461 = vadd.f32 %v3460, %v3398
      %v3462 = vadd.f32 %v3461, %v3399
      %v3463 = vadd.f32 %v3462, %v3400
      %v3464 = vadd.f32 %v3463, %v3401
      %v3465 = vadd.f32 %v3464, %v3402
      %v3466 = vadd.f32 %v3465, %v3403
      %v3467 = vadd.f32 %v3466, %v3404
      %v3468 = vadd.f32 %v3467, %v3405
      %v3469 = vadd.f32 %v3468, %v3406
      %v3470 = vadd.f32 %v3469, %v3407
      %v3471 = vadd.f32 %v3470, %v3408
      %v3472 = vadd.f32 %v3471, %v3409
      %v3473 = vrot.slane %v3472, 4
      %v3474 = vadd.f32 %v3472, %v3473
      %v3475 = vrot.slane %v3474, 2
      %v3476 = vadd.f32 %v3474, %v3475
      %v3477 = vrot.slane %v3476, 1
      %v3478 = vadd.f32 %v3476, %v3477
      %v3479 = vadd.f32 %v3410, %v3411
      %v3480 = vadd.f32 %v3479, %v3412
      %v3481 = vadd.f32 %v3480, %v3413
      %v3482 = vadd.f32 %v3481, %v3414
      %v3483 = vadd.f32 %v3482, %v3415
      %v3484 = vadd.f32 %v3483, %v3416
      %v3485 = vadd.f32 %v3484, %v3417
      %v3486 = vadd.f32 %v3485, %v3418
      %v3487 = vadd.f32 %v3486, %v3419
      %v3488 = vadd.f32 %v3487, %v3420
      %v3489 = vadd.f32 %v3488, %v3421
      %v3490 = vadd.f32 %v3489, %v3422
      %v3491 = vadd.f32 %v3490, %v3423
      %v3492 = vadd.f32 %v3491, %v3424
      %v3493 = vadd.f32 %v3492, %v3425
      %v3494 = vrot.slane %v3493, 4
      %v3495 = vadd.f32 %v3493, %v3494
      %v3496 = vrot.slane %v3495, 2
      %v3497 = vadd.f32 %v3495, %v3496
      %v3498 = vrot.slane %v3497, 1
      %v3499 = vadd.f32 %v3497, %v3498
      %v3500 = vadd.f32 %v3426, %v3427
      %v3501 = vadd.f32 %v3500, %v3428
      %v3502 = vadd.f32 %v3501, %v3429
      %v3503 = vadd.f32 %v3502, %v3430
      %v3504 = vadd.f32 %v3503, %v3431
      %v3505 = vadd.f32 %v3504, %v3432
      %v3506 = vadd.f32 %v3505, %v3433
      %v3507 = vadd.f32 %v3506, %v3434
      %v3508 = vadd.f32 %v3507, %v3435
      %v3509 = vadd.f32 %v3508, %v3436
      %v3510 = vadd.f32 %v3509, %v3437
      %v3511 = vadd.f32 %v3510, %v3438
      %v3512 = vadd.f32 %v3511, %v3439
      %v3513 = vadd.f32 %v3512, %v3440
      %v3514 = vadd.f32 %v3513, %v3441
      %v3515 = vrot.slane %v3514, 4
      %v3516 = vadd.f32 %v3514, %v3515
      %v3517 = vrot.slane %v3516, 2
      %v3518 = vadd.f32 %v3516, %v3517
      %v3519 = vrot.slane %v3518, 1
      %v3520 = vadd.f32 %v3518, %v3519
      %v3521 = vadd.f32 %v3442, %v3443
      %v3522 = vadd.f32 %v3521, %v3444
      %v3523 = vadd.f32 %v3522, %v3445
      %v3524 = vadd.f32 %v3523, %v3446
      %v3525 = vadd.f32 %v3524, %v3447
      %v3526 = vadd.f32 %v3525, %v3448
      %v3527 = vadd.f32 %v3526, %v3449
      %v3528 = vadd.f32 %v3527, %v3450
      %v3529 = vadd.f32 %v3528, %v3451
      %v3530 = vadd.f32 %v3529, %v3452
      %v3531 = vadd.f32 %v3530, %v3453
      %v3532 = vadd.f32 %v3531, %v3454
      %v3533 = vadd.f32 %v3532, %v3455
      %v3534 = vadd.f32 %v3533, %v3456
      %v3535 = vadd.f32 %v3534, %v3457
      %v3536 = vrot.slane %v3535, 4
      %v3537 = vadd.f32 %v3535, %v3536
      %v3538 = vrot.slane %v3537, 2
      %v3539 = vadd.f32 %v3537, %v3538
      %v3540 = vrot.slane %v3539, 1
      %v3541 = vadd.f32 %v3539, %v3540
      %v3542 = vmul.f32 %v3478, 1.442695
      %v3543 = vpow.pop %v3542
      %v3544 = vmul.f32 %v3499, 1.442695
      %v3545 = vpow.pop %v3544
      %v3546 = vmul.f32 %v3520, 1.442695
      %v3547 = vpow.pop %v3546
      %v3548 = vmul.f32 %v3541, 1.442695
      %v3549 = vpow.pop %v3548
      %v3550 = vsub.f32 1.0, %v2554
      %v3555 = vsel %vm1442, %v3545, %v3543
      %v3556 = vsel %vm1444, %v3547, %v3555
      %v3557 = vsel %vm1446, %v3549, %v3556
      %v3559 = vmul.f32 %v3550, %v3557
      %s3560 = scalar_lea.vmem %s307, 8
      %3561 = vst [vmem:[%s3560] sm:$0xf] %v3559
      %s3562 = scalar_lea.vmem %s313, 8
      %3563 = vst [vmem:[%s3562] sm:$0xf] %v2548
      %s3564 = scalar_lea.vmem %s288, 12
      %v3565 = vld [vmem:[%s3564] sm:$0xf]
      %s3566 = scalar_lea.vmem %s301, 12
      %v3567 = vld [vmem:[%s3566] sm:$0xf]
      %s3568 = scalar_lea.vmem %s295, 48
      %v3569 = vld [vmem:[%s3568] sm:$0xff]
      %v3570 = vld [vmem:[%s3568 + $0x8] sm:$0xff]
      %3572 = vset.pattern.permute.xlu0 0
      %3573 = vperm.xlu0 %3572, %v3567
      %v3574 = vpop.permute.xlu0 %3573
      %v3576 = vmul.f32 %v3574, %v3569
      %v3577 = vsub.f32 1.0, %v3576
      %3578 = vset.pattern.permute.xlu0 1
      %3579 = vperm.xlu0 %3578, %v3567
      %v3580 = vpop.permute.xlu0 %3579
      %v3583 = vcombine.high %v3569, %v3569
      %v3585 = vmul.f32 %v3580, %v3583
      %v3586 = vsub.f32 1.0, %v3585
      %v3587 = vmul.f32 %v3577, %v3586
      %3588 = vset.pattern.permute.xlu0 2
      %3589 = vperm.xlu0 %3588, %v3567
      %v3590 = vpop.permute.xlu0 %3589
      %v3592 = vmul.f32 %v3590, %v3570
      %v3593 = vsub.f32 1.0, %v3592
      %v3594 = vmul.f32 %v3587, %v3593
      %3595 = vset.pattern.permute.xlu0 3
      %3596 = vperm.xlu0 %3595, %v3567
      %v3597 = vpop.permute.xlu0 %3596
      %v3600 = vcombine.high %v3570, %v3570
      %v3602 = vmul.f32 %v3597, %v3600
      %v3603 = vsub.f32 1.0, %v3602
      %v3604 = vmul.f32 %v3594, %v3603
      %v3605 = vsub.f32 1.0, %v2552
      %v3606 = vmul.f32 %v3565, %v3605
      %v3607 = vadd.f32 %v2552, %v3606
      %v3608 = vmul.f32 %v3607, %v3604
      %v3609 = vmul.f32 %v3608, 0.999999
      %v3610 = vadd.f32 %v3609, 1e-06
      %v3611 = vlaneseq
      %v3612 = vshrl.u32 %v3611, 7
      %v3613 = vsub.s32 0, %v3612
      %v3614 = vrot.slane %v3610, %v3613
      %3616 = vbcast.lane.b32.xlu0 %v3614, 256
      %v3617 = vpop.permute.xlu0 %3616
      %s3619 = sor.u32 256, 8
      %3620 = vbcast.lane.b32.xlu0 %v3614, %s3619
      %v3621 = vpop.permute.xlu0 %3620
      %s3623 = sor.u32 256, 16
      %3624 = vbcast.lane.b32.xlu0 %v3614, %s3623
      %v3625 = vpop.permute.xlu0 %3624
      %s3627 = sor.u32 256, 24
      %3628 = vbcast.lane.b32.xlu0 %v3614, %s3627
      %v3629 = vpop.permute.xlu0 %3628
      %s3631 = sor.u32 256, 32
      %3632 = vbcast.lane.b32.xlu0 %v3614, %s3631
      %v3633 = vpop.permute.xlu0 %3632
      %s3635 = sor.u32 256, 40
      %3636 = vbcast.lane.b32.xlu0 %v3614, %s3635
      %v3637 = vpop.permute.xlu0 %3636
      %s3639 = sor.u32 256, 48
      %3640 = vbcast.lane.b32.xlu0 %v3614, %s3639
      %v3641 = vpop.permute.xlu0 %3640
      %s3643 = sor.u32 256, 56
      %3644 = vbcast.lane.b32.xlu0 %v3614, %s3643
      %v3645 = vpop.permute.xlu0 %3644
      %s3647 = sor.u32 256, 64
      %3648 = vbcast.lane.b32.xlu0 %v3614, %s3647
      %v3649 = vpop.permute.xlu0 %3648
      %s3651 = sor.u32 256, 72
      %3652 = vbcast.lane.b32.xlu0 %v3614, %s3651
      %v3653 = vpop.permute.xlu0 %3652
      %s3655 = sor.u32 256, 80
      %3656 = vbcast.lane.b32.xlu0 %v3614, %s3655
      %v3657 = vpop.permute.xlu0 %3656
      %s3659 = sor.u32 256, 88
      %3660 = vbcast.lane.b32.xlu0 %v3614, %s3659
      %v3661 = vpop.permute.xlu0 %3660
      %s3663 = sor.u32 256, 96
      %3664 = vbcast.lane.b32.xlu0 %v3614, %s3663
      %v3665 = vpop.permute.xlu0 %3664
      %s3667 = sor.u32 256, 104
      %3668 = vbcast.lane.b32.xlu0 %v3614, %s3667
      %v3669 = vpop.permute.xlu0 %3668
      %s3671 = sor.u32 256, 112
      %3672 = vbcast.lane.b32.xlu0 %v3614, %s3671
      %v3673 = vpop.permute.xlu0 %3672
      %s3675 = sor.u32 256, 120
      %3676 = vbcast.lane.b32.xlu0 %v3614, %s3675
      %v3677 = vpop.permute.xlu0 %3676
      %v3678 = vlaneseq
      %v3679 = vshrl.u32 %v3678, 7
      %v3680 = vsub.s32 1, %v3679
      %v3681 = vrot.slane %v3610, %v3680
      %3683 = vbcast.lane.b32.xlu0 %v3681, 256
      %v3684 = vpop.permute.xlu0 %3683
      %s3686 = sor.u32 256, 8
      %3687 = vbcast.lane.b32.xlu0 %v3681, %s3686
      %v3688 = vpop.permute.xlu0 %3687
      %s3690 = sor.u32 256, 16
      %3691 = vbcast.lane.b32.xlu0 %v3681, %s3690
      %v3692 = vpop.permute.xlu0 %3691
      %s3694 = sor.u32 256, 24
      %3695 = vbcast.lane.b32.xlu0 %v3681, %s3694
      %v3696 = vpop.permute.xlu0 %3695
      %s3698 = sor.u32 256, 32
      %3699 = vbcast.lane.b32.xlu0 %v3681, %s3698
      %v3700 = vpop.permute.xlu0 %3699
      %s3702 = sor.u32 256, 40
      %3703 = vbcast.lane.b32.xlu0 %v3681, %s3702
      %v3704 = vpop.permute.xlu0 %3703
      %s3706 = sor.u32 256, 48
      %3707 = vbcast.lane.b32.xlu0 %v3681, %s3706
      %v3708 = vpop.permute.xlu0 %3707
      %s3710 = sor.u32 256, 56
      %3711 = vbcast.lane.b32.xlu0 %v3681, %s3710
      %v3712 = vpop.permute.xlu0 %3711
      %s3714 = sor.u32 256, 64
      %3715 = vbcast.lane.b32.xlu0 %v3681, %s3714
      %v3716 = vpop.permute.xlu0 %3715
      %s3718 = sor.u32 256, 72
      %3719 = vbcast.lane.b32.xlu0 %v3681, %s3718
      %v3720 = vpop.permute.xlu0 %3719
      %s3722 = sor.u32 256, 80
      %3723 = vbcast.lane.b32.xlu0 %v3681, %s3722
      %v3724 = vpop.permute.xlu0 %3723
      %s3726 = sor.u32 256, 88
      %3727 = vbcast.lane.b32.xlu0 %v3681, %s3726
      %v3728 = vpop.permute.xlu0 %3727
      %s3730 = sor.u32 256, 96
      %3731 = vbcast.lane.b32.xlu0 %v3681, %s3730
      %v3732 = vpop.permute.xlu0 %3731
      %s3734 = sor.u32 256, 104
      %3735 = vbcast.lane.b32.xlu0 %v3681, %s3734
      %v3736 = vpop.permute.xlu0 %3735
      %s3738 = sor.u32 256, 112
      %3739 = vbcast.lane.b32.xlu0 %v3681, %s3738
      %v3740 = vpop.permute.xlu0 %3739
      %s3742 = sor.u32 256, 120
      %3743 = vbcast.lane.b32.xlu0 %v3681, %s3742
      %v3744 = vpop.permute.xlu0 %3743
      %v3745 = vlaneseq
      %v3746 = vshrl.u32 %v3745, 7
      %v3747 = vsub.s32 2, %v3746
      %v3748 = vrot.slane %v3610, %v3747
      %3750 = vbcast.lane.b32.xlu0 %v3748, 256
      %v3751 = vpop.permute.xlu0 %3750
      %s3753 = sor.u32 256, 8
      %3754 = vbcast.lane.b32.xlu0 %v3748, %s3753
      %v3755 = vpop.permute.xlu0 %3754
      %s3757 = sor.u32 256, 16
      %3758 = vbcast.lane.b32.xlu0 %v3748, %s3757
      %v3759 = vpop.permute.xlu0 %3758
      %s3761 = sor.u32 256, 24
      %3762 = vbcast.lane.b32.xlu0 %v3748, %s3761
      %v3763 = vpop.permute.xlu0 %3762
      %s3765 = sor.u32 256, 32
      %3766 = vbcast.lane.b32.xlu0 %v3748, %s3765
      %v3767 = vpop.permute.xlu0 %3766
      %s3769 = sor.u32 256, 40
      %3770 = vbcast.lane.b32.xlu0 %v3748, %s3769
      %v3771 = vpop.permute.xlu0 %3770
      %s3773 = sor.u32 256, 48
      %3774 = vbcast.lane.b32.xlu0 %v3748, %s3773
      %v3775 = vpop.permute.xlu0 %3774
      %s3777 = sor.u32 256, 56
      %3778 = vbcast.lane.b32.xlu0 %v3748, %s3777
      %v3779 = vpop.permute.xlu0 %3778
      %s3781 = sor.u32 256, 64
      %3782 = vbcast.lane.b32.xlu0 %v3748, %s3781
      %v3783 = vpop.permute.xlu0 %3782
      %s3785 = sor.u32 256, 72
      %3786 = vbcast.lane.b32.xlu0 %v3748, %s3785
      %v3787 = vpop.permute.xlu0 %3786
      %s3789 = sor.u32 256, 80
      %3790 = vbcast.lane.b32.xlu0 %v3748, %s3789
      %v3791 = vpop.permute.xlu0 %3790
      %s3793 = sor.u32 256, 88
      %3794 = vbcast.lane.b32.xlu0 %v3748, %s3793
      %v3795 = vpop.permute.xlu0 %3794
      %s3797 = sor.u32 256, 96
      %3798 = vbcast.lane.b32.xlu0 %v3748, %s3797
      %v3799 = vpop.permute.xlu0 %3798
      %s3801 = sor.u32 256, 104
      %3802 = vbcast.lane.b32.xlu0 %v3748, %s3801
      %v3803 = vpop.permute.xlu0 %3802
      %s3805 = sor.u32 256, 112
      %3806 = vbcast.lane.b32.xlu0 %v3748, %s3805
      %v3807 = vpop.permute.xlu0 %3806
      %s3809 = sor.u32 256, 120
      %3810 = vbcast.lane.b32.xlu0 %v3748, %s3809
      %v3811 = vpop.permute.xlu0 %3810
      %v3812 = vlaneseq
      %v3813 = vshrl.u32 %v3812, 7
      %v3814 = vsub.s32 3, %v3813
      %v3815 = vrot.slane %v3610, %v3814
      %3817 = vbcast.lane.b32.xlu0 %v3815, 256
      %v3818 = vpop.permute.xlu0 %3817
      %s3820 = sor.u32 256, 8
      %3821 = vbcast.lane.b32.xlu0 %v3815, %s3820
      %v3822 = vpop.permute.xlu0 %3821
      %s3824 = sor.u32 256, 16
      %3825 = vbcast.lane.b32.xlu0 %v3815, %s3824
      %v3826 = vpop.permute.xlu0 %3825
      %s3828 = sor.u32 256, 24
      %3829 = vbcast.lane.b32.xlu0 %v3815, %s3828
      %v3830 = vpop.permute.xlu0 %3829
      %s3832 = sor.u32 256, 32
      %3833 = vbcast.lane.b32.xlu0 %v3815, %s3832
      %v3834 = vpop.permute.xlu0 %3833
      %s3836 = sor.u32 256, 40
      %3837 = vbcast.lane.b32.xlu0 %v3815, %s3836
      %v3838 = vpop.permute.xlu0 %3837
      %s3840 = sor.u32 256, 48
      %3841 = vbcast.lane.b32.xlu0 %v3815, %s3840
      %v3842 = vpop.permute.xlu0 %3841
      %s3844 = sor.u32 256, 56
      %3845 = vbcast.lane.b32.xlu0 %v3815, %s3844
      %v3846 = vpop.permute.xlu0 %3845
      %s3848 = sor.u32 256, 64
      %3849 = vbcast.lane.b32.xlu0 %v3815, %s3848
      %v3850 = vpop.permute.xlu0 %3849
      %s3852 = sor.u32 256, 72
      %3853 = vbcast.lane.b32.xlu0 %v3815, %s3852
      %v3854 = vpop.permute.xlu0 %3853
      %s3856 = sor.u32 256, 80
      %3857 = vbcast.lane.b32.xlu0 %v3815, %s3856
      %v3858 = vpop.permute.xlu0 %3857
      %s3860 = sor.u32 256, 88
      %3861 = vbcast.lane.b32.xlu0 %v3815, %s3860
      %v3862 = vpop.permute.xlu0 %3861
      %s3864 = sor.u32 256, 96
      %3865 = vbcast.lane.b32.xlu0 %v3815, %s3864
      %v3866 = vpop.permute.xlu0 %3865
      %s3868 = sor.u32 256, 104
      %3869 = vbcast.lane.b32.xlu0 %v3815, %s3868
      %v3870 = vpop.permute.xlu0 %3869
      %s3872 = sor.u32 256, 112
      %3873 = vbcast.lane.b32.xlu0 %v3815, %s3872
      %v3874 = vpop.permute.xlu0 %3873
      %s3876 = sor.u32 256, 120
      %3877 = vbcast.lane.b32.xlu0 %v3815, %s3876
      %v3878 = vpop.permute.xlu0 %3877
      %v3881 = vunpack.c.l.s4 1966171168
      %v3882 = vunpack.c.0.s8 %v3881
      %v3883 = vlaneseq
      %v3884 = vshrl.u32 %v3883, 7
      %v3885 = vsub.s32 %v3882, %v3884
      %v3886 = vrot.slane %v3610, %v3885
      %v3887 = vcombine.high %v3886, %v3886
      %v3889 = vunpack.c.l.s4 1966171168
      %v3890 = vunpack.c.0.s8 %v3889
      %v3891 = vlaneseq
      %v3892 = vshrl.u32 %v3891, 7
      %v3893 = vsub.s32 %v3890, %v3892
      %v3894 = vrot.slane %v3886, %v3893
      %v3896 = vunpack.c.l.s4 1966171168
      %v3897 = vunpack.c.0.s8 %v3896
      %v3898 = vlaneseq
      %v3899 = vshrl.u32 %v3898, 7
      %v3900 = vsub.s32 %v3897, %v3899
      %v3901 = vrot.slane %v3887, %v3900
      %v3902 = vcombine.high %v3894, %v3894
      %v3903 = vcombine.high %v3901, %v3901
      %v3904 = vlaneseq
      %v3905 = vshrl.u32 %v3904, 7
      %v3906 = vsub.s32 0, %v3905
      %v3907 = vrot.slane %v3894, %v3906
      %v3908 = vlaneseq
      %v3909 = vshrl.u32 %v3908, 7
      %v3910 = vsub.s32 0, %v3909
      %v3911 = vrot.slane %v3901, %v3910
      %v3912 = vlaneseq
      %v3913 = vshrl.u32 %v3912, 7
      %v3914 = vsub.s32 0, %v3913
      %v3915 = vrot.slane %v3902, %v3914
      %v3916 = vlaneseq
      %v3917 = vshrl.u32 %v3916, 7
      %v3918 = vsub.s32 0, %v3917
      %v3919 = vrot.slane %v3903, %v3918
      %vm3924 = vcmp.lt.f32.partialorder %v3617, %v3907
      %vm3925 = vcmp.lt.f32.partialorder %v3621, %v3907
      %vm3926 = vcmp.lt.f32.partialorder %v3625, %v3907
      %vm3927 = vcmp.lt.f32.partialorder %v3629, %v3907
      %vm3928 = vcmp.lt.f32.partialorder %v3633, %v3907
      %vm3929 = vcmp.lt.f32.partialorder %v3637, %v3907
      %vm3930 = vcmp.lt.f32.partialorder %v3641, %v3907
      %vm3931 = vcmp.lt.f32.partialorder %v3645, %v3907
      %vm3932 = vcmp.lt.f32.partialorder %v3649, %v3907
      %vm3933 = vcmp.lt.f32.partialorder %v3653, %v3907
      %vm3934 = vcmp.lt.f32.partialorder %v3657, %v3907
      %vm3935 = vcmp.lt.f32.partialorder %v3661, %v3907
      %vm3936 = vcmp.lt.f32.partialorder %v3665, %v3907
      %vm3937 = vcmp.lt.f32.partialorder %v3669, %v3907
      %vm3938 = vcmp.lt.f32.partialorder %v3673, %v3907
      %vm3939 = vcmp.lt.f32.partialorder %v3677, %v3907
      %vm3940 = vcmp.lt.f32.partialorder %v3684, %v3911
      %vm3941 = vcmp.lt.f32.partialorder %v3688, %v3911
      %vm3942 = vcmp.lt.f32.partialorder %v3692, %v3911
      %vm3943 = vcmp.lt.f32.partialorder %v3696, %v3911
      %vm3944 = vcmp.lt.f32.partialorder %v3700, %v3911
      %vm3945 = vcmp.lt.f32.partialorder %v3704, %v3911
      %vm3946 = vcmp.lt.f32.partialorder %v3708, %v3911
      %vm3947 = vcmp.lt.f32.partialorder %v3712, %v3911
      %vm3948 = vcmp.lt.f32.partialorder %v3716, %v3911
      %vm3949 = vcmp.lt.f32.partialorder %v3720, %v3911
      %vm3950 = vcmp.lt.f32.partialorder %v3724, %v3911
      %vm3951 = vcmp.lt.f32.partialorder %v3728, %v3911
      %vm3952 = vcmp.lt.f32.partialorder %v3732, %v3911
      %vm3953 = vcmp.lt.f32.partialorder %v3736, %v3911
      %vm3954 = vcmp.lt.f32.partialorder %v3740, %v3911
      %vm3955 = vcmp.lt.f32.partialorder %v3744, %v3911
      %vm3956 = vcmp.lt.f32.partialorder %v3751, %v3915
      %vm3957 = vcmp.lt.f32.partialorder %v3755, %v3915
      %vm3958 = vcmp.lt.f32.partialorder %v3759, %v3915
      %vm3959 = vcmp.lt.f32.partialorder %v3763, %v3915
      %vm3960 = vcmp.lt.f32.partialorder %v3767, %v3915
      %vm3961 = vcmp.lt.f32.partialorder %v3771, %v3915
      %vm3962 = vcmp.lt.f32.partialorder %v3775, %v3915
      %vm3963 = vcmp.lt.f32.partialorder %v3779, %v3915
      %vm3964 = vcmp.lt.f32.partialorder %v3783, %v3915
      %vm3965 = vcmp.lt.f32.partialorder %v3787, %v3915
      %vm3966 = vcmp.lt.f32.partialorder %v3791, %v3915
      %vm3967 = vcmp.lt.f32.partialorder %v3795, %v3915
      %vm3968 = vcmp.lt.f32.partialorder %v3799, %v3915
      %vm3969 = vcmp.lt.f32.partialorder %v3803, %v3915
      %vm3970 = vcmp.lt.f32.partialorder %v3807, %v3915
      %vm3971 = vcmp.lt.f32.partialorder %v3811, %v3915
      %vm3972 = vcmp.lt.f32.partialorder %v3818, %v3919
      %vm3973 = vcmp.lt.f32.partialorder %v3822, %v3919
      %vm3974 = vcmp.lt.f32.partialorder %v3826, %v3919
      %vm3975 = vcmp.lt.f32.partialorder %v3830, %v3919
      %vm3976 = vcmp.lt.f32.partialorder %v3834, %v3919
      %vm3977 = vcmp.lt.f32.partialorder %v3838, %v3919
      %vm3978 = vcmp.lt.f32.partialorder %v3842, %v3919
      %vm3979 = vcmp.lt.f32.partialorder %v3846, %v3919
      %vm3980 = vcmp.lt.f32.partialorder %v3850, %v3919
      %vm3981 = vcmp.lt.f32.partialorder %v3854, %v3919
      %vm3982 = vcmp.lt.f32.partialorder %v3858, %v3919
      %vm3983 = vcmp.lt.f32.partialorder %v3862, %v3919
      %vm3984 = vcmp.lt.f32.partialorder %v3866, %v3919
      %vm3985 = vcmp.lt.f32.partialorder %v3870, %v3919
      %vm3986 = vcmp.lt.f32.partialorder %v3874, %v3919
      %vm3987 = vcmp.lt.f32.partialorder %v3878, %v3919
      %vm3988 = vcmp.eq.f32.partialorder %v3617, %v3907
      %vm3989 = vcmp.eq.f32.partialorder %v3621, %v3907
      %vm3990 = vcmp.eq.f32.partialorder %v3625, %v3907
      %vm3991 = vcmp.eq.f32.partialorder %v3629, %v3907
      %vm3992 = vcmp.eq.f32.partialorder %v3633, %v3907
      %vm3993 = vcmp.eq.f32.partialorder %v3637, %v3907
      %vm3994 = vcmp.eq.f32.partialorder %v3641, %v3907
      %vm3995 = vcmp.eq.f32.partialorder %v3645, %v3907
      %vm3996 = vcmp.eq.f32.partialorder %v3649, %v3907
      %vm3997 = vcmp.eq.f32.partialorder %v3653, %v3907
      %vm3998 = vcmp.eq.f32.partialorder %v3657, %v3907
      %vm3999 = vcmp.eq.f32.partialorder %v3661, %v3907
      %vm4000 = vcmp.eq.f32.partialorder %v3665, %v3907
      %vm4001 = vcmp.eq.f32.partialorder %v3669, %v3907
      %vm4002 = vcmp.eq.f32.partialorder %v3673, %v3907
      %vm4003 = vcmp.eq.f32.partialorder %v3677, %v3907
      %vm4004 = vcmp.eq.f32.partialorder %v3684, %v3911
      %vm4005 = vcmp.eq.f32.partialorder %v3688, %v3911
      %vm4006 = vcmp.eq.f32.partialorder %v3692, %v3911
      %vm4007 = vcmp.eq.f32.partialorder %v3696, %v3911
      %vm4008 = vcmp.eq.f32.partialorder %v3700, %v3911
      %vm4009 = vcmp.eq.f32.partialorder %v3704, %v3911
      %vm4010 = vcmp.eq.f32.partialorder %v3708, %v3911
      %vm4011 = vcmp.eq.f32.partialorder %v3712, %v3911
      %vm4012 = vcmp.eq.f32.partialorder %v3716, %v3911
      %vm4013 = vcmp.eq.f32.partialorder %v3720, %v3911
      %vm4014 = vcmp.eq.f32.partialorder %v3724, %v3911
      %vm4015 = vcmp.eq.f32.partialorder %v3728, %v3911
      %vm4016 = vcmp.eq.f32.partialorder %v3732, %v3911
      %vm4017 = vcmp.eq.f32.partialorder %v3736, %v3911
      %vm4018 = vcmp.eq.f32.partialorder %v3740, %v3911
      %vm4019 = vcmp.eq.f32.partialorder %v3744, %v3911
      %vm4020 = vcmp.eq.f32.partialorder %v3751, %v3915
      %vm4021 = vcmp.eq.f32.partialorder %v3755, %v3915
      %vm4022 = vcmp.eq.f32.partialorder %v3759, %v3915
      %vm4023 = vcmp.eq.f32.partialorder %v3763, %v3915
      %vm4024 = vcmp.eq.f32.partialorder %v3767, %v3915
      %vm4025 = vcmp.eq.f32.partialorder %v3771, %v3915
      %vm4026 = vcmp.eq.f32.partialorder %v3775, %v3915
      %vm4027 = vcmp.eq.f32.partialorder %v3779, %v3915
      %vm4028 = vcmp.eq.f32.partialorder %v3783, %v3915
      %vm4029 = vcmp.eq.f32.partialorder %v3787, %v3915
      %vm4030 = vcmp.eq.f32.partialorder %v3791, %v3915
      %vm4031 = vcmp.eq.f32.partialorder %v3795, %v3915
      %vm4032 = vcmp.eq.f32.partialorder %v3799, %v3915
      %vm4033 = vcmp.eq.f32.partialorder %v3803, %v3915
      %vm4034 = vcmp.eq.f32.partialorder %v3807, %v3915
      %vm4035 = vcmp.eq.f32.partialorder %v3811, %v3915
      %vm4036 = vcmp.eq.f32.partialorder %v3818, %v3919
      %vm4037 = vcmp.eq.f32.partialorder %v3822, %v3919
      %vm4038 = vcmp.eq.f32.partialorder %v3826, %v3919
      %vm4039 = vcmp.eq.f32.partialorder %v3830, %v3919
      %vm4040 = vcmp.eq.f32.partialorder %v3834, %v3919
      %vm4041 = vcmp.eq.f32.partialorder %v3838, %v3919
      %vm4042 = vcmp.eq.f32.partialorder %v3842, %v3919
      %vm4043 = vcmp.eq.f32.partialorder %v3846, %v3919
      %vm4044 = vcmp.eq.f32.partialorder %v3850, %v3919
      %vm4045 = vcmp.eq.f32.partialorder %v3854, %v3919
      %vm4046 = vcmp.eq.f32.partialorder %v3858, %v3919
      %vm4047 = vcmp.eq.f32.partialorder %v3862, %v3919
      %vm4048 = vcmp.eq.f32.partialorder %v3866, %v3919
      %vm4049 = vcmp.eq.f32.partialorder %v3870, %v3919
      %vm4050 = vcmp.eq.f32.partialorder %v3874, %v3919
      %vm4051 = vcmp.eq.f32.partialorder %v3878, %v3919
      %vm4052 = vmand %vm3988, %vm867
      %vm4053 = vmand %vm3989, %vm868
      %vm4054 = vmand %vm3990, %vm869
      %vm4055 = vmand %vm3991, %vm870
      %vm4056 = vmand %vm3992, %vm871
      %vm4057 = vmand %vm3993, %vm872
      %vm4058 = vmand %vm3994, %vm873
      %vm4059 = vmand %vm3995, %vm874
      %vm4060 = vmand %vm3996, %vm875
      %vm4061 = vmand %vm3997, %vm876
      %vm4062 = vmand %vm3998, %vm877
      %vm4063 = vmand %vm3999, %vm878
      %vm4064 = vmand %vm4000, %vm879
      %vm4065 = vmand %vm4001, %vm880
      %vm4066 = vmand %vm4002, %vm881
      %vm4067 = vmand %vm4003, %vm882
      %vm4068 = vmand %vm4004, %vm867
      %vm4069 = vmand %vm4005, %vm868
      %vm4070 = vmand %vm4006, %vm869
      %vm4071 = vmand %vm4007, %vm870
      %vm4072 = vmand %vm4008, %vm871
      %vm4073 = vmand %vm4009, %vm872
      %vm4074 = vmand %vm4010, %vm873
      %vm4075 = vmand %vm4011, %vm874
      %vm4076 = vmand %vm4012, %vm875
      %vm4077 = vmand %vm4013, %vm876
      %vm4078 = vmand %vm4014, %vm877
      %vm4079 = vmand %vm4015, %vm878
      %vm4080 = vmand %vm4016, %vm879
      %vm4081 = vmand %vm4017, %vm880
      %vm4082 = vmand %vm4018, %vm881
      %vm4083 = vmand %vm4019, %vm882
      %vm4084 = vmand %vm4020, %vm867
      %vm4085 = vmand %vm4021, %vm868
      %vm4086 = vmand %vm4022, %vm869
      %vm4087 = vmand %vm4023, %vm870
      %vm4088 = vmand %vm4024, %vm871
      %vm4089 = vmand %vm4025, %vm872
      %vm4090 = vmand %vm4026, %vm873
      %vm4091 = vmand %vm4027, %vm874
      %vm4092 = vmand %vm4028, %vm875
      %vm4093 = vmand %vm4029, %vm876
      %vm4094 = vmand %vm4030, %vm877
      %vm4095 = vmand %vm4031, %vm878
      %vm4096 = vmand %vm4032, %vm879
      %vm4097 = vmand %vm4033, %vm880
      %vm4098 = vmand %vm4034, %vm881
      %vm4099 = vmand %vm4035, %vm882
      %vm4100 = vmand %vm4036, %vm867
      %vm4101 = vmand %vm4037, %vm868
      %vm4102 = vmand %vm4038, %vm869
      %vm4103 = vmand %vm4039, %vm870
      %vm4104 = vmand %vm4040, %vm871
      %vm4105 = vmand %vm4041, %vm872
      %vm4106 = vmand %vm4042, %vm873
      %vm4107 = vmand %vm4043, %vm874
      %vm4108 = vmand %vm4044, %vm875
      %vm4109 = vmand %vm4045, %vm876
      %vm4110 = vmand %vm4046, %vm877
      %vm4111 = vmand %vm4047, %vm878
      %vm4112 = vmand %vm4048, %vm879
      %vm4113 = vmand %vm4049, %vm880
      %vm4114 = vmand %vm4050, %vm881
      %vm4115 = vmand %vm4051, %vm882
      %vm4116 = vmor %vm3924, %vm4052
      %vm4117 = vmor %vm3925, %vm4053
      %vm4118 = vmor %vm3926, %vm4054
      %vm4119 = vmor %vm3927, %vm4055
      %vm4120 = vmor %vm3928, %vm4056
      %vm4121 = vmor %vm3929, %vm4057
      %vm4122 = vmor %vm3930, %vm4058
      %vm4123 = vmor %vm3931, %vm4059
      %vm4124 = vmor %vm3932, %vm4060
      %vm4125 = vmor %vm3933, %vm4061
      %vm4126 = vmor %vm3934, %vm4062
      %vm4127 = vmor %vm3935, %vm4063
      %vm4128 = vmor %vm3936, %vm4064
      %vm4129 = vmor %vm3937, %vm4065
      %vm4130 = vmor %vm3938, %vm4066
      %vm4131 = vmor %vm3939, %vm4067
      %vm4132 = vmor %vm3940, %vm4068
      %vm4133 = vmor %vm3941, %vm4069
      %vm4134 = vmor %vm3942, %vm4070
      %vm4135 = vmor %vm3943, %vm4071
      %vm4136 = vmor %vm3944, %vm4072
      %vm4137 = vmor %vm3945, %vm4073
      %vm4138 = vmor %vm3946, %vm4074
      %vm4139 = vmor %vm3947, %vm4075
      %vm4140 = vmor %vm3948, %vm4076
      %vm4141 = vmor %vm3949, %vm4077
      %vm4142 = vmor %vm3950, %vm4078
      %vm4143 = vmor %vm3951, %vm4079
      %vm4144 = vmor %vm3952, %vm4080
      %vm4145 = vmor %vm3953, %vm4081
      %vm4146 = vmor %vm3954, %vm4082
      %vm4147 = vmor %vm3955, %vm4083
      %vm4148 = vmor %vm3956, %vm4084
      %vm4149 = vmor %vm3957, %vm4085
      %vm4150 = vmor %vm3958, %vm4086
      %vm4151 = vmor %vm3959, %vm4087
      %vm4152 = vmor %vm3960, %vm4088
      %vm4153 = vmor %vm3961, %vm4089
      %vm4154 = vmor %vm3962, %vm4090
      %vm4155 = vmor %vm3963, %vm4091
      %vm4156 = vmor %vm3964, %vm4092
      %vm4157 = vmor %vm3965, %vm4093
      %vm4158 = vmor %vm3966, %vm4094
      %vm4159 = vmor %vm3967, %vm4095
      %vm4160 = vmor %vm3968, %vm4096
      %vm4161 = vmor %vm3969, %vm4097
      %vm4162 = vmor %vm3970, %vm4098
      %vm4163 = vmor %vm3971, %vm4099
      %vm4164 = vmor %vm3972, %vm4100
      %vm4165 = vmor %vm3973, %vm4101
      %vm4166 = vmor %vm3974, %vm4102
      %vm4167 = vmor %vm3975, %vm4103
      %vm4168 = vmor %vm3976, %vm4104
      %vm4169 = vmor %vm3977, %vm4105
      %vm4170 = vmor %vm3978, %vm4106
      %vm4171 = vmor %vm3979, %vm4107
      %vm4172 = vmor %vm3980, %vm4108
      %vm4173 = vmor %vm3981, %vm4109
      %vm4174 = vmor %vm3982, %vm4110
      %vm4175 = vmor %vm3983, %vm4111
      %vm4176 = vmor %vm3984, %vm4112
      %vm4177 = vmor %vm3985, %vm4113
      %vm4178 = vmor %vm3986, %vm4114
      %vm4179 = vmor %vm3987, %vm4115
      %v4180 = vlog2.pop %v3610
      %v4181 = vmul.f32 %v4180, 0.6931472
      %v4182 = vlaneseq
      %v4183 = vshrl.u32 %v4182, 7
      %v4184 = vsub.s32 0, %v4183
      %v4185 = vrot.slane %v4181, %v4184
      %4187 = vbcast.lane.b32.xlu0 %v4185, 256
      %v4188 = vpop.permute.xlu0 %4187
      %s4190 = sor.u32 256, 8
      %4191 = vbcast.lane.b32.xlu0 %v4185, %s4190
      %v4192 = vpop.permute.xlu0 %4191
      %s4194 = sor.u32 256, 16
      %4195 = vbcast.lane.b32.xlu0 %v4185, %s4194
      %v4196 = vpop.permute.xlu0 %4195
      %s4198 = sor.u32 256, 24
      %4199 = vbcast.lane.b32.xlu0 %v4185, %s4198
      %v4200 = vpop.permute.xlu0 %4199
      %s4202 = sor.u32 256, 32
      %4203 = vbcast.lane.b32.xlu0 %v4185, %s4202
      %v4204 = vpop.permute.xlu0 %4203
      %s4206 = sor.u32 256, 40
      %4207 = vbcast.lane.b32.xlu0 %v4185, %s4206
      %v4208 = vpop.permute.xlu0 %4207
      %s4210 = sor.u32 256, 48
      %4211 = vbcast.lane.b32.xlu0 %v4185, %s4210
      %v4212 = vpop.permute.xlu0 %4211
      %s4214 = sor.u32 256, 56
      %4215 = vbcast.lane.b32.xlu0 %v4185, %s4214
      %v4216 = vpop.permute.xlu0 %4215
      %s4218 = sor.u32 256, 64
      %4219 = vbcast.lane.b32.xlu0 %v4185, %s4218
      %v4220 = vpop.permute.xlu0 %4219
      %s4222 = sor.u32 256, 72
      %4223 = vbcast.lane.b32.xlu0 %v4185, %s4222
      %v4224 = vpop.permute.xlu0 %4223
      %s4226 = sor.u32 256, 80
      %4227 = vbcast.lane.b32.xlu0 %v4185, %s4226
      %v4228 = vpop.permute.xlu0 %4227
      %s4230 = sor.u32 256, 88
      %4231 = vbcast.lane.b32.xlu0 %v4185, %s4230
      %v4232 = vpop.permute.xlu0 %4231
      %s4234 = sor.u32 256, 96
      %4235 = vbcast.lane.b32.xlu0 %v4185, %s4234
      %v4236 = vpop.permute.xlu0 %4235
      %s4238 = sor.u32 256, 104
      %4239 = vbcast.lane.b32.xlu0 %v4185, %s4238
      %v4240 = vpop.permute.xlu0 %4239
      %s4242 = sor.u32 256, 112
      %4243 = vbcast.lane.b32.xlu0 %v4185, %s4242
      %v4244 = vpop.permute.xlu0 %4243
      %s4246 = sor.u32 256, 120
      %4247 = vbcast.lane.b32.xlu0 %v4185, %s4246
      %v4248 = vpop.permute.xlu0 %4247
      %v4249 = vlaneseq
      %v4250 = vshrl.u32 %v4249, 7
      %v4251 = vsub.s32 1, %v4250
      %v4252 = vrot.slane %v4181, %v4251
      %4254 = vbcast.lane.b32.xlu0 %v4252, 256
      %v4255 = vpop.permute.xlu0 %4254
      %s4257 = sor.u32 256, 8
      %4258 = vbcast.lane.b32.xlu0 %v4252, %s4257
      %v4259 = vpop.permute.xlu0 %4258
      %s4261 = sor.u32 256, 16
      %4262 = vbcast.lane.b32.xlu0 %v4252, %s4261
      %v4263 = vpop.permute.xlu0 %4262
      %s4265 = sor.u32 256, 24
      %4266 = vbcast.lane.b32.xlu0 %v4252, %s4265
      %v4267 = vpop.permute.xlu0 %4266
      %s4269 = sor.u32 256, 32
      %4270 = vbcast.lane.b32.xlu0 %v4252, %s4269
      %v4271 = vpop.permute.xlu0 %4270
      %s4273 = sor.u32 256, 40
      %4274 = vbcast.lane.b32.xlu0 %v4252, %s4273
      %v4275 = vpop.permute.xlu0 %4274
      %s4277 = sor.u32 256, 48
      %4278 = vbcast.lane.b32.xlu0 %v4252, %s4277
      %v4279 = vpop.permute.xlu0 %4278
      %s4281 = sor.u32 256, 56
      %4282 = vbcast.lane.b32.xlu0 %v4252, %s4281
      %v4283 = vpop.permute.xlu0 %4282
      %s4285 = sor.u32 256, 64
      %4286 = vbcast.lane.b32.xlu0 %v4252, %s4285
      %v4287 = vpop.permute.xlu0 %4286
      %s4289 = sor.u32 256, 72
      %4290 = vbcast.lane.b32.xlu0 %v4252, %s4289
      %v4291 = vpop.permute.xlu0 %4290
      %s4293 = sor.u32 256, 80
      %4294 = vbcast.lane.b32.xlu0 %v4252, %s4293
      %v4295 = vpop.permute.xlu0 %4294
      %s4297 = sor.u32 256, 88
      %4298 = vbcast.lane.b32.xlu0 %v4252, %s4297
      %v4299 = vpop.permute.xlu0 %4298
      %s4301 = sor.u32 256, 96
      %4302 = vbcast.lane.b32.xlu0 %v4252, %s4301
      %v4303 = vpop.permute.xlu0 %4302
      %s4305 = sor.u32 256, 104
      %4306 = vbcast.lane.b32.xlu0 %v4252, %s4305
      %v4307 = vpop.permute.xlu0 %4306
      %s4309 = sor.u32 256, 112
      %4310 = vbcast.lane.b32.xlu0 %v4252, %s4309
      %v4311 = vpop.permute.xlu0 %4310
      %s4313 = sor.u32 256, 120
      %4314 = vbcast.lane.b32.xlu0 %v4252, %s4313
      %v4315 = vpop.permute.xlu0 %4314
      %v4316 = vlaneseq
      %v4317 = vshrl.u32 %v4316, 7
      %v4318 = vsub.s32 2, %v4317
      %v4319 = vrot.slane %v4181, %v4318
      %4321 = vbcast.lane.b32.xlu0 %v4319, 256
      %v4322 = vpop.permute.xlu0 %4321
      %s4324 = sor.u32 256, 8
      %4325 = vbcast.lane.b32.xlu0 %v4319, %s4324
      %v4326 = vpop.permute.xlu0 %4325
      %s4328 = sor.u32 256, 16
      %4329 = vbcast.lane.b32.xlu0 %v4319, %s4328
      %v4330 = vpop.permute.xlu0 %4329
      %s4332 = sor.u32 256, 24
      %4333 = vbcast.lane.b32.xlu0 %v4319, %s4332
      %v4334 = vpop.permute.xlu0 %4333
      %s4336 = sor.u32 256, 32
      %4337 = vbcast.lane.b32.xlu0 %v4319, %s4336
      %v4338 = vpop.permute.xlu0 %4337
      %s4340 = sor.u32 256, 40
      %4341 = vbcast.lane.b32.xlu0 %v4319, %s4340
      %v4342 = vpop.permute.xlu0 %4341
      %s4344 = sor.u32 256, 48
      %4345 = vbcast.lane.b32.xlu0 %v4319, %s4344
      %v4346 = vpop.permute.xlu0 %4345
      %s4348 = sor.u32 256, 56
      %4349 = vbcast.lane.b32.xlu0 %v4319, %s4348
      %v4350 = vpop.permute.xlu0 %4349
      %s4352 = sor.u32 256, 64
      %4353 = vbcast.lane.b32.xlu0 %v4319, %s4352
      %v4354 = vpop.permute.xlu0 %4353
      %s4356 = sor.u32 256, 72
      %4357 = vbcast.lane.b32.xlu0 %v4319, %s4356
      %v4358 = vpop.permute.xlu0 %4357
      %s4360 = sor.u32 256, 80
      %4361 = vbcast.lane.b32.xlu0 %v4319, %s4360
      %v4362 = vpop.permute.xlu0 %4361
      %s4364 = sor.u32 256, 88
      %4365 = vbcast.lane.b32.xlu0 %v4319, %s4364
      %v4366 = vpop.permute.xlu0 %4365
      %s4368 = sor.u32 256, 96
      %4369 = vbcast.lane.b32.xlu0 %v4319, %s4368
      %v4370 = vpop.permute.xlu0 %4369
      %s4372 = sor.u32 256, 104
      %4373 = vbcast.lane.b32.xlu0 %v4319, %s4372
      %v4374 = vpop.permute.xlu0 %4373
      %s4376 = sor.u32 256, 112
      %4377 = vbcast.lane.b32.xlu0 %v4319, %s4376
      %v4378 = vpop.permute.xlu0 %4377
      %s4380 = sor.u32 256, 120
      %4381 = vbcast.lane.b32.xlu0 %v4319, %s4380
      %v4382 = vpop.permute.xlu0 %4381
      %v4383 = vlaneseq
      %v4384 = vshrl.u32 %v4383, 7
      %v4385 = vsub.s32 3, %v4384
      %v4386 = vrot.slane %v4181, %v4385
      %4388 = vbcast.lane.b32.xlu0 %v4386, 256
      %v4389 = vpop.permute.xlu0 %4388
      %s4391 = sor.u32 256, 8
      %4392 = vbcast.lane.b32.xlu0 %v4386, %s4391
      %v4393 = vpop.permute.xlu0 %4392
      %s4395 = sor.u32 256, 16
      %4396 = vbcast.lane.b32.xlu0 %v4386, %s4395
      %v4397 = vpop.permute.xlu0 %4396
      %s4399 = sor.u32 256, 24
      %4400 = vbcast.lane.b32.xlu0 %v4386, %s4399
      %v4401 = vpop.permute.xlu0 %4400
      %s4403 = sor.u32 256, 32
      %4404 = vbcast.lane.b32.xlu0 %v4386, %s4403
      %v4405 = vpop.permute.xlu0 %4404
      %s4407 = sor.u32 256, 40
      %4408 = vbcast.lane.b32.xlu0 %v4386, %s4407
      %v4409 = vpop.permute.xlu0 %4408
      %s4411 = sor.u32 256, 48
      %4412 = vbcast.lane.b32.xlu0 %v4386, %s4411
      %v4413 = vpop.permute.xlu0 %4412
      %s4415 = sor.u32 256, 56
      %4416 = vbcast.lane.b32.xlu0 %v4386, %s4415
      %v4417 = vpop.permute.xlu0 %4416
      %s4419 = sor.u32 256, 64
      %4420 = vbcast.lane.b32.xlu0 %v4386, %s4419
      %v4421 = vpop.permute.xlu0 %4420
      %s4423 = sor.u32 256, 72
      %4424 = vbcast.lane.b32.xlu0 %v4386, %s4423
      %v4425 = vpop.permute.xlu0 %4424
      %s4427 = sor.u32 256, 80
      %4428 = vbcast.lane.b32.xlu0 %v4386, %s4427
      %v4429 = vpop.permute.xlu0 %4428
      %s4431 = sor.u32 256, 88
      %4432 = vbcast.lane.b32.xlu0 %v4386, %s4431
      %v4433 = vpop.permute.xlu0 %4432
      %s4435 = sor.u32 256, 96
      %4436 = vbcast.lane.b32.xlu0 %v4386, %s4435
      %v4437 = vpop.permute.xlu0 %4436
      %s4439 = sor.u32 256, 104
      %4440 = vbcast.lane.b32.xlu0 %v4386, %s4439
      %v4441 = vpop.permute.xlu0 %4440
      %s4443 = sor.u32 256, 112
      %4444 = vbcast.lane.b32.xlu0 %v4386, %s4443
      %v4445 = vpop.permute.xlu0 %4444
      %s4447 = sor.u32 256, 120
      %4448 = vbcast.lane.b32.xlu0 %v4386, %s4447
      %v4449 = vpop.permute.xlu0 %4448
      %v4450 = vsel %vm4116, %v4188, 0.0
      %v4451 = vsel %vm4117, %v4192, 0.0
      %v4452 = vsel %vm4118, %v4196, 0.0
      %v4453 = vsel %vm4119, %v4200, 0.0
      %v4454 = vsel %vm4120, %v4204, 0.0
      %v4455 = vsel %vm4121, %v4208, 0.0
      %v4456 = vsel %vm4122, %v4212, 0.0
      %v4457 = vsel %vm4123, %v4216, 0.0
      %v4458 = vsel %vm4124, %v4220, 0.0
      %v4459 = vsel %vm4125, %v4224, 0.0
      %v4460 = vsel %vm4126, %v4228, 0.0
      %v4461 = vsel %vm4127, %v4232, 0.0
      %v4462 = vsel %vm4128, %v4236, 0.0
      %v4463 = vsel %vm4129, %v4240, 0.0
      %v4464 = vsel %vm4130, %v4244, 0.0
      %v4465 = vsel %vm4131, %v4248, 0.0
      %v4466 = vsel %vm4132, %v4255, 0.0
      %v4467 = vsel %vm4133, %v4259, 0.0
      %v4468 = vsel %vm4134, %v4263, 0.0
      %v4469 = vsel %vm4135, %v4267, 0.0
      %v4470 = vsel %vm4136, %v4271, 0.0
      %v4471 = vsel %vm4137, %v4275, 0.0
      %v4472 = vsel %vm4138, %v4279, 0.0
      %v4473 = vsel %vm4139, %v4283, 0.0
      %v4474 = vsel %vm4140, %v4287, 0.0
      %v4475 = vsel %vm4141, %v4291, 0.0
      %v4476 = vsel %vm4142, %v4295, 0.0
      %v4477 = vsel %vm4143, %v4299, 0.0
      %v4478 = vsel %vm4144, %v4303, 0.0
      %v4479 = vsel %vm4145, %v4307, 0.0
      %v4480 = vsel %vm4146, %v4311, 0.0
      %v4481 = vsel %vm4147, %v4315, 0.0
      %v4482 = vsel %vm4148, %v4322, 0.0
      %v4483 = vsel %vm4149, %v4326, 0.0
      %v4484 = vsel %vm4150, %v4330, 0.0
      %v4485 = vsel %vm4151, %v4334, 0.0
      %v4486 = vsel %vm4152, %v4338, 0.0
      %v4487 = vsel %vm4153, %v4342, 0.0
      %v4488 = vsel %vm4154, %v4346, 0.0
      %v4489 = vsel %vm4155, %v4350, 0.0
      %v4490 = vsel %vm4156, %v4354, 0.0
      %v4491 = vsel %vm4157, %v4358, 0.0
      %v4492 = vsel %vm4158, %v4362, 0.0
      %v4493 = vsel %vm4159, %v4366, 0.0
      %v4494 = vsel %vm4160, %v4370, 0.0
      %v4495 = vsel %vm4161, %v4374, 0.0
      %v4496 = vsel %vm4162, %v4378, 0.0
      %v4497 = vsel %vm4163, %v4382, 0.0
      %v4498 = vsel %vm4164, %v4389, 0.0
      %v4499 = vsel %vm4165, %v4393, 0.0
      %v4500 = vsel %vm4166, %v4397, 0.0
      %v4501 = vsel %vm4167, %v4401, 0.0
      %v4502 = vsel %vm4168, %v4405, 0.0
      %v4503 = vsel %vm4169, %v4409, 0.0
      %v4504 = vsel %vm4170, %v4413, 0.0
      %v4505 = vsel %vm4171, %v4417, 0.0
      %v4506 = vsel %vm4172, %v4421, 0.0
      %v4507 = vsel %vm4173, %v4425, 0.0
      %v4508 = vsel %vm4174, %v4429, 0.0
      %v4509 = vsel %vm4175, %v4433, 0.0
      %v4510 = vsel %vm4176, %v4437, 0.0
      %v4511 = vsel %vm4177, %v4441, 0.0
      %v4512 = vsel %vm4178, %v4445, 0.0
      %v4513 = vsel %vm4179, %v4449, 0.0
      %v4514 = vadd.f32 %v4450, %v4451
      %v4515 = vadd.f32 %v4514, %v4452
      %v4516 = vadd.f32 %v4515, %v4453
      %v4517 = vadd.f32 %v4516, %v4454
      %v4518 = vadd.f32 %v4517, %v4455
      %v4519 = vadd.f32 %v4518, %v4456
      %v4520 = vadd.f32 %v4519, %v4457
      %v4521 = vadd.f32 %v4520, %v4458
      %v4522 = vadd.f32 %v4521, %v4459
      %v4523 = vadd.f32 %v4522, %v4460
      %v4524 = vadd.f32 %v4523, %v4461
      %v4525 = vadd.f32 %v4524, %v4462
      %v4526 = vadd.f32 %v4525, %v4463
      %v4527 = vadd.f32 %v4526, %v4464
      %v4528 = vadd.f32 %v4527, %v4465
      %v4529 = vrot.slane %v4528, 4
      %v4530 = vadd.f32 %v4528, %v4529
      %v4531 = vrot.slane %v4530, 2
      %v4532 = vadd.f32 %v4530, %v4531
      %v4533 = vrot.slane %v4532, 1
      %v4534 = vadd.f32 %v4532, %v4533
      %v4535 = vadd.f32 %v4466, %v4467
      %v4536 = vadd.f32 %v4535, %v4468
      %v4537 = vadd.f32 %v4536, %v4469
      %v4538 = vadd.f32 %v4537, %v4470
      %v4539 = vadd.f32 %v4538, %v4471
      %v4540 = vadd.f32 %v4539, %v4472
      %v4541 = vadd.f32 %v4540, %v4473
      %v4542 = vadd.f32 %v4541, %v4474
      %v4543 = vadd.f32 %v4542, %v4475
      %v4544 = vadd.f32 %v4543, %v4476
      %v4545 = vadd.f32 %v4544, %v4477
      %v4546 = vadd.f32 %v4545, %v4478
      %v4547 = vadd.f32 %v4546, %v4479
      %v4548 = vadd.f32 %v4547, %v4480
      %v4549 = vadd.f32 %v4548, %v4481
      %v4550 = vrot.slane %v4549, 4
      %v4551 = vadd.f32 %v4549, %v4550
      %v4552 = vrot.slane %v4551, 2
      %v4553 = vadd.f32 %v4551, %v4552
      %v4554 = vrot.slane %v4553, 1
      %v4555 = vadd.f32 %v4553, %v4554
      %v4556 = vadd.f32 %v4482, %v4483
      %v4557 = vadd.f32 %v4556, %v4484
      %v4558 = vadd.f32 %v4557, %v4485
      %v4559 = vadd.f32 %v4558, %v4486
      %v4560 = vadd.f32 %v4559, %v4487
      %v4561 = vadd.f32 %v4560, %v4488
      %v4562 = vadd.f32 %v4561, %v4489
      %v4563 = vadd.f32 %v4562, %v4490
      %v4564 = vadd.f32 %v4563, %v4491
      %v4565 = vadd.f32 %v4564, %v4492
      %v4566 = vadd.f32 %v4565, %v4493
      %v4567 = vadd.f32 %v4566, %v4494
      %v4568 = vadd.f32 %v4567, %v4495
      %v4569 = vadd.f32 %v4568, %v4496
      %v4570 = vadd.f32 %v4569, %v4497
      %v4571 = vrot.slane %v4570, 4
      %v4572 = vadd.f32 %v4570, %v4571
      %v4573 = vrot.slane %v4572, 2
      %v4574 = vadd.f32 %v4572, %v4573
      %v4575 = vrot.slane %v4574, 1
      %v4576 = vadd.f32 %v4574, %v4575
      %v4577 = vadd.f32 %v4498, %v4499
      %v4578 = vadd.f32 %v4577, %v4500
      %v4579 = vadd.f32 %v4578, %v4501
      %v4580 = vadd.f32 %v4579, %v4502
      %v4581 = vadd.f32 %v4580, %v4503
      %v4582 = vadd.f32 %v4581, %v4504
      %v4583 = vadd.f32 %v4582, %v4505
      %v4584 = vadd.f32 %v4583, %v4506
      %v4585 = vadd.f32 %v4584, %v4507
      %v4586 = vadd.f32 %v4585, %v4508
      %v4587 = vadd.f32 %v4586, %v4509
      %v4588 = vadd.f32 %v4587, %v4510
      %v4589 = vadd.f32 %v4588, %v4511
      %v4590 = vadd.f32 %v4589, %v4512
      %v4591 = vadd.f32 %v4590, %v4513
      %v4592 = vrot.slane %v4591, 4
      %v4593 = vadd.f32 %v4591, %v4592
      %v4594 = vrot.slane %v4593, 2
      %v4595 = vadd.f32 %v4593, %v4594
      %v4596 = vrot.slane %v4595, 1
      %v4597 = vadd.f32 %v4595, %v4596
      %v4598 = vmul.f32 %v4534, 1.442695
      %v4599 = vpow.pop %v4598
      %v4600 = vmul.f32 %v4555, 1.442695
      %v4601 = vpow.pop %v4600
      %v4602 = vmul.f32 %v4576, 1.442695
      %v4603 = vpow.pop %v4602
      %v4604 = vmul.f32 %v4597, 1.442695
      %v4605 = vpow.pop %v4604
      %v4606 = vsub.f32 1.0, %v3610
      %v4611 = vsel %vm1442, %v4601, %v4599
      %v4612 = vsel %vm1444, %v4603, %v4611
      %v4613 = vsel %vm1446, %v4605, %v4612
      %v4615 = vmul.f32 %v4606, %v4613
      %s4616 = scalar_lea.vmem %s307, 12
      %4617 = vst [vmem:[%s4616] sm:$0xf] %v4615
      %s4618 = scalar_lea.vmem %s313, 12
      %4619 = vst [vmem:[%s4618] sm:$0xf] %v3604
      %s4620 = scalar_lea.vmem %s288, 16
      %v4621 = vld [vmem:[%s4620] sm:$0xf]
      %s4622 = scalar_lea.vmem %s301, 16
      %v4623 = vld [vmem:[%s4622] sm:$0xf]
      %s4624 = scalar_lea.vmem %s295, 64
      %v4625 = vld [vmem:[%s4624] sm:$0xff]
      %v4626 = vld [vmem:[%s4624 + $0x8] sm:$0xff]
      %4628 = vset.pattern.permute.xlu0 0
      %4629 = vperm.xlu0 %4628, %v4623
      %v4630 = vpop.permute.xlu0 %4629
      %v4632 = vmul.f32 %v4630, %v4625
      %v4633 = vsub.f32 1.0, %v4632
      %4634 = vset.pattern.permute.xlu0 1
      %4635 = vperm.xlu0 %4634, %v4623
      %v4636 = vpop.permute.xlu0 %4635
      %v4639 = vcombine.high %v4625, %v4625
      %v4641 = vmul.f32 %v4636, %v4639
      %v4642 = vsub.f32 1.0, %v4641
      %v4643 = vmul.f32 %v4633, %v4642
      %4644 = vset.pattern.permute.xlu0 2
      %4645 = vperm.xlu0 %4644, %v4623
      %v4646 = vpop.permute.xlu0 %4645
      %v4648 = vmul.f32 %v4646, %v4626
      %v4649 = vsub.f32 1.0, %v4648
      %v4650 = vmul.f32 %v4643, %v4649
      %4651 = vset.pattern.permute.xlu0 3
      %4652 = vperm.xlu0 %4651, %v4623
      %v4653 = vpop.permute.xlu0 %4652
      %v4656 = vcombine.high %v4626, %v4626
      %v4658 = vmul.f32 %v4653, %v4656
      %v4659 = vsub.f32 1.0, %v4658
      %v4660 = vmul.f32 %v4650, %v4659
      %v4661 = vsub.f32 1.0, %v3608
      %v4662 = vmul.f32 %v4621, %v4661
      %v4663 = vadd.f32 %v3608, %v4662
      %v4664 = vmul.f32 %v4663, %v4660
      %v4665 = vmul.f32 %v4664, 0.999999
      %v4666 = vadd.f32 %v4665, 1e-06
      %v4667 = vlaneseq
      %v4668 = vshrl.u32 %v4667, 7
      %v4669 = vsub.s32 0, %v4668
      %v4670 = vrot.slane %v4666, %v4669
      %4672 = vbcast.lane.b32.xlu0 %v4670, 256
      %v4673 = vpop.permute.xlu0 %4672
      %s4675 = sor.u32 256, 8
      %4676 = vbcast.lane.b32.xlu0 %v4670, %s4675
      %v4677 = vpop.permute.xlu0 %4676
      %s4679 = sor.u32 256, 16
      %4680 = vbcast.lane.b32.xlu0 %v4670, %s4679
      %v4681 = vpop.permute.xlu0 %4680
      %s4683 = sor.u32 256, 24
      %4684 = vbcast.lane.b32.xlu0 %v4670, %s4683
      %v4685 = vpop.permute.xlu0 %4684
      %s4687 = sor.u32 256, 32
      %4688 = vbcast.lane.b32.xlu0 %v4670, %s4687
      %v4689 = vpop.permute.xlu0 %4688
      %s4691 = sor.u32 256, 40
      %4692 = vbcast.lane.b32.xlu0 %v4670, %s4691
      %v4693 = vpop.permute.xlu0 %4692
      %s4695 = sor.u32 256, 48
      %4696 = vbcast.lane.b32.xlu0 %v4670, %s4695
      %v4697 = vpop.permute.xlu0 %4696
      %s4699 = sor.u32 256, 56
      %4700 = vbcast.lane.b32.xlu0 %v4670, %s4699
      %v4701 = vpop.permute.xlu0 %4700
      %s4703 = sor.u32 256, 64
      %4704 = vbcast.lane.b32.xlu0 %v4670, %s4703
      %v4705 = vpop.permute.xlu0 %4704
      %s4707 = sor.u32 256, 72
      %4708 = vbcast.lane.b32.xlu0 %v4670, %s4707
      %v4709 = vpop.permute.xlu0 %4708
      %s4711 = sor.u32 256, 80
      %4712 = vbcast.lane.b32.xlu0 %v4670, %s4711
      %v4713 = vpop.permute.xlu0 %4712
      %s4715 = sor.u32 256, 88
      %4716 = vbcast.lane.b32.xlu0 %v4670, %s4715
      %v4717 = vpop.permute.xlu0 %4716
      %s4719 = sor.u32 256, 96
      %4720 = vbcast.lane.b32.xlu0 %v4670, %s4719
      %v4721 = vpop.permute.xlu0 %4720
      %s4723 = sor.u32 256, 104
      %4724 = vbcast.lane.b32.xlu0 %v4670, %s4723
      %v4725 = vpop.permute.xlu0 %4724
      %s4727 = sor.u32 256, 112
      %4728 = vbcast.lane.b32.xlu0 %v4670, %s4727
      %v4729 = vpop.permute.xlu0 %4728
      %s4731 = sor.u32 256, 120
      %4732 = vbcast.lane.b32.xlu0 %v4670, %s4731
      %v4733 = vpop.permute.xlu0 %4732
      %v4734 = vlaneseq
      %v4735 = vshrl.u32 %v4734, 7
      %v4736 = vsub.s32 1, %v4735
      %v4737 = vrot.slane %v4666, %v4736
      %4739 = vbcast.lane.b32.xlu0 %v4737, 256
      %v4740 = vpop.permute.xlu0 %4739
      %s4742 = sor.u32 256, 8
      %4743 = vbcast.lane.b32.xlu0 %v4737, %s4742
      %v4744 = vpop.permute.xlu0 %4743
      %s4746 = sor.u32 256, 16
      %4747 = vbcast.lane.b32.xlu0 %v4737, %s4746
      %v4748 = vpop.permute.xlu0 %4747
      %s4750 = sor.u32 256, 24
      %4751 = vbcast.lane.b32.xlu0 %v4737, %s4750
      %v4752 = vpop.permute.xlu0 %4751
      %s4754 = sor.u32 256, 32
      %4755 = vbcast.lane.b32.xlu0 %v4737, %s4754
      %v4756 = vpop.permute.xlu0 %4755
      %s4758 = sor.u32 256, 40
      %4759 = vbcast.lane.b32.xlu0 %v4737, %s4758
      %v4760 = vpop.permute.xlu0 %4759
      %s4762 = sor.u32 256, 48
      %4763 = vbcast.lane.b32.xlu0 %v4737, %s4762
      %v4764 = vpop.permute.xlu0 %4763
      %s4766 = sor.u32 256, 56
      %4767 = vbcast.lane.b32.xlu0 %v4737, %s4766
      %v4768 = vpop.permute.xlu0 %4767
      %s4770 = sor.u32 256, 64
      %4771 = vbcast.lane.b32.xlu0 %v4737, %s4770
      %v4772 = vpop.permute.xlu0 %4771
      %s4774 = sor.u32 256, 72
      %4775 = vbcast.lane.b32.xlu0 %v4737, %s4774
      %v4776 = vpop.permute.xlu0 %4775
      %s4778 = sor.u32 256, 80
      %4779 = vbcast.lane.b32.xlu0 %v4737, %s4778
      %v4780 = vpop.permute.xlu0 %4779
      %s4782 = sor.u32 256, 88
      %4783 = vbcast.lane.b32.xlu0 %v4737, %s4782
      %v4784 = vpop.permute.xlu0 %4783
      %s4786 = sor.u32 256, 96
      %4787 = vbcast.lane.b32.xlu0 %v4737, %s4786
      %v4788 = vpop.permute.xlu0 %4787
      %s4790 = sor.u32 256, 104
      %4791 = vbcast.lane.b32.xlu0 %v4737, %s4790
      %v4792 = vpop.permute.xlu0 %4791
      %s4794 = sor.u32 256, 112
      %4795 = vbcast.lane.b32.xlu0 %v4737, %s4794
      %v4796 = vpop.permute.xlu0 %4795
      %s4798 = sor.u32 256, 120
      %4799 = vbcast.lane.b32.xlu0 %v4737, %s4798
      %v4800 = vpop.permute.xlu0 %4799
      %v4801 = vlaneseq
      %v4802 = vshrl.u32 %v4801, 7
      %v4803 = vsub.s32 2, %v4802
      %v4804 = vrot.slane %v4666, %v4803
      %4806 = vbcast.lane.b32.xlu0 %v4804, 256
      %v4807 = vpop.permute.xlu0 %4806
      %s4809 = sor.u32 256, 8
      %4810 = vbcast.lane.b32.xlu0 %v4804, %s4809
      %v4811 = vpop.permute.xlu0 %4810
      %s4813 = sor.u32 256, 16
      %4814 = vbcast.lane.b32.xlu0 %v4804, %s4813
      %v4815 = vpop.permute.xlu0 %4814
      %s4817 = sor.u32 256, 24
      %4818 = vbcast.lane.b32.xlu0 %v4804, %s4817
      %v4819 = vpop.permute.xlu0 %4818
      %s4821 = sor.u32 256, 32
      %4822 = vbcast.lane.b32.xlu0 %v4804, %s4821
      %v4823 = vpop.permute.xlu0 %4822
      %s4825 = sor.u32 256, 40
      %4826 = vbcast.lane.b32.xlu0 %v4804, %s4825
      %v4827 = vpop.permute.xlu0 %4826
      %s4829 = sor.u32 256, 48
      %4830 = vbcast.lane.b32.xlu0 %v4804, %s4829
      %v4831 = vpop.permute.xlu0 %4830
      %s4833 = sor.u32 256, 56
      %4834 = vbcast.lane.b32.xlu0 %v4804, %s4833
      %v4835 = vpop.permute.xlu0 %4834
      %s4837 = sor.u32 256, 64
      %4838 = vbcast.lane.b32.xlu0 %v4804, %s4837
      %v4839 = vpop.permute.xlu0 %4838
      %s4841 = sor.u32 256, 72
      %4842 = vbcast.lane.b32.xlu0 %v4804, %s4841
      %v4843 = vpop.permute.xlu0 %4842
      %s4845 = sor.u32 256, 80
      %4846 = vbcast.lane.b32.xlu0 %v4804, %s4845
      %v4847 = vpop.permute.xlu0 %4846
      %s4849 = sor.u32 256, 88
      %4850 = vbcast.lane.b32.xlu0 %v4804, %s4849
      %v4851 = vpop.permute.xlu0 %4850
      %s4853 = sor.u32 256, 96
      %4854 = vbcast.lane.b32.xlu0 %v4804, %s4853
      %v4855 = vpop.permute.xlu0 %4854
      %s4857 = sor.u32 256, 104
      %4858 = vbcast.lane.b32.xlu0 %v4804, %s4857
      %v4859 = vpop.permute.xlu0 %4858
      %s4861 = sor.u32 256, 112
      %4862 = vbcast.lane.b32.xlu0 %v4804, %s4861
      %v4863 = vpop.permute.xlu0 %4862
      %s4865 = sor.u32 256, 120
      %4866 = vbcast.lane.b32.xlu0 %v4804, %s4865
      %v4867 = vpop.permute.xlu0 %4866
      %v4868 = vlaneseq
      %v4869 = vshrl.u32 %v4868, 7
      %v4870 = vsub.s32 3, %v4869
      %v4871 = vrot.slane %v4666, %v4870
      %4873 = vbcast.lane.b32.xlu0 %v4871, 256
      %v4874 = vpop.permute.xlu0 %4873
      %s4876 = sor.u32 256, 8
      %4877 = vbcast.lane.b32.xlu0 %v4871, %s4876
      %v4878 = vpop.permute.xlu0 %4877
      %s4880 = sor.u32 256, 16
      %4881 = vbcast.lane.b32.xlu0 %v4871, %s4880
      %v4882 = vpop.permute.xlu0 %4881
      %s4884 = sor.u32 256, 24
      %4885 = vbcast.lane.b32.xlu0 %v4871, %s4884
      %v4886 = vpop.permute.xlu0 %4885
      %s4888 = sor.u32 256, 32
      %4889 = vbcast.lane.b32.xlu0 %v4871, %s4888
      %v4890 = vpop.permute.xlu0 %4889
      %s4892 = sor.u32 256, 40
      %4893 = vbcast.lane.b32.xlu0 %v4871, %s4892
      %v4894 = vpop.permute.xlu0 %4893
      %s4896 = sor.u32 256, 48
      %4897 = vbcast.lane.b32.xlu0 %v4871, %s4896
      %v4898 = vpop.permute.xlu0 %4897
      %s4900 = sor.u32 256, 56
      %4901 = vbcast.lane.b32.xlu0 %v4871, %s4900
      %v4902 = vpop.permute.xlu0 %4901
      %s4904 = sor.u32 256, 64
      %4905 = vbcast.lane.b32.xlu0 %v4871, %s4904
      %v4906 = vpop.permute.xlu0 %4905
      %s4908 = sor.u32 256, 72
      %4909 = vbcast.lane.b32.xlu0 %v4871, %s4908
      %v4910 = vpop.permute.xlu0 %4909
      %s4912 = sor.u32 256, 80
      %4913 = vbcast.lane.b32.xlu0 %v4871, %s4912
      %v4914 = vpop.permute.xlu0 %4913
      %s4916 = sor.u32 256, 88
      %4917 = vbcast.lane.b32.xlu0 %v4871, %s4916
      %v4918 = vpop.permute.xlu0 %4917
      %s4920 = sor.u32 256, 96
      %4921 = vbcast.lane.b32.xlu0 %v4871, %s4920
      %v4922 = vpop.permute.xlu0 %4921
      %s4924 = sor.u32 256, 104
      %4925 = vbcast.lane.b32.xlu0 %v4871, %s4924
      %v4926 = vpop.permute.xlu0 %4925
      %s4928 = sor.u32 256, 112
      %4929 = vbcast.lane.b32.xlu0 %v4871, %s4928
      %v4930 = vpop.permute.xlu0 %4929
      %s4932 = sor.u32 256, 120
      %4933 = vbcast.lane.b32.xlu0 %v4871, %s4932
      %v4934 = vpop.permute.xlu0 %4933
      %v4937 = vunpack.c.l.s4 1966171168
      %v4938 = vunpack.c.0.s8 %v4937
      %v4939 = vlaneseq
      %v4940 = vshrl.u32 %v4939, 7
      %v4941 = vsub.s32 %v4938, %v4940
      %v4942 = vrot.slane %v4666, %v4941
      %v4943 = vcombine.high %v4942, %v4942
      %v4945 = vunpack.c.l.s4 1966171168
      %v4946 = vunpack.c.0.s8 %v4945
      %v4947 = vlaneseq
      %v4948 = vshrl.u32 %v4947, 7
      %v4949 = vsub.s32 %v4946, %v4948
      %v4950 = vrot.slane %v4942, %v4949
      %v4952 = vunpack.c.l.s4 1966171168
      %v4953 = vunpack.c.0.s8 %v4952
      %v4954 = vlaneseq
      %v4955 = vshrl.u32 %v4954, 7
      %v4956 = vsub.s32 %v4953, %v4955
      %v4957 = vrot.slane %v4943, %v4956
      %v4958 = vcombine.high %v4950, %v4950
      %v4959 = vcombine.high %v4957, %v4957
      %v4960 = vlaneseq
      %v4961 = vshrl.u32 %v4960, 7
      %v4962 = vsub.s32 0, %v4961
      %v4963 = vrot.slane %v4950, %v4962
      %v4964 = vlaneseq
      %v4965 = vshrl.u32 %v4964, 7
      %v4966 = vsub.s32 0, %v4965
      %v4967 = vrot.slane %v4957, %v4966
      %v4968 = vlaneseq
      %v4969 = vshrl.u32 %v4968, 7
      %v4970 = vsub.s32 0, %v4969
      %v4971 = vrot.slane %v4958, %v4970
      %v4972 = vlaneseq
      %v4973 = vshrl.u32 %v4972, 7
      %v4974 = vsub.s32 0, %v4973
      %v4975 = vrot.slane %v4959, %v4974
      %vm4980 = vcmp.lt.f32.partialorder %v4673, %v4963
      %vm4981 = vcmp.lt.f32.partialorder %v4677, %v4963
      %vm4982 = vcmp.lt.f32.partialorder %v4681, %v4963
      %vm4983 = vcmp.lt.f32.partialorder %v4685, %v4963
      %vm4984 = vcmp.lt.f32.partialorder %v4689, %v4963
      %vm4985 = vcmp.lt.f32.partialorder %v4693, %v4963
      %vm4986 = vcmp.lt.f32.partialorder %v4697, %v4963
      %vm4987 = vcmp.lt.f32.partialorder %v4701, %v4963
      %vm4988 = vcmp.lt.f32.partialorder %v4705, %v4963
      %vm4989 = vcmp.lt.f32.partialorder %v4709, %v4963
      %vm4990 = vcmp.lt.f32.partialorder %v4713, %v4963
      %vm4991 = vcmp.lt.f32.partialorder %v4717, %v4963
      %vm4992 = vcmp.lt.f32.partialorder %v4721, %v4963
      %vm4993 = vcmp.lt.f32.partialorder %v4725, %v4963
      %vm4994 = vcmp.lt.f32.partialorder %v4729, %v4963
      %vm4995 = vcmp.lt.f32.partialorder %v4733, %v4963
      %vm4996 = vcmp.lt.f32.partialorder %v4740, %v4967
      %vm4997 = vcmp.lt.f32.partialorder %v4744, %v4967
      %vm4998 = vcmp.lt.f32.partialorder %v4748, %v4967
      %vm4999 = vcmp.lt.f32.partialorder %v4752, %v4967
      %vm5000 = vcmp.lt.f32.partialorder %v4756, %v4967
      %vm5001 = vcmp.lt.f32.partialorder %v4760, %v4967
      %vm5002 = vcmp.lt.f32.partialorder %v4764, %v4967
      %vm5003 = vcmp.lt.f32.partialorder %v4768, %v4967
      %vm5004 = vcmp.lt.f32.partialorder %v4772, %v4967
      %vm5005 = vcmp.lt.f32.partialorder %v4776, %v4967
      %vm5006 = vcmp.lt.f32.partialorder %v4780, %v4967
      %vm5007 = vcmp.lt.f32.partialorder %v4784, %v4967
      %vm5008 = vcmp.lt.f32.partialorder %v4788, %v4967
      %vm5009 = vcmp.lt.f32.partialorder %v4792, %v4967
      %vm5010 = vcmp.lt.f32.partialorder %v4796, %v4967
      %vm5011 = vcmp.lt.f32.partialorder %v4800, %v4967
      %vm5012 = vcmp.lt.f32.partialorder %v4807, %v4971
      %vm5013 = vcmp.lt.f32.partialorder %v4811, %v4971
      %vm5014 = vcmp.lt.f32.partialorder %v4815, %v4971
      %vm5015 = vcmp.lt.f32.partialorder %v4819, %v4971
      %vm5016 = vcmp.lt.f32.partialorder %v4823, %v4971
      %vm5017 = vcmp.lt.f32.partialorder %v4827, %v4971
      %vm5018 = vcmp.lt.f32.partialorder %v4831, %v4971
      %vm5019 = vcmp.lt.f32.partialorder %v4835, %v4971
      %vm5020 = vcmp.lt.f32.partialorder %v4839, %v4971
      %vm5021 = vcmp.lt.f32.partialorder %v4843, %v4971
      %vm5022 = vcmp.lt.f32.partialorder %v4847, %v4971
      %vm5023 = vcmp.lt.f32.partialorder %v4851, %v4971
      %vm5024 = vcmp.lt.f32.partialorder %v4855, %v4971
      %vm5025 = vcmp.lt.f32.partialorder %v4859, %v4971
      %vm5026 = vcmp.lt.f32.partialorder %v4863, %v4971
      %vm5027 = vcmp.lt.f32.partialorder %v4867, %v4971
      %vm5028 = vcmp.lt.f32.partialorder %v4874, %v4975
      %vm5029 = vcmp.lt.f32.partialorder %v4878, %v4975
      %vm5030 = vcmp.lt.f32.partialorder %v4882, %v4975
      %vm5031 = vcmp.lt.f32.partialorder %v4886, %v4975
      %vm5032 = vcmp.lt.f32.partialorder %v4890, %v4975
      %vm5033 = vcmp.lt.f32.partialorder %v4894, %v4975
      %vm5034 = vcmp.lt.f32.partialorder %v4898, %v4975
      %vm5035 = vcmp.lt.f32.partialorder %v4902, %v4975
      %vm5036 = vcmp.lt.f32.partialorder %v4906, %v4975
      %vm5037 = vcmp.lt.f32.partialorder %v4910, %v4975
      %vm5038 = vcmp.lt.f32.partialorder %v4914, %v4975
      %vm5039 = vcmp.lt.f32.partialorder %v4918, %v4975
      %vm5040 = vcmp.lt.f32.partialorder %v4922, %v4975
      %vm5041 = vcmp.lt.f32.partialorder %v4926, %v4975
      %vm5042 = vcmp.lt.f32.partialorder %v4930, %v4975
      %vm5043 = vcmp.lt.f32.partialorder %v4934, %v4975
      %vm5044 = vcmp.eq.f32.partialorder %v4673, %v4963
      %vm5045 = vcmp.eq.f32.partialorder %v4677, %v4963
      %vm5046 = vcmp.eq.f32.partialorder %v4681, %v4963
      %vm5047 = vcmp.eq.f32.partialorder %v4685, %v4963
      %vm5048 = vcmp.eq.f32.partialorder %v4689, %v4963
      %vm5049 = vcmp.eq.f32.partialorder %v4693, %v4963
      %vm5050 = vcmp.eq.f32.partialorder %v4697, %v4963
      %vm5051 = vcmp.eq.f32.partialorder %v4701, %v4963
      %vm5052 = vcmp.eq.f32.partialorder %v4705, %v4963
      %vm5053 = vcmp.eq.f32.partialorder %v4709, %v4963
      %vm5054 = vcmp.eq.f32.partialorder %v4713, %v4963
      %vm5055 = vcmp.eq.f32.partialorder %v4717, %v4963
      %vm5056 = vcmp.eq.f32.partialorder %v4721, %v4963
      %vm5057 = vcmp.eq.f32.partialorder %v4725, %v4963
      %vm5058 = vcmp.eq.f32.partialorder %v4729, %v4963
      %vm5059 = vcmp.eq.f32.partialorder %v4733, %v4963
      %vm5060 = vcmp.eq.f32.partialorder %v4740, %v4967
      %vm5061 = vcmp.eq.f32.partialorder %v4744, %v4967
      %vm5062 = vcmp.eq.f32.partialorder %v4748, %v4967
      %vm5063 = vcmp.eq.f32.partialorder %v4752, %v4967
      %vm5064 = vcmp.eq.f32.partialorder %v4756, %v4967
      %vm5065 = vcmp.eq.f32.partialorder %v4760, %v4967
      %vm5066 = vcmp.eq.f32.partialorder %v4764, %v4967
      %vm5067 = vcmp.eq.f32.partialorder %v4768, %v4967
      %vm5068 = vcmp.eq.f32.partialorder %v4772, %v4967
      %vm5069 = vcmp.eq.f32.partialorder %v4776, %v4967
      %vm5070 = vcmp.eq.f32.partialorder %v4780, %v4967
      %vm5071 = vcmp.eq.f32.partialorder %v4784, %v4967
      %vm5072 = vcmp.eq.f32.partialorder %v4788, %v4967
      %vm5073 = vcmp.eq.f32.partialorder %v4792, %v4967
      %vm5074 = vcmp.eq.f32.partialorder %v4796, %v4967
      %vm5075 = vcmp.eq.f32.partialorder %v4800, %v4967
      %vm5076 = vcmp.eq.f32.partialorder %v4807, %v4971
      %vm5077 = vcmp.eq.f32.partialorder %v4811, %v4971
      %vm5078 = vcmp.eq.f32.partialorder %v4815, %v4971
      %vm5079 = vcmp.eq.f32.partialorder %v4819, %v4971
      %vm5080 = vcmp.eq.f32.partialorder %v4823, %v4971
      %vm5081 = vcmp.eq.f32.partialorder %v4827, %v4971
      %vm5082 = vcmp.eq.f32.partialorder %v4831, %v4971
      %vm5083 = vcmp.eq.f32.partialorder %v4835, %v4971
      %vm5084 = vcmp.eq.f32.partialorder %v4839, %v4971
      %vm5085 = vcmp.eq.f32.partialorder %v4843, %v4971
      %vm5086 = vcmp.eq.f32.partialorder %v4847, %v4971
      %vm5087 = vcmp.eq.f32.partialorder %v4851, %v4971
      %vm5088 = vcmp.eq.f32.partialorder %v4855, %v4971
      %vm5089 = vcmp.eq.f32.partialorder %v4859, %v4971
      %vm5090 = vcmp.eq.f32.partialorder %v4863, %v4971
      %vm5091 = vcmp.eq.f32.partialorder %v4867, %v4971
      %vm5092 = vcmp.eq.f32.partialorder %v4874, %v4975
      %vm5093 = vcmp.eq.f32.partialorder %v4878, %v4975
      %vm5094 = vcmp.eq.f32.partialorder %v4882, %v4975
      %vm5095 = vcmp.eq.f32.partialorder %v4886, %v4975
      %vm5096 = vcmp.eq.f32.partialorder %v4890, %v4975
      %vm5097 = vcmp.eq.f32.partialorder %v4894, %v4975
      %vm5098 = vcmp.eq.f32.partialorder %v4898, %v4975
      %vm5099 = vcmp.eq.f32.partialorder %v4902, %v4975
      %vm5100 = vcmp.eq.f32.partialorder %v4906, %v4975
      %vm5101 = vcmp.eq.f32.partialorder %v4910, %v4975
      %vm5102 = vcmp.eq.f32.partialorder %v4914, %v4975
      %vm5103 = vcmp.eq.f32.partialorder %v4918, %v4975
      %vm5104 = vcmp.eq.f32.partialorder %v4922, %v4975
      %vm5105 = vcmp.eq.f32.partialorder %v4926, %v4975
      %vm5106 = vcmp.eq.f32.partialorder %v4930, %v4975
      %vm5107 = vcmp.eq.f32.partialorder %v4934, %v4975
      %vm5108 = vmand %vm5044, %vm867
      %vm5109 = vmand %vm5045, %vm868
      %vm5110 = vmand %vm5046, %vm869
      %vm5111 = vmand %vm5047, %vm870
      %vm5112 = vmand %vm5048, %vm871
      %vm5113 = vmand %vm5049, %vm872
      %vm5114 = vmand %vm5050, %vm873
      %vm5115 = vmand %vm5051, %vm874
      %vm5116 = vmand %vm5052, %vm875
      %vm5117 = vmand %vm5053, %vm876
      %vm5118 = vmand %vm5054, %vm877
      %vm5119 = vmand %vm5055, %vm878
      %vm5120 = vmand %vm5056, %vm879
      %vm5121 = vmand %vm5057, %vm880
      %vm5122 = vmand %vm5058, %vm881
      %vm5123 = vmand %vm5059, %vm882
      %vm5124 = vmand %vm5060, %vm867
      %vm5125 = vmand %vm5061, %vm868
      %vm5126 = vmand %vm5062, %vm869
      %vm5127 = vmand %vm5063, %vm870
      %vm5128 = vmand %vm5064, %vm871
      %vm5129 = vmand %vm5065, %vm872
      %vm5130 = vmand %vm5066, %vm873
      %vm5131 = vmand %vm5067, %vm874
      %vm5132 = vmand %vm5068, %vm875
      %vm5133 = vmand %vm5069, %vm876
      %vm5134 = vmand %vm5070, %vm877
      %vm5135 = vmand %vm5071, %vm878
      %vm5136 = vmand %vm5072, %vm879
      %vm5137 = vmand %vm5073, %vm880
      %vm5138 = vmand %vm5074, %vm881
      %vm5139 = vmand %vm5075, %vm882
      %vm5140 = vmand %vm5076, %vm867
      %vm5141 = vmand %vm5077, %vm868
      %vm5142 = vmand %vm5078, %vm869
      %vm5143 = vmand %vm5079, %vm870
      %vm5144 = vmand %vm5080, %vm871
      %vm5145 = vmand %vm5081, %vm872
      %vm5146 = vmand %vm5082, %vm873
      %vm5147 = vmand %vm5083, %vm874
      %vm5148 = vmand %vm5084, %vm875
      %vm5149 = vmand %vm5085, %vm876
      %vm5150 = vmand %vm5086, %vm877
      %vm5151 = vmand %vm5087, %vm878
      %vm5152 = vmand %vm5088, %vm879
      %vm5153 = vmand %vm5089, %vm880
      %vm5154 = vmand %vm5090, %vm881
      %vm5155 = vmand %vm5091, %vm882
      %vm5156 = vmand %vm5092, %vm867
      %vm5157 = vmand %vm5093, %vm868
      %vm5158 = vmand %vm5094, %vm869
      %vm5159 = vmand %vm5095, %vm870
      %vm5160 = vmand %vm5096, %vm871
      %vm5161 = vmand %vm5097, %vm872
      %vm5162 = vmand %vm5098, %vm873
      %vm5163 = vmand %vm5099, %vm874
      %vm5164 = vmand %vm5100, %vm875
      %vm5165 = vmand %vm5101, %vm876
      %vm5166 = vmand %vm5102, %vm877
      %vm5167 = vmand %vm5103, %vm878
      %vm5168 = vmand %vm5104, %vm879
      %vm5169 = vmand %vm5105, %vm880
      %vm5170 = vmand %vm5106, %vm881
      %vm5171 = vmand %vm5107, %vm882
      %vm5172 = vmor %vm4980, %vm5108
      %vm5173 = vmor %vm4981, %vm5109
      %vm5174 = vmor %vm4982, %vm5110
      %vm5175 = vmor %vm4983, %vm5111
      %vm5176 = vmor %vm4984, %vm5112
      %vm5177 = vmor %vm4985, %vm5113
      %vm5178 = vmor %vm4986, %vm5114
      %vm5179 = vmor %vm4987, %vm5115
      %vm5180 = vmor %vm4988, %vm5116
      %vm5181 = vmor %vm4989, %vm5117
      %vm5182 = vmor %vm4990, %vm5118
      %vm5183 = vmor %vm4991, %vm5119
      %vm5184 = vmor %vm4992, %vm5120
      %vm5185 = vmor %vm4993, %vm5121
      %vm5186 = vmor %vm4994, %vm5122
      %vm5187 = vmor %vm4995, %vm5123
      %vm5188 = vmor %vm4996, %vm5124
      %vm5189 = vmor %vm4997, %vm5125
      %vm5190 = vmor %vm4998, %vm5126
      %vm5191 = vmor %vm4999, %vm5127
      %vm5192 = vmor %vm5000, %vm5128
      %vm5193 = vmor %vm5001, %vm5129
      %vm5194 = vmor %vm5002, %vm5130
      %vm5195 = vmor %vm5003, %vm5131
      %vm5196 = vmor %vm5004, %vm5132
      %vm5197 = vmor %vm5005, %vm5133
      %vm5198 = vmor %vm5006, %vm5134
      %vm5199 = vmor %vm5007, %vm5135
      %vm5200 = vmor %vm5008, %vm5136
      %vm5201 = vmor %vm5009, %vm5137
      %vm5202 = vmor %vm5010, %vm5138
      %vm5203 = vmor %vm5011, %vm5139
      %vm5204 = vmor %vm5012, %vm5140
      %vm5205 = vmor %vm5013, %vm5141
      %vm5206 = vmor %vm5014, %vm5142
      %vm5207 = vmor %vm5015, %vm5143
      %vm5208 = vmor %vm5016, %vm5144
      %vm5209 = vmor %vm5017, %vm5145
      %vm5210 = vmor %vm5018, %vm5146
      %vm5211 = vmor %vm5019, %vm5147
      %vm5212 = vmor %vm5020, %vm5148
      %vm5213 = vmor %vm5021, %vm5149
      %vm5214 = vmor %vm5022, %vm5150
      %vm5215 = vmor %vm5023, %vm5151
      %vm5216 = vmor %vm5024, %vm5152
      %vm5217 = vmor %vm5025, %vm5153
      %vm5218 = vmor %vm5026, %vm5154
      %vm5219 = vmor %vm5027, %vm5155
      %vm5220 = vmor %vm5028, %vm5156
      %vm5221 = vmor %vm5029, %vm5157
      %vm5222 = vmor %vm5030, %vm5158
      %vm5223 = vmor %vm5031, %vm5159
      %vm5224 = vmor %vm5032, %vm5160
      %vm5225 = vmor %vm5033, %vm5161
      %vm5226 = vmor %vm5034, %vm5162
      %vm5227 = vmor %vm5035, %vm5163
      %vm5228 = vmor %vm5036, %vm5164
      %vm5229 = vmor %vm5037, %vm5165
      %vm5230 = vmor %vm5038, %vm5166
      %vm5231 = vmor %vm5039, %vm5167
      %vm5232 = vmor %vm5040, %vm5168
      %vm5233 = vmor %vm5041, %vm5169
      %vm5234 = vmor %vm5042, %vm5170
      %vm5235 = vmor %vm5043, %vm5171
      %v5236 = vlog2.pop %v4666
      %v5237 = vmul.f32 %v5236, 0.6931472
      %v5238 = vlaneseq
      %v5239 = vshrl.u32 %v5238, 7
      %v5240 = vsub.s32 0, %v5239
      %v5241 = vrot.slane %v5237, %v5240
      %5243 = vbcast.lane.b32.xlu0 %v5241, 256
      %v5244 = vpop.permute.xlu0 %5243
      %s5246 = sor.u32 256, 8
      %5247 = vbcast.lane.b32.xlu0 %v5241, %s5246
      %v5248 = vpop.permute.xlu0 %5247
      %s5250 = sor.u32 256, 16
      %5251 = vbcast.lane.b32.xlu0 %v5241, %s5250
      %v5252 = vpop.permute.xlu0 %5251
      %s5254 = sor.u32 256, 24
      %5255 = vbcast.lane.b32.xlu0 %v5241, %s5254
      %v5256 = vpop.permute.xlu0 %5255
      %s5258 = sor.u32 256, 32
      %5259 = vbcast.lane.b32.xlu0 %v5241, %s5258
      %v5260 = vpop.permute.xlu0 %5259
      %s5262 = sor.u32 256, 40
      %5263 = vbcast.lane.b32.xlu0 %v5241, %s5262
      %v5264 = vpop.permute.xlu0 %5263
      %s5266 = sor.u32 256, 48
      %5267 = vbcast.lane.b32.xlu0 %v5241, %s5266
      %v5268 = vpop.permute.xlu0 %5267
      %s5270 = sor.u32 256, 56
      %5271 = vbcast.lane.b32.xlu0 %v5241, %s5270
      %v5272 = vpop.permute.xlu0 %5271
      %s5274 = sor.u32 256, 64
      %5275 = vbcast.lane.b32.xlu0 %v5241, %s5274
      %v5276 = vpop.permute.xlu0 %5275
      %s5278 = sor.u32 256, 72
      %5279 = vbcast.lane.b32.xlu0 %v5241, %s5278
      %v5280 = vpop.permute.xlu0 %5279
      %s5282 = sor.u32 256, 80
      %5283 = vbcast.lane.b32.xlu0 %v5241, %s5282
      %v5284 = vpop.permute.xlu0 %5283
      %s5286 = sor.u32 256, 88
      %5287 = vbcast.lane.b32.xlu0 %v5241, %s5286
      %v5288 = vpop.permute.xlu0 %5287
      %s5290 = sor.u32 256, 96
      %5291 = vbcast.lane.b32.xlu0 %v5241, %s5290
      %v5292 = vpop.permute.xlu0 %5291
      %s5294 = sor.u32 256, 104
      %5295 = vbcast.lane.b32.xlu0 %v5241, %s5294
      %v5296 = vpop.permute.xlu0 %5295
      %s5298 = sor.u32 256, 112
      %5299 = vbcast.lane.b32.xlu0 %v5241, %s5298
      %v5300 = vpop.permute.xlu0 %5299
      %s5302 = sor.u32 256, 120
      %5303 = vbcast.lane.b32.xlu0 %v5241, %s5302
      %v5304 = vpop.permute.xlu0 %5303
      %v5305 = vlaneseq
      %v5306 = vshrl.u32 %v5305, 7
      %v5307 = vsub.s32 1, %v5306
      %v5308 = vrot.slane %v5237, %v5307
      %5310 = vbcast.lane.b32.xlu0 %v5308, 256
      %v5311 = vpop.permute.xlu0 %5310
      %s5313 = sor.u32 256, 8
      %5314 = vbcast.lane.b32.xlu0 %v5308, %s5313
      %v5315 = vpop.permute.xlu0 %5314
      %s5317 = sor.u32 256, 16
      %5318 = vbcast.lane.b32.xlu0 %v5308, %s5317
      %v5319 = vpop.permute.xlu0 %5318
      %s5321 = sor.u32 256, 24
      %5322 = vbcast.lane.b32.xlu0 %v5308, %s5321
      %v5323 = vpop.permute.xlu0 %5322
      %s5325 = sor.u32 256, 32
      %5326 = vbcast.lane.b32.xlu0 %v5308, %s5325
      %v5327 = vpop.permute.xlu0 %5326
      %s5329 = sor.u32 256, 40
      %5330 = vbcast.lane.b32.xlu0 %v5308, %s5329
      %v5331 = vpop.permute.xlu0 %5330
      %s5333 = sor.u32 256, 48
      %5334 = vbcast.lane.b32.xlu0 %v5308, %s5333
      %v5335 = vpop.permute.xlu0 %5334
      %s5337 = sor.u32 256, 56
      %5338 = vbcast.lane.b32.xlu0 %v5308, %s5337
      %v5339 = vpop.permute.xlu0 %5338
      %s5341 = sor.u32 256, 64
      %5342 = vbcast.lane.b32.xlu0 %v5308, %s5341
      %v5343 = vpop.permute.xlu0 %5342
      %s5345 = sor.u32 256, 72
      %5346 = vbcast.lane.b32.xlu0 %v5308, %s5345
      %v5347 = vpop.permute.xlu0 %5346
      %s5349 = sor.u32 256, 80
      %5350 = vbcast.lane.b32.xlu0 %v5308, %s5349
      %v5351 = vpop.permute.xlu0 %5350
      %s5353 = sor.u32 256, 88
      %5354 = vbcast.lane.b32.xlu0 %v5308, %s5353
      %v5355 = vpop.permute.xlu0 %5354
      %s5357 = sor.u32 256, 96
      %5358 = vbcast.lane.b32.xlu0 %v5308, %s5357
      %v5359 = vpop.permute.xlu0 %5358
      %s5361 = sor.u32 256, 104
      %5362 = vbcast.lane.b32.xlu0 %v5308, %s5361
      %v5363 = vpop.permute.xlu0 %5362
      %s5365 = sor.u32 256, 112
      %5366 = vbcast.lane.b32.xlu0 %v5308, %s5365
      %v5367 = vpop.permute.xlu0 %5366
      %s5369 = sor.u32 256, 120
      %5370 = vbcast.lane.b32.xlu0 %v5308, %s5369
      %v5371 = vpop.permute.xlu0 %5370
      %v5372 = vlaneseq
      %v5373 = vshrl.u32 %v5372, 7
      %v5374 = vsub.s32 2, %v5373
      %v5375 = vrot.slane %v5237, %v5374
      %5377 = vbcast.lane.b32.xlu0 %v5375, 256
      %v5378 = vpop.permute.xlu0 %5377
      %s5380 = sor.u32 256, 8
      %5381 = vbcast.lane.b32.xlu0 %v5375, %s5380
      %v5382 = vpop.permute.xlu0 %5381
      %s5384 = sor.u32 256, 16
      %5385 = vbcast.lane.b32.xlu0 %v5375, %s5384
      %v5386 = vpop.permute.xlu0 %5385
      %s5388 = sor.u32 256, 24
      %5389 = vbcast.lane.b32.xlu0 %v5375, %s5388
      %v5390 = vpop.permute.xlu0 %5389
      %s5392 = sor.u32 256, 32
      %5393 = vbcast.lane.b32.xlu0 %v5375, %s5392
      %v5394 = vpop.permute.xlu0 %5393
      %s5396 = sor.u32 256, 40
      %5397 = vbcast.lane.b32.xlu0 %v5375, %s5396
      %v5398 = vpop.permute.xlu0 %5397
      %s5400 = sor.u32 256, 48
      %5401 = vbcast.lane.b32.xlu0 %v5375, %s5400
      %v5402 = vpop.permute.xlu0 %5401
      %s5404 = sor.u32 256, 56
      %5405 = vbcast.lane.b32.xlu0 %v5375, %s5404
      %v5406 = vpop.permute.xlu0 %5405
      %s5408 = sor.u32 256, 64
      %5409 = vbcast.lane.b32.xlu0 %v5375, %s5408
      %v5410 = vpop.permute.xlu0 %5409
      %s5412 = sor.u32 256, 72
      %5413 = vbcast.lane.b32.xlu0 %v5375, %s5412
      %v5414 = vpop.permute.xlu0 %5413
      %s5416 = sor.u32 256, 80
      %5417 = vbcast.lane.b32.xlu0 %v5375, %s5416
      %v5418 = vpop.permute.xlu0 %5417
      %s5420 = sor.u32 256, 88
      %5421 = vbcast.lane.b32.xlu0 %v5375, %s5420
      %v5422 = vpop.permute.xlu0 %5421
      %s5424 = sor.u32 256, 96
      %5425 = vbcast.lane.b32.xlu0 %v5375, %s5424
      %v5426 = vpop.permute.xlu0 %5425
      %s5428 = sor.u32 256, 104
      %5429 = vbcast.lane.b32.xlu0 %v5375, %s5428
      %v5430 = vpop.permute.xlu0 %5429
      %s5432 = sor.u32 256, 112
      %5433 = vbcast.lane.b32.xlu0 %v5375, %s5432
      %v5434 = vpop.permute.xlu0 %5433
      %s5436 = sor.u32 256, 120
      %5437 = vbcast.lane.b32.xlu0 %v5375, %s5436
      %v5438 = vpop.permute.xlu0 %5437
      %v5439 = vlaneseq
      %v5440 = vshrl.u32 %v5439, 7
      %v5441 = vsub.s32 3, %v5440
      %v5442 = vrot.slane %v5237, %v5441
      %5444 = vbcast.lane.b32.xlu0 %v5442, 256
      %v5445 = vpop.permute.xlu0 %5444
      %s5447 = sor.u32 256, 8
      %5448 = vbcast.lane.b32.xlu0 %v5442, %s5447
      %v5449 = vpop.permute.xlu0 %5448
      %s5451 = sor.u32 256, 16
      %5452 = vbcast.lane.b32.xlu0 %v5442, %s5451
      %v5453 = vpop.permute.xlu0 %5452
      %s5455 = sor.u32 256, 24
      %5456 = vbcast.lane.b32.xlu0 %v5442, %s5455
      %v5457 = vpop.permute.xlu0 %5456
      %s5459 = sor.u32 256, 32
      %5460 = vbcast.lane.b32.xlu0 %v5442, %s5459
      %v5461 = vpop.permute.xlu0 %5460
      %s5463 = sor.u32 256, 40
      %5464 = vbcast.lane.b32.xlu0 %v5442, %s5463
      %v5465 = vpop.permute.xlu0 %5464
      %s5467 = sor.u32 256, 48
      %5468 = vbcast.lane.b32.xlu0 %v5442, %s5467
      %v5469 = vpop.permute.xlu0 %5468
      %s5471 = sor.u32 256, 56
      %5472 = vbcast.lane.b32.xlu0 %v5442, %s5471
      %v5473 = vpop.permute.xlu0 %5472
      %s5475 = sor.u32 256, 64
      %5476 = vbcast.lane.b32.xlu0 %v5442, %s5475
      %v5477 = vpop.permute.xlu0 %5476
      %s5479 = sor.u32 256, 72
      %5480 = vbcast.lane.b32.xlu0 %v5442, %s5479
      %v5481 = vpop.permute.xlu0 %5480
      %s5483 = sor.u32 256, 80
      %5484 = vbcast.lane.b32.xlu0 %v5442, %s5483
      %v5485 = vpop.permute.xlu0 %5484
      %s5487 = sor.u32 256, 88
      %5488 = vbcast.lane.b32.xlu0 %v5442, %s5487
      %v5489 = vpop.permute.xlu0 %5488
      %s5491 = sor.u32 256, 96
      %5492 = vbcast.lane.b32.xlu0 %v5442, %s5491
      %v5493 = vpop.permute.xlu0 %5492
      %s5495 = sor.u32 256, 104
      %5496 = vbcast.lane.b32.xlu0 %v5442, %s5495
      %v5497 = vpop.permute.xlu0 %5496
      %s5499 = sor.u32 256, 112
      %5500 = vbcast.lane.b32.xlu0 %v5442, %s5499
      %v5501 = vpop.permute.xlu0 %5500
      %s5503 = sor.u32 256, 120
      %5504 = vbcast.lane.b32.xlu0 %v5442, %s5503
      %v5505 = vpop.permute.xlu0 %5504
      %v5506 = vsel %vm5172, %v5244, 0.0
      %v5507 = vsel %vm5173, %v5248, 0.0
      %v5508 = vsel %vm5174, %v5252, 0.0
      %v5509 = vsel %vm5175, %v5256, 0.0
      %v5510 = vsel %vm5176, %v5260, 0.0
      %v5511 = vsel %vm5177, %v5264, 0.0
      %v5512 = vsel %vm5178, %v5268, 0.0
      %v5513 = vsel %vm5179, %v5272, 0.0
      %v5514 = vsel %vm5180, %v5276, 0.0
      %v5515 = vsel %vm5181, %v5280, 0.0
      %v5516 = vsel %vm5182, %v5284, 0.0
      %v5517 = vsel %vm5183, %v5288, 0.0
      %v5518 = vsel %vm5184, %v5292, 0.0
      %v5519 = vsel %vm5185, %v5296, 0.0
      %v5520 = vsel %vm5186, %v5300, 0.0
      %v5521 = vsel %vm5187, %v5304, 0.0
      %v5522 = vsel %vm5188, %v5311, 0.0
      %v5523 = vsel %vm5189, %v5315, 0.0
      %v5524 = vsel %vm5190, %v5319, 0.0
      %v5525 = vsel %vm5191, %v5323, 0.0
      %v5526 = vsel %vm5192, %v5327, 0.0
      %v5527 = vsel %vm5193, %v5331, 0.0
      %v5528 = vsel %vm5194, %v5335, 0.0
      %v5529 = vsel %vm5195, %v5339, 0.0
      %v5530 = vsel %vm5196, %v5343, 0.0
      %v5531 = vsel %vm5197, %v5347, 0.0
      %v5532 = vsel %vm5198, %v5351, 0.0
      %v5533 = vsel %vm5199, %v5355, 0.0
      %v5534 = vsel %vm5200, %v5359, 0.0
      %v5535 = vsel %vm5201, %v5363, 0.0
      %v5536 = vsel %vm5202, %v5367, 0.0
      %v5537 = vsel %vm5203, %v5371, 0.0
      %v5538 = vsel %vm5204, %v5378, 0.0
      %v5539 = vsel %vm5205, %v5382, 0.0
      %v5540 = vsel %vm5206, %v5386, 0.0
      %v5541 = vsel %vm5207, %v5390, 0.0
      %v5542 = vsel %vm5208, %v5394, 0.0
      %v5543 = vsel %vm5209, %v5398, 0.0
      %v5544 = vsel %vm5210, %v5402, 0.0
      %v5545 = vsel %vm5211, %v5406, 0.0
      %v5546 = vsel %vm5212, %v5410, 0.0
      %v5547 = vsel %vm5213, %v5414, 0.0
      %v5548 = vsel %vm5214, %v5418, 0.0
      %v5549 = vsel %vm5215, %v5422, 0.0
      %v5550 = vsel %vm5216, %v5426, 0.0
      %v5551 = vsel %vm5217, %v5430, 0.0
      %v5552 = vsel %vm5218, %v5434, 0.0
      %v5553 = vsel %vm5219, %v5438, 0.0
      %v5554 = vsel %vm5220, %v5445, 0.0
      %v5555 = vsel %vm5221, %v5449, 0.0
      %v5556 = vsel %vm5222, %v5453, 0.0
      %v5557 = vsel %vm5223, %v5457, 0.0
      %v5558 = vsel %vm5224, %v5461, 0.0
      %v5559 = vsel %vm5225, %v5465, 0.0
      %v5560 = vsel %vm5226, %v5469, 0.0
      %v5561 = vsel %vm5227, %v5473, 0.0
      %v5562 = vsel %vm5228, %v5477, 0.0
      %v5563 = vsel %vm5229, %v5481, 0.0
      %v5564 = vsel %vm5230, %v5485, 0.0
      %v5565 = vsel %vm5231, %v5489, 0.0
      %v5566 = vsel %vm5232, %v5493, 0.0
      %v5567 = vsel %vm5233, %v5497, 0.0
      %v5568 = vsel %vm5234, %v5501, 0.0
      %v5569 = vsel %vm5235, %v5505, 0.0
      %v5570 = vadd.f32 %v5506, %v5507
      %v5571 = vadd.f32 %v5570, %v5508
      %v5572 = vadd.f32 %v5571, %v5509
      %v5573 = vadd.f32 %v5572, %v5510
      %v5574 = vadd.f32 %v5573, %v5511
      %v5575 = vadd.f32 %v5574, %v5512
      %v5576 = vadd.f32 %v5575, %v5513
      %v5577 = vadd.f32 %v5576, %v5514
      %v5578 = vadd.f32 %v5577, %v5515
      %v5579 = vadd.f32 %v5578, %v5516
      %v5580 = vadd.f32 %v5579, %v5517
      %v5581 = vadd.f32 %v5580, %v5518
      %v5582 = vadd.f32 %v5581, %v5519
      %v5583 = vadd.f32 %v5582, %v5520
      %v5584 = vadd.f32 %v5583, %v5521
      %v5585 = vrot.slane %v5584, 4
      %v5586 = vadd.f32 %v5584, %v5585
      %v5587 = vrot.slane %v5586, 2
      %v5588 = vadd.f32 %v5586, %v5587
      %v5589 = vrot.slane %v5588, 1
      %v5590 = vadd.f32 %v5588, %v5589
      %v5591 = vadd.f32 %v5522, %v5523
      %v5592 = vadd.f32 %v5591, %v5524
      %v5593 = vadd.f32 %v5592, %v5525
      %v5594 = vadd.f32 %v5593, %v5526
      %v5595 = vadd.f32 %v5594, %v5527
      %v5596 = vadd.f32 %v5595, %v5528
      %v5597 = vadd.f32 %v5596, %v5529
      %v5598 = vadd.f32 %v5597, %v5530
      %v5599 = vadd.f32 %v5598, %v5531
      %v5600 = vadd.f32 %v5599, %v5532
      %v5601 = vadd.f32 %v5600, %v5533
      %v5602 = vadd.f32 %v5601, %v5534
      %v5603 = vadd.f32 %v5602, %v5535
      %v5604 = vadd.f32 %v5603, %v5536
      %v5605 = vadd.f32 %v5604, %v5537
      %v5606 = vrot.slane %v5605, 4
      %v5607 = vadd.f32 %v5605, %v5606
      %v5608 = vrot.slane %v5607, 2
      %v5609 = vadd.f32 %v5607, %v5608
      %v5610 = vrot.slane %v5609, 1
      %v5611 = vadd.f32 %v5609, %v5610
      %v5612 = vadd.f32 %v5538, %v5539
      %v5613 = vadd.f32 %v5612, %v5540
      %v5614 = vadd.f32 %v5613, %v5541
      %v5615 = vadd.f32 %v5614, %v5542
      %v5616 = vadd.f32 %v5615, %v5543
      %v5617 = vadd.f32 %v5616, %v5544
      %v5618 = vadd.f32 %v5617, %v5545
      %v5619 = vadd.f32 %v5618, %v5546
      %v5620 = vadd.f32 %v5619, %v5547
      %v5621 = vadd.f32 %v5620, %v5548
      %v5622 = vadd.f32 %v5621, %v5549
      %v5623 = vadd.f32 %v5622, %v5550
      %v5624 = vadd.f32 %v5623, %v5551
      %v5625 = vadd.f32 %v5624, %v5552
      %v5626 = vadd.f32 %v5625, %v5553
      %v5627 = vrot.slane %v5626, 4
      %v5628 = vadd.f32 %v5626, %v5627
      %v5629 = vrot.slane %v5628, 2
      %v5630 = vadd.f32 %v5628, %v5629
      %v5631 = vrot.slane %v5630, 1
      %v5632 = vadd.f32 %v5630, %v5631
      %v5633 = vadd.f32 %v5554, %v5555
      %v5634 = vadd.f32 %v5633, %v5556
      %v5635 = vadd.f32 %v5634, %v5557
      %v5636 = vadd.f32 %v5635, %v5558
      %v5637 = vadd.f32 %v5636, %v5559
      %v5638 = vadd.f32 %v5637, %v5560
      %v5639 = vadd.f32 %v5638, %v5561
      %v5640 = vadd.f32 %v5639, %v5562
      %v5641 = vadd.f32 %v5640, %v5563
      %v5642 = vadd.f32 %v5641, %v5564
      %v5643 = vadd.f32 %v5642, %v5565
      %v5644 = vadd.f32 %v5643, %v5566
      %v5645 = vadd.f32 %v5644, %v5567
      %v5646 = vadd.f32 %v5645, %v5568
      %v5647 = vadd.f32 %v5646, %v5569
      %v5648 = vrot.slane %v5647, 4
      %v5649 = vadd.f32 %v5647, %v5648
      %v5650 = vrot.slane %v5649, 2
      %v5651 = vadd.f32 %v5649, %v5650
      %v5652 = vrot.slane %v5651, 1
      %v5653 = vadd.f32 %v5651, %v5652
      %v5654 = vmul.f32 %v5590, 1.442695
      %v5655 = vpow.pop %v5654
      %v5656 = vmul.f32 %v5611, 1.442695
      %v5657 = vpow.pop %v5656
      %v5658 = vmul.f32 %v5632, 1.442695
      %v5659 = vpow.pop %v5658
      %v5660 = vmul.f32 %v5653, 1.442695
      %v5661 = vpow.pop %v5660
      %v5662 = vsub.f32 1.0, %v4666
      %v5667 = vsel %vm1442, %v5657, %v5655
      %v5668 = vsel %vm1444, %v5659, %v5667
      %v5669 = vsel %vm1446, %v5661, %v5668
      %v5671 = vmul.f32 %v5662, %v5669
      %s5672 = scalar_lea.vmem %s307, 16
      %5673 = vst [vmem:[%s5672] sm:$0xf] %v5671
      %s5674 = scalar_lea.vmem %s313, 16
      %5675 = vst [vmem:[%s5674] sm:$0xf] %v4660
      %s5676 = scalar_lea.vmem %s288, 20
      %v5677 = vld [vmem:[%s5676] sm:$0xf]
      %s5678 = scalar_lea.vmem %s301, 20
      %v5679 = vld [vmem:[%s5678] sm:$0xf]
      %s5680 = scalar_lea.vmem %s295, 80
      %v5681 = vld [vmem:[%s5680] sm:$0xff]
      %v5682 = vld [vmem:[%s5680 + $0x8] sm:$0xff]
      %5684 = vset.pattern.permute.xlu0 0
      %5685 = vperm.xlu0 %5684, %v5679
      %v5686 = vpop.permute.xlu0 %5685
      %v5688 = vmul.f32 %v5686, %v5681
      %v5689 = vsub.f32 1.0, %v5688
      %5690 = vset.pattern.permute.xlu0 1
      %5691 = vperm.xlu0 %5690, %v5679
      %v5692 = vpop.permute.xlu0 %5691
      %v5695 = vcombine.high %v5681, %v5681
      %v5697 = vmul.f32 %v5692, %v5695
      %v5698 = vsub.f32 1.0, %v5697
      %v5699 = vmul.f32 %v5689, %v5698
      %5700 = vset.pattern.permute.xlu0 2
      %5701 = vperm.xlu0 %5700, %v5679
      %v5702 = vpop.permute.xlu0 %5701
      %v5704 = vmul.f32 %v5702, %v5682
      %v5705 = vsub.f32 1.0, %v5704
      %v5706 = vmul.f32 %v5699, %v5705
      %5707 = vset.pattern.permute.xlu0 3
      %5708 = vperm.xlu0 %5707, %v5679
      %v5709 = vpop.permute.xlu0 %5708
      %v5712 = vcombine.high %v5682, %v5682
      %v5714 = vmul.f32 %v5709, %v5712
      %v5715 = vsub.f32 1.0, %v5714
      %v5716 = vmul.f32 %v5706, %v5715
      %v5717 = vsub.f32 1.0, %v4664
      %v5718 = vmul.f32 %v5677, %v5717
      %v5719 = vadd.f32 %v4664, %v5718
      %v5720 = vmul.f32 %v5719, %v5716
      %v5721 = vmul.f32 %v5720, 0.999999
      %v5722 = vadd.f32 %v5721, 1e-06
      %v5723 = vlaneseq
      %v5724 = vshrl.u32 %v5723, 7
      %v5725 = vsub.s32 0, %v5724
      %v5726 = vrot.slane %v5722, %v5725
      %5728 = vbcast.lane.b32.xlu0 %v5726, 256
      %v5729 = vpop.permute.xlu0 %5728
      %s5731 = sor.u32 256, 8
      %5732 = vbcast.lane.b32.xlu0 %v5726, %s5731
      %v5733 = vpop.permute.xlu0 %5732
      %s5735 = sor.u32 256, 16
      %5736 = vbcast.lane.b32.xlu0 %v5726, %s5735
      %v5737 = vpop.permute.xlu0 %5736
      %s5739 = sor.u32 256, 24
      %5740 = vbcast.lane.b32.xlu0 %v5726, %s5739
      %v5741 = vpop.permute.xlu0 %5740
      %s5743 = sor.u32 256, 32
      %5744 = vbcast.lane.b32.xlu0 %v5726, %s5743
      %v5745 = vpop.permute.xlu0 %5744
      %s5747 = sor.u32 256, 40
      %5748 = vbcast.lane.b32.xlu0 %v5726, %s5747
      %v5749 = vpop.permute.xlu0 %5748
      %s5751 = sor.u32 256, 48
      %5752 = vbcast.lane.b32.xlu0 %v5726, %s5751
      %v5753 = vpop.permute.xlu0 %5752
      %s5755 = sor.u32 256, 56
      %5756 = vbcast.lane.b32.xlu0 %v5726, %s5755
      %v5757 = vpop.permute.xlu0 %5756
      %s5759 = sor.u32 256, 64
      %5760 = vbcast.lane.b32.xlu0 %v5726, %s5759
      %v5761 = vpop.permute.xlu0 %5760
      %s5763 = sor.u32 256, 72
      %5764 = vbcast.lane.b32.xlu0 %v5726, %s5763
      %v5765 = vpop.permute.xlu0 %5764
      %s5767 = sor.u32 256, 80
      %5768 = vbcast.lane.b32.xlu0 %v5726, %s5767
      %v5769 = vpop.permute.xlu0 %5768
      %s5771 = sor.u32 256, 88
      %5772 = vbcast.lane.b32.xlu0 %v5726, %s5771
      %v5773 = vpop.permute.xlu0 %5772
      %s5775 = sor.u32 256, 96
      %5776 = vbcast.lane.b32.xlu0 %v5726, %s5775
      %v5777 = vpop.permute.xlu0 %5776
      %s5779 = sor.u32 256, 104
      %5780 = vbcast.lane.b32.xlu0 %v5726, %s5779
      %v5781 = vpop.permute.xlu0 %5780
      %s5783 = sor.u32 256, 112
      %5784 = vbcast.lane.b32.xlu0 %v5726, %s5783
      %v5785 = vpop.permute.xlu0 %5784
      %s5787 = sor.u32 256, 120
      %5788 = vbcast.lane.b32.xlu0 %v5726, %s5787
      %v5789 = vpop.permute.xlu0 %5788
      %v5790 = vlaneseq
      %v5791 = vshrl.u32 %v5790, 7
      %v5792 = vsub.s32 1, %v5791
      %v5793 = vrot.slane %v5722, %v5792
      %5795 = vbcast.lane.b32.xlu0 %v5793, 256
      %v5796 = vpop.permute.xlu0 %5795
      %s5798 = sor.u32 256, 8
      %5799 = vbcast.lane.b32.xlu0 %v5793, %s5798
      %v5800 = vpop.permute.xlu0 %5799
      %s5802 = sor.u32 256, 16
      %5803 = vbcast.lane.b32.xlu0 %v5793, %s5802
      %v5804 = vpop.permute.xlu0 %5803
      %s5806 = sor.u32 256, 24
      %5807 = vbcast.lane.b32.xlu0 %v5793, %s5806
      %v5808 = vpop.permute.xlu0 %5807
      %s5810 = sor.u32 256, 32
      %5811 = vbcast.lane.b32.xlu0 %v5793, %s5810
      %v5812 = vpop.permute.xlu0 %5811
      %s5814 = sor.u32 256, 40
      %5815 = vbcast.lane.b32.xlu0 %v5793, %s5814
      %v5816 = vpop.permute.xlu0 %5815
      %s5818 = sor.u32 256, 48
      %5819 = vbcast.lane.b32.xlu0 %v5793, %s5818
      %v5820 = vpop.permute.xlu0 %5819
      %s5822 = sor.u32 256, 56
      %5823 = vbcast.lane.b32.xlu0 %v5793, %s5822
      %v5824 = vpop.permute.xlu0 %5823
      %s5826 = sor.u32 256, 64
      %5827 = vbcast.lane.b32.xlu0 %v5793, %s5826
      %v5828 = vpop.permute.xlu0 %5827
      %s5830 = sor.u32 256, 72
      %5831 = vbcast.lane.b32.xlu0 %v5793, %s5830
      %v5832 = vpop.permute.xlu0 %5831
      %s5834 = sor.u32 256, 80
      %5835 = vbcast.lane.b32.xlu0 %v5793, %s5834
      %v5836 = vpop.permute.xlu0 %5835
      %s5838 = sor.u32 256, 88
      %5839 = vbcast.lane.b32.xlu0 %v5793, %s5838
      %v5840 = vpop.permute.xlu0 %5839
      %s5842 = sor.u32 256, 96
      %5843 = vbcast.lane.b32.xlu0 %v5793, %s5842
      %v5844 = vpop.permute.xlu0 %5843
      %s5846 = sor.u32 256, 104
      %5847 = vbcast.lane.b32.xlu0 %v5793, %s5846
      %v5848 = vpop.permute.xlu0 %5847
      %s5850 = sor.u32 256, 112
      %5851 = vbcast.lane.b32.xlu0 %v5793, %s5850
      %v5852 = vpop.permute.xlu0 %5851
      %s5854 = sor.u32 256, 120
      %5855 = vbcast.lane.b32.xlu0 %v5793, %s5854
      %v5856 = vpop.permute.xlu0 %5855
      %v5857 = vlaneseq
      %v5858 = vshrl.u32 %v5857, 7
      %v5859 = vsub.s32 2, %v5858
      %v5860 = vrot.slane %v5722, %v5859
      %5862 = vbcast.lane.b32.xlu0 %v5860, 256
      %v5863 = vpop.permute.xlu0 %5862
      %s5865 = sor.u32 256, 8
      %5866 = vbcast.lane.b32.xlu0 %v5860, %s5865
      %v5867 = vpop.permute.xlu0 %5866
      %s5869 = sor.u32 256, 16
      %5870 = vbcast.lane.b32.xlu0 %v5860, %s5869
      %v5871 = vpop.permute.xlu0 %5870
      %s5873 = sor.u32 256, 24
      %5874 = vbcast.lane.b32.xlu0 %v5860, %s5873
      %v5875 = vpop.permute.xlu0 %5874
      %s5877 = sor.u32 256, 32
      %5878 = vbcast.lane.b32.xlu0 %v5860, %s5877
      %v5879 = vpop.permute.xlu0 %5878
      %s5881 = sor.u32 256, 40
      %5882 = vbcast.lane.b32.xlu0 %v5860, %s5881
      %v5883 = vpop.permute.xlu0 %5882
      %s5885 = sor.u32 256, 48
      %5886 = vbcast.lane.b32.xlu0 %v5860, %s5885
      %v5887 = vpop.permute.xlu0 %5886
      %s5889 = sor.u32 256, 56
      %5890 = vbcast.lane.b32.xlu0 %v5860, %s5889
      %v5891 = vpop.permute.xlu0 %5890
      %s5893 = sor.u32 256, 64
      %5894 = vbcast.lane.b32.xlu0 %v5860, %s5893
      %v5895 = vpop.permute.xlu0 %5894
      %s5897 = sor.u32 256, 72
      %5898 = vbcast.lane.b32.xlu0 %v5860, %s5897
      %v5899 = vpop.permute.xlu0 %5898
      %s5901 = sor.u32 256, 80
      %5902 = vbcast.lane.b32.xlu0 %v5860, %s5901
      %v5903 = vpop.permute.xlu0 %5902
      %s5905 = sor.u32 256, 88
      %5906 = vbcast.lane.b32.xlu0 %v5860, %s5905
      %v5907 = vpop.permute.xlu0 %5906
      %s5909 = sor.u32 256, 96
      %5910 = vbcast.lane.b32.xlu0 %v5860, %s5909
      %v5911 = vpop.permute.xlu0 %5910
      %s5913 = sor.u32 256, 104
      %5914 = vbcast.lane.b32.xlu0 %v5860, %s5913
      %v5915 = vpop.permute.xlu0 %5914
      %s5917 = sor.u32 256, 112
      %5918 = vbcast.lane.b32.xlu0 %v5860, %s5917
      %v5919 = vpop.permute.xlu0 %5918
      %s5921 = sor.u32 256, 120
      %5922 = vbcast.lane.b32.xlu0 %v5860, %s5921
      %v5923 = vpop.permute.xlu0 %5922
      %v5924 = vlaneseq
      %v5925 = vshrl.u32 %v5924, 7
      %v5926 = vsub.s32 3, %v5925
      %v5927 = vrot.slane %v5722, %v5926
      %5929 = vbcast.lane.b32.xlu0 %v5927, 256
      %v5930 = vpop.permute.xlu0 %5929
      %s5932 = sor.u32 256, 8
      %5933 = vbcast.lane.b32.xlu0 %v5927, %s5932
      %v5934 = vpop.permute.xlu0 %5933
      %s5936 = sor.u32 256, 16
      %5937 = vbcast.lane.b32.xlu0 %v5927, %s5936
      %v5938 = vpop.permute.xlu0 %5937
      %s5940 = sor.u32 256, 24
      %5941 = vbcast.lane.b32.xlu0 %v5927, %s5940
      %v5942 = vpop.permute.xlu0 %5941
      %s5944 = sor.u32 256, 32
      %5945 = vbcast.lane.b32.xlu0 %v5927, %s5944
      %v5946 = vpop.permute.xlu0 %5945
      %s5948 = sor.u32 256, 40
      %5949 = vbcast.lane.b32.xlu0 %v5927, %s5948
      %v5950 = vpop.permute.xlu0 %5949
      %s5952 = sor.u32 256, 48
      %5953 = vbcast.lane.b32.xlu0 %v5927, %s5952
      %v5954 = vpop.permute.xlu0 %5953
      %s5956 = sor.u32 256, 56
      %5957 = vbcast.lane.b32.xlu0 %v5927, %s5956
      %v5958 = vpop.permute.xlu0 %5957
      %s5960 = sor.u32 256, 64
      %5961 = vbcast.lane.b32.xlu0 %v5927, %s5960
      %v5962 = vpop.permute.xlu0 %5961
      %s5964 = sor.u32 256, 72
      %5965 = vbcast.lane.b32.xlu0 %v5927, %s5964
      %v5966 = vpop.permute.xlu0 %5965
      %s5968 = sor.u32 256, 80
      %5969 = vbcast.lane.b32.xlu0 %v5927, %s5968
      %v5970 = vpop.permute.xlu0 %5969
      %s5972 = sor.u32 256, 88
      %5973 = vbcast.lane.b32.xlu0 %v5927, %s5972
      %v5974 = vpop.permute.xlu0 %5973
      %s5976 = sor.u32 256, 96
      %5977 = vbcast.lane.b32.xlu0 %v5927, %s5976
      %v5978 = vpop.permute.xlu0 %5977
      %s5980 = sor.u32 256, 104
      %5981 = vbcast.lane.b32.xlu0 %v5927, %s5980
      %v5982 = vpop.permute.xlu0 %5981
      %s5984 = sor.u32 256, 112
      %5985 = vbcast.lane.b32.xlu0 %v5927, %s5984
      %v5986 = vpop.permute.xlu0 %5985
      %s5988 = sor.u32 256, 120
      %5989 = vbcast.lane.b32.xlu0 %v5927, %s5988
      %v5990 = vpop.permute.xlu0 %5989
      %v5993 = vunpack.c.l.s4 1966171168
      %v5994 = vunpack.c.0.s8 %v5993
      %v5995 = vlaneseq
      %v5996 = vshrl.u32 %v5995, 7
      %v5997 = vsub.s32 %v5994, %v5996
      %v5998 = vrot.slane %v5722, %v5997
      %v5999 = vcombine.high %v5998, %v5998
      %v6001 = vunpack.c.l.s4 1966171168
      %v6002 = vunpack.c.0.s8 %v6001
      %v6003 = vlaneseq
      %v6004 = vshrl.u32 %v6003, 7
      %v6005 = vsub.s32 %v6002, %v6004
      %v6006 = vrot.slane %v5998, %v6005
      %v6008 = vunpack.c.l.s4 1966171168
      %v6009 = vunpack.c.0.s8 %v6008
      %v6010 = vlaneseq
      %v6011 = vshrl.u32 %v6010, 7
      %v6012 = vsub.s32 %v6009, %v6011
      %v6013 = vrot.slane %v5999, %v6012
      %v6014 = vcombine.high %v6006, %v6006
      %v6015 = vcombine.high %v6013, %v6013
      %v6016 = vlaneseq
      %v6017 = vshrl.u32 %v6016, 7
      %v6018 = vsub.s32 0, %v6017
      %v6019 = vrot.slane %v6006, %v6018
      %v6020 = vlaneseq
      %v6021 = vshrl.u32 %v6020, 7
      %v6022 = vsub.s32 0, %v6021
      %v6023 = vrot.slane %v6013, %v6022
      %v6024 = vlaneseq
      %v6025 = vshrl.u32 %v6024, 7
      %v6026 = vsub.s32 0, %v6025
      %v6027 = vrot.slane %v6014, %v6026
      %v6028 = vlaneseq
      %v6029 = vshrl.u32 %v6028, 7
      %v6030 = vsub.s32 0, %v6029
      %v6031 = vrot.slane %v6015, %v6030
      %vm6036 = vcmp.lt.f32.partialorder %v5729, %v6019
      %vm6037 = vcmp.lt.f32.partialorder %v5733, %v6019
      %vm6038 = vcmp.lt.f32.partialorder %v5737, %v6019
      %vm6039 = vcmp.lt.f32.partialorder %v5741, %v6019
      %vm6040 = vcmp.lt.f32.partialorder %v5745, %v6019
      %vm6041 = vcmp.lt.f32.partialorder %v5749, %v6019
      %vm6042 = vcmp.lt.f32.partialorder %v5753, %v6019
      %vm6043 = vcmp.lt.f32.partialorder %v5757, %v6019
      %vm6044 = vcmp.lt.f32.partialorder %v5761, %v6019
      %vm6045 = vcmp.lt.f32.partialorder %v5765, %v6019
      %vm6046 = vcmp.lt.f32.partialorder %v5769, %v6019
      %vm6047 = vcmp.lt.f32.partialorder %v5773, %v6019
      %vm6048 = vcmp.lt.f32.partialorder %v5777, %v6019
      %vm6049 = vcmp.lt.f32.partialorder %v5781, %v6019
      %vm6050 = vcmp.lt.f32.partialorder %v5785, %v6019
      %vm6051 = vcmp.lt.f32.partialorder %v5789, %v6019
      %vm6052 = vcmp.lt.f32.partialorder %v5796, %v6023
      %vm6053 = vcmp.lt.f32.partialorder %v5800, %v6023
      %vm6054 = vcmp.lt.f32.partialorder %v5804, %v6023
      %vm6055 = vcmp.lt.f32.partialorder %v5808, %v6023
      %vm6056 = vcmp.lt.f32.partialorder %v5812, %v6023
      %vm6057 = vcmp.lt.f32.partialorder %v5816, %v6023
      %vm6058 = vcmp.lt.f32.partialorder %v5820, %v6023
      %vm6059 = vcmp.lt.f32.partialorder %v5824, %v6023
      %vm6060 = vcmp.lt.f32.partialorder %v5828, %v6023
      %vm6061 = vcmp.lt.f32.partialorder %v5832, %v6023
      %vm6062 = vcmp.lt.f32.partialorder %v5836, %v6023
      %vm6063 = vcmp.lt.f32.partialorder %v5840, %v6023
      %vm6064 = vcmp.lt.f32.partialorder %v5844, %v6023
      %vm6065 = vcmp.lt.f32.partialorder %v5848, %v6023
      %vm6066 = vcmp.lt.f32.partialorder %v5852, %v6023
      %vm6067 = vcmp.lt.f32.partialorder %v5856, %v6023
      %vm6068 = vcmp.lt.f32.partialorder %v5863, %v6027
      %vm6069 = vcmp.lt.f32.partialorder %v5867, %v6027
      %vm6070 = vcmp.lt.f32.partialorder %v5871, %v6027
      %vm6071 = vcmp.lt.f32.partialorder %v5875, %v6027
      %vm6072 = vcmp.lt.f32.partialorder %v5879, %v6027
      %vm6073 = vcmp.lt.f32.partialorder %v5883, %v6027
      %vm6074 = vcmp.lt.f32.partialorder %v5887, %v6027
      %vm6075 = vcmp.lt.f32.partialorder %v5891, %v6027
      %vm6076 = vcmp.lt.f32.partialorder %v5895, %v6027
      %vm6077 = vcmp.lt.f32.partialorder %v5899, %v6027
      %vm6078 = vcmp.lt.f32.partialorder %v5903, %v6027
      %vm6079 = vcmp.lt.f32.partialorder %v5907, %v6027
      %vm6080 = vcmp.lt.f32.partialorder %v5911, %v6027
      %vm6081 = vcmp.lt.f32.partialorder %v5915, %v6027
      %vm6082 = vcmp.lt.f32.partialorder %v5919, %v6027
      %vm6083 = vcmp.lt.f32.partialorder %v5923, %v6027
      %vm6084 = vcmp.lt.f32.partialorder %v5930, %v6031
      %vm6085 = vcmp.lt.f32.partialorder %v5934, %v6031
      %vm6086 = vcmp.lt.f32.partialorder %v5938, %v6031
      %vm6087 = vcmp.lt.f32.partialorder %v5942, %v6031
      %vm6088 = vcmp.lt.f32.partialorder %v5946, %v6031
      %vm6089 = vcmp.lt.f32.partialorder %v5950, %v6031
      %vm6090 = vcmp.lt.f32.partialorder %v5954, %v6031
      %vm6091 = vcmp.lt.f32.partialorder %v5958, %v6031
      %vm6092 = vcmp.lt.f32.partialorder %v5962, %v6031
      %vm6093 = vcmp.lt.f32.partialorder %v5966, %v6031
      %vm6094 = vcmp.lt.f32.partialorder %v5970, %v6031
      %vm6095 = vcmp.lt.f32.partialorder %v5974, %v6031
      %vm6096 = vcmp.lt.f32.partialorder %v5978, %v6031
      %vm6097 = vcmp.lt.f32.partialorder %v5982, %v6031
      %vm6098 = vcmp.lt.f32.partialorder %v5986, %v6031
      %vm6099 = vcmp.lt.f32.partialorder %v5990, %v6031
      %vm6100 = vcmp.eq.f32.partialorder %v5729, %v6019
      %vm6101 = vcmp.eq.f32.partialorder %v5733, %v6019
      %vm6102 = vcmp.eq.f32.partialorder %v5737, %v6019
      %vm6103 = vcmp.eq.f32.partialorder %v5741, %v6019
      %vm6104 = vcmp.eq.f32.partialorder %v5745, %v6019
      %vm6105 = vcmp.eq.f32.partialorder %v5749, %v6019
      %vm6106 = vcmp.eq.f32.partialorder %v5753, %v6019
      %vm6107 = vcmp.eq.f32.partialorder %v5757, %v6019
      %vm6108 = vcmp.eq.f32.partialorder %v5761, %v6019
      %vm6109 = vcmp.eq.f32.partialorder %v5765, %v6019
      %vm6110 = vcmp.eq.f32.partialorder %v5769, %v6019
      %vm6111 = vcmp.eq.f32.partialorder %v5773, %v6019
      %vm6112 = vcmp.eq.f32.partialorder %v5777, %v6019
      %vm6113 = vcmp.eq.f32.partialorder %v5781, %v6019
      %vm6114 = vcmp.eq.f32.partialorder %v5785, %v6019
      %vm6115 = vcmp.eq.f32.partialorder %v5789, %v6019
      %vm6116 = vcmp.eq.f32.partialorder %v5796, %v6023
      %vm6117 = vcmp.eq.f32.partialorder %v5800, %v6023
      %vm6118 = vcmp.eq.f32.partialorder %v5804, %v6023
      %vm6119 = vcmp.eq.f32.partialorder %v5808, %v6023
      %vm6120 = vcmp.eq.f32.partialorder %v5812, %v6023
      %vm6121 = vcmp.eq.f32.partialorder %v5816, %v6023
      %vm6122 = vcmp.eq.f32.partialorder %v5820, %v6023
      %vm6123 = vcmp.eq.f32.partialorder %v5824, %v6023
      %vm6124 = vcmp.eq.f32.partialorder %v5828, %v6023
      %vm6125 = vcmp.eq.f32.partialorder %v5832, %v6023
      %vm6126 = vcmp.eq.f32.partialorder %v5836, %v6023
      %vm6127 = vcmp.eq.f32.partialorder %v5840, %v6023
      %vm6128 = vcmp.eq.f32.partialorder %v5844, %v6023
      %vm6129 = vcmp.eq.f32.partialorder %v5848, %v6023
      %vm6130 = vcmp.eq.f32.partialorder %v5852, %v6023
      %vm6131 = vcmp.eq.f32.partialorder %v5856, %v6023
      %vm6132 = vcmp.eq.f32.partialorder %v5863, %v6027
      %vm6133 = vcmp.eq.f32.partialorder %v5867, %v6027
      %vm6134 = vcmp.eq.f32.partialorder %v5871, %v6027
      %vm6135 = vcmp.eq.f32.partialorder %v5875, %v6027
      %vm6136 = vcmp.eq.f32.partialorder %v5879, %v6027
      %vm6137 = vcmp.eq.f32.partialorder %v5883, %v6027
      %vm6138 = vcmp.eq.f32.partialorder %v5887, %v6027
      %vm6139 = vcmp.eq.f32.partialorder %v5891, %v6027
      %vm6140 = vcmp.eq.f32.partialorder %v5895, %v6027
      %vm6141 = vcmp.eq.f32.partialorder %v5899, %v6027
      %vm6142 = vcmp.eq.f32.partialorder %v5903, %v6027
      %vm6143 = vcmp.eq.f32.partialorder %v5907, %v6027
      %vm6144 = vcmp.eq.f32.partialorder %v5911, %v6027
      %vm6145 = vcmp.eq.f32.partialorder %v5915, %v6027
      %vm6146 = vcmp.eq.f32.partialorder %v5919, %v6027
      %vm6147 = vcmp.eq.f32.partialorder %v5923, %v6027
      %vm6148 = vcmp.eq.f32.partialorder %v5930, %v6031
      %vm6149 = vcmp.eq.f32.partialorder %v5934, %v6031
      %vm6150 = vcmp.eq.f32.partialorder %v5938, %v6031
      %vm6151 = vcmp.eq.f32.partialorder %v5942, %v6031
      %vm6152 = vcmp.eq.f32.partialorder %v5946, %v6031
      %vm6153 = vcmp.eq.f32.partialorder %v5950, %v6031
      %vm6154 = vcmp.eq.f32.partialorder %v5954, %v6031
      %vm6155 = vcmp.eq.f32.partialorder %v5958, %v6031
      %vm6156 = vcmp.eq.f32.partialorder %v5962, %v6031
      %vm6157 = vcmp.eq.f32.partialorder %v5966, %v6031
      %vm6158 = vcmp.eq.f32.partialorder %v5970, %v6031
      %vm6159 = vcmp.eq.f32.partialorder %v5974, %v6031
      %vm6160 = vcmp.eq.f32.partialorder %v5978, %v6031
      %vm6161 = vcmp.eq.f32.partialorder %v5982, %v6031
      %vm6162 = vcmp.eq.f32.partialorder %v5986, %v6031
      %vm6163 = vcmp.eq.f32.partialorder %v5990, %v6031
      %vm6164 = vmand %vm6100, %vm867
      %vm6165 = vmand %vm6101, %vm868
      %vm6166 = vmand %vm6102, %vm869
      %vm6167 = vmand %vm6103, %vm870
      %vm6168 = vmand %vm6104, %vm871
      %vm6169 = vmand %vm6105, %vm872
      %vm6170 = vmand %vm6106, %vm873
      %vm6171 = vmand %vm6107, %vm874
      %vm6172 = vmand %vm6108, %vm875
      %vm6173 = vmand %vm6109, %vm876
      %vm6174 = vmand %vm6110, %vm877
      %vm6175 = vmand %vm6111, %vm878
      %vm6176 = vmand %vm6112, %vm879
      %vm6177 = vmand %vm6113, %vm880
      %vm6178 = vmand %vm6114, %vm881
      %vm6179 = vmand %vm6115, %vm882
      %vm6180 = vmand %vm6116, %vm867
      %vm6181 = vmand %vm6117, %vm868
      %vm6182 = vmand %vm6118, %vm869
      %vm6183 = vmand %vm6119, %vm870
      %vm6184 = vmand %vm6120, %vm871
      %vm6185 = vmand %vm6121, %vm872
      %vm6186 = vmand %vm6122, %vm873
      %vm6187 = vmand %vm6123, %vm874
      %vm6188 = vmand %vm6124, %vm875
      %vm6189 = vmand %vm6125, %vm876
      %vm6190 = vmand %vm6126, %vm877
      %vm6191 = vmand %vm6127, %vm878
      %vm6192 = vmand %vm6128, %vm879
      %vm6193 = vmand %vm6129, %vm880
      %vm6194 = vmand %vm6130, %vm881
      %vm6195 = vmand %vm6131, %vm882
      %vm6196 = vmand %vm6132, %vm867
      %vm6197 = vmand %vm6133, %vm868
      %vm6198 = vmand %vm6134, %vm869
      %vm6199 = vmand %vm6135, %vm870
      %vm6200 = vmand %vm6136, %vm871
      %vm6201 = vmand %vm6137, %vm872
      %vm6202 = vmand %vm6138, %vm873
      %vm6203 = vmand %vm6139, %vm874
      %vm6204 = vmand %vm6140, %vm875
      %vm6205 = vmand %vm6141, %vm876
      %vm6206 = vmand %vm6142, %vm877
      %vm6207 = vmand %vm6143, %vm878
      %vm6208 = vmand %vm6144, %vm879
      %vm6209 = vmand %vm6145, %vm880
      %vm6210 = vmand %vm6146, %vm881
      %vm6211 = vmand %vm6147, %vm882
      %vm6212 = vmand %vm6148, %vm867
      %vm6213 = vmand %vm6149, %vm868
      %vm6214 = vmand %vm6150, %vm869
      %vm6215 = vmand %vm6151, %vm870
      %vm6216 = vmand %vm6152, %vm871
      %vm6217 = vmand %vm6153, %vm872
      %vm6218 = vmand %vm6154, %vm873
      %vm6219 = vmand %vm6155, %vm874
      %vm6220 = vmand %vm6156, %vm875
      %vm6221 = vmand %vm6157, %vm876
      %vm6222 = vmand %vm6158, %vm877
      %vm6223 = vmand %vm6159, %vm878
      %vm6224 = vmand %vm6160, %vm879
      %vm6225 = vmand %vm6161, %vm880
      %vm6226 = vmand %vm6162, %vm881
      %vm6227 = vmand %vm6163, %vm882
      %vm6228 = vmor %vm6036, %vm6164
      %vm6229 = vmor %vm6037, %vm6165
      %vm6230 = vmor %vm6038, %vm6166
      %vm6231 = vmor %vm6039, %vm6167
      %vm6232 = vmor %vm6040, %vm6168
      %vm6233 = vmor %vm6041, %vm6169
      %vm6234 = vmor %vm6042, %vm6170
      %vm6235 = vmor %vm6043, %vm6171
      %vm6236 = vmor %vm6044, %vm6172
      %vm6237 = vmor %vm6045, %vm6173
      %vm6238 = vmor %vm6046, %vm6174
      %vm6239 = vmor %vm6047, %vm6175
      %vm6240 = vmor %vm6048, %vm6176
      %vm6241 = vmor %vm6049, %vm6177
      %vm6242 = vmor %vm6050, %vm6178
      %vm6243 = vmor %vm6051, %vm6179
      %vm6244 = vmor %vm6052, %vm6180
      %vm6245 = vmor %vm6053, %vm6181
      %vm6246 = vmor %vm6054, %vm6182
      %vm6247 = vmor %vm6055, %vm6183
      %vm6248 = vmor %vm6056, %vm6184
      %vm6249 = vmor %vm6057, %vm6185
      %vm6250 = vmor %vm6058, %vm6186
      %vm6251 = vmor %vm6059, %vm6187
      %vm6252 = vmor %vm6060, %vm6188
      %vm6253 = vmor %vm6061, %vm6189
      %vm6254 = vmor %vm6062, %vm6190
      %vm6255 = vmor %vm6063, %vm6191
      %vm6256 = vmor %vm6064, %vm6192
      %vm6257 = vmor %vm6065, %vm6193
      %vm6258 = vmor %vm6066, %vm6194
      %vm6259 = vmor %vm6067, %vm6195
      %vm6260 = vmor %vm6068, %vm6196
      %vm6261 = vmor %vm6069, %vm6197
      %vm6262 = vmor %vm6070, %vm6198
      %vm6263 = vmor %vm6071, %vm6199
      %vm6264 = vmor %vm6072, %vm6200
      %vm6265 = vmor %vm6073, %vm6201
      %vm6266 = vmor %vm6074, %vm6202
      %vm6267 = vmor %vm6075, %vm6203
      %vm6268 = vmor %vm6076, %vm6204
      %vm6269 = vmor %vm6077, %vm6205
      %vm6270 = vmor %vm6078, %vm6206
      %vm6271 = vmor %vm6079, %vm6207
      %vm6272 = vmor %vm6080, %vm6208
      %vm6273 = vmor %vm6081, %vm6209
      %vm6274 = vmor %vm6082, %vm6210
      %vm6275 = vmor %vm6083, %vm6211
      %vm6276 = vmor %vm6084, %vm6212
      %vm6277 = vmor %vm6085, %vm6213
      %vm6278 = vmor %vm6086, %vm6214
      %vm6279 = vmor %vm6087, %vm6215
      %vm6280 = vmor %vm6088, %vm6216
      %vm6281 = vmor %vm6089, %vm6217
      %vm6282 = vmor %vm6090, %vm6218
      %vm6283 = vmor %vm6091, %vm6219
      %vm6284 = vmor %vm6092, %vm6220
      %vm6285 = vmor %vm6093, %vm6221
      %vm6286 = vmor %vm6094, %vm6222
      %vm6287 = vmor %vm6095, %vm6223
      %vm6288 = vmor %vm6096, %vm6224
      %vm6289 = vmor %vm6097, %vm6225
      %vm6290 = vmor %vm6098, %vm6226
      %vm6291 = vmor %vm6099, %vm6227
      %v6292 = vlog2.pop %v5722
      %v6293 = vmul.f32 %v6292, 0.6931472
      %v6294 = vlaneseq
      %v6295 = vshrl.u32 %v6294, 7
      %v6296 = vsub.s32 0, %v6295
      %v6297 = vrot.slane %v6293, %v6296
      %6299 = vbcast.lane.b32.xlu0 %v6297, 256
      %v6300 = vpop.permute.xlu0 %6299
      %s6302 = sor.u32 256, 8
      %6303 = vbcast.lane.b32.xlu0 %v6297, %s6302
      %v6304 = vpop.permute.xlu0 %6303
      %s6306 = sor.u32 256, 16
      %6307 = vbcast.lane.b32.xlu0 %v6297, %s6306
      %v6308 = vpop.permute.xlu0 %6307
      %s6310 = sor.u32 256, 24
      %6311 = vbcast.lane.b32.xlu0 %v6297, %s6310
      %v6312 = vpop.permute.xlu0 %6311
      %s6314 = sor.u32 256, 32
      %6315 = vbcast.lane.b32.xlu0 %v6297, %s6314
      %v6316 = vpop.permute.xlu0 %6315
      %s6318 = sor.u32 256, 40
      %6319 = vbcast.lane.b32.xlu0 %v6297, %s6318
      %v6320 = vpop.permute.xlu0 %6319
      %s6322 = sor.u32 256, 48
      %6323 = vbcast.lane.b32.xlu0 %v6297, %s6322
      %v6324 = vpop.permute.xlu0 %6323
      %s6326 = sor.u32 256, 56
      %6327 = vbcast.lane.b32.xlu0 %v6297, %s6326
      %v6328 = vpop.permute.xlu0 %6327
      %s6330 = sor.u32 256, 64
      %6331 = vbcast.lane.b32.xlu0 %v6297, %s6330
      %v6332 = vpop.permute.xlu0 %6331
      %s6334 = sor.u32 256, 72
      %6335 = vbcast.lane.b32.xlu0 %v6297, %s6334
      %v6336 = vpop.permute.xlu0 %6335
      %s6338 = sor.u32 256, 80
      %6339 = vbcast.lane.b32.xlu0 %v6297, %s6338
      %v6340 = vpop.permute.xlu0 %6339
      %s6342 = sor.u32 256, 88
      %6343 = vbcast.lane.b32.xlu0 %v6297, %s6342
      %v6344 = vpop.permute.xlu0 %6343
      %s6346 = sor.u32 256, 96
      %6347 = vbcast.lane.b32.xlu0 %v6297, %s6346
      %v6348 = vpop.permute.xlu0 %6347
      %s6350 = sor.u32 256, 104
      %6351 = vbcast.lane.b32.xlu0 %v6297, %s6350
      %v6352 = vpop.permute.xlu0 %6351
      %s6354 = sor.u32 256, 112
      %6355 = vbcast.lane.b32.xlu0 %v6297, %s6354
      %v6356 = vpop.permute.xlu0 %6355
      %s6358 = sor.u32 256, 120
      %6359 = vbcast.lane.b32.xlu0 %v6297, %s6358
      %v6360 = vpop.permute.xlu0 %6359
      %v6361 = vlaneseq
      %v6362 = vshrl.u32 %v6361, 7
      %v6363 = vsub.s32 1, %v6362
      %v6364 = vrot.slane %v6293, %v6363
      %6366 = vbcast.lane.b32.xlu0 %v6364, 256
      %v6367 = vpop.permute.xlu0 %6366
      %s6369 = sor.u32 256, 8
      %6370 = vbcast.lane.b32.xlu0 %v6364, %s6369
      %v6371 = vpop.permute.xlu0 %6370
      %s6373 = sor.u32 256, 16
      %6374 = vbcast.lane.b32.xlu0 %v6364, %s6373
      %v6375 = vpop.permute.xlu0 %6374
      %s6377 = sor.u32 256, 24
      %6378 = vbcast.lane.b32.xlu0 %v6364, %s6377
      %v6379 = vpop.permute.xlu0 %6378
      %s6381 = sor.u32 256, 32
      %6382 = vbcast.lane.b32.xlu0 %v6364, %s6381
      %v6383 = vpop.permute.xlu0 %6382
      %s6385 = sor.u32 256, 40
      %6386 = vbcast.lane.b32.xlu0 %v6364, %s6385
      %v6387 = vpop.permute.xlu0 %6386
      %s6389 = sor.u32 256, 48
      %6390 = vbcast.lane.b32.xlu0 %v6364, %s6389
      %v6391 = vpop.permute.xlu0 %6390
      %s6393 = sor.u32 256, 56
      %6394 = vbcast.lane.b32.xlu0 %v6364, %s6393
      %v6395 = vpop.permute.xlu0 %6394
      %s6397 = sor.u32 256, 64
      %6398 = vbcast.lane.b32.xlu0 %v6364, %s6397
      %v6399 = vpop.permute.xlu0 %6398
      %s6401 = sor.u32 256, 72
      %6402 = vbcast.lane.b32.xlu0 %v6364, %s6401
      %v6403 = vpop.permute.xlu0 %6402
      %s6405 = sor.u32 256, 80
      %6406 = vbcast.lane.b32.xlu0 %v6364, %s6405
      %v6407 = vpop.permute.xlu0 %6406
      %s6409 = sor.u32 256, 88
      %6410 = vbcast.lane.b32.xlu0 %v6364, %s6409
      %v6411 = vpop.permute.xlu0 %6410
      %s6413 = sor.u32 256, 96
      %6414 = vbcast.lane.b32.xlu0 %v6364, %s6413
      %v6415 = vpop.permute.xlu0 %6414
      %s6417 = sor.u32 256, 104
      %6418 = vbcast.lane.b32.xlu0 %v6364, %s6417
      %v6419 = vpop.permute.xlu0 %6418
      %s6421 = sor.u32 256, 112
      %6422 = vbcast.lane.b32.xlu0 %v6364, %s6421
      %v6423 = vpop.permute.xlu0 %6422
      %s6425 = sor.u32 256, 120
      %6426 = vbcast.lane.b32.xlu0 %v6364, %s6425
      %v6427 = vpop.permute.xlu0 %6426
      %v6428 = vlaneseq
      %v6429 = vshrl.u32 %v6428, 7
      %v6430 = vsub.s32 2, %v6429
      %v6431 = vrot.slane %v6293, %v6430
      %6433 = vbcast.lane.b32.xlu0 %v6431, 256
      %v6434 = vpop.permute.xlu0 %6433
      %s6436 = sor.u32 256, 8
      %6437 = vbcast.lane.b32.xlu0 %v6431, %s6436
      %v6438 = vpop.permute.xlu0 %6437
      %s6440 = sor.u32 256, 16
      %6441 = vbcast.lane.b32.xlu0 %v6431, %s6440
      %v6442 = vpop.permute.xlu0 %6441
      %s6444 = sor.u32 256, 24
      %6445 = vbcast.lane.b32.xlu0 %v6431, %s6444
      %v6446 = vpop.permute.xlu0 %6445
      %s6448 = sor.u32 256, 32
      %6449 = vbcast.lane.b32.xlu0 %v6431, %s6448
      %v6450 = vpop.permute.xlu0 %6449
      %s6452 = sor.u32 256, 40
      %6453 = vbcast.lane.b32.xlu0 %v6431, %s6452
      %v6454 = vpop.permute.xlu0 %6453
      %s6456 = sor.u32 256, 48
      %6457 = vbcast.lane.b32.xlu0 %v6431, %s6456
      %v6458 = vpop.permute.xlu0 %6457
      %s6460 = sor.u32 256, 56
      %6461 = vbcast.lane.b32.xlu0 %v6431, %s6460
      %v6462 = vpop.permute.xlu0 %6461
      %s6464 = sor.u32 256, 64
      %6465 = vbcast.lane.b32.xlu0 %v6431, %s6464
      %v6466 = vpop.permute.xlu0 %6465
      %s6468 = sor.u32 256, 72
      %6469 = vbcast.lane.b32.xlu0 %v6431, %s6468
      %v6470 = vpop.permute.xlu0 %6469
      %s6472 = sor.u32 256, 80
      %6473 = vbcast.lane.b32.xlu0 %v6431, %s6472
      %v6474 = vpop.permute.xlu0 %6473
      %s6476 = sor.u32 256, 88
      %6477 = vbcast.lane.b32.xlu0 %v6431, %s6476
      %v6478 = vpop.permute.xlu0 %6477
      %s6480 = sor.u32 256, 96
      %6481 = vbcast.lane.b32.xlu0 %v6431, %s6480
      %v6482 = vpop.permute.xlu0 %6481
      %s6484 = sor.u32 256, 104
      %6485 = vbcast.lane.b32.xlu0 %v6431, %s6484
      %v6486 = vpop.permute.xlu0 %6485
      %s6488 = sor.u32 256, 112
      %6489 = vbcast.lane.b32.xlu0 %v6431, %s6488
      %v6490 = vpop.permute.xlu0 %6489
      %s6492 = sor.u32 256, 120
      %6493 = vbcast.lane.b32.xlu0 %v6431, %s6492
      %v6494 = vpop.permute.xlu0 %6493
      %v6495 = vlaneseq
      %v6496 = vshrl.u32 %v6495, 7
      %v6497 = vsub.s32 3, %v6496
      %v6498 = vrot.slane %v6293, %v6497
      %6500 = vbcast.lane.b32.xlu0 %v6498, 256
      %v6501 = vpop.permute.xlu0 %6500
      %s6503 = sor.u32 256, 8
      %6504 = vbcast.lane.b32.xlu0 %v6498, %s6503
      %v6505 = vpop.permute.xlu0 %6504
      %s6507 = sor.u32 256, 16
      %6508 = vbcast.lane.b32.xlu0 %v6498, %s6507
      %v6509 = vpop.permute.xlu0 %6508
      %s6511 = sor.u32 256, 24
      %6512 = vbcast.lane.b32.xlu0 %v6498, %s6511
      %v6513 = vpop.permute.xlu0 %6512
      %s6515 = sor.u32 256, 32
      %6516 = vbcast.lane.b32.xlu0 %v6498, %s6515
      %v6517 = vpop.permute.xlu0 %6516
      %s6519 = sor.u32 256, 40
      %6520 = vbcast.lane.b32.xlu0 %v6498, %s6519
      %v6521 = vpop.permute.xlu0 %6520
      %s6523 = sor.u32 256, 48
      %6524 = vbcast.lane.b32.xlu0 %v6498, %s6523
      %v6525 = vpop.permute.xlu0 %6524
      %s6527 = sor.u32 256, 56
      %6528 = vbcast.lane.b32.xlu0 %v6498, %s6527
      %v6529 = vpop.permute.xlu0 %6528
      %s6531 = sor.u32 256, 64
      %6532 = vbcast.lane.b32.xlu0 %v6498, %s6531
      %v6533 = vpop.permute.xlu0 %6532
      %s6535 = sor.u32 256, 72
      %6536 = vbcast.lane.b32.xlu0 %v6498, %s6535
      %v6537 = vpop.permute.xlu0 %6536
      %s6539 = sor.u32 256, 80
      %6540 = vbcast.lane.b32.xlu0 %v6498, %s6539
      %v6541 = vpop.permute.xlu0 %6540
      %s6543 = sor.u32 256, 88
      %6544 = vbcast.lane.b32.xlu0 %v6498, %s6543
      %v6545 = vpop.permute.xlu0 %6544
      %s6547 = sor.u32 256, 96
      %6548 = vbcast.lane.b32.xlu0 %v6498, %s6547
      %v6549 = vpop.permute.xlu0 %6548
      %s6551 = sor.u32 256, 104
      %6552 = vbcast.lane.b32.xlu0 %v6498, %s6551
      %v6553 = vpop.permute.xlu0 %6552
      %s6555 = sor.u32 256, 112
      %6556 = vbcast.lane.b32.xlu0 %v6498, %s6555
      %v6557 = vpop.permute.xlu0 %6556
      %s6559 = sor.u32 256, 120
      %6560 = vbcast.lane.b32.xlu0 %v6498, %s6559
      %v6561 = vpop.permute.xlu0 %6560
      %v6562 = vsel %vm6228, %v6300, 0.0
      %v6563 = vsel %vm6229, %v6304, 0.0
      %v6564 = vsel %vm6230, %v6308, 0.0
      %v6565 = vsel %vm6231, %v6312, 0.0
      %v6566 = vsel %vm6232, %v6316, 0.0
      %v6567 = vsel %vm6233, %v6320, 0.0
      %v6568 = vsel %vm6234, %v6324, 0.0
      %v6569 = vsel %vm6235, %v6328, 0.0
      %v6570 = vsel %vm6236, %v6332, 0.0
      %v6571 = vsel %vm6237, %v6336, 0.0
      %v6572 = vsel %vm6238, %v6340, 0.0
      %v6573 = vsel %vm6239, %v6344, 0.0
      %v6574 = vsel %vm6240, %v6348, 0.0
      %v6575 = vsel %vm6241, %v6352, 0.0
      %v6576 = vsel %vm6242, %v6356, 0.0
      %v6577 = vsel %vm6243, %v6360, 0.0
      %v6578 = vsel %vm6244, %v6367, 0.0
      %v6579 = vsel %vm6245, %v6371, 0.0
      %v6580 = vsel %vm6246, %v6375, 0.0
      %v6581 = vsel %vm6247, %v6379, 0.0
      %v6582 = vsel %vm6248, %v6383, 0.0
      %v6583 = vsel %vm6249, %v6387, 0.0
      %v6584 = vsel %vm6250, %v6391, 0.0
      %v6585 = vsel %vm6251, %v6395, 0.0
      %v6586 = vsel %vm6252, %v6399, 0.0
      %v6587 = vsel %vm6253, %v6403, 0.0
      %v6588 = vsel %vm6254, %v6407, 0.0
      %v6589 = vsel %vm6255, %v6411, 0.0
      %v6590 = vsel %vm6256, %v6415, 0.0
      %v6591 = vsel %vm6257, %v6419, 0.0
      %v6592 = vsel %vm6258, %v6423, 0.0
      %v6593 = vsel %vm6259, %v6427, 0.0
      %v6594 = vsel %vm6260, %v6434, 0.0
      %v6595 = vsel %vm6261, %v6438, 0.0
      %v6596 = vsel %vm6262, %v6442, 0.0
      %v6597 = vsel %vm6263, %v6446, 0.0
      %v6598 = vsel %vm6264, %v6450, 0.0
      %v6599 = vsel %vm6265, %v6454, 0.0
      %v6600 = vsel %vm6266, %v6458, 0.0
      %v6601 = vsel %vm6267, %v6462, 0.0
      %v6602 = vsel %vm6268, %v6466, 0.0
      %v6603 = vsel %vm6269, %v6470, 0.0
      %v6604 = vsel %vm6270, %v6474, 0.0
      %v6605 = vsel %vm6271, %v6478, 0.0
      %v6606 = vsel %vm6272, %v6482, 0.0
      %v6607 = vsel %vm6273, %v6486, 0.0
      %v6608 = vsel %vm6274, %v6490, 0.0
      %v6609 = vsel %vm6275, %v6494, 0.0
      %v6610 = vsel %vm6276, %v6501, 0.0
      %v6611 = vsel %vm6277, %v6505, 0.0
      %v6612 = vsel %vm6278, %v6509, 0.0
      %v6613 = vsel %vm6279, %v6513, 0.0
      %v6614 = vsel %vm6280, %v6517, 0.0
      %v6615 = vsel %vm6281, %v6521, 0.0
      %v6616 = vsel %vm6282, %v6525, 0.0
      %v6617 = vsel %vm6283, %v6529, 0.0
      %v6618 = vsel %vm6284, %v6533, 0.0
      %v6619 = vsel %vm6285, %v6537, 0.0
      %v6620 = vsel %vm6286, %v6541, 0.0
      %v6621 = vsel %vm6287, %v6545, 0.0
      %v6622 = vsel %vm6288, %v6549, 0.0
      %v6623 = vsel %vm6289, %v6553, 0.0
      %v6624 = vsel %vm6290, %v6557, 0.0
      %v6625 = vsel %vm6291, %v6561, 0.0
      %v6626 = vadd.f32 %v6562, %v6563
      %v6627 = vadd.f32 %v6626, %v6564
      %v6628 = vadd.f32 %v6627, %v6565
      %v6629 = vadd.f32 %v6628, %v6566
      %v6630 = vadd.f32 %v6629, %v6567
      %v6631 = vadd.f32 %v6630, %v6568
      %v6632 = vadd.f32 %v6631, %v6569
      %v6633 = vadd.f32 %v6632, %v6570
      %v6634 = vadd.f32 %v6633, %v6571
      %v6635 = vadd.f32 %v6634, %v6572
      %v6636 = vadd.f32 %v6635, %v6573
      %v6637 = vadd.f32 %v6636, %v6574
      %v6638 = vadd.f32 %v6637, %v6575
      %v6639 = vadd.f32 %v6638, %v6576
      %v6640 = vadd.f32 %v6639, %v6577
      %v6641 = vrot.slane %v6640, 4
      %v6642 = vadd.f32 %v6640, %v6641
      %v6643 = vrot.slane %v6642, 2
      %v6644 = vadd.f32 %v6642, %v6643
      %v6645 = vrot.slane %v6644, 1
      %v6646 = vadd.f32 %v6644, %v6645
      %v6647 = vadd.f32 %v6578, %v6579
      %v6648 = vadd.f32 %v6647, %v6580
      %v6649 = vadd.f32 %v6648, %v6581
      %v6650 = vadd.f32 %v6649, %v6582
      %v6651 = vadd.f32 %v6650, %v6583
      %v6652 = vadd.f32 %v6651, %v6584
      %v6653 = vadd.f32 %v6652, %v6585
      %v6654 = vadd.f32 %v6653, %v6586
      %v6655 = vadd.f32 %v6654, %v6587
      %v6656 = vadd.f32 %v6655, %v6588
      %v6657 = vadd.f32 %v6656, %v6589
      %v6658 = vadd.f32 %v6657, %v6590
      %v6659 = vadd.f32 %v6658, %v6591
      %v6660 = vadd.f32 %v6659, %v6592
      %v6661 = vadd.f32 %v6660, %v6593
      %v6662 = vrot.slane %v6661, 4
      %v6663 = vadd.f32 %v6661, %v6662
      %v6664 = vrot.slane %v6663, 2
      %v6665 = vadd.f32 %v6663, %v6664
      %v6666 = vrot.slane %v6665, 1
      %v6667 = vadd.f32 %v6665, %v6666
      %v6668 = vadd.f32 %v6594, %v6595
      %v6669 = vadd.f32 %v6668, %v6596
      %v6670 = vadd.f32 %v6669, %v6597
      %v6671 = vadd.f32 %v6670, %v6598
      %v6672 = vadd.f32 %v6671, %v6599
      %v6673 = vadd.f32 %v6672, %v6600
      %v6674 = vadd.f32 %v6673, %v6601
      %v6675 = vadd.f32 %v6674, %v6602
      %v6676 = vadd.f32 %v6675, %v6603
      %v6677 = vadd.f32 %v6676, %v6604
      %v6678 = vadd.f32 %v6677, %v6605
      %v6679 = vadd.f32 %v6678, %v6606
      %v6680 = vadd.f32 %v6679, %v6607
      %v6681 = vadd.f32 %v6680, %v6608
      %v6682 = vadd.f32 %v6681, %v6609
      %v6683 = vrot.slane %v6682, 4
      %v6684 = vadd.f32 %v6682, %v6683
      %v6685 = vrot.slane %v6684, 2
      %v6686 = vadd.f32 %v6684, %v6685
      %v6687 = vrot.slane %v6686, 1
      %v6688 = vadd.f32 %v6686, %v6687
      %v6689 = vadd.f32 %v6610, %v6611
      %v6690 = vadd.f32 %v6689, %v6612
      %v6691 = vadd.f32 %v6690, %v6613
      %v6692 = vadd.f32 %v6691, %v6614
      %v6693 = vadd.f32 %v6692, %v6615
      %v6694 = vadd.f32 %v6693, %v6616
      %v6695 = vadd.f32 %v6694, %v6617
      %v6696 = vadd.f32 %v6695, %v6618
      %v6697 = vadd.f32 %v6696, %v6619
      %v6698 = vadd.f32 %v6697, %v6620
      %v6699 = vadd.f32 %v6698, %v6621
      %v6700 = vadd.f32 %v6699, %v6622
      %v6701 = vadd.f32 %v6700, %v6623
      %v6702 = vadd.f32 %v6701, %v6624
      %v6703 = vadd.f32 %v6702, %v6625
      %v6704 = vrot.slane %v6703, 4
      %v6705 = vadd.f32 %v6703, %v6704
      %v6706 = vrot.slane %v6705, 2
      %v6707 = vadd.f32 %v6705, %v6706
      %v6708 = vrot.slane %v6707, 1
      %v6709 = vadd.f32 %v6707, %v6708
      %v6710 = vmul.f32 %v6646, 1.442695
      %v6711 = vpow.pop %v6710
      %v6712 = vmul.f32 %v6667, 1.442695
      %v6713 = vpow.pop %v6712
      %v6714 = vmul.f32 %v6688, 1.442695
      %v6715 = vpow.pop %v6714
      %v6716 = vmul.f32 %v6709, 1.442695
      %v6717 = vpow.pop %v6716
      %v6718 = vsub.f32 1.0, %v5722
      %v6723 = vsel %vm1442, %v6713, %v6711
      %v6724 = vsel %vm1444, %v6715, %v6723
      %v6725 = vsel %vm1446, %v6717, %v6724
      %v6727 = vmul.f32 %v6718, %v6725
      %s6728 = scalar_lea.vmem %s307, 20
      %6729 = vst [vmem:[%s6728] sm:$0xf] %v6727
      %s6730 = scalar_lea.vmem %s313, 20
      %6731 = vst [vmem:[%s6730] sm:$0xf] %v5716
      %s6732 = scalar_lea.vmem %s288, 24
      %v6733 = vld [vmem:[%s6732] sm:$0xf]
      %s6734 = scalar_lea.vmem %s301, 24
      %v6735 = vld [vmem:[%s6734] sm:$0xf]
      %s6736 = scalar_lea.vmem %s295, 96
      %v6737 = vld [vmem:[%s6736] sm:$0xff]
      %v6738 = vld [vmem:[%s6736 + $0x8] sm:$0xff]
      %6740 = vset.pattern.permute.xlu0 0
      %6741 = vperm.xlu0 %6740, %v6735
      %v6742 = vpop.permute.xlu0 %6741
      %v6744 = vmul.f32 %v6742, %v6737
      %v6745 = vsub.f32 1.0, %v6744
      %6746 = vset.pattern.permute.xlu0 1
      %6747 = vperm.xlu0 %6746, %v6735
      %v6748 = vpop.permute.xlu0 %6747
      %v6751 = vcombine.high %v6737, %v6737
      %v6753 = vmul.f32 %v6748, %v6751
      %v6754 = vsub.f32 1.0, %v6753
      %v6755 = vmul.f32 %v6745, %v6754
      %6756 = vset.pattern.permute.xlu0 2
      %6757 = vperm.xlu0 %6756, %v6735
      %v6758 = vpop.permute.xlu0 %6757
      %v6760 = vmul.f32 %v6758, %v6738
      %v6761 = vsub.f32 1.0, %v6760
      %v6762 = vmul.f32 %v6755, %v6761
      %6763 = vset.pattern.permute.xlu0 3
      %6764 = vperm.xlu0 %6763, %v6735
      %v6765 = vpop.permute.xlu0 %6764
      %v6768 = vcombine.high %v6738, %v6738
      %v6770 = vmul.f32 %v6765, %v6768
      %v6771 = vsub.f32 1.0, %v6770
      %v6772 = vmul.f32 %v6762, %v6771
      %v6773 = vsub.f32 1.0, %v5720
      %v6774 = vmul.f32 %v6733, %v6773
      %v6775 = vadd.f32 %v5720, %v6774
      %v6776 = vmul.f32 %v6775, %v6772
      %v6777 = vmul.f32 %v6776, 0.999999
      %v6778 = vadd.f32 %v6777, 1e-06
      %v6779 = vlaneseq
      %v6780 = vshrl.u32 %v6779, 7
      %v6781 = vsub.s32 0, %v6780
      %v6782 = vrot.slane %v6778, %v6781
      %6784 = vbcast.lane.b32.xlu0 %v6782, 256
      %v6785 = vpop.permute.xlu0 %6784
      %s6787 = sor.u32 256, 8
      %6788 = vbcast.lane.b32.xlu0 %v6782, %s6787
      %v6789 = vpop.permute.xlu0 %6788
      %s6791 = sor.u32 256, 16
      %6792 = vbcast.lane.b32.xlu0 %v6782, %s6791
      %v6793 = vpop.permute.xlu0 %6792
      %s6795 = sor.u32 256, 24
      %6796 = vbcast.lane.b32.xlu0 %v6782, %s6795
      %v6797 = vpop.permute.xlu0 %6796
      %s6799 = sor.u32 256, 32
      %6800 = vbcast.lane.b32.xlu0 %v6782, %s6799
      %v6801 = vpop.permute.xlu0 %6800
      %s6803 = sor.u32 256, 40
      %6804 = vbcast.lane.b32.xlu0 %v6782, %s6803
      %v6805 = vpop.permute.xlu0 %6804
      %s6807 = sor.u32 256, 48
      %6808 = vbcast.lane.b32.xlu0 %v6782, %s6807
      %v6809 = vpop.permute.xlu0 %6808
      %s6811 = sor.u32 256, 56
      %6812 = vbcast.lane.b32.xlu0 %v6782, %s6811
      %v6813 = vpop.permute.xlu0 %6812
      %s6815 = sor.u32 256, 64
      %6816 = vbcast.lane.b32.xlu0 %v6782, %s6815
      %v6817 = vpop.permute.xlu0 %6816
      %s6819 = sor.u32 256, 72
      %6820 = vbcast.lane.b32.xlu0 %v6782, %s6819
      %v6821 = vpop.permute.xlu0 %6820
      %s6823 = sor.u32 256, 80
      %6824 = vbcast.lane.b32.xlu0 %v6782, %s6823
      %v6825 = vpop.permute.xlu0 %6824
      %s6827 = sor.u32 256, 88
      %6828 = vbcast.lane.b32.xlu0 %v6782, %s6827
      %v6829 = vpop.permute.xlu0 %6828
      %s6831 = sor.u32 256, 96
      %6832 = vbcast.lane.b32.xlu0 %v6782, %s6831
      %v6833 = vpop.permute.xlu0 %6832
      %s6835 = sor.u32 256, 104
      %6836 = vbcast.lane.b32.xlu0 %v6782, %s6835
      %v6837 = vpop.permute.xlu0 %6836
      %s6839 = sor.u32 256, 112
      %6840 = vbcast.lane.b32.xlu0 %v6782, %s6839
      %v6841 = vpop.permute.xlu0 %6840
      %s6843 = sor.u32 256, 120
      %6844 = vbcast.lane.b32.xlu0 %v6782, %s6843
      %v6845 = vpop.permute.xlu0 %6844
      %v6846 = vlaneseq
      %v6847 = vshrl.u32 %v6846, 7
      %v6848 = vsub.s32 1, %v6847
      %v6849 = vrot.slane %v6778, %v6848
      %6851 = vbcast.lane.b32.xlu0 %v6849, 256
      %v6852 = vpop.permute.xlu0 %6851
      %s6854 = sor.u32 256, 8
      %6855 = vbcast.lane.b32.xlu0 %v6849, %s6854
      %v6856 = vpop.permute.xlu0 %6855
      %s6858 = sor.u32 256, 16
      %6859 = vbcast.lane.b32.xlu0 %v6849, %s6858
      %v6860 = vpop.permute.xlu0 %6859
      %s6862 = sor.u32 256, 24
      %6863 = vbcast.lane.b32.xlu0 %v6849, %s6862
      %v6864 = vpop.permute.xlu0 %6863
      %s6866 = sor.u32 256, 32
      %6867 = vbcast.lane.b32.xlu0 %v6849, %s6866
      %v6868 = vpop.permute.xlu0 %6867
      %s6870 = sor.u32 256, 40
      %6871 = vbcast.lane.b32.xlu0 %v6849, %s6870
      %v6872 = vpop.permute.xlu0 %6871
      %s6874 = sor.u32 256, 48
      %6875 = vbcast.lane.b32.xlu0 %v6849, %s6874
      %v6876 = vpop.permute.xlu0 %6875
      %s6878 = sor.u32 256, 56
      %6879 = vbcast.lane.b32.xlu0 %v6849, %s6878
      %v6880 = vpop.permute.xlu0 %6879
      %s6882 = sor.u32 256, 64
      %6883 = vbcast.lane.b32.xlu0 %v6849, %s6882
      %v6884 = vpop.permute.xlu0 %6883
      %s6886 = sor.u32 256, 72
      %6887 = vbcast.lane.b32.xlu0 %v6849, %s6886
      %v6888 = vpop.permute.xlu0 %6887
      %s6890 = sor.u32 256, 80
      %6891 = vbcast.lane.b32.xlu0 %v6849, %s6890
      %v6892 = vpop.permute.xlu0 %6891
      %s6894 = sor.u32 256, 88
      %6895 = vbcast.lane.b32.xlu0 %v6849, %s6894
      %v6896 = vpop.permute.xlu0 %6895
      %s6898 = sor.u32 256, 96
      %6899 = vbcast.lane.b32.xlu0 %v6849, %s6898
      %v6900 = vpop.permute.xlu0 %6899
      %s6902 = sor.u32 256, 104
      %6903 = vbcast.lane.b32.xlu0 %v6849, %s6902
      %v6904 = vpop.permute.xlu0 %6903
      %s6906 = sor.u32 256, 112
      %6907 = vbcast.lane.b32.xlu0 %v6849, %s6906
      %v6908 = vpop.permute.xlu0 %6907
      %s6910 = sor.u32 256, 120
      %6911 = vbcast.lane.b32.xlu0 %v6849, %s6910
      %v6912 = vpop.permute.xlu0 %6911
      %v6913 = vlaneseq
      %v6914 = vshrl.u32 %v6913, 7
      %v6915 = vsub.s32 2, %v6914
      %v6916 = vrot.slane %v6778, %v6915
      %6918 = vbcast.lane.b32.xlu0 %v6916, 256
      %v6919 = vpop.permute.xlu0 %6918
      %s6921 = sor.u32 256, 8
      %6922 = vbcast.lane.b32.xlu0 %v6916, %s6921
      %v6923 = vpop.permute.xlu0 %6922
      %s6925 = sor.u32 256, 16
      %6926 = vbcast.lane.b32.xlu0 %v6916, %s6925
      %v6927 = vpop.permute.xlu0 %6926
      %s6929 = sor.u32 256, 24
      %6930 = vbcast.lane.b32.xlu0 %v6916, %s6929
      %v6931 = vpop.permute.xlu0 %6930
      %s6933 = sor.u32 256, 32
      %6934 = vbcast.lane.b32.xlu0 %v6916, %s6933
      %v6935 = vpop.permute.xlu0 %6934
      %s6937 = sor.u32 256, 40
      %6938 = vbcast.lane.b32.xlu0 %v6916, %s6937
      %v6939 = vpop.permute.xlu0 %6938
      %s6941 = sor.u32 256, 48
      %6942 = vbcast.lane.b32.xlu0 %v6916, %s6941
      %v6943 = vpop.permute.xlu0 %6942
      %s6945 = sor.u32 256, 56
      %6946 = vbcast.lane.b32.xlu0 %v6916, %s6945
      %v6947 = vpop.permute.xlu0 %6946
      %s6949 = sor.u32 256, 64
      %6950 = vbcast.lane.b32.xlu0 %v6916, %s6949
      %v6951 = vpop.permute.xlu0 %6950
      %s6953 = sor.u32 256, 72
      %6954 = vbcast.lane.b32.xlu0 %v6916, %s6953
      %v6955 = vpop.permute.xlu0 %6954
      %s6957 = sor.u32 256, 80
      %6958 = vbcast.lane.b32.xlu0 %v6916, %s6957
      %v6959 = vpop.permute.xlu0 %6958
      %s6961 = sor.u32 256, 88
      %6962 = vbcast.lane.b32.xlu0 %v6916, %s6961
      %v6963 = vpop.permute.xlu0 %6962
      %s6965 = sor.u32 256, 96
      %6966 = vbcast.lane.b32.xlu0 %v6916, %s6965
      %v6967 = vpop.permute.xlu0 %6966
      %s6969 = sor.u32 256, 104
      %6970 = vbcast.lane.b32.xlu0 %v6916, %s6969
      %v6971 = vpop.permute.xlu0 %6970
      %s6973 = sor.u32 256, 112
      %6974 = vbcast.lane.b32.xlu0 %v6916, %s6973
      %v6975 = vpop.permute.xlu0 %6974
      %s6977 = sor.u32 256, 120
      %6978 = vbcast.lane.b32.xlu0 %v6916, %s6977
      %v6979 = vpop.permute.xlu0 %6978
      %v6980 = vlaneseq
      %v6981 = vshrl.u32 %v6980, 7
      %v6982 = vsub.s32 3, %v6981
      %v6983 = vrot.slane %v6778, %v6982
      %6985 = vbcast.lane.b32.xlu0 %v6983, 256
      %v6986 = vpop.permute.xlu0 %6985
      %s6988 = sor.u32 256, 8
      %6989 = vbcast.lane.b32.xlu0 %v6983, %s6988
      %v6990 = vpop.permute.xlu0 %6989
      %s6992 = sor.u32 256, 16
      %6993 = vbcast.lane.b32.xlu0 %v6983, %s6992
      %v6994 = vpop.permute.xlu0 %6993
      %s6996 = sor.u32 256, 24
      %6997 = vbcast.lane.b32.xlu0 %v6983, %s6996
      %v6998 = vpop.permute.xlu0 %6997
      %s7000 = sor.u32 256, 32
      %7001 = vbcast.lane.b32.xlu0 %v6983, %s7000
      %v7002 = vpop.permute.xlu0 %7001
      %s7004 = sor.u32 256, 40
      %7005 = vbcast.lane.b32.xlu0 %v6983, %s7004
      %v7006 = vpop.permute.xlu0 %7005
      %s7008 = sor.u32 256, 48
      %7009 = vbcast.lane.b32.xlu0 %v6983, %s7008
      %v7010 = vpop.permute.xlu0 %7009
      %s7012 = sor.u32 256, 56
      %7013 = vbcast.lane.b32.xlu0 %v6983, %s7012
      %v7014 = vpop.permute.xlu0 %7013
      %s7016 = sor.u32 256, 64
      %7017 = vbcast.lane.b32.xlu0 %v6983, %s7016
      %v7018 = vpop.permute.xlu0 %7017
      %s7020 = sor.u32 256, 72
      %7021 = vbcast.lane.b32.xlu0 %v6983, %s7020
      %v7022 = vpop.permute.xlu0 %7021
      %s7024 = sor.u32 256, 80
      %7025 = vbcast.lane.b32.xlu0 %v6983, %s7024
      %v7026 = vpop.permute.xlu0 %7025
      %s7028 = sor.u32 256, 88
      %7029 = vbcast.lane.b32.xlu0 %v6983, %s7028
      %v7030 = vpop.permute.xlu0 %7029
      %s7032 = sor.u32 256, 96
      %7033 = vbcast.lane.b32.xlu0 %v6983, %s7032
      %v7034 = vpop.permute.xlu0 %7033
      %s7036 = sor.u32 256, 104
      %7037 = vbcast.lane.b32.xlu0 %v6983, %s7036
      %v7038 = vpop.permute.xlu0 %7037
      %s7040 = sor.u32 256, 112
      %7041 = vbcast.lane.b32.xlu0 %v6983, %s7040
      %v7042 = vpop.permute.xlu0 %7041
      %s7044 = sor.u32 256, 120
      %7045 = vbcast.lane.b32.xlu0 %v6983, %s7044
      %v7046 = vpop.permute.xlu0 %7045
      %v7049 = vunpack.c.l.s4 1966171168
      %v7050 = vunpack.c.0.s8 %v7049
      %v7051 = vlaneseq
      %v7052 = vshrl.u32 %v7051, 7
      %v7053 = vsub.s32 %v7050, %v7052
      %v7054 = vrot.slane %v6778, %v7053
      %v7055 = vcombine.high %v7054, %v7054
      %v7057 = vunpack.c.l.s4 1966171168
      %v7058 = vunpack.c.0.s8 %v7057
      %v7059 = vlaneseq
      %v7060 = vshrl.u32 %v7059, 7
      %v7061 = vsub.s32 %v7058, %v7060
      %v7062 = vrot.slane %v7054, %v7061
      %v7064 = vunpack.c.l.s4 1966171168
      %v7065 = vunpack.c.0.s8 %v7064
      %v7066 = vlaneseq
      %v7067 = vshrl.u32 %v7066, 7
      %v7068 = vsub.s32 %v7065, %v7067
      %v7069 = vrot.slane %v7055, %v7068
      %v7070 = vcombine.high %v7062, %v7062
      %v7071 = vcombine.high %v7069, %v7069
      %v7072 = vlaneseq
      %v7073 = vshrl.u32 %v7072, 7
      %v7074 = vsub.s32 0, %v7073
      %v7075 = vrot.slane %v7062, %v7074
      %v7076 = vlaneseq
      %v7077 = vshrl.u32 %v7076, 7
      %v7078 = vsub.s32 0, %v7077
      %v7079 = vrot.slane %v7069, %v7078
      %v7080 = vlaneseq
      %v7081 = vshrl.u32 %v7080, 7
      %v7082 = vsub.s32 0, %v7081
      %v7083 = vrot.slane %v7070, %v7082
      %v7084 = vlaneseq
      %v7085 = vshrl.u32 %v7084, 7
      %v7086 = vsub.s32 0, %v7085
      %v7087 = vrot.slane %v7071, %v7086
      %vm7092 = vcmp.lt.f32.partialorder %v6785, %v7075
      %vm7093 = vcmp.lt.f32.partialorder %v6789, %v7075
      %vm7094 = vcmp.lt.f32.partialorder %v6793, %v7075
      %vm7095 = vcmp.lt.f32.partialorder %v6797, %v7075
      %vm7096 = vcmp.lt.f32.partialorder %v6801, %v7075
      %vm7097 = vcmp.lt.f32.partialorder %v6805, %v7075
      %vm7098 = vcmp.lt.f32.partialorder %v6809, %v7075
      %vm7099 = vcmp.lt.f32.partialorder %v6813, %v7075
      %vm7100 = vcmp.lt.f32.partialorder %v6817, %v7075
      %vm7101 = vcmp.lt.f32.partialorder %v6821, %v7075
      %vm7102 = vcmp.lt.f32.partialorder %v6825, %v7075
      %vm7103 = vcmp.lt.f32.partialorder %v6829, %v7075
      %vm7104 = vcmp.lt.f32.partialorder %v6833, %v7075
      %vm7105 = vcmp.lt.f32.partialorder %v6837, %v7075
      %vm7106 = vcmp.lt.f32.partialorder %v6841, %v7075
      %vm7107 = vcmp.lt.f32.partialorder %v6845, %v7075
      %vm7108 = vcmp.lt.f32.partialorder %v6852, %v7079
      %vm7109 = vcmp.lt.f32.partialorder %v6856, %v7079
      %vm7110 = vcmp.lt.f32.partialorder %v6860, %v7079
      %vm7111 = vcmp.lt.f32.partialorder %v6864, %v7079
      %vm7112 = vcmp.lt.f32.partialorder %v6868, %v7079
      %vm7113 = vcmp.lt.f32.partialorder %v6872, %v7079
      %vm7114 = vcmp.lt.f32.partialorder %v6876, %v7079
      %vm7115 = vcmp.lt.f32.partialorder %v6880, %v7079
      %vm7116 = vcmp.lt.f32.partialorder %v6884, %v7079
      %vm7117 = vcmp.lt.f32.partialorder %v6888, %v7079
      %vm7118 = vcmp.lt.f32.partialorder %v6892, %v7079
      %vm7119 = vcmp.lt.f32.partialorder %v6896, %v7079
      %vm7120 = vcmp.lt.f32.partialorder %v6900, %v7079
      %vm7121 = vcmp.lt.f32.partialorder %v6904, %v7079
      %vm7122 = vcmp.lt.f32.partialorder %v6908, %v7079
      %vm7123 = vcmp.lt.f32.partialorder %v6912, %v7079
      %vm7124 = vcmp.lt.f32.partialorder %v6919, %v7083
      %vm7125 = vcmp.lt.f32.partialorder %v6923, %v7083
      %vm7126 = vcmp.lt.f32.partialorder %v6927, %v7083
      %vm7127 = vcmp.lt.f32.partialorder %v6931, %v7083
      %vm7128 = vcmp.lt.f32.partialorder %v6935, %v7083
      %vm7129 = vcmp.lt.f32.partialorder %v6939, %v7083
      %vm7130 = vcmp.lt.f32.partialorder %v6943, %v7083
      %vm7131 = vcmp.lt.f32.partialorder %v6947, %v7083
      %vm7132 = vcmp.lt.f32.partialorder %v6951, %v7083
      %vm7133 = vcmp.lt.f32.partialorder %v6955, %v7083
      %vm7134 = vcmp.lt.f32.partialorder %v6959, %v7083
      %vm7135 = vcmp.lt.f32.partialorder %v6963, %v7083
      %vm7136 = vcmp.lt.f32.partialorder %v6967, %v7083
      %vm7137 = vcmp.lt.f32.partialorder %v6971, %v7083
      %vm7138 = vcmp.lt.f32.partialorder %v6975, %v7083
      %vm7139 = vcmp.lt.f32.partialorder %v6979, %v7083
      %vm7140 = vcmp.lt.f32.partialorder %v6986, %v7087
      %vm7141 = vcmp.lt.f32.partialorder %v6990, %v7087
      %vm7142 = vcmp.lt.f32.partialorder %v6994, %v7087
      %vm7143 = vcmp.lt.f32.partialorder %v6998, %v7087
      %vm7144 = vcmp.lt.f32.partialorder %v7002, %v7087
      %vm7145 = vcmp.lt.f32.partialorder %v7006, %v7087
      %vm7146 = vcmp.lt.f32.partialorder %v7010, %v7087
      %vm7147 = vcmp.lt.f32.partialorder %v7014, %v7087
      %vm7148 = vcmp.lt.f32.partialorder %v7018, %v7087
      %vm7149 = vcmp.lt.f32.partialorder %v7022, %v7087
      %vm7150 = vcmp.lt.f32.partialorder %v7026, %v7087
      %vm7151 = vcmp.lt.f32.partialorder %v7030, %v7087
      %vm7152 = vcmp.lt.f32.partialorder %v7034, %v7087
      %vm7153 = vcmp.lt.f32.partialorder %v7038, %v7087
      %vm7154 = vcmp.lt.f32.partialorder %v7042, %v7087
      %vm7155 = vcmp.lt.f32.partialorder %v7046, %v7087
      %vm7156 = vcmp.eq.f32.partialorder %v6785, %v7075
      %vm7157 = vcmp.eq.f32.partialorder %v6789, %v7075
      %vm7158 = vcmp.eq.f32.partialorder %v6793, %v7075
      %vm7159 = vcmp.eq.f32.partialorder %v6797, %v7075
      %vm7160 = vcmp.eq.f32.partialorder %v6801, %v7075
      %vm7161 = vcmp.eq.f32.partialorder %v6805, %v7075
      %vm7162 = vcmp.eq.f32.partialorder %v6809, %v7075
      %vm7163 = vcmp.eq.f32.partialorder %v6813, %v7075
      %vm7164 = vcmp.eq.f32.partialorder %v6817, %v7075
      %vm7165 = vcmp.eq.f32.partialorder %v6821, %v7075
      %vm7166 = vcmp.eq.f32.partialorder %v6825, %v7075
      %vm7167 = vcmp.eq.f32.partialorder %v6829, %v7075
      %vm7168 = vcmp.eq.f32.partialorder %v6833, %v7075
      %vm7169 = vcmp.eq.f32.partialorder %v6837, %v7075
      %vm7170 = vcmp.eq.f32.partialorder %v6841, %v7075
      %vm7171 = vcmp.eq.f32.partialorder %v6845, %v7075
      %vm7172 = vcmp.eq.f32.partialorder %v6852, %v7079
      %vm7173 = vcmp.eq.f32.partialorder %v6856, %v7079
      %vm7174 = vcmp.eq.f32.partialorder %v6860, %v7079
      %vm7175 = vcmp.eq.f32.partialorder %v6864, %v7079
      %vm7176 = vcmp.eq.f32.partialorder %v6868, %v7079
      %vm7177 = vcmp.eq.f32.partialorder %v6872, %v7079
      %vm7178 = vcmp.eq.f32.partialorder %v6876, %v7079
      %vm7179 = vcmp.eq.f32.partialorder %v6880, %v7079
      %vm7180 = vcmp.eq.f32.partialorder %v6884, %v7079
      %vm7181 = vcmp.eq.f32.partialorder %v6888, %v7079
      %vm7182 = vcmp.eq.f32.partialorder %v6892, %v7079
      %vm7183 = vcmp.eq.f32.partialorder %v6896, %v7079
      %vm7184 = vcmp.eq.f32.partialorder %v6900, %v7079
      %vm7185 = vcmp.eq.f32.partialorder %v6904, %v7079
      %vm7186 = vcmp.eq.f32.partialorder %v6908, %v7079
      %vm7187 = vcmp.eq.f32.partialorder %v6912, %v7079
      %vm7188 = vcmp.eq.f32.partialorder %v6919, %v7083
      %vm7189 = vcmp.eq.f32.partialorder %v6923, %v7083
      %vm7190 = vcmp.eq.f32.partialorder %v6927, %v7083
      %vm7191 = vcmp.eq.f32.partialorder %v6931, %v7083
      %vm7192 = vcmp.eq.f32.partialorder %v6935, %v7083
      %vm7193 = vcmp.eq.f32.partialorder %v6939, %v7083
      %vm7194 = vcmp.eq.f32.partialorder %v6943, %v7083
      %vm7195 = vcmp.eq.f32.partialorder %v6947, %v7083
      %vm7196 = vcmp.eq.f32.partialorder %v6951, %v7083
      %vm7197 = vcmp.eq.f32.partialorder %v6955, %v7083
      %vm7198 = vcmp.eq.f32.partialorder %v6959, %v7083
      %vm7199 = vcmp.eq.f32.partialorder %v6963, %v7083
      %vm7200 = vcmp.eq.f32.partialorder %v6967, %v7083
      %vm7201 = vcmp.eq.f32.partialorder %v6971, %v7083
      %vm7202 = vcmp.eq.f32.partialorder %v6975, %v7083
      %vm7203 = vcmp.eq.f32.partialorder %v6979, %v7083
      %vm7204 = vcmp.eq.f32.partialorder %v6986, %v7087
      %vm7205 = vcmp.eq.f32.partialorder %v6990, %v7087
      %vm7206 = vcmp.eq.f32.partialorder %v6994, %v7087
      %vm7207 = vcmp.eq.f32.partialorder %v6998, %v7087
      %vm7208 = vcmp.eq.f32.partialorder %v7002, %v7087
      %vm7209 = vcmp.eq.f32.partialorder %v7006, %v7087
      %vm7210 = vcmp.eq.f32.partialorder %v7010, %v7087
      %vm7211 = vcmp.eq.f32.partialorder %v7014, %v7087
      %vm7212 = vcmp.eq.f32.partialorder %v7018, %v7087
      %vm7213 = vcmp.eq.f32.partialorder %v7022, %v7087
      %vm7214 = vcmp.eq.f32.partialorder %v7026, %v7087
      %vm7215 = vcmp.eq.f32.partialorder %v7030, %v7087
      %vm7216 = vcmp.eq.f32.partialorder %v7034, %v7087
      %vm7217 = vcmp.eq.f32.partialorder %v7038, %v7087
      %vm7218 = vcmp.eq.f32.partialorder %v7042, %v7087
      %vm7219 = vcmp.eq.f32.partialorder %v7046, %v7087
      %vm7220 = vmand %vm7156, %vm867
      %vm7221 = vmand %vm7157, %vm868
      %vm7222 = vmand %vm7158, %vm869
      %vm7223 = vmand %vm7159, %vm870
      %vm7224 = vmand %vm7160, %vm871
      %vm7225 = vmand %vm7161, %vm872
      %vm7226 = vmand %vm7162, %vm873
      %vm7227 = vmand %vm7163, %vm874
      %vm7228 = vmand %vm7164, %vm875
      %vm7229 = vmand %vm7165, %vm876
      %vm7230 = vmand %vm7166, %vm877
      %vm7231 = vmand %vm7167, %vm878
      %vm7232 = vmand %vm7168, %vm879
      %vm7233 = vmand %vm7169, %vm880
      %vm7234 = vmand %vm7170, %vm881
      %vm7235 = vmand %vm7171, %vm882
      %vm7236 = vmand %vm7172, %vm867
      %vm7237 = vmand %vm7173, %vm868
      %vm7238 = vmand %vm7174, %vm869
      %vm7239 = vmand %vm7175, %vm870
      %vm7240 = vmand %vm7176, %vm871
      %vm7241 = vmand %vm7177, %vm872
      %vm7242 = vmand %vm7178, %vm873
      %vm7243 = vmand %vm7179, %vm874
      %vm7244 = vmand %vm7180, %vm875
      %vm7245 = vmand %vm7181, %vm876
      %vm7246 = vmand %vm7182, %vm877
      %vm7247 = vmand %vm7183, %vm878
      %vm7248 = vmand %vm7184, %vm879
      %vm7249 = vmand %vm7185, %vm880
      %vm7250 = vmand %vm7186, %vm881
      %vm7251 = vmand %vm7187, %vm882
      %vm7252 = vmand %vm7188, %vm867
      %vm7253 = vmand %vm7189, %vm868
      %vm7254 = vmand %vm7190, %vm869
      %vm7255 = vmand %vm7191, %vm870
      %vm7256 = vmand %vm7192, %vm871
      %vm7257 = vmand %vm7193, %vm872
      %vm7258 = vmand %vm7194, %vm873
      %vm7259 = vmand %vm7195, %vm874
      %vm7260 = vmand %vm7196, %vm875
      %vm7261 = vmand %vm7197, %vm876
      %vm7262 = vmand %vm7198, %vm877
      %vm7263 = vmand %vm7199, %vm878
      %vm7264 = vmand %vm7200, %vm879
      %vm7265 = vmand %vm7201, %vm880
      %vm7266 = vmand %vm7202, %vm881
      %vm7267 = vmand %vm7203, %vm882
      %vm7268 = vmand %vm7204, %vm867
      %vm7269 = vmand %vm7205, %vm868
      %vm7270 = vmand %vm7206, %vm869
      %vm7271 = vmand %vm7207, %vm870
      %vm7272 = vmand %vm7208, %vm871
      %vm7273 = vmand %vm7209, %vm872
      %vm7274 = vmand %vm7210, %vm873
      %vm7275 = vmand %vm7211, %vm874
      %vm7276 = vmand %vm7212, %vm875
      %vm7277 = vmand %vm7213, %vm876
      %vm7278 = vmand %vm7214, %vm877
      %vm7279 = vmand %vm7215, %vm878
      %vm7280 = vmand %vm7216, %vm879
      %vm7281 = vmand %vm7217, %vm880
      %vm7282 = vmand %vm7218, %vm881
      %vm7283 = vmand %vm7219, %vm882
      %vm7284 = vmor %vm7092, %vm7220
      %vm7285 = vmor %vm7093, %vm7221
      %vm7286 = vmor %vm7094, %vm7222
      %vm7287 = vmor %vm7095, %vm7223
      %vm7288 = vmor %vm7096, %vm7224
      %vm7289 = vmor %vm7097, %vm7225
      %vm7290 = vmor %vm7098, %vm7226
      %vm7291 = vmor %vm7099, %vm7227
      %vm7292 = vmor %vm7100, %vm7228
      %vm7293 = vmor %vm7101, %vm7229
      %vm7294 = vmor %vm7102, %vm7230
      %vm7295 = vmor %vm7103, %vm7231
      %vm7296 = vmor %vm7104, %vm7232
      %vm7297 = vmor %vm7105, %vm7233
      %vm7298 = vmor %vm7106, %vm7234
      %vm7299 = vmor %vm7107, %vm7235
      %vm7300 = vmor %vm7108, %vm7236
      %vm7301 = vmor %vm7109, %vm7237
      %vm7302 = vmor %vm7110, %vm7238
      %vm7303 = vmor %vm7111, %vm7239
      %vm7304 = vmor %vm7112, %vm7240
      %vm7305 = vmor %vm7113, %vm7241
      %vm7306 = vmor %vm7114, %vm7242
      %vm7307 = vmor %vm7115, %vm7243
      %vm7308 = vmor %vm7116, %vm7244
      %vm7309 = vmor %vm7117, %vm7245
      %vm7310 = vmor %vm7118, %vm7246
      %vm7311 = vmor %vm7119, %vm7247
      %vm7312 = vmor %vm7120, %vm7248
      %vm7313 = vmor %vm7121, %vm7249
      %vm7314 = vmor %vm7122, %vm7250
      %vm7315 = vmor %vm7123, %vm7251
      %vm7316 = vmor %vm7124, %vm7252
      %vm7317 = vmor %vm7125, %vm7253
      %vm7318 = vmor %vm7126, %vm7254
      %vm7319 = vmor %vm7127, %vm7255
      %vm7320 = vmor %vm7128, %vm7256
      %vm7321 = vmor %vm7129, %vm7257
      %vm7322 = vmor %vm7130, %vm7258
      %vm7323 = vmor %vm7131, %vm7259
      %vm7324 = vmor %vm7132, %vm7260
      %vm7325 = vmor %vm7133, %vm7261
      %vm7326 = vmor %vm7134, %vm7262
      %vm7327 = vmor %vm7135, %vm7263
      %vm7328 = vmor %vm7136, %vm7264
      %vm7329 = vmor %vm7137, %vm7265
      %vm7330 = vmor %vm7138, %vm7266
      %vm7331 = vmor %vm7139, %vm7267
      %vm7332 = vmor %vm7140, %vm7268
      %vm7333 = vmor %vm7141, %vm7269
      %vm7334 = vmor %vm7142, %vm7270
      %vm7335 = vmor %vm7143, %vm7271
      %vm7336 = vmor %vm7144, %vm7272
      %vm7337 = vmor %vm7145, %vm7273
      %vm7338 = vmor %vm7146, %vm7274
      %vm7339 = vmor %vm7147, %vm7275
      %vm7340 = vmor %vm7148, %vm7276
      %vm7341 = vmor %vm7149, %vm7277
      %vm7342 = vmor %vm7150, %vm7278
      %vm7343 = vmor %vm7151, %vm7279
      %vm7344 = vmor %vm7152, %vm7280
      %vm7345 = vmor %vm7153, %vm7281
      %vm7346 = vmor %vm7154, %vm7282
      %vm7347 = vmor %vm7155, %vm7283
      %v7348 = vlog2.pop %v6778
      %v7349 = vmul.f32 %v7348, 0.6931472
      %v7350 = vlaneseq
      %v7351 = vshrl.u32 %v7350, 7
      %v7352 = vsub.s32 0, %v7351
      %v7353 = vrot.slane %v7349, %v7352
      %7355 = vbcast.lane.b32.xlu0 %v7353, 256
      %v7356 = vpop.permute.xlu0 %7355
      %s7358 = sor.u32 256, 8
      %7359 = vbcast.lane.b32.xlu0 %v7353, %s7358
      %v7360 = vpop.permute.xlu0 %7359
      %s7362 = sor.u32 256, 16
      %7363 = vbcast.lane.b32.xlu0 %v7353, %s7362
      %v7364 = vpop.permute.xlu0 %7363
      %s7366 = sor.u32 256, 24
      %7367 = vbcast.lane.b32.xlu0 %v7353, %s7366
      %v7368 = vpop.permute.xlu0 %7367
      %s7370 = sor.u32 256, 32
      %7371 = vbcast.lane.b32.xlu0 %v7353, %s7370
      %v7372 = vpop.permute.xlu0 %7371
      %s7374 = sor.u32 256, 40
      %7375 = vbcast.lane.b32.xlu0 %v7353, %s7374
      %v7376 = vpop.permute.xlu0 %7375
      %s7378 = sor.u32 256, 48
      %7379 = vbcast.lane.b32.xlu0 %v7353, %s7378
      %v7380 = vpop.permute.xlu0 %7379
      %s7382 = sor.u32 256, 56
      %7383 = vbcast.lane.b32.xlu0 %v7353, %s7382
      %v7384 = vpop.permute.xlu0 %7383
      %s7386 = sor.u32 256, 64
      %7387 = vbcast.lane.b32.xlu0 %v7353, %s7386
      %v7388 = vpop.permute.xlu0 %7387
      %s7390 = sor.u32 256, 72
      %7391 = vbcast.lane.b32.xlu0 %v7353, %s7390
      %v7392 = vpop.permute.xlu0 %7391
      %s7394 = sor.u32 256, 80
      %7395 = vbcast.lane.b32.xlu0 %v7353, %s7394
      %v7396 = vpop.permute.xlu0 %7395
      %s7398 = sor.u32 256, 88
      %7399 = vbcast.lane.b32.xlu0 %v7353, %s7398
      %v7400 = vpop.permute.xlu0 %7399
      %s7402 = sor.u32 256, 96
      %7403 = vbcast.lane.b32.xlu0 %v7353, %s7402
      %v7404 = vpop.permute.xlu0 %7403
      %s7406 = sor.u32 256, 104
      %7407 = vbcast.lane.b32.xlu0 %v7353, %s7406
      %v7408 = vpop.permute.xlu0 %7407
      %s7410 = sor.u32 256, 112
      %7411 = vbcast.lane.b32.xlu0 %v7353, %s7410
      %v7412 = vpop.permute.xlu0 %7411
      %s7414 = sor.u32 256, 120
      %7415 = vbcast.lane.b32.xlu0 %v7353, %s7414
      %v7416 = vpop.permute.xlu0 %7415
      %v7417 = vlaneseq
      %v7418 = vshrl.u32 %v7417, 7
      %v7419 = vsub.s32 1, %v7418
      %v7420 = vrot.slane %v7349, %v7419
      %7422 = vbcast.lane.b32.xlu0 %v7420, 256
      %v7423 = vpop.permute.xlu0 %7422
      %s7425 = sor.u32 256, 8
      %7426 = vbcast.lane.b32.xlu0 %v7420, %s7425
      %v7427 = vpop.permute.xlu0 %7426
      %s7429 = sor.u32 256, 16
      %7430 = vbcast.lane.b32.xlu0 %v7420, %s7429
      %v7431 = vpop.permute.xlu0 %7430
      %s7433 = sor.u32 256, 24
      %7434 = vbcast.lane.b32.xlu0 %v7420, %s7433
      %v7435 = vpop.permute.xlu0 %7434
      %s7437 = sor.u32 256, 32
      %7438 = vbcast.lane.b32.xlu0 %v7420, %s7437
      %v7439 = vpop.permute.xlu0 %7438
      %s7441 = sor.u32 256, 40
      %7442 = vbcast.lane.b32.xlu0 %v7420, %s7441
      %v7443 = vpop.permute.xlu0 %7442
      %s7445 = sor.u32 256, 48
      %7446 = vbcast.lane.b32.xlu0 %v7420, %s7445
      %v7447 = vpop.permute.xlu0 %7446
      %s7449 = sor.u32 256, 56
      %7450 = vbcast.lane.b32.xlu0 %v7420, %s7449
      %v7451 = vpop.permute.xlu0 %7450
      %s7453 = sor.u32 256, 64
      %7454 = vbcast.lane.b32.xlu0 %v7420, %s7453
      %v7455 = vpop.permute.xlu0 %7454
      %s7457 = sor.u32 256, 72
      %7458 = vbcast.lane.b32.xlu0 %v7420, %s7457
      %v7459 = vpop.permute.xlu0 %7458
      %s7461 = sor.u32 256, 80
      %7462 = vbcast.lane.b32.xlu0 %v7420, %s7461
      %v7463 = vpop.permute.xlu0 %7462
      %s7465 = sor.u32 256, 88
      %7466 = vbcast.lane.b32.xlu0 %v7420, %s7465
      %v7467 = vpop.permute.xlu0 %7466
      %s7469 = sor.u32 256, 96
      %7470 = vbcast.lane.b32.xlu0 %v7420, %s7469
      %v7471 = vpop.permute.xlu0 %7470
      %s7473 = sor.u32 256, 104
      %7474 = vbcast.lane.b32.xlu0 %v7420, %s7473
      %v7475 = vpop.permute.xlu0 %7474
      %s7477 = sor.u32 256, 112
      %7478 = vbcast.lane.b32.xlu0 %v7420, %s7477
      %v7479 = vpop.permute.xlu0 %7478
      %s7481 = sor.u32 256, 120
      %7482 = vbcast.lane.b32.xlu0 %v7420, %s7481
      %v7483 = vpop.permute.xlu0 %7482
      %v7484 = vlaneseq
      %v7485 = vshrl.u32 %v7484, 7
      %v7486 = vsub.s32 2, %v7485
      %v7487 = vrot.slane %v7349, %v7486
      %7489 = vbcast.lane.b32.xlu0 %v7487, 256
      %v7490 = vpop.permute.xlu0 %7489
      %s7492 = sor.u32 256, 8
      %7493 = vbcast.lane.b32.xlu0 %v7487, %s7492
      %v7494 = vpop.permute.xlu0 %7493
      %s7496 = sor.u32 256, 16
      %7497 = vbcast.lane.b32.xlu0 %v7487, %s7496
      %v7498 = vpop.permute.xlu0 %7497
      %s7500 = sor.u32 256, 24
      %7501 = vbcast.lane.b32.xlu0 %v7487, %s7500
      %v7502 = vpop.permute.xlu0 %7501
      %s7504 = sor.u32 256, 32
      %7505 = vbcast.lane.b32.xlu0 %v7487, %s7504
      %v7506 = vpop.permute.xlu0 %7505
      %s7508 = sor.u32 256, 40
      %7509 = vbcast.lane.b32.xlu0 %v7487, %s7508
      %v7510 = vpop.permute.xlu0 %7509
      %s7512 = sor.u32 256, 48
      %7513 = vbcast.lane.b32.xlu0 %v7487, %s7512
      %v7514 = vpop.permute.xlu0 %7513
      %s7516 = sor.u32 256, 56
      %7517 = vbcast.lane.b32.xlu0 %v7487, %s7516
      %v7518 = vpop.permute.xlu0 %7517
      %s7520 = sor.u32 256, 64
      %7521 = vbcast.lane.b32.xlu0 %v7487, %s7520
      %v7522 = vpop.permute.xlu0 %7521
      %s7524 = sor.u32 256, 72
      %7525 = vbcast.lane.b32.xlu0 %v7487, %s7524
      %v7526 = vpop.permute.xlu0 %7525
      %s7528 = sor.u32 256, 80
      %7529 = vbcast.lane.b32.xlu0 %v7487, %s7528
      %v7530 = vpop.permute.xlu0 %7529
      %s7532 = sor.u32 256, 88
      %7533 = vbcast.lane.b32.xlu0 %v7487, %s7532
      %v7534 = vpop.permute.xlu0 %7533
      %s7536 = sor.u32 256, 96
      %7537 = vbcast.lane.b32.xlu0 %v7487, %s7536
      %v7538 = vpop.permute.xlu0 %7537
      %s7540 = sor.u32 256, 104
      %7541 = vbcast.lane.b32.xlu0 %v7487, %s7540
      %v7542 = vpop.permute.xlu0 %7541
      %s7544 = sor.u32 256, 112
      %7545 = vbcast.lane.b32.xlu0 %v7487, %s7544
      %v7546 = vpop.permute.xlu0 %7545
      %s7548 = sor.u32 256, 120
      %7549 = vbcast.lane.b32.xlu0 %v7487, %s7548
      %v7550 = vpop.permute.xlu0 %7549
      %v7551 = vlaneseq
      %v7552 = vshrl.u32 %v7551, 7
      %v7553 = vsub.s32 3, %v7552
      %v7554 = vrot.slane %v7349, %v7553
      %7556 = vbcast.lane.b32.xlu0 %v7554, 256
      %v7557 = vpop.permute.xlu0 %7556
      %s7559 = sor.u32 256, 8
      %7560 = vbcast.lane.b32.xlu0 %v7554, %s7559
      %v7561 = vpop.permute.xlu0 %7560
      %s7563 = sor.u32 256, 16
      %7564 = vbcast.lane.b32.xlu0 %v7554, %s7563
      %v7565 = vpop.permute.xlu0 %7564
      %s7567 = sor.u32 256, 24
      %7568 = vbcast.lane.b32.xlu0 %v7554, %s7567
      %v7569 = vpop.permute.xlu0 %7568
      %s7571 = sor.u32 256, 32
      %7572 = vbcast.lane.b32.xlu0 %v7554, %s7571
      %v7573 = vpop.permute.xlu0 %7572
      %s7575 = sor.u32 256, 40
      %7576 = vbcast.lane.b32.xlu0 %v7554, %s7575
      %v7577 = vpop.permute.xlu0 %7576
      %s7579 = sor.u32 256, 48
      %7580 = vbcast.lane.b32.xlu0 %v7554, %s7579
      %v7581 = vpop.permute.xlu0 %7580
      %s7583 = sor.u32 256, 56
      %7584 = vbcast.lane.b32.xlu0 %v7554, %s7583
      %v7585 = vpop.permute.xlu0 %7584
      %s7587 = sor.u32 256, 64
      %7588 = vbcast.lane.b32.xlu0 %v7554, %s7587
      %v7589 = vpop.permute.xlu0 %7588
      %s7591 = sor.u32 256, 72
      %7592 = vbcast.lane.b32.xlu0 %v7554, %s7591
      %v7593 = vpop.permute.xlu0 %7592
      %s7595 = sor.u32 256, 80
      %7596 = vbcast.lane.b32.xlu0 %v7554, %s7595
      %v7597 = vpop.permute.xlu0 %7596
      %s7599 = sor.u32 256, 88
      %7600 = vbcast.lane.b32.xlu0 %v7554, %s7599
      %v7601 = vpop.permute.xlu0 %7600
      %s7603 = sor.u32 256, 96
      %7604 = vbcast.lane.b32.xlu0 %v7554, %s7603
      %v7605 = vpop.permute.xlu0 %7604
      %s7607 = sor.u32 256, 104
      %7608 = vbcast.lane.b32.xlu0 %v7554, %s7607
      %v7609 = vpop.permute.xlu0 %7608
      %s7611 = sor.u32 256, 112
      %7612 = vbcast.lane.b32.xlu0 %v7554, %s7611
      %v7613 = vpop.permute.xlu0 %7612
      %s7615 = sor.u32 256, 120
      %7616 = vbcast.lane.b32.xlu0 %v7554, %s7615
      %v7617 = vpop.permute.xlu0 %7616
      %v7618 = vsel %vm7284, %v7356, 0.0
      %v7619 = vsel %vm7285, %v7360, 0.0
      %v7620 = vsel %vm7286, %v7364, 0.0
      %v7621 = vsel %vm7287, %v7368, 0.0
      %v7622 = vsel %vm7288, %v7372, 0.0
      %v7623 = vsel %vm7289, %v7376, 0.0
      %v7624 = vsel %vm7290, %v7380, 0.0
      %v7625 = vsel %vm7291, %v7384, 0.0
      %v7626 = vsel %vm7292, %v7388, 0.0
      %v7627 = vsel %vm7293, %v7392, 0.0
      %v7628 = vsel %vm7294, %v7396, 0.0
      %v7629 = vsel %vm7295, %v7400, 0.0
      %v7630 = vsel %vm7296, %v7404, 0.0
      %v7631 = vsel %vm7297, %v7408, 0.0
      %v7632 = vsel %vm7298, %v7412, 0.0
      %v7633 = vsel %vm7299, %v7416, 0.0
      %v7634 = vsel %vm7300, %v7423, 0.0
      %v7635 = vsel %vm7301, %v7427, 0.0
      %v7636 = vsel %vm7302, %v7431, 0.0
      %v7637 = vsel %vm7303, %v7435, 0.0
      %v7638 = vsel %vm7304, %v7439, 0.0
      %v7639 = vsel %vm7305, %v7443, 0.0
      %v7640 = vsel %vm7306, %v7447, 0.0
      %v7641 = vsel %vm7307, %v7451, 0.0
      %v7642 = vsel %vm7308, %v7455, 0.0
      %v7643 = vsel %vm7309, %v7459, 0.0
      %v7644 = vsel %vm7310, %v7463, 0.0
      %v7645 = vsel %vm7311, %v7467, 0.0
      %v7646 = vsel %vm7312, %v7471, 0.0
      %v7647 = vsel %vm7313, %v7475, 0.0
      %v7648 = vsel %vm7314, %v7479, 0.0
      %v7649 = vsel %vm7315, %v7483, 0.0
      %v7650 = vsel %vm7316, %v7490, 0.0
      %v7651 = vsel %vm7317, %v7494, 0.0
      %v7652 = vsel %vm7318, %v7498, 0.0
      %v7653 = vsel %vm7319, %v7502, 0.0
      %v7654 = vsel %vm7320, %v7506, 0.0
      %v7655 = vsel %vm7321, %v7510, 0.0
      %v7656 = vsel %vm7322, %v7514, 0.0
      %v7657 = vsel %vm7323, %v7518, 0.0
      %v7658 = vsel %vm7324, %v7522, 0.0
      %v7659 = vsel %vm7325, %v7526, 0.0
      %v7660 = vsel %vm7326, %v7530, 0.0
      %v7661 = vsel %vm7327, %v7534, 0.0
      %v7662 = vsel %vm7328, %v7538, 0.0
      %v7663 = vsel %vm7329, %v7542, 0.0
      %v7664 = vsel %vm7330, %v7546, 0.0
      %v7665 = vsel %vm7331, %v7550, 0.0
      %v7666 = vsel %vm7332, %v7557, 0.0
      %v7667 = vsel %vm7333, %v7561, 0.0
      %v7668 = vsel %vm7334, %v7565, 0.0
      %v7669 = vsel %vm7335, %v7569, 0.0
      %v7670 = vsel %vm7336, %v7573, 0.0
      %v7671 = vsel %vm7337, %v7577, 0.0
      %v7672 = vsel %vm7338, %v7581, 0.0
      %v7673 = vsel %vm7339, %v7585, 0.0
      %v7674 = vsel %vm7340, %v7589, 0.0
      %v7675 = vsel %vm7341, %v7593, 0.0
      %v7676 = vsel %vm7342, %v7597, 0.0
      %v7677 = vsel %vm7343, %v7601, 0.0
      %v7678 = vsel %vm7344, %v7605, 0.0
      %v7679 = vsel %vm7345, %v7609, 0.0
      %v7680 = vsel %vm7346, %v7613, 0.0
      %v7681 = vsel %vm7347, %v7617, 0.0
      %v7682 = vadd.f32 %v7618, %v7619
      %v7683 = vadd.f32 %v7682, %v7620
      %v7684 = vadd.f32 %v7683, %v7621
      %v7685 = vadd.f32 %v7684, %v7622
      %v7686 = vadd.f32 %v7685, %v7623
      %v7687 = vadd.f32 %v7686, %v7624
      %v7688 = vadd.f32 %v7687, %v7625
      %v7689 = vadd.f32 %v7688, %v7626
      %v7690 = vadd.f32 %v7689, %v7627
      %v7691 = vadd.f32 %v7690, %v7628
      %v7692 = vadd.f32 %v7691, %v7629
      %v7693 = vadd.f32 %v7692, %v7630
      %v7694 = vadd.f32 %v7693, %v7631
      %v7695 = vadd.f32 %v7694, %v7632
      %v7696 = vadd.f32 %v7695, %v7633
      %v7697 = vrot.slane %v7696, 4
      %v7698 = vadd.f32 %v7696, %v7697
      %v7699 = vrot.slane %v7698, 2
      %v7700 = vadd.f32 %v7698, %v7699
      %v7701 = vrot.slane %v7700, 1
      %v7702 = vadd.f32 %v7700, %v7701
      %v7703 = vadd.f32 %v7634, %v7635
      %v7704 = vadd.f32 %v7703, %v7636
      %v7705 = vadd.f32 %v7704, %v7637
      %v7706 = vadd.f32 %v7705, %v7638
      %v7707 = vadd.f32 %v7706, %v7639
      %v7708 = vadd.f32 %v7707, %v7640
      %v7709 = vadd.f32 %v7708, %v7641
      %v7710 = vadd.f32 %v7709, %v7642
      %v7711 = vadd.f32 %v7710, %v7643
      %v7712 = vadd.f32 %v7711, %v7644
      %v7713 = vadd.f32 %v7712, %v7645
      %v7714 = vadd.f32 %v7713, %v7646
      %v7715 = vadd.f32 %v7714, %v7647
      %v7716 = vadd.f32 %v7715, %v7648
      %v7717 = vadd.f32 %v7716, %v7649
      %v7718 = vrot.slane %v7717, 4
      %v7719 = vadd.f32 %v7717, %v7718
      %v7720 = vrot.slane %v7719, 2
      %v7721 = vadd.f32 %v7719, %v7720
      %v7722 = vrot.slane %v7721, 1
      %v7723 = vadd.f32 %v7721, %v7722
      %v7724 = vadd.f32 %v7650, %v7651
      %v7725 = vadd.f32 %v7724, %v7652
      %v7726 = vadd.f32 %v7725, %v7653
      %v7727 = vadd.f32 %v7726, %v7654
      %v7728 = vadd.f32 %v7727, %v7655
      %v7729 = vadd.f32 %v7728, %v7656
      %v7730 = vadd.f32 %v7729, %v7657
      %v7731 = vadd.f32 %v7730, %v7658
      %v7732 = vadd.f32 %v7731, %v7659
      %v7733 = vadd.f32 %v7732, %v7660
      %v7734 = vadd.f32 %v7733, %v7661
      %v7735 = vadd.f32 %v7734, %v7662
      %v7736 = vadd.f32 %v7735, %v7663
      %v7737 = vadd.f32 %v7736, %v7664
      %v7738 = vadd.f32 %v7737, %v7665
      %v7739 = vrot.slane %v7738, 4
      %v7740 = vadd.f32 %v7738, %v7739
      %v7741 = vrot.slane %v7740, 2
      %v7742 = vadd.f32 %v7740, %v7741
      %v7743 = vrot.slane %v7742, 1
      %v7744 = vadd.f32 %v7742, %v7743
      %v7745 = vadd.f32 %v7666, %v7667
      %v7746 = vadd.f32 %v7745, %v7668
      %v7747 = vadd.f32 %v7746, %v7669
      %v7748 = vadd.f32 %v7747, %v7670
      %v7749 = vadd.f32 %v7748, %v7671
      %v7750 = vadd.f32 %v7749, %v7672
      %v7751 = vadd.f32 %v7750, %v7673
      %v7752 = vadd.f32 %v7751, %v7674
      %v7753 = vadd.f32 %v7752, %v7675
      %v7754 = vadd.f32 %v7753, %v7676
      %v7755 = vadd.f32 %v7754, %v7677
      %v7756 = vadd.f32 %v7755, %v7678
      %v7757 = vadd.f32 %v7756, %v7679
      %v7758 = vadd.f32 %v7757, %v7680
      %v7759 = vadd.f32 %v7758, %v7681
      %v7760 = vrot.slane %v7759, 4
      %v7761 = vadd.f32 %v7759, %v7760
      %v7762 = vrot.slane %v7761, 2
      %v7763 = vadd.f32 %v7761, %v7762
      %v7764 = vrot.slane %v7763, 1
      %v7765 = vadd.f32 %v7763, %v7764
      %v7766 = vmul.f32 %v7702, 1.442695
      %v7767 = vpow.pop %v7766
      %v7768 = vmul.f32 %v7723, 1.442695
      %v7769 = vpow.pop %v7768
      %v7770 = vmul.f32 %v7744, 1.442695
      %v7771 = vpow.pop %v7770
      %v7772 = vmul.f32 %v7765, 1.442695
      %v7773 = vpow.pop %v7772
      %v7774 = vsub.f32 1.0, %v6778
      %v7779 = vsel %vm1442, %v7769, %v7767
      %v7780 = vsel %vm1444, %v7771, %v7779
      %v7781 = vsel %vm1446, %v7773, %v7780
      %v7783 = vmul.f32 %v7774, %v7781
      %s7784 = scalar_lea.vmem %s307, 24
      %7785 = vst [vmem:[%s7784] sm:$0xf] %v7783
      %s7786 = scalar_lea.vmem %s313, 24
      %7787 = vst [vmem:[%s7786] sm:$0xf] %v6772
      %s7788 = scalar_lea.vmem %s288, 28
      %v7789 = vld [vmem:[%s7788] sm:$0xf]
      %s7790 = scalar_lea.vmem %s301, 28
      %v7791 = vld [vmem:[%s7790] sm:$0xf]
      %s7792 = scalar_lea.vmem %s295, 112
      %v7793 = vld [vmem:[%s7792] sm:$0xff]
      %v7794 = vld [vmem:[%s7792 + $0x8] sm:$0xff]
      %7796 = vset.pattern.permute.xlu0 0
      %7797 = vperm.xlu0 %7796, %v7791
      %v7798 = vpop.permute.xlu0 %7797
      %v7800 = vmul.f32 %v7798, %v7793
      %v7801 = vsub.f32 1.0, %v7800
      %7802 = vset.pattern.permute.xlu0 1
      %7803 = vperm.xlu0 %7802, %v7791
      %v7804 = vpop.permute.xlu0 %7803
      %v7807 = vcombine.high %v7793, %v7793
      %v7809 = vmul.f32 %v7804, %v7807
      %v7810 = vsub.f32 1.0, %v7809
      %v7811 = vmul.f32 %v7801, %v7810
      %7812 = vset.pattern.permute.xlu0 2
      %7813 = vperm.xlu0 %7812, %v7791
      %v7814 = vpop.permute.xlu0 %7813
      %v7816 = vmul.f32 %v7814, %v7794
      %v7817 = vsub.f32 1.0, %v7816
      %v7818 = vmul.f32 %v7811, %v7817
      %7819 = vset.pattern.permute.xlu0 3
      %7820 = vperm.xlu0 %7819, %v7791
      %v7821 = vpop.permute.xlu0 %7820
      %v7824 = vcombine.high %v7794, %v7794
      %v7826 = vmul.f32 %v7821, %v7824
      %v7827 = vsub.f32 1.0, %v7826
      %v7828 = vmul.f32 %v7818, %v7827
      %v7829 = vsub.f32 1.0, %v6776
      %v7830 = vmul.f32 %v7789, %v7829
      %v7831 = vadd.f32 %v6776, %v7830
      %v7832 = vmul.f32 %v7831, %v7828
      %v7833 = vmul.f32 %v7832, 0.999999
      %v7834 = vadd.f32 %v7833, 1e-06
      %v7835 = vlaneseq
      %v7836 = vshrl.u32 %v7835, 7
      %v7837 = vsub.s32 0, %v7836
      %v7838 = vrot.slane %v7834, %v7837
      %7840 = vbcast.lane.b32.xlu0 %v7838, 256
      %v7841 = vpop.permute.xlu0 %7840
      %s7843 = sor.u32 256, 8
      %7844 = vbcast.lane.b32.xlu0 %v7838, %s7843
      %v7845 = vpop.permute.xlu0 %7844
      %s7847 = sor.u32 256, 16
      %7848 = vbcast.lane.b32.xlu0 %v7838, %s7847
      %v7849 = vpop.permute.xlu0 %7848
      %s7851 = sor.u32 256, 24
      %7852 = vbcast.lane.b32.xlu0 %v7838, %s7851
      %v7853 = vpop.permute.xlu0 %7852
      %s7855 = sor.u32 256, 32
      %7856 = vbcast.lane.b32.xlu0 %v7838, %s7855
      %v7857 = vpop.permute.xlu0 %7856
      %s7859 = sor.u32 256, 40
      %7860 = vbcast.lane.b32.xlu0 %v7838, %s7859
      %v7861 = vpop.permute.xlu0 %7860
      %s7863 = sor.u32 256, 48
      %7864 = vbcast.lane.b32.xlu0 %v7838, %s7863
      %v7865 = vpop.permute.xlu0 %7864
      %s7867 = sor.u32 256, 56
      %7868 = vbcast.lane.b32.xlu0 %v7838, %s7867
      %v7869 = vpop.permute.xlu0 %7868
      %s7871 = sor.u32 256, 64
      %7872 = vbcast.lane.b32.xlu0 %v7838, %s7871
      %v7873 = vpop.permute.xlu0 %7872
      %s7875 = sor.u32 256, 72
      %7876 = vbcast.lane.b32.xlu0 %v7838, %s7875
      %v7877 = vpop.permute.xlu0 %7876
      %s7879 = sor.u32 256, 80
      %7880 = vbcast.lane.b32.xlu0 %v7838, %s7879
      %v7881 = vpop.permute.xlu0 %7880
      %s7883 = sor.u32 256, 88
      %7884 = vbcast.lane.b32.xlu0 %v7838, %s7883
      %v7885 = vpop.permute.xlu0 %7884
      %s7887 = sor.u32 256, 96
      %7888 = vbcast.lane.b32.xlu0 %v7838, %s7887
      %v7889 = vpop.permute.xlu0 %7888
      %s7891 = sor.u32 256, 104
      %7892 = vbcast.lane.b32.xlu0 %v7838, %s7891
      %v7893 = vpop.permute.xlu0 %7892
      %s7895 = sor.u32 256, 112
      %7896 = vbcast.lane.b32.xlu0 %v7838, %s7895
      %v7897 = vpop.permute.xlu0 %7896
      %s7899 = sor.u32 256, 120
      %7900 = vbcast.lane.b32.xlu0 %v7838, %s7899
      %v7901 = vpop.permute.xlu0 %7900
      %v7902 = vlaneseq
      %v7903 = vshrl.u32 %v7902, 7
      %v7904 = vsub.s32 1, %v7903
      %v7905 = vrot.slane %v7834, %v7904
      %7907 = vbcast.lane.b32.xlu0 %v7905, 256
      %v7908 = vpop.permute.xlu0 %7907
      %s7910 = sor.u32 256, 8
      %7911 = vbcast.lane.b32.xlu0 %v7905, %s7910
      %v7912 = vpop.permute.xlu0 %7911
      %s7914 = sor.u32 256, 16
      %7915 = vbcast.lane.b32.xlu0 %v7905, %s7914
      %v7916 = vpop.permute.xlu0 %7915
      %s7918 = sor.u32 256, 24
      %7919 = vbcast.lane.b32.xlu0 %v7905, %s7918
      %v7920 = vpop.permute.xlu0 %7919
      %s7922 = sor.u32 256, 32
      %7923 = vbcast.lane.b32.xlu0 %v7905, %s7922
      %v7924 = vpop.permute.xlu0 %7923
      %s7926 = sor.u32 256, 40
      %7927 = vbcast.lane.b32.xlu0 %v7905, %s7926
      %v7928 = vpop.permute.xlu0 %7927
      %s7930 = sor.u32 256, 48
      %7931 = vbcast.lane.b32.xlu0 %v7905, %s7930
      %v7932 = vpop.permute.xlu0 %7931
      %s7934 = sor.u32 256, 56
      %7935 = vbcast.lane.b32.xlu0 %v7905, %s7934
      %v7936 = vpop.permute.xlu0 %7935
      %s7938 = sor.u32 256, 64
      %7939 = vbcast.lane.b32.xlu0 %v7905, %s7938
      %v7940 = vpop.permute.xlu0 %7939
      %s7942 = sor.u32 256, 72
      %7943 = vbcast.lane.b32.xlu0 %v7905, %s7942
      %v7944 = vpop.permute.xlu0 %7943
      %s7946 = sor.u32 256, 80
      %7947 = vbcast.lane.b32.xlu0 %v7905, %s7946
      %v7948 = vpop.permute.xlu0 %7947
      %s7950 = sor.u32 256, 88
      %7951 = vbcast.lane.b32.xlu0 %v7905, %s7950
      %v7952 = vpop.permute.xlu0 %7951
      %s7954 = sor.u32 256, 96
      %7955 = vbcast.lane.b32.xlu0 %v7905, %s7954
      %v7956 = vpop.permute.xlu0 %7955
      %s7958 = sor.u32 256, 104
      %7959 = vbcast.lane.b32.xlu0 %v7905, %s7958
      %v7960 = vpop.permute.xlu0 %7959
      %s7962 = sor.u32 256, 112
      %7963 = vbcast.lane.b32.xlu0 %v7905, %s7962
      %v7964 = vpop.permute.xlu0 %7963
      %s7966 = sor.u32 256, 120
      %7967 = vbcast.lane.b32.xlu0 %v7905, %s7966
      %v7968 = vpop.permute.xlu0 %7967
      %v7969 = vlaneseq
      %v7970 = vshrl.u32 %v7969, 7
      %v7971 = vsub.s32 2, %v7970
      %v7972 = vrot.slane %v7834, %v7971
      %7974 = vbcast.lane.b32.xlu0 %v7972, 256
      %v7975 = vpop.permute.xlu0 %7974
      %s7977 = sor.u32 256, 8
      %7978 = vbcast.lane.b32.xlu0 %v7972, %s7977
      %v7979 = vpop.permute.xlu0 %7978
      %s7981 = sor.u32 256, 16
      %7982 = vbcast.lane.b32.xlu0 %v7972, %s7981
      %v7983 = vpop.permute.xlu0 %7982
      %s7985 = sor.u32 256, 24
      %7986 = vbcast.lane.b32.xlu0 %v7972, %s7985
      %v7987 = vpop.permute.xlu0 %7986
      %s7989 = sor.u32 256, 32
      %7990 = vbcast.lane.b32.xlu0 %v7972, %s7989
      %v7991 = vpop.permute.xlu0 %7990
      %s7993 = sor.u32 256, 40
      %7994 = vbcast.lane.b32.xlu0 %v7972, %s7993
      %v7995 = vpop.permute.xlu0 %7994
      %s7997 = sor.u32 256, 48
      %7998 = vbcast.lane.b32.xlu0 %v7972, %s7997
      %v7999 = vpop.permute.xlu0 %7998
      %s8001 = sor.u32 256, 56
      %8002 = vbcast.lane.b32.xlu0 %v7972, %s8001
      %v8003 = vpop.permute.xlu0 %8002
      %s8005 = sor.u32 256, 64
      %8006 = vbcast.lane.b32.xlu0 %v7972, %s8005
      %v8007 = vpop.permute.xlu0 %8006
      %s8009 = sor.u32 256, 72
      %8010 = vbcast.lane.b32.xlu0 %v7972, %s8009
      %v8011 = vpop.permute.xlu0 %8010
      %s8013 = sor.u32 256, 80
      %8014 = vbcast.lane.b32.xlu0 %v7972, %s8013
      %v8015 = vpop.permute.xlu0 %8014
      %s8017 = sor.u32 256, 88
      %8018 = vbcast.lane.b32.xlu0 %v7972, %s8017
      %v8019 = vpop.permute.xlu0 %8018
      %s8021 = sor.u32 256, 96
      %8022 = vbcast.lane.b32.xlu0 %v7972, %s8021
      %v8023 = vpop.permute.xlu0 %8022
      %s8025 = sor.u32 256, 104
      %8026 = vbcast.lane.b32.xlu0 %v7972, %s8025
      %v8027 = vpop.permute.xlu0 %8026
      %s8029 = sor.u32 256, 112
      %8030 = vbcast.lane.b32.xlu0 %v7972, %s8029
      %v8031 = vpop.permute.xlu0 %8030
      %s8033 = sor.u32 256, 120
      %8034 = vbcast.lane.b32.xlu0 %v7972, %s8033
      %v8035 = vpop.permute.xlu0 %8034
      %v8036 = vlaneseq
      %v8037 = vshrl.u32 %v8036, 7
      %v8038 = vsub.s32 3, %v8037
      %v8039 = vrot.slane %v7834, %v8038
      %8041 = vbcast.lane.b32.xlu0 %v8039, 256
      %v8042 = vpop.permute.xlu0 %8041
      %s8044 = sor.u32 256, 8
      %8045 = vbcast.lane.b32.xlu0 %v8039, %s8044
      %v8046 = vpop.permute.xlu0 %8045
      %s8048 = sor.u32 256, 16
      %8049 = vbcast.lane.b32.xlu0 %v8039, %s8048
      %v8050 = vpop.permute.xlu0 %8049
      %s8052 = sor.u32 256, 24
      %8053 = vbcast.lane.b32.xlu0 %v8039, %s8052
      %v8054 = vpop.permute.xlu0 %8053
      %s8056 = sor.u32 256, 32
      %8057 = vbcast.lane.b32.xlu0 %v8039, %s8056
      %v8058 = vpop.permute.xlu0 %8057
      %s8060 = sor.u32 256, 40
      %8061 = vbcast.lane.b32.xlu0 %v8039, %s8060
      %v8062 = vpop.permute.xlu0 %8061
      %s8064 = sor.u32 256, 48
      %8065 = vbcast.lane.b32.xlu0 %v8039, %s8064
      %v8066 = vpop.permute.xlu0 %8065
      %s8068 = sor.u32 256, 56
      %8069 = vbcast.lane.b32.xlu0 %v8039, %s8068
      %v8070 = vpop.permute.xlu0 %8069
      %s8072 = sor.u32 256, 64
      %8073 = vbcast.lane.b32.xlu0 %v8039, %s8072
      %v8074 = vpop.permute.xlu0 %8073
      %s8076 = sor.u32 256, 72
      %8077 = vbcast.lane.b32.xlu0 %v8039, %s8076
      %v8078 = vpop.permute.xlu0 %8077
      %s8080 = sor.u32 256, 80
      %8081 = vbcast.lane.b32.xlu0 %v8039, %s8080
      %v8082 = vpop.permute.xlu0 %8081
      %s8084 = sor.u32 256, 88
      %8085 = vbcast.lane.b32.xlu0 %v8039, %s8084
      %v8086 = vpop.permute.xlu0 %8085
      %s8088 = sor.u32 256, 96
      %8089 = vbcast.lane.b32.xlu0 %v8039, %s8088
      %v8090 = vpop.permute.xlu0 %8089
      %s8092 = sor.u32 256, 104
      %8093 = vbcast.lane.b32.xlu0 %v8039, %s8092
      %v8094 = vpop.permute.xlu0 %8093
      %s8096 = sor.u32 256, 112
      %8097 = vbcast.lane.b32.xlu0 %v8039, %s8096
      %v8098 = vpop.permute.xlu0 %8097
      %s8100 = sor.u32 256, 120
      %8101 = vbcast.lane.b32.xlu0 %v8039, %s8100
      %v8102 = vpop.permute.xlu0 %8101
      %v8105 = vunpack.c.l.s4 1966171168
      %v8106 = vunpack.c.0.s8 %v8105
      %v8107 = vlaneseq
      %v8108 = vshrl.u32 %v8107, 7
      %v8109 = vsub.s32 %v8106, %v8108
      %v8110 = vrot.slane %v7834, %v8109
      %v8111 = vcombine.high %v8110, %v8110
      %v8113 = vunpack.c.l.s4 1966171168
      %v8114 = vunpack.c.0.s8 %v8113
      %v8115 = vlaneseq
      %v8116 = vshrl.u32 %v8115, 7
      %v8117 = vsub.s32 %v8114, %v8116
      %v8118 = vrot.slane %v8110, %v8117
      %v8120 = vunpack.c.l.s4 1966171168
      %v8121 = vunpack.c.0.s8 %v8120
      %v8122 = vlaneseq
      %v8123 = vshrl.u32 %v8122, 7
      %v8124 = vsub.s32 %v8121, %v8123
      %v8125 = vrot.slane %v8111, %v8124
      %v8126 = vcombine.high %v8118, %v8118
      %v8127 = vcombine.high %v8125, %v8125
      %v8128 = vlaneseq
      %v8129 = vshrl.u32 %v8128, 7
      %v8130 = vsub.s32 0, %v8129
      %v8131 = vrot.slane %v8118, %v8130
      %v8132 = vlaneseq
      %v8133 = vshrl.u32 %v8132, 7
      %v8134 = vsub.s32 0, %v8133
      %v8135 = vrot.slane %v8125, %v8134
      %v8136 = vlaneseq
      %v8137 = vshrl.u32 %v8136, 7
      %v8138 = vsub.s32 0, %v8137
      %v8139 = vrot.slane %v8126, %v8138
      %v8140 = vlaneseq
      %v8141 = vshrl.u32 %v8140, 7
      %v8142 = vsub.s32 0, %v8141
      %v8143 = vrot.slane %v8127, %v8142
      %vm8148 = vcmp.lt.f32.partialorder %v7841, %v8131
      %vm8149 = vcmp.lt.f32.partialorder %v7845, %v8131
      %vm8150 = vcmp.lt.f32.partialorder %v7849, %v8131
      %vm8151 = vcmp.lt.f32.partialorder %v7853, %v8131
      %vm8152 = vcmp.lt.f32.partialorder %v7857, %v8131
      %vm8153 = vcmp.lt.f32.partialorder %v7861, %v8131
      %vm8154 = vcmp.lt.f32.partialorder %v7865, %v8131
      %vm8155 = vcmp.lt.f32.partialorder %v7869, %v8131
      %vm8156 = vcmp.lt.f32.partialorder %v7873, %v8131
      %vm8157 = vcmp.lt.f32.partialorder %v7877, %v8131
      %vm8158 = vcmp.lt.f32.partialorder %v7881, %v8131
      %vm8159 = vcmp.lt.f32.partialorder %v7885, %v8131
      %vm8160 = vcmp.lt.f32.partialorder %v7889, %v8131
      %vm8161 = vcmp.lt.f32.partialorder %v7893, %v8131
      %vm8162 = vcmp.lt.f32.partialorder %v7897, %v8131
      %vm8163 = vcmp.lt.f32.partialorder %v7901, %v8131
      %vm8164 = vcmp.lt.f32.partialorder %v7908, %v8135
      %vm8165 = vcmp.lt.f32.partialorder %v7912, %v8135
      %vm8166 = vcmp.lt.f32.partialorder %v7916, %v8135
      %vm8167 = vcmp.lt.f32.partialorder %v7920, %v8135
      %vm8168 = vcmp.lt.f32.partialorder %v7924, %v8135
      %vm8169 = vcmp.lt.f32.partialorder %v7928, %v8135
      %vm8170 = vcmp.lt.f32.partialorder %v7932, %v8135
      %vm8171 = vcmp.lt.f32.partialorder %v7936, %v8135
      %vm8172 = vcmp.lt.f32.partialorder %v7940, %v8135
      %vm8173 = vcmp.lt.f32.partialorder %v7944, %v8135
      %vm8174 = vcmp.lt.f32.partialorder %v7948, %v8135
      %vm8175 = vcmp.lt.f32.partialorder %v7952, %v8135
      %vm8176 = vcmp.lt.f32.partialorder %v7956, %v8135
      %vm8177 = vcmp.lt.f32.partialorder %v7960, %v8135
      %vm8178 = vcmp.lt.f32.partialorder %v7964, %v8135
      %vm8179 = vcmp.lt.f32.partialorder %v7968, %v8135
      %vm8180 = vcmp.lt.f32.partialorder %v7975, %v8139
      %vm8181 = vcmp.lt.f32.partialorder %v7979, %v8139
      %vm8182 = vcmp.lt.f32.partialorder %v7983, %v8139
      %vm8183 = vcmp.lt.f32.partialorder %v7987, %v8139
      %vm8184 = vcmp.lt.f32.partialorder %v7991, %v8139
      %vm8185 = vcmp.lt.f32.partialorder %v7995, %v8139
      %vm8186 = vcmp.lt.f32.partialorder %v7999, %v8139
      %vm8187 = vcmp.lt.f32.partialorder %v8003, %v8139
      %vm8188 = vcmp.lt.f32.partialorder %v8007, %v8139
      %vm8189 = vcmp.lt.f32.partialorder %v8011, %v8139
      %vm8190 = vcmp.lt.f32.partialorder %v8015, %v8139
      %vm8191 = vcmp.lt.f32.partialorder %v8019, %v8139
      %vm8192 = vcmp.lt.f32.partialorder %v8023, %v8139
      %vm8193 = vcmp.lt.f32.partialorder %v8027, %v8139
      %vm8194 = vcmp.lt.f32.partialorder %v8031, %v8139
      %vm8195 = vcmp.lt.f32.partialorder %v8035, %v8139
      %vm8196 = vcmp.lt.f32.partialorder %v8042, %v8143
      %vm8197 = vcmp.lt.f32.partialorder %v8046, %v8143
      %vm8198 = vcmp.lt.f32.partialorder %v8050, %v8143
      %vm8199 = vcmp.lt.f32.partialorder %v8054, %v8143
      %vm8200 = vcmp.lt.f32.partialorder %v8058, %v8143
      %vm8201 = vcmp.lt.f32.partialorder %v8062, %v8143
      %vm8202 = vcmp.lt.f32.partialorder %v8066, %v8143
      %vm8203 = vcmp.lt.f32.partialorder %v8070, %v8143
      %vm8204 = vcmp.lt.f32.partialorder %v8074, %v8143
      %vm8205 = vcmp.lt.f32.partialorder %v8078, %v8143
      %vm8206 = vcmp.lt.f32.partialorder %v8082, %v8143
      %vm8207 = vcmp.lt.f32.partialorder %v8086, %v8143
      %vm8208 = vcmp.lt.f32.partialorder %v8090, %v8143
      %vm8209 = vcmp.lt.f32.partialorder %v8094, %v8143
      %vm8210 = vcmp.lt.f32.partialorder %v8098, %v8143
      %vm8211 = vcmp.lt.f32.partialorder %v8102, %v8143
      %vm8212 = vcmp.eq.f32.partialorder %v7841, %v8131
      %vm8213 = vcmp.eq.f32.partialorder %v7845, %v8131
      %vm8214 = vcmp.eq.f32.partialorder %v7849, %v8131
      %vm8215 = vcmp.eq.f32.partialorder %v7853, %v8131
      %vm8216 = vcmp.eq.f32.partialorder %v7857, %v8131
      %vm8217 = vcmp.eq.f32.partialorder %v7861, %v8131
      %vm8218 = vcmp.eq.f32.partialorder %v7865, %v8131
      %vm8219 = vcmp.eq.f32.partialorder %v7869, %v8131
      %vm8220 = vcmp.eq.f32.partialorder %v7873, %v8131
      %vm8221 = vcmp.eq.f32.partialorder %v7877, %v8131
      %vm8222 = vcmp.eq.f32.partialorder %v7881, %v8131
      %vm8223 = vcmp.eq.f32.partialorder %v7885, %v8131
      %vm8224 = vcmp.eq.f32.partialorder %v7889, %v8131
      %vm8225 = vcmp.eq.f32.partialorder %v7893, %v8131
      %vm8226 = vcmp.eq.f32.partialorder %v7897, %v8131
      %vm8227 = vcmp.eq.f32.partialorder %v7901, %v8131
      %vm8228 = vcmp.eq.f32.partialorder %v7908, %v8135
      %vm8229 = vcmp.eq.f32.partialorder %v7912, %v8135
      %vm8230 = vcmp.eq.f32.partialorder %v7916, %v8135
      %vm8231 = vcmp.eq.f32.partialorder %v7920, %v8135
      %vm8232 = vcmp.eq.f32.partialorder %v7924, %v8135
      %vm8233 = vcmp.eq.f32.partialorder %v7928, %v8135
      %vm8234 = vcmp.eq.f32.partialorder %v7932, %v8135
      %vm8235 = vcmp.eq.f32.partialorder %v7936, %v8135
      %vm8236 = vcmp.eq.f32.partialorder %v7940, %v8135
      %vm8237 = vcmp.eq.f32.partialorder %v7944, %v8135
      %vm8238 = vcmp.eq.f32.partialorder %v7948, %v8135
      %vm8239 = vcmp.eq.f32.partialorder %v7952, %v8135
      %vm8240 = vcmp.eq.f32.partialorder %v7956, %v8135
      %vm8241 = vcmp.eq.f32.partialorder %v7960, %v8135
      %vm8242 = vcmp.eq.f32.partialorder %v7964, %v8135
      %vm8243 = vcmp.eq.f32.partialorder %v7968, %v8135
      %vm8244 = vcmp.eq.f32.partialorder %v7975, %v8139
      %vm8245 = vcmp.eq.f32.partialorder %v7979, %v8139
      %vm8246 = vcmp.eq.f32.partialorder %v7983, %v8139
      %vm8247 = vcmp.eq.f32.partialorder %v7987, %v8139
      %vm8248 = vcmp.eq.f32.partialorder %v7991, %v8139
      %vm8249 = vcmp.eq.f32.partialorder %v7995, %v8139
      %vm8250 = vcmp.eq.f32.partialorder %v7999, %v8139
      %vm8251 = vcmp.eq.f32.partialorder %v8003, %v8139
      %vm8252 = vcmp.eq.f32.partialorder %v8007, %v8139
      %vm8253 = vcmp.eq.f32.partialorder %v8011, %v8139
      %vm8254 = vcmp.eq.f32.partialorder %v8015, %v8139
      %vm8255 = vcmp.eq.f32.partialorder %v8019, %v8139
      %vm8256 = vcmp.eq.f32.partialorder %v8023, %v8139
      %vm8257 = vcmp.eq.f32.partialorder %v8027, %v8139
      %vm8258 = vcmp.eq.f32.partialorder %v8031, %v8139
      %vm8259 = vcmp.eq.f32.partialorder %v8035, %v8139
      %vm8260 = vcmp.eq.f32.partialorder %v8042, %v8143
      %vm8261 = vcmp.eq.f32.partialorder %v8046, %v8143
      %vm8262 = vcmp.eq.f32.partialorder %v8050, %v8143
      %vm8263 = vcmp.eq.f32.partialorder %v8054, %v8143
      %vm8264 = vcmp.eq.f32.partialorder %v8058, %v8143
      %vm8265 = vcmp.eq.f32.partialorder %v8062, %v8143
      %vm8266 = vcmp.eq.f32.partialorder %v8066, %v8143
      %vm8267 = vcmp.eq.f32.partialorder %v8070, %v8143
      %vm8268 = vcmp.eq.f32.partialorder %v8074, %v8143
      %vm8269 = vcmp.eq.f32.partialorder %v8078, %v8143
      %vm8270 = vcmp.eq.f32.partialorder %v8082, %v8143
      %vm8271 = vcmp.eq.f32.partialorder %v8086, %v8143
      %vm8272 = vcmp.eq.f32.partialorder %v8090, %v8143
      %vm8273 = vcmp.eq.f32.partialorder %v8094, %v8143
      %vm8274 = vcmp.eq.f32.partialorder %v8098, %v8143
      %vm8275 = vcmp.eq.f32.partialorder %v8102, %v8143
      %vm8276 = vmand %vm8212, %vm867
      %vm8277 = vmand %vm8213, %vm868
      %vm8278 = vmand %vm8214, %vm869
      %vm8279 = vmand %vm8215, %vm870
      %vm8280 = vmand %vm8216, %vm871
      %vm8281 = vmand %vm8217, %vm872
      %vm8282 = vmand %vm8218, %vm873
      %vm8283 = vmand %vm8219, %vm874
      %vm8284 = vmand %vm8220, %vm875
      %vm8285 = vmand %vm8221, %vm876
      %vm8286 = vmand %vm8222, %vm877
      %vm8287 = vmand %vm8223, %vm878
      %vm8288 = vmand %vm8224, %vm879
      %vm8289 = vmand %vm8225, %vm880
      %vm8290 = vmand %vm8226, %vm881
      %vm8291 = vmand %vm8227, %vm882
      %vm8292 = vmand %vm8228, %vm867
      %vm8293 = vmand %vm8229, %vm868
      %vm8294 = vmand %vm8230, %vm869
      %vm8295 = vmand %vm8231, %vm870
      %vm8296 = vmand %vm8232, %vm871
      %vm8297 = vmand %vm8233, %vm872
      %vm8298 = vmand %vm8234, %vm873
      %vm8299 = vmand %vm8235, %vm874
      %vm8300 = vmand %vm8236, %vm875
      %vm8301 = vmand %vm8237, %vm876
      %vm8302 = vmand %vm8238, %vm877
      %vm8303 = vmand %vm8239, %vm878
      %vm8304 = vmand %vm8240, %vm879
      %vm8305 = vmand %vm8241, %vm880
      %vm8306 = vmand %vm8242, %vm881
      %vm8307 = vmand %vm8243, %vm882
      %vm8308 = vmand %vm8244, %vm867
      %vm8309 = vmand %vm8245, %vm868
      %vm8310 = vmand %vm8246, %vm869
      %vm8311 = vmand %vm8247, %vm870
      %vm8312 = vmand %vm8248, %vm871
      %vm8313 = vmand %vm8249, %vm872
      %vm8314 = vmand %vm8250, %vm873
      %vm8315 = vmand %vm8251, %vm874
      %vm8316 = vmand %vm8252, %vm875
      %vm8317 = vmand %vm8253, %vm876
      %vm8318 = vmand %vm8254, %vm877
      %vm8319 = vmand %vm8255, %vm878
      %vm8320 = vmand %vm8256, %vm879
      %vm8321 = vmand %vm8257, %vm880
      %vm8322 = vmand %vm8258, %vm881
      %vm8323 = vmand %vm8259, %vm882
      %vm8324 = vmand %vm8260, %vm867
      %vm8325 = vmand %vm8261, %vm868
      %vm8326 = vmand %vm8262, %vm869
      %vm8327 = vmand %vm8263, %vm870
      %vm8328 = vmand %vm8264, %vm871
      %vm8329 = vmand %vm8265, %vm872
      %vm8330 = vmand %vm8266, %vm873
      %vm8331 = vmand %vm8267, %vm874
      %vm8332 = vmand %vm8268, %vm875
      %vm8333 = vmand %vm8269, %vm876
      %vm8334 = vmand %vm8270, %vm877
      %vm8335 = vmand %vm8271, %vm878
      %vm8336 = vmand %vm8272, %vm879
      %vm8337 = vmand %vm8273, %vm880
      %vm8338 = vmand %vm8274, %vm881
      %vm8339 = vmand %vm8275, %vm882
      %vm8340 = vmor %vm8148, %vm8276
      %vm8341 = vmor %vm8149, %vm8277
      %vm8342 = vmor %vm8150, %vm8278
      %vm8343 = vmor %vm8151, %vm8279
      %vm8344 = vmor %vm8152, %vm8280
      %vm8345 = vmor %vm8153, %vm8281
      %vm8346 = vmor %vm8154, %vm8282
      %vm8347 = vmor %vm8155, %vm8283
      %vm8348 = vmor %vm8156, %vm8284
      %vm8349 = vmor %vm8157, %vm8285
      %vm8350 = vmor %vm8158, %vm8286
      %vm8351 = vmor %vm8159, %vm8287
      %vm8352 = vmor %vm8160, %vm8288
      %vm8353 = vmor %vm8161, %vm8289
      %vm8354 = vmor %vm8162, %vm8290
      %vm8355 = vmor %vm8163, %vm8291
      %vm8356 = vmor %vm8164, %vm8292
      %vm8357 = vmor %vm8165, %vm8293
      %vm8358 = vmor %vm8166, %vm8294
      %vm8359 = vmor %vm8167, %vm8295
      %vm8360 = vmor %vm8168, %vm8296
      %vm8361 = vmor %vm8169, %vm8297
      %vm8362 = vmor %vm8170, %vm8298
      %vm8363 = vmor %vm8171, %vm8299
      %vm8364 = vmor %vm8172, %vm8300
      %vm8365 = vmor %vm8173, %vm8301
      %vm8366 = vmor %vm8174, %vm8302
      %vm8367 = vmor %vm8175, %vm8303
      %vm8368 = vmor %vm8176, %vm8304
      %vm8369 = vmor %vm8177, %vm8305
      %vm8370 = vmor %vm8178, %vm8306
      %vm8371 = vmor %vm8179, %vm8307
      %vm8372 = vmor %vm8180, %vm8308
      %vm8373 = vmor %vm8181, %vm8309
      %vm8374 = vmor %vm8182, %vm8310
      %vm8375 = vmor %vm8183, %vm8311
      %vm8376 = vmor %vm8184, %vm8312
      %vm8377 = vmor %vm8185, %vm8313
      %vm8378 = vmor %vm8186, %vm8314
      %vm8379 = vmor %vm8187, %vm8315
      %vm8380 = vmor %vm8188, %vm8316
      %vm8381 = vmor %vm8189, %vm8317
      %vm8382 = vmor %vm8190, %vm8318
      %vm8383 = vmor %vm8191, %vm8319
      %vm8384 = vmor %vm8192, %vm8320
      %vm8385 = vmor %vm8193, %vm8321
      %vm8386 = vmor %vm8194, %vm8322
      %vm8387 = vmor %vm8195, %vm8323
      %vm8388 = vmor %vm8196, %vm8324
      %vm8389 = vmor %vm8197, %vm8325
      %vm8390 = vmor %vm8198, %vm8326
      %vm8391 = vmor %vm8199, %vm8327
      %vm8392 = vmor %vm8200, %vm8328
      %vm8393 = vmor %vm8201, %vm8329
      %vm8394 = vmor %vm8202, %vm8330
      %vm8395 = vmor %vm8203, %vm8331
      %vm8396 = vmor %vm8204, %vm8332
      %vm8397 = vmor %vm8205, %vm8333
      %vm8398 = vmor %vm8206, %vm8334
      %vm8399 = vmor %vm8207, %vm8335
      %vm8400 = vmor %vm8208, %vm8336
      %vm8401 = vmor %vm8209, %vm8337
      %vm8402 = vmor %vm8210, %vm8338
      %vm8403 = vmor %vm8211, %vm8339
      %v8404 = vlog2.pop %v7834
      %v8405 = vmul.f32 %v8404, 0.6931472
      %v8406 = vlaneseq
      %v8407 = vshrl.u32 %v8406, 7
      %v8408 = vsub.s32 0, %v8407
      %v8409 = vrot.slane %v8405, %v8408
      %8411 = vbcast.lane.b32.xlu0 %v8409, 256
      %v8412 = vpop.permute.xlu0 %8411
      %s8414 = sor.u32 256, 8
      %8415 = vbcast.lane.b32.xlu0 %v8409, %s8414
      %v8416 = vpop.permute.xlu0 %8415
      %s8418 = sor.u32 256, 16
      %8419 = vbcast.lane.b32.xlu0 %v8409, %s8418
      %v8420 = vpop.permute.xlu0 %8419
      %s8422 = sor.u32 256, 24
      %8423 = vbcast.lane.b32.xlu0 %v8409, %s8422
      %v8424 = vpop.permute.xlu0 %8423
      %s8426 = sor.u32 256, 32
      %8427 = vbcast.lane.b32.xlu0 %v8409, %s8426
      %v8428 = vpop.permute.xlu0 %8427
      %s8430 = sor.u32 256, 40
      %8431 = vbcast.lane.b32.xlu0 %v8409, %s8430
      %v8432 = vpop.permute.xlu0 %8431
      %s8434 = sor.u32 256, 48
      %8435 = vbcast.lane.b32.xlu0 %v8409, %s8434
      %v8436 = vpop.permute.xlu0 %8435
      %s8438 = sor.u32 256, 56
      %8439 = vbcast.lane.b32.xlu0 %v8409, %s8438
      %v8440 = vpop.permute.xlu0 %8439
      %s8442 = sor.u32 256, 64
      %8443 = vbcast.lane.b32.xlu0 %v8409, %s8442
      %v8444 = vpop.permute.xlu0 %8443
      %s8446 = sor.u32 256, 72
      %8447 = vbcast.lane.b32.xlu0 %v8409, %s8446
      %v8448 = vpop.permute.xlu0 %8447
      %s8450 = sor.u32 256, 80
      %8451 = vbcast.lane.b32.xlu0 %v8409, %s8450
      %v8452 = vpop.permute.xlu0 %8451
      %s8454 = sor.u32 256, 88
      %8455 = vbcast.lane.b32.xlu0 %v8409, %s8454
      %v8456 = vpop.permute.xlu0 %8455
      %s8458 = sor.u32 256, 96
      %8459 = vbcast.lane.b32.xlu0 %v8409, %s8458
      %v8460 = vpop.permute.xlu0 %8459
      %s8462 = sor.u32 256, 104
      %8463 = vbcast.lane.b32.xlu0 %v8409, %s8462
      %v8464 = vpop.permute.xlu0 %8463
      %s8466 = sor.u32 256, 112
      %8467 = vbcast.lane.b32.xlu0 %v8409, %s8466
      %v8468 = vpop.permute.xlu0 %8467
      %s8470 = sor.u32 256, 120
      %8471 = vbcast.lane.b32.xlu0 %v8409, %s8470
      %v8472 = vpop.permute.xlu0 %8471
      %v8473 = vlaneseq
      %v8474 = vshrl.u32 %v8473, 7
      %v8475 = vsub.s32 1, %v8474
      %v8476 = vrot.slane %v8405, %v8475
      %8478 = vbcast.lane.b32.xlu0 %v8476, 256
      %v8479 = vpop.permute.xlu0 %8478
      %s8481 = sor.u32 256, 8
      %8482 = vbcast.lane.b32.xlu0 %v8476, %s8481
      %v8483 = vpop.permute.xlu0 %8482
      %s8485 = sor.u32 256, 16
      %8486 = vbcast.lane.b32.xlu0 %v8476, %s8485
      %v8487 = vpop.permute.xlu0 %8486
      %s8489 = sor.u32 256, 24
      %8490 = vbcast.lane.b32.xlu0 %v8476, %s8489
      %v8491 = vpop.permute.xlu0 %8490
      %s8493 = sor.u32 256, 32
      %8494 = vbcast.lane.b32.xlu0 %v8476, %s8493
      %v8495 = vpop.permute.xlu0 %8494
      %s8497 = sor.u32 256, 40
      %8498 = vbcast.lane.b32.xlu0 %v8476, %s8497
      %v8499 = vpop.permute.xlu0 %8498
      %s8501 = sor.u32 256, 48
      %8502 = vbcast.lane.b32.xlu0 %v8476, %s8501
      %v8503 = vpop.permute.xlu0 %8502
      %s8505 = sor.u32 256, 56
      %8506 = vbcast.lane.b32.xlu0 %v8476, %s8505
      %v8507 = vpop.permute.xlu0 %8506
      %s8509 = sor.u32 256, 64
      %8510 = vbcast.lane.b32.xlu0 %v8476, %s8509
      %v8511 = vpop.permute.xlu0 %8510
      %s8513 = sor.u32 256, 72
      %8514 = vbcast.lane.b32.xlu0 %v8476, %s8513
      %v8515 = vpop.permute.xlu0 %8514
      %s8517 = sor.u32 256, 80
      %8518 = vbcast.lane.b32.xlu0 %v8476, %s8517
      %v8519 = vpop.permute.xlu0 %8518
      %s8521 = sor.u32 256, 88
      %8522 = vbcast.lane.b32.xlu0 %v8476, %s8521
      %v8523 = vpop.permute.xlu0 %8522
      %s8525 = sor.u32 256, 96
      %8526 = vbcast.lane.b32.xlu0 %v8476, %s8525
      %v8527 = vpop.permute.xlu0 %8526
      %s8529 = sor.u32 256, 104
      %8530 = vbcast.lane.b32.xlu0 %v8476, %s8529
      %v8531 = vpop.permute.xlu0 %8530
      %s8533 = sor.u32 256, 112
      %8534 = vbcast.lane.b32.xlu0 %v8476, %s8533
      %v8535 = vpop.permute.xlu0 %8534
      %s8537 = sor.u32 256, 120
      %8538 = vbcast.lane.b32.xlu0 %v8476, %s8537
      %v8539 = vpop.permute.xlu0 %8538
      %v8540 = vlaneseq
      %v8541 = vshrl.u32 %v8540, 7
      %v8542 = vsub.s32 2, %v8541
      %v8543 = vrot.slane %v8405, %v8542
      %8545 = vbcast.lane.b32.xlu0 %v8543, 256
      %v8546 = vpop.permute.xlu0 %8545
      %s8548 = sor.u32 256, 8
      %8549 = vbcast.lane.b32.xlu0 %v8543, %s8548
      %v8550 = vpop.permute.xlu0 %8549
      %s8552 = sor.u32 256, 16
      %8553 = vbcast.lane.b32.xlu0 %v8543, %s8552
      %v8554 = vpop.permute.xlu0 %8553
      %s8556 = sor.u32 256, 24
      %8557 = vbcast.lane.b32.xlu0 %v8543, %s8556
      %v8558 = vpop.permute.xlu0 %8557
      %s8560 = sor.u32 256, 32
      %8561 = vbcast.lane.b32.xlu0 %v8543, %s8560
      %v8562 = vpop.permute.xlu0 %8561
      %s8564 = sor.u32 256, 40
      %8565 = vbcast.lane.b32.xlu0 %v8543, %s8564
      %v8566 = vpop.permute.xlu0 %8565
      %s8568 = sor.u32 256, 48
      %8569 = vbcast.lane.b32.xlu0 %v8543, %s8568
      %v8570 = vpop.permute.xlu0 %8569
      %s8572 = sor.u32 256, 56
      %8573 = vbcast.lane.b32.xlu0 %v8543, %s8572
      %v8574 = vpop.permute.xlu0 %8573
      %s8576 = sor.u32 256, 64
      %8577 = vbcast.lane.b32.xlu0 %v8543, %s8576
      %v8578 = vpop.permute.xlu0 %8577
      %s8580 = sor.u32 256, 72
      %8581 = vbcast.lane.b32.xlu0 %v8543, %s8580
      %v8582 = vpop.permute.xlu0 %8581
      %s8584 = sor.u32 256, 80
      %8585 = vbcast.lane.b32.xlu0 %v8543, %s8584
      %v8586 = vpop.permute.xlu0 %8585
      %s8588 = sor.u32 256, 88
      %8589 = vbcast.lane.b32.xlu0 %v8543, %s8588
      %v8590 = vpop.permute.xlu0 %8589
      %s8592 = sor.u32 256, 96
      %8593 = vbcast.lane.b32.xlu0 %v8543, %s8592
      %v8594 = vpop.permute.xlu0 %8593
      %s8596 = sor.u32 256, 104
      %8597 = vbcast.lane.b32.xlu0 %v8543, %s8596
      %v8598 = vpop.permute.xlu0 %8597
      %s8600 = sor.u32 256, 112
      %8601 = vbcast.lane.b32.xlu0 %v8543, %s8600
      %v8602 = vpop.permute.xlu0 %8601
      %s8604 = sor.u32 256, 120
      %8605 = vbcast.lane.b32.xlu0 %v8543, %s8604
      %v8606 = vpop.permute.xlu0 %8605
      %v8607 = vlaneseq
      %v8608 = vshrl.u32 %v8607, 7
      %v8609 = vsub.s32 3, %v8608
      %v8610 = vrot.slane %v8405, %v8609
      %8612 = vbcast.lane.b32.xlu0 %v8610, 256
      %v8613 = vpop.permute.xlu0 %8612
      %s8615 = sor.u32 256, 8
      %8616 = vbcast.lane.b32.xlu0 %v8610, %s8615
      %v8617 = vpop.permute.xlu0 %8616
      %s8619 = sor.u32 256, 16
      %8620 = vbcast.lane.b32.xlu0 %v8610, %s8619
      %v8621 = vpop.permute.xlu0 %8620
      %s8623 = sor.u32 256, 24
      %8624 = vbcast.lane.b32.xlu0 %v8610, %s8623
      %v8625 = vpop.permute.xlu0 %8624
      %s8627 = sor.u32 256, 32
      %8628 = vbcast.lane.b32.xlu0 %v8610, %s8627
      %v8629 = vpop.permute.xlu0 %8628
      %s8631 = sor.u32 256, 40
      %8632 = vbcast.lane.b32.xlu0 %v8610, %s8631
      %v8633 = vpop.permute.xlu0 %8632
      %s8635 = sor.u32 256, 48
      %8636 = vbcast.lane.b32.xlu0 %v8610, %s8635
      %v8637 = vpop.permute.xlu0 %8636
      %s8639 = sor.u32 256, 56
      %8640 = vbcast.lane.b32.xlu0 %v8610, %s8639
      %v8641 = vpop.permute.xlu0 %8640
      %s8643 = sor.u32 256, 64
      %8644 = vbcast.lane.b32.xlu0 %v8610, %s8643
      %v8645 = vpop.permute.xlu0 %8644
      %s8647 = sor.u32 256, 72
      %8648 = vbcast.lane.b32.xlu0 %v8610, %s8647
      %v8649 = vpop.permute.xlu0 %8648
      %s8651 = sor.u32 256, 80
      %8652 = vbcast.lane.b32.xlu0 %v8610, %s8651
      %v8653 = vpop.permute.xlu0 %8652
      %s8655 = sor.u32 256, 88
      %8656 = vbcast.lane.b32.xlu0 %v8610, %s8655
      %v8657 = vpop.permute.xlu0 %8656
      %s8659 = sor.u32 256, 96
      %8660 = vbcast.lane.b32.xlu0 %v8610, %s8659
      %v8661 = vpop.permute.xlu0 %8660
      %s8663 = sor.u32 256, 104
      %8664 = vbcast.lane.b32.xlu0 %v8610, %s8663
      %v8665 = vpop.permute.xlu0 %8664
      %s8667 = sor.u32 256, 112
      %8668 = vbcast.lane.b32.xlu0 %v8610, %s8667
      %v8669 = vpop.permute.xlu0 %8668
      %s8671 = sor.u32 256, 120
      %8672 = vbcast.lane.b32.xlu0 %v8610, %s8671
      %v8673 = vpop.permute.xlu0 %8672
      %v8674 = vsel %vm8340, %v8412, 0.0
      %v8675 = vsel %vm8341, %v8416, 0.0
      %v8676 = vsel %vm8342, %v8420, 0.0
      %v8677 = vsel %vm8343, %v8424, 0.0
      %v8678 = vsel %vm8344, %v8428, 0.0
      %v8679 = vsel %vm8345, %v8432, 0.0
      %v8680 = vsel %vm8346, %v8436, 0.0
      %v8681 = vsel %vm8347, %v8440, 0.0
      %v8682 = vsel %vm8348, %v8444, 0.0
      %v8683 = vsel %vm8349, %v8448, 0.0
      %v8684 = vsel %vm8350, %v8452, 0.0
      %v8685 = vsel %vm8351, %v8456, 0.0
      %v8686 = vsel %vm8352, %v8460, 0.0
      %v8687 = vsel %vm8353, %v8464, 0.0
      %v8688 = vsel %vm8354, %v8468, 0.0
      %v8689 = vsel %vm8355, %v8472, 0.0
      %v8690 = vsel %vm8356, %v8479, 0.0
      %v8691 = vsel %vm8357, %v8483, 0.0
      %v8692 = vsel %vm8358, %v8487, 0.0
      %v8693 = vsel %vm8359, %v8491, 0.0
      %v8694 = vsel %vm8360, %v8495, 0.0
      %v8695 = vsel %vm8361, %v8499, 0.0
      %v8696 = vsel %vm8362, %v8503, 0.0
      %v8697 = vsel %vm8363, %v8507, 0.0
      %v8698 = vsel %vm8364, %v8511, 0.0
      %v8699 = vsel %vm8365, %v8515, 0.0
      %v8700 = vsel %vm8366, %v8519, 0.0
      %v8701 = vsel %vm8367, %v8523, 0.0
      %v8702 = vsel %vm8368, %v8527, 0.0
      %v8703 = vsel %vm8369, %v8531, 0.0
      %v8704 = vsel %vm8370, %v8535, 0.0
      %v8705 = vsel %vm8371, %v8539, 0.0
      %v8706 = vsel %vm8372, %v8546, 0.0
      %v8707 = vsel %vm8373, %v8550, 0.0
      %v8708 = vsel %vm8374, %v8554, 0.0
      %v8709 = vsel %vm8375, %v8558, 0.0
      %v8710 = vsel %vm8376, %v8562, 0.0
      %v8711 = vsel %vm8377, %v8566, 0.0
      %v8712 = vsel %vm8378, %v8570, 0.0
      %v8713 = vsel %vm8379, %v8574, 0.0
      %v8714 = vsel %vm8380, %v8578, 0.0
      %v8715 = vsel %vm8381, %v8582, 0.0
      %v8716 = vsel %vm8382, %v8586, 0.0
      %v8717 = vsel %vm8383, %v8590, 0.0
      %v8718 = vsel %vm8384, %v8594, 0.0
      %v8719 = vsel %vm8385, %v8598, 0.0
      %v8720 = vsel %vm8386, %v8602, 0.0
      %v8721 = vsel %vm8387, %v8606, 0.0
      %v8722 = vsel %vm8388, %v8613, 0.0
      %v8723 = vsel %vm8389, %v8617, 0.0
      %v8724 = vsel %vm8390, %v8621, 0.0
      %v8725 = vsel %vm8391, %v8625, 0.0
      %v8726 = vsel %vm8392, %v8629, 0.0
      %v8727 = vsel %vm8393, %v8633, 0.0
      %v8728 = vsel %vm8394, %v8637, 0.0
      %v8729 = vsel %vm8395, %v8641, 0.0
      %v8730 = vsel %vm8396, %v8645, 0.0
      %v8731 = vsel %vm8397, %v8649, 0.0
      %v8732 = vsel %vm8398, %v8653, 0.0
      %v8733 = vsel %vm8399, %v8657, 0.0
      %v8734 = vsel %vm8400, %v8661, 0.0
      %v8735 = vsel %vm8401, %v8665, 0.0
      %v8736 = vsel %vm8402, %v8669, 0.0
      %v8737 = vsel %vm8403, %v8673, 0.0
      %v8738 = vadd.f32 %v8674, %v8675
      %v8739 = vadd.f32 %v8738, %v8676
      %v8740 = vadd.f32 %v8739, %v8677
      %v8741 = vadd.f32 %v8740, %v8678
      %v8742 = vadd.f32 %v8741, %v8679
      %v8743 = vadd.f32 %v8742, %v8680
      %v8744 = vadd.f32 %v8743, %v8681
      %v8745 = vadd.f32 %v8744, %v8682
      %v8746 = vadd.f32 %v8745, %v8683
      %v8747 = vadd.f32 %v8746, %v8684
      %v8748 = vadd.f32 %v8747, %v8685
      %v8749 = vadd.f32 %v8748, %v8686
      %v8750 = vadd.f32 %v8749, %v8687
      %v8751 = vadd.f32 %v8750, %v8688
      %v8752 = vadd.f32 %v8751, %v8689
      %v8753 = vrot.slane %v8752, 4
      %v8754 = vadd.f32 %v8752, %v8753
      %v8755 = vrot.slane %v8754, 2
      %v8756 = vadd.f32 %v8754, %v8755
      %v8757 = vrot.slane %v8756, 1
      %v8758 = vadd.f32 %v8756, %v8757
      %v8759 = vadd.f32 %v8690, %v8691
      %v8760 = vadd.f32 %v8759, %v8692
      %v8761 = vadd.f32 %v8760, %v8693
      %v8762 = vadd.f32 %v8761, %v8694
      %v8763 = vadd.f32 %v8762, %v8695
      %v8764 = vadd.f32 %v8763, %v8696
      %v8765 = vadd.f32 %v8764, %v8697
      %v8766 = vadd.f32 %v8765, %v8698
      %v8767 = vadd.f32 %v8766, %v8699
      %v8768 = vadd.f32 %v8767, %v8700
      %v8769 = vadd.f32 %v8768, %v8701
      %v8770 = vadd.f32 %v8769, %v8702
      %v8771 = vadd.f32 %v8770, %v8703
      %v8772 = vadd.f32 %v8771, %v8704
      %v8773 = vadd.f32 %v8772, %v8705
      %v8774 = vrot.slane %v8773, 4
      %v8775 = vadd.f32 %v8773, %v8774
      %v8776 = vrot.slane %v8775, 2
      %v8777 = vadd.f32 %v8775, %v8776
      %v8778 = vrot.slane %v8777, 1
      %v8779 = vadd.f32 %v8777, %v8778
      %v8780 = vadd.f32 %v8706, %v8707
      %v8781 = vadd.f32 %v8780, %v8708
      %v8782 = vadd.f32 %v8781, %v8709
      %v8783 = vadd.f32 %v8782, %v8710
      %v8784 = vadd.f32 %v8783, %v8711
      %v8785 = vadd.f32 %v8784, %v8712
      %v8786 = vadd.f32 %v8785, %v8713
      %v8787 = vadd.f32 %v8786, %v8714
      %v8788 = vadd.f32 %v8787, %v8715
      %v8789 = vadd.f32 %v8788, %v8716
      %v8790 = vadd.f32 %v8789, %v8717
      %v8791 = vadd.f32 %v8790, %v8718
      %v8792 = vadd.f32 %v8791, %v8719
      %v8793 = vadd.f32 %v8792, %v8720
      %v8794 = vadd.f32 %v8793, %v8721
      %v8795 = vrot.slane %v8794, 4
      %v8796 = vadd.f32 %v8794, %v8795
      %v8797 = vrot.slane %v8796, 2
      %v8798 = vadd.f32 %v8796, %v8797
      %v8799 = vrot.slane %v8798, 1
      %v8800 = vadd.f32 %v8798, %v8799
      %v8801 = vadd.f32 %v8722, %v8723
      %v8802 = vadd.f32 %v8801, %v8724
      %v8803 = vadd.f32 %v8802, %v8725
      %v8804 = vadd.f32 %v8803, %v8726
      %v8805 = vadd.f32 %v8804, %v8727
      %v8806 = vadd.f32 %v8805, %v8728
      %v8807 = vadd.f32 %v8806, %v8729
      %v8808 = vadd.f32 %v8807, %v8730
      %v8809 = vadd.f32 %v8808, %v8731
      %v8810 = vadd.f32 %v8809, %v8732
      %v8811 = vadd.f32 %v8810, %v8733
      %v8812 = vadd.f32 %v8811, %v8734
      %v8813 = vadd.f32 %v8812, %v8735
      %v8814 = vadd.f32 %v8813, %v8736
      %v8815 = vadd.f32 %v8814, %v8737
      %v8816 = vrot.slane %v8815, 4
      %v8817 = vadd.f32 %v8815, %v8816
      %v8818 = vrot.slane %v8817, 2
      %v8819 = vadd.f32 %v8817, %v8818
      %v8820 = vrot.slane %v8819, 1
      %v8821 = vadd.f32 %v8819, %v8820
      %v8822 = vmul.f32 %v8758, 1.442695
      %v8823 = vpow.pop %v8822
      %v8824 = vmul.f32 %v8779, 1.442695
      %v8825 = vpow.pop %v8824
      %v8826 = vmul.f32 %v8800, 1.442695
      %v8827 = vpow.pop %v8826
      %v8828 = vmul.f32 %v8821, 1.442695
      %v8829 = vpow.pop %v8828
      %v8830 = vsub.f32 1.0, %v7834
      %v8835 = vsel %vm1442, %v8825, %v8823
      %v8836 = vsel %vm1444, %v8827, %v8835
      %v8837 = vsel %vm1446, %v8829, %v8836
      %v8839 = vmul.f32 %v8830, %v8837
      %s8840 = scalar_lea.vmem %s307, 28
      %8841 = vst [vmem:[%s8840] sm:$0xf] %v8839
      %s8842 = scalar_lea.vmem %s313, 28
      %8843 = vst [vmem:[%s8842] sm:$0xf] %v7828
      %8844 = vst [vmem:[%s7] sm:$0xf] %v7832
      %s8845 = smul.u32 8, %s20
      %p8846 = scmp.lt.s32.totalorder %s8845, 15
      %s8847 = scalar_select %p8846, %s8845, 15
      %s8848 = smul.addr %s8847, 4
      %s8849 = scalar_lea.vmem %s5, %s8848
      %s8850 = smul.u32 8, %s20
      %p8851 = scmp.lt.s32.totalorder %s8850, 15
      %s8852 = scalar_select %p8851, %s8850, 15
      %s8853 = smul.addr %s8852, 4
      %s8854 = scalar_lea.vmem %s6, %s8853
      // Predicated region
      $region41: #{allocation_forward_sequence.1} parent=35 // pred_check
        %p8855 = pneg %p137
      $region42: #{allocation_forward_sequence.1} parent=35 // pred_check_branch
        %8857 = sbr.rel (%p8855) target = $region44
      $region43: #{allocation_forward_sequence.1} parent=35 // pred_region
        %s8858 = smul.u32 8, %s20
      $region44: #{allocation_forward_sequence.1} parent=35 // pred_fallthru
        _
      // Predicated region
      $region45: #{allocation_forward_sequence.1} parent=35 // pred_check
        %p8859 = pneg %p163
      $region46: #{allocation_forward_sequence.1} parent=35 // pred_check_branch
        %8861 = sbr.rel (%p8859) target = $region48
      $region47: #{allocation_forward_sequence.1} parent=35 // pred_region
        %s8862 = smul.u32 8, %s20
      $region48: #{allocation_forward_sequence.1} parent=35 // pred_fallthru
        _
      // Predicated region
      $region49: #{allocation_forward_sequence.1} parent=35 // pred_check
        %p8863 = pneg %p184
      $region50: #{allocation_forward_sequence.1} parent=35 // pred_check_branch
        %8865 = sbr.rel (%p8863) target = $region52
      $region51: #{allocation_forward_sequence.1} parent=35 // pred_region
        _
      $region52: #{allocation_forward_sequence.1} parent=35 // pred_fallthru
        _
      // Predicated region
      $region53: #{allocation_forward_sequence.1} parent=35 // pred_check
        %p8866 = pneg %p184
      $region54: #{allocation_forward_sequence.1} parent=35 // pred_check_branch
        %8868 = sbr.rel (%p8866) target = $region56
      $region55: #{allocation_forward_sequence.1} parent=35 // pred_region
        _
      $region56: #{allocation_forward_sequence.1} parent=35 // pred_fallthru
        _
    $region36: #{allocation_forward_sequence.1} parent=5 // pred_fallthru
      _
    %p8869 = scmp.le.s32.totalorder 2, %s15
    // Predicated region
    $region57: #{allocation_forward_sequence.1} parent=5 // pred_check
      %p8870 = pneg %p8869
    $region58: #{allocation_forward_sequence.1} parent=5 // pred_check_branch
      %8872 = sbr.rel (%p8870) target = $region60
    $region59: #{allocation_forward_sequence.1} parent=5 // pred_region
      %s8873 = ssub.s32 %s15, 2
      // Predicated region
      $region61: #{allocation_forward_sequence.1} parent=59 // pred_check
        %p8874 = pneg %p143
      $region62: #{allocation_forward_sequence.1} parent=59 // pred_check_branch
        %8876 = sbr.rel (%p8874) target = $region64
      $region63: #{allocation_forward_sequence.1} parent=59 // pred_region
        %s8877 = smul.u32 8, %s21
        %p8878 = scmp.lt.s32.totalorder %s8877, 15
        %s8879 = scalar_select %p8878, %s8877, 15
        %s8880 = smul.addr %s8879, 4
        %s8881 = scalar_lea.vmem %s5, %s8880
      $region64: #{allocation_forward_sequence.1} parent=59 // pred_fallthru
        _
      // Predicated region
      $region65: #{allocation_forward_sequence.1} parent=59 // pred_check
        %p8882 = pneg %p169
      $region66: #{allocation_forward_sequence.1} parent=59 // pred_check_branch
        %8884 = sbr.rel (%p8882) target = $region68
      $region67: #{allocation_forward_sequence.1} parent=59 // pred_region
        %s8885 = smul.u32 8, %s21
        %p8886 = scmp.lt.s32.totalorder %s8885, 15
        %s8887 = scalar_select %p8886, %s8885, 15
        %s8888 = smul.addr %s8887, 4
        %s8889 = scalar_lea.vmem %s6, %s8888
      $region68: #{allocation_forward_sequence.1} parent=59 // pred_fallthru
        _
    $region60: #{allocation_forward_sequence.1} parent=5 // pred_fallthru
      _
  $region6: #{allocation_forward_sequence.1} parent=0 // loop_footer
    %s19 = sadd.s32 1, %s15
  $region7: #{allocation_forward_sequence.1} parent=0 // loop_footer_branch
    %14 = sbr.rel target = $region3
  $region8: #{allocation_forward_sequence.1} parent=0 // loop_exit
    _

</llo_original>
